<compile_context>
chip_gen: v5e
topology: v5e:2x2
jax: 0.10.0
libtpu: 0.0.40
codegen_flags: <defaults>
</compile_context>

<pallas_src>
import functools

import jax
import jax.numpy as jnp
from jax.experimental import pallas as pl
from jax.experimental.pallas import tpu as pltpu


# Tap (ky=1, kx=1) first so its CIN lanes double as the residual input.
_TAP_ORDER = ((1, 1), (0, 0), (0, 1), (0, 2), (1, 0), (1, 2), (2, 0), (2, 1),
              (2, 2))


def _vdsr_fused_kernel(xcol_ref, w_in_ref, w_res_ref, w_out_ref, o_ref,
                       a_ref, b_ref, *, H, W, C, CIN, NRES):
    """One batch element: 6 fused 3x3 'same' convs + global residual add.

    xcol_ref:  (1, H*(W+2), 9*CIN)  input im2col (junk-column grid)
    w_in_ref:  (9*CIN, C)           input-conv weights, _TAP_ORDER rows
    w_res_ref: (NRES*3, 3*C, C)     residual-conv weights, ky-grouped, kx-packed
    w_out_ref: (3, 3*C, CIN)        output-conv weights, ky-grouped, kx-packed
    o_ref:     (1, H*(W+2), CIN)    output (junk columns sliced off by wrapper)
    a_ref/b_ref: ((H+2)*(W+2)+2, C) flat zero-padded ping-pong buffers
    """
    Wp = W + 2                 # row pitch of the flat padded buffers
    M = H * Wp                 # rows of one layer's output (incl. 2 junk cols)

    # Zero only the halo bands (top row + (1,0); bottom row + 2 guard rows),
    # once.  Halo *columns* receive zeros from the masked stores below, and
    # interiors are fully overwritten every layer, so this never re-runs.
    @pl.when(pl.program_id(0) == 0)
    def _init_halos():
        for buf in (a_ref, b_ref):
            buf[0:Wp + 1, :] = jnp.zeros((Wp + 1, C), buf.dtype)
            buf[(H + 1) * Wp:, :] = jnp.zeros((Wp + 2, C), buf.dtype)

    # Junk-column mask: flat rows with w' in {W, W+1} are forced to zero
    # before every store so they land as zeros in the halo columns of the
    # destination buffer ("same"-conv zero padding).
    w_idx = jax.lax.broadcasted_iota(jnp.int32, (M, 1), 0) % Wp
    col_ok = w_idx < W                                            # (M, 1)

    def store(dst_ref, acc):
        # Fused ReLU + junk-column mask + single store per layer.
        val = jnp.where(col_ok, jnp.maximum(acc, 0.0), 0.0)
        dst_ref[Wp + 1:Wp + 1 + M, :] = val.astype(dst_ref.dtype)

    def conv_packed(src_ref, w_tap_ref, base_tap):
        # One 3x3 conv: 3 dots of K=3*C; the 3 kx taps of each ky row are
        # contiguous row-slices lane-concatenated along the contraction axis.
        acc = None
        for ky in range(3):
            off = ky * Wp
            slab = jnp.concatenate(
                [src_ref[off:off + M, :],
                 src_ref[off + 1:off + 1 + M, :],
                 src_ref[off + 2:off + 2 + M, :]], axis=-1)        # (M, 3*C)
            d = jnp.dot(slab, w_tap_ref[base_tap + ky],
                        preferred_element_type=jnp.float32)
            acc = d if acc is None else acc + d
        return acc

    # ---- layer 1: input conv as a single K=9*CIN dot (im2col built host-side)
    acc = jnp.dot(xcol_ref[0], w_in_ref[...],
                  preferred_element_type=jnp.float32)              # (M, C)
    store(a_ref, acc)

    # ---- residual convs: C -> C, ReLU, VMEM ping-pong ------------------------
    src, dst = a_ref, b_ref
    for l in range(NRES):
        store(dst, conv_packed(src, w_res_ref, 3 * l))
        src, dst = dst, src

    # ---- output conv: C -> CIN (no ReLU) + fused global residual add --------
    acc = conv_packed(src, w_out_ref, 0)                           # (M, CIN)
    resid = xcol_ref[0, :, 0:CIN].astype(jnp.float32)              # tap (1,1) == x
    o_ref[0] = (acc + resid).astype(o_ref.dtype)


def _input_im2col(x_nhwc, dtype):
    """(N,H,W,CIN) -> (N, H*(W+2), 9*CIN) im2col over the junk-column grid.

    Channel order is _TAP_ORDER-major / input-channel-minor.  Pure layout prep
    (like the weight packing); keeps the kernel free of 3-lane concatenations.
    """
    N, H, W, CIN = x_nhwc.shape
    xp = jnp.pad(x_nhwc, ((0, 0), (1, 1), (1, 3), (0, 0)))
    slabs = [xp[:, ky:ky + H, kx:kx + W + 2, :] for ky, kx in _TAP_ORDER]
    xcol = jnp.concatenate(slabs, axis=-1)                 # (N, H, W+2, 9*CIN)
    return xcol.reshape(N, H * (W + 2), 9 * CIN).astype(dtype)


def vdsr_forward(params, x_nchw, *, compute_dtype=jnp.float32):
    """Matches VDSR.forward; input/output are NCHW like the PyTorch module."""
    x_nhwc = jnp.transpose(x_nchw, (0, 2, 3, 1)).astype(jnp.float32)
    N, H, W, CIN = x_nhwc.shape
    C = params["residuals"][0].shape[-1]
    NRES = len(params["residuals"])
    Wp, M = W + 2, H * (W + 2)
    mrows = (H + 2) * Wp + 2      # flat scratch rows (+2 guard rows read by junk cols)

    xcol = _input_im2col(x_nhwc, compute_dtype)                       # (N, M, 9*CIN)
    w_in = jnp.concatenate(
        [params["input_conv"][ky, kx] for ky, kx in _TAP_ORDER],
        axis=0).astype(compute_dtype)                                 # (9*CIN, C)
    w_res = jnp.concatenate(
        [w.reshape(3, 3 * C, C) for w in params["residuals"]],
        axis=0).astype(compute_dtype)                                 # (NRES*3, 3C, C)
    w_out = params["output_conv"].reshape(3, 3 * C, CIN).astype(compute_dtype)

    kernel = functools.partial(_vdsr_fused_kernel,
                               H=H, W=W, C=C, CIN=CIN, NRES=NRES)

    itemsize = jnp.dtype(compute_dtype).itemsize
    est = (2 * mrows * C * itemsize                  # ping-pong scratch
           + 2 * 2 * M * 128 * itemsize              # xcol/out blocks (lane-padded, 2x buf)
           + 2 * (w_in.size + w_res.size + w_out.size) * itemsize
           + M * 5 * C * 4)                          # live dot operands / f32 acc
    try:
        phys_vmem = pltpu.get_tpu_info().vmem_capacity_bytes
    except Exception:                                # conservative (v7x) fallback
        phys_vmem = 64 * 2 ** 20
    vmem_limit = int(min(3 * phys_vmem // 4, max(32 * 2 ** 20, 2 * est)))

    out_flat = pl.pallas_call(
        kernel,
        out_shape=jax.ShapeDtypeStruct((N, M, CIN), jnp.float32),
        grid_spec=pltpu.PrefetchScalarGridSpec(
            num_scalar_prefetch=0,
            grid=(N,),
            in_specs=[
                pl.BlockSpec((1, M, 9 * CIN), lambda n: (n, 0, 0)),
                pl.BlockSpec((9 * CIN, C), lambda n: (0, 0)),
                pl.BlockSpec((NRES * 3, 3 * C, C), lambda n: (0, 0, 0)),
                pl.BlockSpec((3, 3 * C, CIN), lambda n: (0, 0, 0)),
            ],
            out_specs=pl.BlockSpec((1, M, CIN), lambda n: (n, 0, 0)),
            scratch_shapes=[
                pltpu.VMEM((mrows, C), compute_dtype),    # ping buffer
                pltpu.VMEM((mrows, C), compute_dtype),    # pong buffer
            ],
        ),
        compiler_params=pltpu.CompilerParams(
            dimension_semantics=("parallel",),
            vmem_limit_bytes=vmem_limit,
        ),
    )(xcol, w_in, w_res, w_out)

    # Drop the 2 junk columns per row, back to NCHW.
    out = out_flat.reshape(N, H, Wp, CIN)[:, :, :W, :]
    return jnp.transpose(out, (0, 3, 1, 2))


def vdsr_reference(params, x_nchw):
    """Pure-XLA reference (HIGHEST precision) for correctness checking."""
    x = jnp.transpose(x_nchw, (0, 2, 3, 1))
    conv = functools.partial(
        jax.lax.conv_general_dilated, window_strides=(1, 1), padding="SAME",
        dimension_numbers=("NHWC", "HWIO", "NHWC"),
        precision=jax.lax.Precision.HIGHEST)
    h = jax.nn.relu(conv(x, params["input_conv"]))
    for w in params["residuals"]:
        h = jax.nn.relu(conv(h, w))
    y = conv(h, params["output_conv"]) + x
    return jnp.transpose(y, (0, 3, 1, 2))


def init_vdsr_params(key, num_channels=3, base_channels=64, num_residuals=4):
    """Deterministic synthetic weights, stored HWIO (3, 3, Cin, Cout).

    The reference module uses bias=False everywhere, so there are no biases.
    """
    keys = jax.random.split(key, num_residuals + 2)

    def w(k, cin, cout):
        scale = 1.0 / jnp.sqrt(jnp.float32(cin * 9))
        return scale * jax.random.normal(k, (3, 3, cin, cout), dtype=jnp.float32)

    return {
        "input_conv": w(keys[0], num_channels, base_channels),
        "residuals": [w(keys[1 + i], base_channels, base_channels)
                      for i in range(num_residuals)],
        "output_conv": w(keys[1 + num_residuals], base_channels, num_channels),
    }


if __name__ == "__main__":
    key = jax.random.PRNGKey(0)
    k_x, k_p = jax.random.split(key)

    # NCHW input, 3 channels (fixed by the module), small spatial size.
    x = jax.random.normal(k_x, (2, 3, 16, 16), dtype=jnp.float32)
    params = init_vdsr_params(k_p)

    y = jax.jit(vdsr_forward)(params, x)
    jax.block_until_ready(y)

    assert y.shape == x.shape, (y.shape, x.shape)
    assert y.dtype == jnp.float32
    assert bool(jnp.all(jnp.isfinite(y)))

    # Structural-correctness check vs. a pure-XLA reference (loose tolerance
    # covers default-precision MXU passes; real layout/halo bugs are O(1)).
    y_ref = jax.jit(vdsr_reference)(params, x)
    err = float(jnp.max(jnp.abs(y - y_ref)))
    assert err < 5e-2, f"max abs err vs reference: {err}"

    print("KERNEL_OK")
</pallas_src>

<mosaic_0001>
module attributes {stable_mosaic.version = 11 : i64} {
  func.func @_vdsr_fused_kernel(%arg0: i32, %arg1: memref<1x288x27xf32, #tpu.memory_space<vmem>>, %arg2: memref<27x64xf32, #tpu.memory_space<vmem>>, %arg3: memref<12x192x64xf32, #tpu.memory_space<vmem>>, %arg4: memref<3x192x3xf32, #tpu.memory_space<vmem>>, %arg5: memref<1x288x3xf32, #tpu.memory_space<vmem>>, %arg6: memref<326x64xf32, #tpu.memory_space<vmem>>, %arg7: memref<326x64xf32, #tpu.memory_space<vmem>>) attributes {dimension_semantics = [#tpu.dimension_semantics<parallel>], iteration_bounds = array<i64: 2>, scalar_prefetch = 0 : i64, scratch_operands = 2 : i64, tpu.core_type = #tpu.core_type<tc>, window_params = [{transform_indices = @transform_0, window_bounds = array<i64: 1, 288, 27>}, {pipeline_mode = #tpu.pipeline_mode<synchronous>, transform_indices = @transform_1, window_bounds = array<i64: 27, 64>}, {pipeline_mode = #tpu.pipeline_mode<synchronous>, transform_indices = @transform_2, window_bounds = array<i64: 12, 192, 64>}, {pipeline_mode = #tpu.pipeline_mode<synchronous>, transform_indices = @transform_3, window_bounds = array<i64: 3, 192, 3>}, {transform_indices = @transform_4, window_bounds = array<i64: 1, 288, 3>}]} {
    %c0_i32 = arith.constant 0 : i32
    %0 = arith.cmpi eq, %arg0, %c0_i32 : i32
    %1 = arith.extui %0 : i1 to i32
    %c0_i32_0 = arith.constant 0 : i32
    %2 = arith.cmpi ne, %1, %c0_i32_0 : i32
    scf.if %2 {
      %cst_168 = arith.constant 0.000000e+00 : f32
      %182 = vector.broadcast %cst_168 : f32 to vector<19x64xf32>
      %c0_169 = arith.constant 0 : index
      %c0_170 = arith.constant 0 : index
      %183 = vector.load %arg6[%c0_169, %c0_170] : memref<326x64xf32, #tpu.memory_space<vmem>>, vector<19x64xf32>
      tpu.vector_store %arg6[%c0_169, %c0_170], %182 {strides = array<i32>} : memref<326x64xf32, #tpu.memory_space<vmem>>, vector<19x64xf32>,
      %cst_171 = arith.constant 0.000000e+00 : f32
      %184 = vector.broadcast %cst_171 : f32 to vector<20x64xf32>
      %c306 = arith.constant 306 : index
      %c0_172 = arith.constant 0 : index
      %185 = vector.load %arg6[%c306, %c0_172] : memref<326x64xf32, #tpu.memory_space<vmem>>, vector<20x64xf32>
      tpu.vector_store %arg6[%c306, %c0_172], %184 {strides = array<i32>} : memref<326x64xf32, #tpu.memory_space<vmem>>, vector<20x64xf32>,
      %cst_173 = arith.constant 0.000000e+00 : f32
      %186 = vector.broadcast %cst_173 : f32 to vector<19x64xf32>
      %c0_174 = arith.constant 0 : index
      %c0_175 = arith.constant 0 : index
      %187 = vector.load %arg7[%c0_174, %c0_175] : memref<326x64xf32, #tpu.memory_space<vmem>>, vector<19x64xf32>
      tpu.vector_store %arg7[%c0_174, %c0_175], %186 {strides = array<i32>} : memref<326x64xf32, #tpu.memory_space<vmem>>, vector<19x64xf32>,
      %cst_176 = arith.constant 0.000000e+00 : f32
      %188 = vector.broadcast %cst_176 : f32 to vector<20x64xf32>
      %c306_177 = arith.constant 306 : index
      %c0_178 = arith.constant 0 : index
      %189 = vector.load %arg7[%c306_177, %c0_178] : memref<326x64xf32, #tpu.memory_space<vmem>>, vector<20x64xf32>
      tpu.vector_store %arg7[%c306_177, %c0_178], %188 {strides = array<i32>} : memref<326x64xf32, #tpu.memory_space<vmem>>, vector<20x64xf32>,
    } else {
    }
    %3 = tpu.iota {dimensions = array<i32: 0>} : vector<288x1xi32>
    %c18_i32 = arith.constant 18 : i32
    %c0_i32_1 = arith.constant 0 : i32
    %4 = arith.cmpi eq, %c18_i32, %c0_i32_1 : i32
    %c1_i32 = arith.constant 1 : i32
    %5 = arith.select %4, %c1_i32, %c18_i32 : i32
    %6 = vector.broadcast %5 : i32 to vector<288x1xi32>
    %7 = arith.remsi %3, %6 : vector<288x1xi32>
    %c0_i32_2 = arith.constant 0 : i32
    %8 = vector.broadcast %c0_i32_2 : i32 to vector<288x1xi32>
    %9 = arith.cmpi ne, %7, %8 : vector<288x1xi32>
    %c0_i32_3 = arith.constant 0 : i32
    %10 = vector.broadcast %c0_i32_3 : i32 to vector<288x1xi32>
    %11 = arith.cmpi slt, %7, %10 : vector<288x1xi32>
    %c0_i32_4 = arith.constant 0 : i32
    %12 = arith.cmpi slt, %5, %c0_i32_4 : i32
    %13 = vector.broadcast %12 : i1 to vector<288x1xi1>
    %14 = vector.broadcast %13 : vector<288x1xi1> to vector<288x1xi1>
    %15 = arith.xori %11, %14 : vector<288x1xi1>
    %16 = arith.andi %15, %9 : vector<288x1xi1>
    %17 = vector.broadcast %5 : i32 to vector<288x1xi32>
    %18 = arith.addi %7, %17 : vector<288x1xi32>
    %19 = arith.select %16, %18, %7 : vector<288x1xi1>, vector<288x1xi32>
    %c16_i32 = arith.constant 16 : i32
    %20 = vector.broadcast %c16_i32 : i32 to vector<288x1xi32>
    %21 = arith.cmpi slt, %19, %20 : vector<288x1xi32>
    %c0 = arith.constant 0 : index
    %c0_5 = arith.constant 0 : index
    %c0_6 = arith.constant 0 : index
    %22 = vector.load %arg1[%c0, %c0_5, %c0_6] : memref<1x288x27xf32, #tpu.memory_space<vmem>>, vector<1x288x27xf32>
    %23 = vector.shape_cast %22 : vector<1x288x27xf32> to vector<288x27xf32>
    %c0_7 = arith.constant 0 : index
    %c0_8 = arith.constant 0 : index
    %24 = vector.load %arg2[%c0_7, %c0_8] : memref<27x64xf32, #tpu.memory_space<vmem>>, vector<27x64xf32>
    %cst = arith.constant dense<0.000000e+00> : vector<288x64xf32>
    %25 = tpu.matmul %23, %24, %cst {dimension_numbers = #tpu.dot_dimension_numbers<[1], [0], [0], [1], [0, 0, 1, 1], [], []>} : vector<288x27xf32>, vector<27x64xf32>, vector<288x64xf32> -> vector<288x64xf32>
    %cst_9 = arith.constant 0.000000e+00 : f32
    %26 = vector.broadcast %cst_9 : f32 to vector<288x64xf32>
    %27 = arith.maximumf %25, %26 : vector<288x64xf32>
    %cst_10 = arith.constant 0.000000e+00 : f32
    %28 = vector.shape_cast %21 : vector<288x1xi1> to vector<288x1xi1>
    %29 = vector.broadcast %28 : vector<288x1xi1> to vector<288x64xi1>
    %30 = vector.broadcast %cst_10 : f32 to vector<288x64xf32>
    %31 = arith.select %29, %27, %30 : vector<288x64xi1>, vector<288x64xf32>
    %c19 = arith.constant 19 : index
    %c0_11 = arith.constant 0 : index
    %32 = vector.load %arg6[%c19, %c0_11] : memref<326x64xf32, #tpu.memory_space<vmem>>, vector<288x64xf32>
    tpu.vector_store %arg6[%c19, %c0_11], %31 {strides = array<i32>} : memref<326x64xf32, #tpu.memory_space<vmem>>, vector<288x64xf32>,
    %c0_12 = arith.constant 0 : index
    %c0_13 = arith.constant 0 : index
    %33 = vector.load %arg6[%c0_12, %c0_13] : memref<326x64xf32, #tpu.memory_space<vmem>>, vector<288x64xf32>
    %c1 = arith.constant 1 : index
    %c0_14 = arith.constant 0 : index
    %34 = vector.load %arg6[%c1, %c0_14] : memref<326x64xf32, #tpu.memory_space<vmem>>, vector<288x64xf32>
    %c2 = arith.constant 2 : index
    %c0_15 = arith.constant 0 : index
    %35 = vector.load %arg6[%c2, %c0_15] : memref<326x64xf32, #tpu.memory_space<vmem>>, vector<288x64xf32>
    %36 = tpu.concatenate %33, %34, %35 in 1 : vector<288x64xf32>, vector<288x64xf32>, vector<288x64xf32> -> vector<288x192xf32>
    %c0_16 = arith.constant 0 : index
    %c0_17 = arith.constant 0 : index
    %c0_18 = arith.constant 0 : index
    %37 = vector.load %arg3[%c0_16, %c0_17, %c0_18] : memref<12x192x64xf32, #tpu.memory_space<vmem>>, vector<1x192x64xf32>
    %38 = vector.shape_cast %37 : vector<1x192x64xf32> to vector<192x64xf32>
    %cst_19 = arith.constant dense<0.000000e+00> : vector<288x64xf32>
    %39 = tpu.matmul %36, %38, %cst_19 {dimension_numbers = #tpu.dot_dimension_numbers<[1], [0], [0], [1], [0, 0, 1, 1], [], []>} : vector<288x192xf32>, vector<192x64xf32>, vector<288x64xf32> -> vector<288x64xf32>
    %c18 = arith.constant 18 : index
    %c0_20 = arith.constant 0 : index
    %40 = vector.load %arg6[%c18, %c0_20] : memref<326x64xf32, #tpu.memory_space<vmem>>, vector<288x64xf32>
    %c19_21 = arith.constant 19 : index
    %c0_22 = arith.constant 0 : index
    %41 = vector.load %arg6[%c19_21, %c0_22] : memref<326x64xf32, #tpu.memory_space<vmem>>, vector<288x64xf32>
    %c20 = arith.constant 20 : index
    %c0_23 = arith.constant 0 : index
    %42 = vector.load %arg6[%c20, %c0_23] : memref<326x64xf32, #tpu.memory_space<vmem>>, vector<288x64xf32>
    %43 = tpu.concatenate %40, %41, %42 in 1 : vector<288x64xf32>, vector<288x64xf32>, vector<288x64xf32> -> vector<288x192xf32>
    %c1_24 = arith.constant 1 : index
    %c0_25 = arith.constant 0 : index
    %c0_26 = arith.constant 0 : index
    %44 = vector.load %arg3[%c1_24, %c0_25, %c0_26] : memref<12x192x64xf32, #tpu.memory_space<vmem>>, vector<1x192x64xf32>
    %45 = vector.shape_cast %44 : vector<1x192x64xf32> to vector<192x64xf32>
    %cst_27 = arith.constant dense<0.000000e+00> : vector<288x64xf32>
    %46 = tpu.matmul %43, %45, %cst_27 {dimension_numbers = #tpu.dot_dimension_numbers<[1], [0], [0], [1], [0, 0, 1, 1], [], []>} : vector<288x192xf32>, vector<192x64xf32>, vector<288x64xf32> -> vector<288x64xf32>
    %47 = arith.addf %39, %46 : vector<288x64xf32>
    %c36 = arith.constant 36 : index
    %c0_28 = arith.constant 0 : index
    %48 = vector.load %arg6[%c36, %c0_28] : memref<326x64xf32, #tpu.memory_space<vmem>>, vector<288x64xf32>
    %c37 = arith.constant 37 : index
    %c0_29 = arith.constant 0 : index
    %49 = vector.load %arg6[%c37, %c0_29] : memref<326x64xf32, #tpu.memory_space<vmem>>, vector<288x64xf32>
    %c38 = arith.constant 38 : index
    %c0_30 = arith.constant 0 : index
    %50 = vector.load %arg6[%c38, %c0_30] : memref<326x64xf32, #tpu.memory_space<vmem>>, vector<288x64xf32>
    %51 = tpu.concatenate %48, %49, %50 in 1 : vector<288x64xf32>, vector<288x64xf32>, vector<288x64xf32> -> vector<288x192xf32>
    %c2_31 = arith.constant 2 : index
    %c0_32 = arith.constant 0 : index
    %c0_33 = arith.constant 0 : index
    %52 = vector.load %arg3[%c2_31, %c0_32, %c0_33] : memref<12x192x64xf32, #tpu.memory_space<vmem>>, vector<1x192x64xf32>
    %53 = vector.shape_cast %52 : vector<1x192x64xf32> to vector<192x64xf32>
    %cst_34 = arith.constant dense<0.000000e+00> : vector<288x64xf32>
    %54 = tpu.matmul %51, %53, %cst_34 {dimension_numbers = #tpu.dot_dimension_numbers<[1], [0], [0], [1], [0, 0, 1, 1], [], []>} : vector<288x192xf32>, vector<192x64xf32>, vector<288x64xf32> -> vector<288x64xf32>
    %55 = arith.addf %47, %54 : vector<288x64xf32>
    %cst_35 = arith.constant 0.000000e+00 : f32
    %56 = vector.broadcast %cst_35 : f32 to vector<288x64xf32>
    %57 = arith.maximumf %55, %56 : vector<288x64xf32>
    %cst_36 = arith.constant 0.000000e+00 : f32
    %58 = vector.shape_cast %21 : vector<288x1xi1> to vector<288x1xi1>
    %59 = vector.broadcast %58 : vector<288x1xi1> to vector<288x64xi1>
    %60 = vector.broadcast %cst_36 : f32 to vector<288x64xf32>
    %61 = arith.select %59, %57, %60 : vector<288x64xi1>, vector<288x64xf32>
    %c19_37 = arith.constant 19 : index
    %c0_38 = arith.constant 0 : index
    %62 = vector.load %arg7[%c19_37, %c0_38] : memref<326x64xf32, #tpu.memory_space<vmem>>, vector<288x64xf32>
    tpu.vector_store %arg7[%c19_37, %c0_38], %61 {strides = array<i32>} : memref<326x64xf32, #tpu.memory_space<vmem>>, vector<288x64xf32>,
    %c0_39 = arith.constant 0 : index
    %c0_40 = arith.constant 0 : index
    %63 = vector.load %arg7[%c0_39, %c0_40] : memref<326x64xf32, #tpu.memory_space<vmem>>, vector<288x64xf32>
    %c1_41 = arith.constant 1 : index
    %c0_42 = arith.constant 0 : index
    %64 = vector.load %arg7[%c1_41, %c0_42] : memref<326x64xf32, #tpu.memory_space<vmem>>, vector<288x64xf32>
    %c2_43 = arith.constant 2 : index
    %c0_44 = arith.constant 0 : index
    %65 = vector.load %arg7[%c2_43, %c0_44] : memref<326x64xf32, #tpu.memory_space<vmem>>, vector<288x64xf32>
    %66 = tpu.concatenate %63, %64, %65 in 1 : vector<288x64xf32>, vector<288x64xf32>, vector<288x64xf32> -> vector<288x192xf32>
    %c3 = arith.constant 3 : index
    %c0_45 = arith.constant 0 : index
    %c0_46 = arith.constant 0 : index
    %67 = vector.load %arg3[%c3, %c0_45, %c0_46] : memref<12x192x64xf32, #tpu.memory_space<vmem>>, vector<1x192x64xf32>
    %68 = vector.shape_cast %67 : vector<1x192x64xf32> to vector<192x64xf32>
    %cst_47 = arith.constant dense<0.000000e+00> : vector<288x64xf32>
    %69 = tpu.matmul %66, %68, %cst_47 {dimension_numbers = #tpu.dot_dimension_numbers<[1], [0], [0], [1], [0, 0, 1, 1], [], []>} : vector<288x192xf32>, vector<192x64xf32>, vector<288x64xf32> -> vector<288x64xf32>
    %c18_48 = arith.constant 18 : index
    %c0_49 = arith.constant 0 : index
    %70 = vector.load %arg7[%c18_48, %c0_49] : memref<326x64xf32, #tpu.memory_space<vmem>>, vector<288x64xf32>
    %c19_50 = arith.constant 19 : index
    %c0_51 = arith.constant 0 : index
    %71 = vector.load %arg7[%c19_50, %c0_51] : memref<326x64xf32, #tpu.memory_space<vmem>>, vector<288x64xf32>
    %c20_52 = arith.constant 20 : index
    %c0_53 = arith.constant 0 : index
    %72 = vector.load %arg7[%c20_52, %c0_53] : memref<326x64xf32, #tpu.memory_space<vmem>>, vector<288x64xf32>
    %73 = tpu.concatenate %70, %71, %72 in 1 : vector<288x64xf32>, vector<288x64xf32>, vector<288x64xf32> -> vector<288x192xf32>
    %c4 = arith.constant 4 : index
    %c0_54 = arith.constant 0 : index
    %c0_55 = arith.constant 0 : index
    %74 = vector.load %arg3[%c4, %c0_54, %c0_55] : memref<12x192x64xf32, #tpu.memory_space<vmem>>, vector<1x192x64xf32>
    %75 = vector.shape_cast %74 : vector<1x192x64xf32> to vector<192x64xf32>
    %cst_56 = arith.constant dense<0.000000e+00> : vector<288x64xf32>
    %76 = tpu.matmul %73, %75, %cst_56 {dimension_numbers = #tpu.dot_dimension_numbers<[1], [0], [0], [1], [0, 0, 1, 1], [], []>} : vector<288x192xf32>, vector<192x64xf32>, vector<288x64xf32> -> vector<288x64xf32>
    %77 = arith.addf %69, %76 : vector<288x64xf32>
    %c36_57 = arith.constant 36 : index
    %c0_58 = arith.constant 0 : index
    %78 = vector.load %arg7[%c36_57, %c0_58] : memref<326x64xf32, #tpu.memory_space<vmem>>, vector<288x64xf32>
    %c37_59 = arith.constant 37 : index
    %c0_60 = arith.constant 0 : index
    %79 = vector.load %arg7[%c37_59, %c0_60] : memref<326x64xf32, #tpu.memory_space<vmem>>, vector<288x64xf32>
    %c38_61 = arith.constant 38 : index
    %c0_62 = arith.constant 0 : index
    %80 = vector.load %arg7[%c38_61, %c0_62] : memref<326x64xf32, #tpu.memory_space<vmem>>, vector<288x64xf32>
    %81 = tpu.concatenate %78, %79, %80 in 1 : vector<288x64xf32>, vector<288x64xf32>, vector<288x64xf32> -> vector<288x192xf32>
    %c5 = arith.constant 5 : index
    %c0_63 = arith.constant 0 : index
    %c0_64 = arith.constant 0 : index
    %82 = vector.load %arg3[%c5, %c0_63, %c0_64] : memref<12x192x64xf32, #tpu.memory_space<vmem>>, vector<1x192x64xf32>
    %83 = vector.shape_cast %82 : vector<1x192x64xf32> to vector<192x64xf32>
    %cst_65 = arith.constant dense<0.000000e+00> : vector<288x64xf32>
    %84 = tpu.matmul %81, %83, %cst_65 {dimension_numbers = #tpu.dot_dimension_numbers<[1], [0], [0], [1], [0, 0, 1, 1], [], []>} : vector<288x192xf32>, vector<192x64xf32>, vector<288x64xf32> -> vector<288x64xf32>
    %85 = arith.addf %77, %84 : vector<288x64xf32>
    %cst_66 = arith.constant 0.000000e+00 : f32
    %86 = vector.broadcast %cst_66 : f32 to vector<288x64xf32>
    %87 = arith.maximumf %85, %86 : vector<288x64xf32>
    %cst_67 = arith.constant 0.000000e+00 : f32
    %88 = vector.shape_cast %21 : vector<288x1xi1> to vector<288x1xi1>
    %89 = vector.broadcast %88 : vector<288x1xi1> to vector<288x64xi1>
    %90 = vector.broadcast %cst_67 : f32 to vector<288x64xf32>
    %91 = arith.select %89, %87, %90 : vector<288x64xi1>, vector<288x64xf32>
    %c19_68 = arith.constant 19 : index
    %c0_69 = arith.constant 0 : index
    %92 = vector.load %arg6[%c19_68, %c0_69] : memref<326x64xf32, #tpu.memory_space<vmem>>, vector<288x64xf32>
    tpu.vector_store %arg6[%c19_68, %c0_69], %91 {strides = array<i32>} : memref<326x64xf32, #tpu.memory_space<vmem>>, vector<288x64xf32>,
    %c0_70 = arith.constant 0 : index
    %c0_71 = arith.constant 0 : index
    %93 = vector.load %arg6[%c0_70, %c0_71] : memref<326x64xf32, #tpu.memory_space<vmem>>, vector<288x64xf32>
    %c1_72 = arith.constant 1 : index
    %c0_73 = arith.constant 0 : index
    %94 = vector.load %arg6[%c1_72, %c0_73] : memref<326x64xf32, #tpu.memory_space<vmem>>, vector<288x64xf32>
    %c2_74 = arith.constant 2 : index
    %c0_75 = arith.constant 0 : index
    %95 = vector.load %arg6[%c2_74, %c0_75] : memref<326x64xf32, #tpu.memory_space<vmem>>, vector<288x64xf32>
    %96 = tpu.concatenate %93, %94, %95 in 1 : vector<288x64xf32>, vector<288x64xf32>, vector<288x64xf32> -> vector<288x192xf32>
    %c6 = arith.constant 6 : index
    %c0_76 = arith.constant 0 : index
    %c0_77 = arith.constant 0 : index
    %97 = vector.load %arg3[%c6, %c0_76, %c0_77] : memref<12x192x64xf32, #tpu.memory_space<vmem>>, vector<1x192x64xf32>
    %98 = vector.shape_cast %97 : vector<1x192x64xf32> to vector<192x64xf32>
    %cst_78 = arith.constant dense<0.000000e+00> : vector<288x64xf32>
    %99 = tpu.matmul %96, %98, %cst_78 {dimension_numbers = #tpu.dot_dimension_numbers<[1], [0], [0], [1], [0, 0, 1, 1], [], []>} : vector<288x192xf32>, vector<192x64xf32>, vector<288x64xf32> -> vector<288x64xf32>
    %c18_79 = arith.constant 18 : index
    %c0_80 = arith.constant 0 : index
    %100 = vector.load %arg6[%c18_79, %c0_80] : memref<326x64xf32, #tpu.memory_space<vmem>>, vector<288x64xf32>
    %c19_81 = arith.constant 19 : index
    %c0_82 = arith.constant 0 : index
    %101 = vector.load %arg6[%c19_81, %c0_82] : memref<326x64xf32, #tpu.memory_space<vmem>>, vector<288x64xf32>
    %c20_83 = arith.constant 20 : index
    %c0_84 = arith.constant 0 : index
    %102 = vector.load %arg6[%c20_83, %c0_84] : memref<326x64xf32, #tpu.memory_space<vmem>>, vector<288x64xf32>
    %103 = tpu.concatenate %100, %101, %102 in 1 : vector<288x64xf32>, vector<288x64xf32>, vector<288x64xf32> -> vector<288x192xf32>
    %c7 = arith.constant 7 : index
    %c0_85 = arith.constant 0 : index
    %c0_86 = arith.constant 0 : index
    %104 = vector.load %arg3[%c7, %c0_85, %c0_86] : memref<12x192x64xf32, #tpu.memory_space<vmem>>, vector<1x192x64xf32>
    %105 = vector.shape_cast %104 : vector<1x192x64xf32> to vector<192x64xf32>
    %cst_87 = arith.constant dense<0.000000e+00> : vector<288x64xf32>
    %106 = tpu.matmul %103, %105, %cst_87 {dimension_numbers = #tpu.dot_dimension_numbers<[1], [0], [0], [1], [0, 0, 1, 1], [], []>} : vector<288x192xf32>, vector<192x64xf32>, vector<288x64xf32> -> vector<288x64xf32>
    %107 = arith.addf %99, %106 : vector<288x64xf32>
    %c36_88 = arith.constant 36 : index
    %c0_89 = arith.constant 0 : index
    %108 = vector.load %arg6[%c36_88, %c0_89] : memref<326x64xf32, #tpu.memory_space<vmem>>, vector<288x64xf32>
    %c37_90 = arith.constant 37 : index
    %c0_91 = arith.constant 0 : index
    %109 = vector.load %arg6[%c37_90, %c0_91] : memref<326x64xf32, #tpu.memory_space<vmem>>, vector<288x64xf32>
    %c38_92 = arith.constant 38 : index
    %c0_93 = arith.constant 0 : index
    %110 = vector.load %arg6[%c38_92, %c0_93] : memref<326x64xf32, #tpu.memory_space<vmem>>, vector<288x64xf32>
    %111 = tpu.concatenate %108, %109, %110 in 1 : vector<288x64xf32>, vector<288x64xf32>, vector<288x64xf32> -> vector<288x192xf32>
    %c8 = arith.constant 8 : index
    %c0_94 = arith.constant 0 : index
    %c0_95 = arith.constant 0 : index
    %112 = vector.load %arg3[%c8, %c0_94, %c0_95] : memref<12x192x64xf32, #tpu.memory_space<vmem>>, vector<1x192x64xf32>
    %113 = vector.shape_cast %112 : vector<1x192x64xf32> to vector<192x64xf32>
    %cst_96 = arith.constant dense<0.000000e+00> : vector<288x64xf32>
    %114 = tpu.matmul %111, %113, %cst_96 {dimension_numbers = #tpu.dot_dimension_numbers<[1], [0], [0], [1], [0, 0, 1, 1], [], []>} : vector<288x192xf32>, vector<192x64xf32>, vector<288x64xf32> -> vector<288x64xf32>
    %115 = arith.addf %107, %114 : vector<288x64xf32>
    %cst_97 = arith.constant 0.000000e+00 : f32
    %116 = vector.broadcast %cst_97 : f32 to vector<288x64xf32>
    %117 = arith.maximumf %115, %116 : vector<288x64xf32>
    %cst_98 = arith.constant 0.000000e+00 : f32
    %118 = vector.shape_cast %21 : vector<288x1xi1> to vector<288x1xi1>
    %119 = vector.broadcast %118 : vector<288x1xi1> to vector<288x64xi1>
    %120 = vector.broadcast %cst_98 : f32 to vector<288x64xf32>
    %121 = arith.select %119, %117, %120 : vector<288x64xi1>, vector<288x64xf32>
    %c19_99 = arith.constant 19 : index
    %c0_100 = arith.constant 0 : index
    %122 = vector.load %arg7[%c19_99, %c0_100] : memref<326x64xf32, #tpu.memory_space<vmem>>, vector<288x64xf32>
    tpu.vector_store %arg7[%c19_99, %c0_100], %121 {strides = array<i32>} : memref<326x64xf32, #tpu.memory_space<vmem>>, vector<288x64xf32>,
    %c0_101 = arith.constant 0 : index
    %c0_102 = arith.constant 0 : index
    %123 = vector.load %arg7[%c0_101, %c0_102] : memref<326x64xf32, #tpu.memory_space<vmem>>, vector<288x64xf32>
    %c1_103 = arith.constant 1 : index
    %c0_104 = arith.constant 0 : index
    %124 = vector.load %arg7[%c1_103, %c0_104] : memref<326x64xf32, #tpu.memory_space<vmem>>, vector<288x64xf32>
    %c2_105 = arith.constant 2 : index
    %c0_106 = arith.constant 0 : index
    %125 = vector.load %arg7[%c2_105, %c0_106] : memref<326x64xf32, #tpu.memory_space<vmem>>, vector<288x64xf32>
    %126 = tpu.concatenate %123, %124, %125 in 1 : vector<288x64xf32>, vector<288x64xf32>, vector<288x64xf32> -> vector<288x192xf32>
    %c9 = arith.constant 9 : index
    %c0_107 = arith.constant 0 : index
    %c0_108 = arith.constant 0 : index
    %127 = vector.load %arg3[%c9, %c0_107, %c0_108] : memref<12x192x64xf32, #tpu.memory_space<vmem>>, vector<1x192x64xf32>
    %128 = vector.shape_cast %127 : vector<1x192x64xf32> to vector<192x64xf32>
    %cst_109 = arith.constant dense<0.000000e+00> : vector<288x64xf32>
    %129 = tpu.matmul %126, %128, %cst_109 {dimension_numbers = #tpu.dot_dimension_numbers<[1], [0], [0], [1], [0, 0, 1, 1], [], []>} : vector<288x192xf32>, vector<192x64xf32>, vector<288x64xf32> -> vector<288x64xf32>
    %c18_110 = arith.constant 18 : index
    %c0_111 = arith.constant 0 : index
    %130 = vector.load %arg7[%c18_110, %c0_111] : memref<326x64xf32, #tpu.memory_space<vmem>>, vector<288x64xf32>
    %c19_112 = arith.constant 19 : index
    %c0_113 = arith.constant 0 : index
    %131 = vector.load %arg7[%c19_112, %c0_113] : memref<326x64xf32, #tpu.memory_space<vmem>>, vector<288x64xf32>
    %c20_114 = arith.constant 20 : index
    %c0_115 = arith.constant 0 : index
    %132 = vector.load %arg7[%c20_114, %c0_115] : memref<326x64xf32, #tpu.memory_space<vmem>>, vector<288x64xf32>
    %133 = tpu.concatenate %130, %131, %132 in 1 : vector<288x64xf32>, vector<288x64xf32>, vector<288x64xf32> -> vector<288x192xf32>
    %c10 = arith.constant 10 : index
    %c0_116 = arith.constant 0 : index
    %c0_117 = arith.constant 0 : index
    %134 = vector.load %arg3[%c10, %c0_116, %c0_117] : memref<12x192x64xf32, #tpu.memory_space<vmem>>, vector<1x192x64xf32>
    %135 = vector.shape_cast %134 : vector<1x192x64xf32> to vector<192x64xf32>
    %cst_118 = arith.constant dense<0.000000e+00> : vector<288x64xf32>
    %136 = tpu.matmul %133, %135, %cst_118 {dimension_numbers = #tpu.dot_dimension_numbers<[1], [0], [0], [1], [0, 0, 1, 1], [], []>} : vector<288x192xf32>, vector<192x64xf32>, vector<288x64xf32> -> vector<288x64xf32>
    %137 = arith.addf %129, %136 : vector<288x64xf32>
    %c36_119 = arith.constant 36 : index
    %c0_120 = arith.constant 0 : index
    %138 = vector.load %arg7[%c36_119, %c0_120] : memref<326x64xf32, #tpu.memory_space<vmem>>, vector<288x64xf32>
    %c37_121 = arith.constant 37 : index
    %c0_122 = arith.constant 0 : index
    %139 = vector.load %arg7[%c37_121, %c0_122] : memref<326x64xf32, #tpu.memory_space<vmem>>, vector<288x64xf32>
    %c38_123 = arith.constant 38 : index
    %c0_124 = arith.constant 0 : index
    %140 = vector.load %arg7[%c38_123, %c0_124] : memref<326x64xf32, #tpu.memory_space<vmem>>, vector<288x64xf32>
    %141 = tpu.concatenate %138, %139, %140 in 1 : vector<288x64xf32>, vector<288x64xf32>, vector<288x64xf32> -> vector<288x192xf32>
    %c11 = arith.constant 11 : index
    %c0_125 = arith.constant 0 : index
    %c0_126 = arith.constant 0 : index
    %142 = vector.load %arg3[%c11, %c0_125, %c0_126] : memref<12x192x64xf32, #tpu.memory_space<vmem>>, vector<1x192x64xf32>
    %143 = vector.shape_cast %142 : vector<1x192x64xf32> to vector<192x64xf32>
    %cst_127 = arith.constant dense<0.000000e+00> : vector<288x64xf32>
    %144 = tpu.matmul %141, %143, %cst_127 {dimension_numbers = #tpu.dot_dimension_numbers<[1], [0], [0], [1], [0, 0, 1, 1], [], []>} : vector<288x192xf32>, vector<192x64xf32>, vector<288x64xf32> -> vector<288x64xf32>
    %145 = arith.addf %137, %144 : vector<288x64xf32>
    %cst_128 = arith.constant 0.000000e+00 : f32
    %146 = vector.broadcast %cst_128 : f32 to vector<288x64xf32>
    %147 = arith.maximumf %145, %146 : vector<288x64xf32>
    %cst_129 = arith.constant 0.000000e+00 : f32
    %148 = vector.shape_cast %21 : vector<288x1xi1> to vector<288x1xi1>
    %149 = vector.broadcast %148 : vector<288x1xi1> to vector<288x64xi1>
    %150 = vector.broadcast %cst_129 : f32 to vector<288x64xf32>
    %151 = arith.select %149, %147, %150 : vector<288x64xi1>, vector<288x64xf32>
    %c19_130 = arith.constant 19 : index
    %c0_131 = arith.constant 0 : index
    %152 = vector.load %arg6[%c19_130, %c0_131] : memref<326x64xf32, #tpu.memory_space<vmem>>, vector<288x64xf32>
    tpu.vector_store %arg6[%c19_130, %c0_131], %151 {strides = array<i32>} : memref<326x64xf32, #tpu.memory_space<vmem>>, vector<288x64xf32>,
    %c0_132 = arith.constant 0 : index
    %c0_133 = arith.constant 0 : index
    %153 = vector.load %arg6[%c0_132, %c0_133] : memref<326x64xf32, #tpu.memory_space<vmem>>, vector<288x64xf32>
    %c1_134 = arith.constant 1 : index
    %c0_135 = arith.constant 0 : index
    %154 = vector.load %arg6[%c1_134, %c0_135] : memref<326x64xf32, #tpu.memory_space<vmem>>, vector<288x64xf32>
    %c2_136 = arith.constant 2 : index
    %c0_137 = arith.constant 0 : index
    %155 = vector.load %arg6[%c2_136, %c0_137] : memref<326x64xf32, #tpu.memory_space<vmem>>, vector<288x64xf32>
    %156 = tpu.concatenate %153, %154, %155 in 1 : vector<288x64xf32>, vector<288x64xf32>, vector<288x64xf32> -> vector<288x192xf32>
    %c0_138 = arith.constant 0 : index
    %c0_139 = arith.constant 0 : index
    %c0_140 = arith.constant 0 : index
    %157 = vector.load %arg4[%c0_138, %c0_139, %c0_140] : memref<3x192x3xf32, #tpu.memory_space<vmem>>, vector<1x192x3xf32>
    %158 = vector.shape_cast %157 : vector<1x192x3xf32> to vector<192x3xf32>
    %cst_141 = arith.constant dense<0.000000e+00> : vector<288x3xf32>
    %159 = tpu.matmul %156, %158, %cst_141 {dimension_numbers = #tpu.dot_dimension_numbers<[1], [0], [0], [1], [0, 0, 1, 1], [], []>} : vector<288x192xf32>, vector<192x3xf32>, vector<288x3xf32> -> vector<288x3xf32>
    %c18_142 = arith.constant 18 : index
    %c0_143 = arith.constant 0 : index
    %160 = vector.load %arg6[%c18_142, %c0_143] : memref<326x64xf32, #tpu.memory_space<vmem>>, vector<288x64xf32>
    %c19_144 = arith.constant 19 : index
    %c0_145 = arith.constant 0 : index
    %161 = vector.load %arg6[%c19_144, %c0_145] : memref<326x64xf32, #tpu.memory_space<vmem>>, vector<288x64xf32>
    %c20_146 = arith.constant 20 : index
    %c0_147 = arith.constant 0 : index
    %162 = vector.load %arg6[%c20_146, %c0_147] : memref<326x64xf32, #tpu.memory_space<vmem>>, vector<288x64xf32>
    %163 = tpu.concatenate %160, %161, %162 in 1 : vector<288x64xf32>, vector<288x64xf32>, vector<288x64xf32> -> vector<288x192xf32>
    %c1_148 = arith.constant 1 : index
    %c0_149 = arith.constant 0 : index
    %c0_150 = arith.constant 0 : index
    %164 = vector.load %arg4[%c1_148, %c0_149, %c0_150] : memref<3x192x3xf32, #tpu.memory_space<vmem>>, vector<1x192x3xf32>
    %165 = vector.shape_cast %164 : vector<1x192x3xf32> to vector<192x3xf32>
    %cst_151 = arith.constant dense<0.000000e+00> : vector<288x3xf32>
    %166 = tpu.matmul %163, %165, %cst_151 {dimension_numbers = #tpu.dot_dimension_numbers<[1], [0], [0], [1], [0, 0, 1, 1], [], []>} : vector<288x192xf32>, vector<192x3xf32>, vector<288x3xf32> -> vector<288x3xf32>
    %167 = arith.addf %159, %166 : vector<288x3xf32>
    %c36_152 = arith.constant 36 : index
    %c0_153 = arith.constant 0 : index
    %168 = vector.load %arg6[%c36_152, %c0_153] : memref<326x64xf32, #tpu.memory_space<vmem>>, vector<288x64xf32>
    %c37_154 = arith.constant 37 : index
    %c0_155 = arith.constant 0 : index
    %169 = vector.load %arg6[%c37_154, %c0_155] : memref<326x64xf32, #tpu.memory_space<vmem>>, vector<288x64xf32>
    %c38_156 = arith.constant 38 : index
    %c0_157 = arith.constant 0 : index
    %170 = vector.load %arg6[%c38_156, %c0_157] : memref<326x64xf32, #tpu.memory_space<vmem>>, vector<288x64xf32>
    %171 = tpu.concatenate %168, %169, %170 in 1 : vector<288x64xf32>, vector<288x64xf32>, vector<288x64xf32> -> vector<288x192xf32>
    %c2_158 = arith.constant 2 : index
    %c0_159 = arith.constant 0 : index
    %c0_160 = arith.constant 0 : index
    %172 = vector.load %arg4[%c2_158, %c0_159, %c0_160] : memref<3x192x3xf32, #tpu.memory_space<vmem>>, vector<1x192x3xf32>
    %173 = vector.shape_cast %172 : vector<1x192x3xf32> to vector<192x3xf32>
    %cst_161 = arith.constant dense<0.000000e+00> : vector<288x3xf32>
    %174 = tpu.matmul %171, %173, %cst_161 {dimension_numbers = #tpu.dot_dimension_numbers<[1], [0], [0], [1], [0, 0, 1, 1], [], []>} : vector<288x192xf32>, vector<192x3xf32>, vector<288x3xf32> -> vector<288x3xf32>
    %175 = arith.addf %167, %174 : vector<288x3xf32>
    %c0_162 = arith.constant 0 : index
    %c0_163 = arith.constant 0 : index
    %c0_164 = arith.constant 0 : index
    %176 = vector.load %arg1[%c0_162, %c0_163, %c0_164] : memref<1x288x27xf32, #tpu.memory_space<vmem>>, vector<1x288x3xf32>
    %177 = vector.shape_cast %176 : vector<1x288x3xf32> to vector<288x3xf32>
    %178 = arith.addf %175, %177 : vector<288x3xf32>
    %c0_165 = arith.constant 0 : index
    %c0_166 = arith.constant 0 : index
    %c0_167 = arith.constant 0 : index
    %179 = vector.load %arg5[%c0_165, %c0_166, %c0_167] : memref<1x288x3xf32, #tpu.memory_space<vmem>>, vector<1x288x3xf32>
    %180 = vector.shape_cast %179 : vector<1x288x3xf32> to vector<288x3xf32>
    %181 = vector.shape_cast %178 : vector<288x3xf32> to vector<1x288x3xf32>
    tpu.vector_store %arg5[%c0_165, %c0_166, %c0_167], %181 {strides = array<i32>} : memref<1x288x3xf32, #tpu.memory_space<vmem>>, vector<1x288x3xf32>,
    return
  }
  func.func @transform_0(%arg0: i32) -> (i32, i32, i32) {
    %c0_i32 = arith.constant 0 : i32
    %c0_i32_0 = arith.constant 0 : i32
    %c0_i32_1 = arith.constant 0 : i32
    return %arg0, %c0_i32, %c0_i32_0 : i32, i32, i32
  }
  func.func @transform_1(%arg0: i32) -> (i32, i32) {
    %c0_i32 = arith.constant 0 : i32
    %c0_i32_0 = arith.constant 0 : i32
    %c0_i32_1 = arith.constant 0 : i32
    return %c0_i32, %c0_i32_0 : i32, i32
  }
  func.func @transform_2(%arg0: i32) -> (i32, i32, i32) {
    %c0_i32 = arith.constant 0 : i32
    %c0_i32_0 = arith.constant 0 : i32
    %c0_i32_1 = arith.constant 0 : i32
    %c0_i32_2 = arith.constant 0 : i32
    return %c0_i32, %c0_i32_0, %c0_i32_1 : i32, i32, i32
  }
  func.func @transform_3(%arg0: i32) -> (i32, i32, i32) {
    %c0_i32 = arith.constant 0 : i32
    %c0_i32_0 = arith.constant 0 : i32
    %c0_i32_1 = arith.constant 0 : i32
    %c0_i32_2 = arith.constant 0 : i32
    return %c0_i32, %c0_i32_0, %c0_i32_1 : i32, i32, i32
  }
  func.func @transform_4(%arg0: i32) -> (i32, i32, i32) {
    %c0_i32 = arith.constant 0 : i32
    %c0_i32_0 = arith.constant 0 : i32
    %c0_i32_1 = arith.constant 0 : i32
    return %arg0, %c0_i32, %c0_i32_0 : i32, i32, i32
  }
}

</mosaic_0001>

<llo_original>
// kernel: vdsr_forward.1
$region0: #{vdsr_forward.1}
  #allocation0 [shape = 'u32[]', space=smem, size = 0x4, offset = 0x4, fixed_abs, tag = 'smem constant byte address 0x4 - core index']
  #allocation1 [shape = 'u32[72,128]{1,0:T(1,128)}', space=vmem, size = 0x9000, scoped, tag = 'internal scratch']
  #allocation2 [shape = 'f32[326,64]{1,0:T(8,128)}', space=vmem, size = 0x29000, scoped, tag = 'scratch operand']
  #allocation3 [shape = 'f32[326,64]{1,0:T(8,128)}', space=vmem, size = 0x29000, scoped, tag = 'scratch operand']
  %s0 = inlined_call_operand.vmem [shape: f32[2,288,27], index: 0, kind: input, shape index: {}]
  %s1 = inlined_call_operand.vmem [shape: f32[27,64], index: 1, kind: input, shape index: {}]
  %s2 = inlined_call_operand.vmem [shape: f32[12,192,64], index: 2, kind: input, shape index: {}]
  %s3 = inlined_call_operand.vmem [shape: f32[3,192,3], index: 3, kind: input, shape index: {}]
  %s4 = inlined_call_operand.vmem [shape: f32[2,288,3], index: 4, kind: output, shape index: {}]
  %s5 = sld [smem:[#allocation0]]
  $region53: #{vdsr_forward.1} parent=0
    _
  %s7 = ssub.s32 1, %s5
  %s8 = scalar_select 0, %s7, %s5
  loop: start=0, step=1, limit=4
  $region2: #{vdsr_forward.1} parent=0 // loop_pre_header
    _
  $region3: #{vdsr_forward.1} parent=0 // loop_header
    %s10 = sphi 0, %s14
    %p11 = scmp.ge.s32.totalorder %s10, 4
    %s20 = sphi 0, %s22
    %s23 = sphi 0, %s20
    %s24 = sphi 0, %s23
    %s40 = sphi 0, %s24
    %s44 = sphi 0, %s44
    %s46 = sphi 0, %s44
    %s47 = sphi 0, %s46
    %s61 = sphi 0, %s47
    %s65 = sphi 0, %s65
    %s67 = sphi 0, %s65
    %s68 = sphi 0, %s67
    %s82 = sphi 0, %s68
    %s86 = sphi 0, %s86
    %s88 = sphi 0, %s86
    %s89 = sphi 0, %s88
    %s103 = sphi 0, %s89
    %s109 = sphi 0, %s111
    %s112 = sphi 0, %s109
    %s113 = sphi 0, %s112
    %s129 = sphi 0, %s113
  $region4: #{vdsr_forward.1} parent=0 // loop_header_branch
    %13 = sbr.rel (%p11) target = $region8
  $region5: #{vdsr_forward.1} parent=0 // loop_body
    %s15 = ssub.s32 %s10, 1
    %s16 = ssub.s32 %s10, 2
    %s17 = sadd.s32 %s10, 1
    %s18 = ssub.s32 %s10, %s17
    %p19 = scmp.eq.s32.totalorder %s18, 0
    %s21 = sadd.s32 %s20, 1
    %s22 = scalar_select %p19, %s20, %s21
    %p25 = pneg %p19
    %p26 = scmp.eq.s32.totalorder %s10, 1
    %p27 = por %p25, %p26
    %p28 = scmp.ne.s32.totalorder %s20, %s23
    %p29 = scmp.eq.s32.totalorder %s10, 0
    %p30 = por %p28, %p29
    %p31 = scmp.ne.s32.totalorder %s20, %s23
    %p32 = scmp.eq.s32.totalorder %s15, 1
    %p33 = por %p31, %p32
    %p34 = scmp.ne.s32.totalorder %s23, %s24
    %p35 = scmp.eq.s32.totalorder %s15, 0
    %p36 = por %p34, %p35
    %p37 = scmp.ne.s32.totalorder %s23, %s24
    %p38 = scmp.eq.s32.totalorder %s16, 1
    %p39 = por %p37, %p38
    %p41 = scmp.ne.s32.totalorder %s24, %s40
    %p42 = scmp.eq.s32.totalorder %s16, 0
    %p43 = por %p41, %p42
    %s45 = sadd.s32 %s44, 1
    %p48 = scmp.eq.s32.totalorder %s10, 1
    %p49 = scmp.ne.s32.totalorder %s44, %s46
    %p50 = scmp.eq.s32.totalorder %s10, 0
    %p51 = por %p49, %p50
    %p52 = scmp.ne.s32.totalorder %s44, %s46
    %p53 = scmp.eq.s32.totalorder %s15, 1
    %p54 = por %p52, %p53
    %p55 = scmp.ne.s32.totalorder %s46, %s47
    %p56 = scmp.eq.s32.totalorder %s15, 0
    %p57 = por %p55, %p56
    %p58 = scmp.ne.s32.totalorder %s46, %s47
    %p59 = scmp.eq.s32.totalorder %s16, 1
    %p60 = por %p58, %p59
    %p62 = scmp.ne.s32.totalorder %s47, %s61
    %p63 = scmp.eq.s32.totalorder %s16, 0
    %p64 = por %p62, %p63
    %s66 = sadd.s32 %s65, 1
    %p69 = scmp.eq.s32.totalorder %s10, 1
    %p70 = scmp.ne.s32.totalorder %s65, %s67
    %p71 = scmp.eq.s32.totalorder %s10, 0
    %p72 = por %p70, %p71
    %p73 = scmp.ne.s32.totalorder %s65, %s67
    %p74 = scmp.eq.s32.totalorder %s15, 1
    %p75 = por %p73, %p74
    %p76 = scmp.ne.s32.totalorder %s67, %s68
    %p77 = scmp.eq.s32.totalorder %s15, 0
    %p78 = por %p76, %p77
    %p79 = scmp.ne.s32.totalorder %s67, %s68
    %p80 = scmp.eq.s32.totalorder %s16, 1
    %p81 = por %p79, %p80
    %p83 = scmp.ne.s32.totalorder %s68, %s82
    %p84 = scmp.eq.s32.totalorder %s16, 0
    %p85 = por %p83, %p84
    %s87 = sadd.s32 %s86, 1
    %p90 = scmp.eq.s32.totalorder %s10, 1
    %p91 = scmp.ne.s32.totalorder %s86, %s88
    %p92 = scmp.eq.s32.totalorder %s10, 0
    %p93 = por %p91, %p92
    %p94 = scmp.ne.s32.totalorder %s86, %s88
    %p95 = scmp.eq.s32.totalorder %s15, 1
    %p96 = por %p94, %p95
    %p97 = scmp.ne.s32.totalorder %s88, %s89
    %p98 = scmp.eq.s32.totalorder %s15, 0
    %p99 = por %p97, %p98
    %p100 = scmp.ne.s32.totalorder %s88, %s89
    %p101 = scmp.eq.s32.totalorder %s16, 1
    %p102 = por %p100, %p101
    %p104 = scmp.ne.s32.totalorder %s89, %s103
    %p105 = scmp.eq.s32.totalorder %s16, 0
    %p106 = por %p104, %p105
    %s107 = ssub.s32 %s10, %s17
    %p108 = scmp.eq.s32.totalorder %s107, 0
    %s110 = sadd.s32 %s109, 1
    %s111 = scalar_select %p108, %s109, %s110
    %p114 = pneg %p108
    %p115 = scmp.eq.s32.totalorder %s10, 1
    %p116 = por %p114, %p115
    %p117 = scmp.ne.s32.totalorder %s109, %s112
    %p118 = scmp.eq.s32.totalorder %s10, 0
    %p119 = por %p117, %p118
    %p120 = scmp.ne.s32.totalorder %s109, %s112
    %p121 = scmp.eq.s32.totalorder %s15, 1
    %p122 = por %p120, %p121
    %p123 = scmp.ne.s32.totalorder %s112, %s113
    %p124 = scmp.eq.s32.totalorder %s15, 0
    %p125 = por %p123, %p124
    %p126 = scmp.ne.s32.totalorder %s112, %s113
    %p127 = scmp.eq.s32.totalorder %s16, 1
    %p128 = por %p126, %p127
    %p130 = scmp.ne.s32.totalorder %s113, %s129
    %p131 = scmp.eq.s32.totalorder %s16, 0
    %p132 = por %p130, %p131
    %p133 = scmp.le.s32.totalorder 1, %s10
    %p134 = scmp.lt.s32.totalorder %s10, 3
    %p135 = pnand %p133, %p134
    %p136 = pneg %p135
    // Predicated region
    $region9: #{vdsr_forward.1} parent=5 // pred_check
      _
    $region10: #{vdsr_forward.1} parent=5 // pred_check_branch
      %138 = sbr.rel (%p135) target = $region12
    $region11: #{vdsr_forward.1} parent=5 // pred_region
      %s139 = ssub.s32 %s10, 1
      // Predicated region
      $region13: #{vdsr_forward.1} parent=11 // pred_check
        %p140 = pneg %p57
      $region14: #{vdsr_forward.1} parent=11 // pred_check_branch
        %142 = sbr.rel (%p140) target = $region16
      $region15: #{vdsr_forward.1} parent=11 // pred_region
        _
      $region16: #{vdsr_forward.1} parent=11 // pred_fallthru
        _
      // Predicated region
      $region17: #{vdsr_forward.1} parent=11 // pred_check
        %p143 = pneg %p78
      $region18: #{vdsr_forward.1} parent=11 // pred_check_branch
        %145 = sbr.rel (%p143) target = $region20
      $region19: #{vdsr_forward.1} parent=11 // pred_region
        _
      $region20: #{vdsr_forward.1} parent=11 // pred_fallthru
        _
      // Predicated region
      $region21: #{vdsr_forward.1} parent=11 // pred_check
        %p146 = pneg %p99
      $region22: #{vdsr_forward.1} parent=11 // pred_check_branch
        %148 = sbr.rel (%p146) target = $region24
      $region23: #{vdsr_forward.1} parent=11 // pred_region
        _
      $region24: #{vdsr_forward.1} parent=11 // pred_fallthru
        _
    $region12: #{vdsr_forward.1} parent=5 // pred_fallthru
      _
    %p149 = scmp.lt.s32.totalorder %s10, 2
    // Predicated region
    $region25: #{vdsr_forward.1} parent=5 // pred_check
      %p150 = pneg %p149
    $region26: #{vdsr_forward.1} parent=5 // pred_check_branch
      %152 = sbr.rel (%p150) target = $region28
    $region27: #{vdsr_forward.1} parent=5 // pred_region
      // Predicated region
      $region29: #{vdsr_forward.1} parent=27 // pred_check
        %p153 = pneg %p30
      $region30: #{vdsr_forward.1} parent=27 // pred_check_branch
        %155 = sbr.rel (%p153) target = $region32
      $region31: #{vdsr_forward.1} parent=27 // pred_region
        %p156 = scmp.lt.s32.totalorder %s10, 1
        %s157 = scalar_select %p156, %s10, 1
        %s158 = smul.addr %s157, 36
        %s159 = smul.addr %s158, 8
        %s160 = scalar_lea.vmem %s0, %s159
      $region32: #{vdsr_forward.1} parent=27 // pred_fallthru
        _
    $region28: #{vdsr_forward.1} parent=5 // pred_fallthru
      _
    %p161 = scmp.le.s32.totalorder 1, %s10
    %p162 = scmp.lt.s32.totalorder %s10, 3
    %p163 = pnand %p161, %p162
    %p164 = pneg %p163
    // Predicated region
    $region33: #{vdsr_forward.1} parent=5 // pred_check
      _
    $region34: #{vdsr_forward.1} parent=5 // pred_check_branch
      %166 = sbr.rel (%p163) target = $region36
    $region35: #{vdsr_forward.1} parent=5 // pred_region
      %s167 = ssub.s32 %s10, 1
      %p168 = scmp.lt.s32.totalorder %s15, 1
      %s169 = scalar_select %p168, %s15, 1
      %s170 = smul.addr %s169, 36
      %s171 = smul.addr %s170, 8
      %s172 = scalar_lea.vmem %s0, %s171
      %p173 = pneg %p36
      %p174 = pneg %p33
      %p175 = pneg %p57
      %p176 = pneg %p54
      %p177 = pneg %p78
      %p178 = pneg %p75
      %p179 = pneg %p99
      %p180 = pneg %p96
      %p181 = pneg %p125
      %p182 = pneg %p122
      %p183 = scmp.lt.s32.totalorder %s15, 1
      %s184 = scalar_select %p183, %s15, 1
      %s185 = smul.addr %s184, 36
      %s186 = smul.addr %s185, 8
      %s187 = scalar_lea.vmem %s4, %s186
      %p188 = scmp.lt.s32.totalorder %s15, 1
      %s189 = scalar_select %p188, %s15, 1
      %s190 = smul.addr %s189, 36
      %s191 = smul.addr %s190, 8
      %s192 = scalar_lea.vmem %s0, %s191
      %p193 = scmp.lt.s32.totalorder %s15, 1
      %s194 = scalar_select %p193, %s15, 1
      %s195 = smul.addr %s194, 36
      %s196 = smul.addr %s195, 8
      %s197 = scalar_lea.vmem %s4, %s196
      %p198 = scmp.eq.s32.totalorder %s15, 0
      // Predicated region
      $region37: #{vdsr_forward.1} parent=35 // pred_check
        %p199 = pneg %p198
      $region38: #{vdsr_forward.1} parent=35 // pred_check_branch
        %201 = sbr.rel (%p199) target = $region40
      $region39: #{vdsr_forward.1} parent=35 // pred_region
        %vm202 = vcmask 523264
        %203 = vst.msk [vmem:[#allocation2] sm:$0xff] %vm202, 0.0
        %204 = vst.msk [vmem:[#allocation2 + $0x8] sm:$0xff] %vm202, 0.0
        %vm205 = vcmask 518144
        %206 = vst.msk [vmem:[#allocation2 + $0x10] sm:$0x7] %vm205, 0.0
        %207 = vst.msk [vmem:[#allocation2 + $0x132] sm:$0xff] %vm202, 0.0
        %208 = vst.msk [vmem:[#allocation2 + $0x13a] sm:$0xff] %vm202, 0.0
        %vm209 = vcmask 519168
        %210 = vst.msk [vmem:[#allocation2 + $0x142] sm:$0xf] %vm209, 0.0
        %211 = vst.msk [vmem:[#allocation3] sm:$0xff] %vm202, 0.0
        %212 = vst.msk [vmem:[#allocation3 + $0x8] sm:$0xff] %vm202, 0.0
        %213 = vst.msk [vmem:[#allocation3 + $0x10] sm:$0x7] %vm205, 0.0
        %214 = vst.msk [vmem:[#allocation3 + $0x132] sm:$0xff] %vm202, 0.0
        %215 = vst.msk [vmem:[#allocation3 + $0x13a] sm:$0xff] %vm202, 0.0
        %216 = vst.msk [vmem:[#allocation3 + $0x142] sm:$0xf] %vm209, 0.0
      $region40: #{vdsr_forward.1} parent=35 // pred_fallthru
        _
      %v217 = vlaneseq
      %v218 = vshrl.u32 %v217, 7
      %v219 = vadd.s32 %v218, 8
      %v220 = vadd.s32 %v218, 16
      %v221 = vadd.s32 %v218, 24
      %v222 = vadd.s32 %v218, 32
      %v223 = vadd.s32 %v218, 40
      %v224 = vadd.s32 %v218, 48
      %v225 = vadd.s32 %v218, 56
      %v226 = vadd.s32 %v218, 64
      %v227 = vadd.s32 %v218, 72
      %v228 = vadd.s32 %v218, 80
      %v229 = vadd.s32 %v218, 88
      %v230 = vadd.s32 %v218, 96
      %v231 = vadd.s32 %v218, 104
      %v232 = vadd.s32 %v218, 112
      %v233 = vadd.s32 %v218, 120
      %v234 = vadd.s32 %v218, 128
      %v235 = vadd.s32 %v218, 136
      %v236 = vadd.s32 %v218, 144
      %v237 = vadd.s32 %v218, 152
      %v238 = vadd.s32 %v218, 160
      %v239 = vadd.s32 %v218, 168
      %v240 = vadd.s32 %v218, 176
      %v241 = vadd.s32 %v218, 184
      %v242 = vadd.s32 %v218, 192
      %v243 = vadd.s32 %v218, 200
      %v244 = vadd.s32 %v218, 208
      %v245 = vadd.s32 %v218, 216
      %v246 = vadd.s32 %v218, 224
      %v247 = vadd.s32 %v218, 232
      %v248 = vadd.s32 %v218, 240
      %v249 = vadd.s32 %v218, 248
      %v250 = vadd.s32 %v218, 256
      %v251 = vadd.s32 %v218, 264
      %v252 = vadd.s32 %v218, 272
      %v253 = vadd.s32 %v218, 280
      %vm254 = vcmp.lt.s32.totalorder %v218, 0
      %v255 = vsub.s32 0, %v218
      %v256 = vsel %vm254, %v255, %v218
      %v257 = vand.u32 %v256, 65535
      %v258 = vshrl.u32 %v256, 16
      %v260 = vmul.u32 %v257, 14564
      %v261 = vmul.u32 %v257, 58254
      %v262 = vmul.u32 %v258, 14564
      %v263 = vmul.u32 %v258, 58254
      %v264 = vshll.u32 %v261, 16
      %v265 = vshrl.u32 %v261, 16
      %v266 = vshll.u32 %v262, 16
      %v267 = vshrl.u32 %v262, 16
      %vm268 = vc.u32 %v260, %v264
      %v269 = vsel %vm268, 1, 0
      %v270 = vadd.s32 %v260, %v264
      %v271 = vadd.s32 %v263, %v269
      %vm272 = vc.u32 %v270, %v266
      %v273 = vsel %vm272, 1, 0
      %v274 = vadd.s32 %v270, %v266
      %v275 = vadd.s32 %v271, %v273
      %v276 = vadd.s32 %v275, %v265
      %v277 = vadd.s32 %v276, %v267
      %v278 = vshrl.u32 %v277, 4
      %v279 = vmul.u32 %v278, 18
      %v280 = vsub.s32 %v256, %v279
      %v281 = vsub.s32 0, %v280
      %v282 = vsel %vm254, %v281, %v280
      %vm283 = vcmp.lt.s32.totalorder %v219, 0
      %v284 = vsub.s32 0, %v219
      %v285 = vsel %vm283, %v284, %v219
      %v286 = vand.u32 %v285, 65535
      %v287 = vshrl.u32 %v285, 16
      %v289 = vmul.u32 %v286, 14564
      %v290 = vmul.u32 %v286, 58254
      %v291 = vmul.u32 %v287, 14564
      %v292 = vmul.u32 %v287, 58254
      %v293 = vshll.u32 %v290, 16
      %v294 = vshrl.u32 %v290, 16
      %v295 = vshll.u32 %v291, 16
      %v296 = vshrl.u32 %v291, 16
      %vm297 = vc.u32 %v289, %v293
      %v298 = vsel %vm297, 1, 0
      %v299 = vadd.s32 %v289, %v293
      %v300 = vadd.s32 %v292, %v298
      %vm301 = vc.u32 %v299, %v295
      %v302 = vsel %vm301, 1, 0
      %v303 = vadd.s32 %v299, %v295
      %v304 = vadd.s32 %v300, %v302
      %v305 = vadd.s32 %v304, %v294
      %v306 = vadd.s32 %v305, %v296
      %v307 = vshrl.u32 %v306, 4
      %v308 = vmul.u32 %v307, 18
      %v309 = vsub.s32 %v285, %v308
      %v310 = vsub.s32 0, %v309
      %v311 = vsel %vm283, %v310, %v309
      %vm312 = vcmp.lt.s32.totalorder %v220, 0
      %v313 = vsub.s32 0, %v220
      %v314 = vsel %vm312, %v313, %v220
      %v315 = vand.u32 %v314, 65535
      %v316 = vshrl.u32 %v314, 16
      %v318 = vmul.u32 %v315, 14564
      %v319 = vmul.u32 %v315, 58254
      %v320 = vmul.u32 %v316, 14564
      %v321 = vmul.u32 %v316, 58254
      %v322 = vshll.u32 %v319, 16
      %v323 = vshrl.u32 %v319, 16
      %v324 = vshll.u32 %v320, 16
      %v325 = vshrl.u32 %v320, 16
      %vm326 = vc.u32 %v318, %v322
      %v327 = vsel %vm326, 1, 0
      %v328 = vadd.s32 %v318, %v322
      %v329 = vadd.s32 %v321, %v327
      %vm330 = vc.u32 %v328, %v324
      %v331 = vsel %vm330, 1, 0
      %v332 = vadd.s32 %v328, %v324
      %v333 = vadd.s32 %v329, %v331
      %v334 = vadd.s32 %v333, %v323
      %v335 = vadd.s32 %v334, %v325
      %v336 = vshrl.u32 %v335, 4
      %v337 = vmul.u32 %v336, 18
      %v338 = vsub.s32 %v314, %v337
      %v339 = vsub.s32 0, %v338
      %v340 = vsel %vm312, %v339, %v338
      %vm341 = vcmp.lt.s32.totalorder %v221, 0
      %v342 = vsub.s32 0, %v221
      %v343 = vsel %vm341, %v342, %v221
      %v344 = vand.u32 %v343, 65535
      %v345 = vshrl.u32 %v343, 16
      %v347 = vmul.u32 %v344, 14564
      %v348 = vmul.u32 %v344, 58254
      %v349 = vmul.u32 %v345, 14564
      %v350 = vmul.u32 %v345, 58254
      %v351 = vshll.u32 %v348, 16
      %v352 = vshrl.u32 %v348, 16
      %v353 = vshll.u32 %v349, 16
      %v354 = vshrl.u32 %v349, 16
      %vm355 = vc.u32 %v347, %v351
      %v356 = vsel %vm355, 1, 0
      %v357 = vadd.s32 %v347, %v351
      %v358 = vadd.s32 %v350, %v356
      %vm359 = vc.u32 %v357, %v353
      %v360 = vsel %vm359, 1, 0
      %v361 = vadd.s32 %v357, %v353
      %v362 = vadd.s32 %v358, %v360
      %v363 = vadd.s32 %v362, %v352
      %v364 = vadd.s32 %v363, %v354
      %v365 = vshrl.u32 %v364, 4
      %v366 = vmul.u32 %v365, 18
      %v367 = vsub.s32 %v343, %v366
      %v368 = vsub.s32 0, %v367
      %v369 = vsel %vm341, %v368, %v367
      %vm370 = vcmp.lt.s32.totalorder %v222, 0
      %v371 = vsub.s32 0, %v222
      %v372 = vsel %vm370, %v371, %v222
      %v373 = vand.u32 %v372, 65535
      %v374 = vshrl.u32 %v372, 16
      %v376 = vmul.u32 %v373, 14564
      %v377 = vmul.u32 %v373, 58254
      %v378 = vmul.u32 %v374, 14564
      %v379 = vmul.u32 %v374, 58254
      %v380 = vshll.u32 %v377, 16
      %v381 = vshrl.u32 %v377, 16
      %v382 = vshll.u32 %v378, 16
      %v383 = vshrl.u32 %v378, 16
      %vm384 = vc.u32 %v376, %v380
      %v385 = vsel %vm384, 1, 0
      %v386 = vadd.s32 %v376, %v380
      %v387 = vadd.s32 %v379, %v385
      %vm388 = vc.u32 %v386, %v382
      %v389 = vsel %vm388, 1, 0
      %v390 = vadd.s32 %v386, %v382
      %v391 = vadd.s32 %v387, %v389
      %v392 = vadd.s32 %v391, %v381
      %v393 = vadd.s32 %v392, %v383
      %v394 = vshrl.u32 %v393, 4
      %v395 = vmul.u32 %v394, 18
      %v396 = vsub.s32 %v372, %v395
      %v397 = vsub.s32 0, %v396
      %v398 = vsel %vm370, %v397, %v396
      %vm399 = vcmp.lt.s32.totalorder %v223, 0
      %v400 = vsub.s32 0, %v223
      %v401 = vsel %vm399, %v400, %v223
      %v402 = vand.u32 %v401, 65535
      %v403 = vshrl.u32 %v401, 16
      %v405 = vmul.u32 %v402, 14564
      %v406 = vmul.u32 %v402, 58254
      %v407 = vmul.u32 %v403, 14564
      %v408 = vmul.u32 %v403, 58254
      %v409 = vshll.u32 %v406, 16
      %v410 = vshrl.u32 %v406, 16
      %v411 = vshll.u32 %v407, 16
      %v412 = vshrl.u32 %v407, 16
      %vm413 = vc.u32 %v405, %v409
      %v414 = vsel %vm413, 1, 0
      %v415 = vadd.s32 %v405, %v409
      %v416 = vadd.s32 %v408, %v414
      %vm417 = vc.u32 %v415, %v411
      %v418 = vsel %vm417, 1, 0
      %v419 = vadd.s32 %v415, %v411
      %v420 = vadd.s32 %v416, %v418
      %v421 = vadd.s32 %v420, %v410
      %v422 = vadd.s32 %v421, %v412
      %v423 = vshrl.u32 %v422, 4
      %v424 = vmul.u32 %v423, 18
      %v425 = vsub.s32 %v401, %v424
      %v426 = vsub.s32 0, %v425
      %v427 = vsel %vm399, %v426, %v425
      %vm428 = vcmp.lt.s32.totalorder %v224, 0
      %v429 = vsub.s32 0, %v224
      %v430 = vsel %vm428, %v429, %v224
      %v431 = vand.u32 %v430, 65535
      %v432 = vshrl.u32 %v430, 16
      %v434 = vmul.u32 %v431, 14564
      %v435 = vmul.u32 %v431, 58254
      %v436 = vmul.u32 %v432, 14564
      %v437 = vmul.u32 %v432, 58254
      %v438 = vshll.u32 %v435, 16
      %v439 = vshrl.u32 %v435, 16
      %v440 = vshll.u32 %v436, 16
      %v441 = vshrl.u32 %v436, 16
      %vm442 = vc.u32 %v434, %v438
      %v443 = vsel %vm442, 1, 0
      %v444 = vadd.s32 %v434, %v438
      %v445 = vadd.s32 %v437, %v443
      %vm446 = vc.u32 %v444, %v440
      %v447 = vsel %vm446, 1, 0
      %v448 = vadd.s32 %v444, %v440
      %v449 = vadd.s32 %v445, %v447
      %v450 = vadd.s32 %v449, %v439
      %v451 = vadd.s32 %v450, %v441
      %v452 = vshrl.u32 %v451, 4
      %v453 = vmul.u32 %v452, 18
      %v454 = vsub.s32 %v430, %v453
      %v455 = vsub.s32 0, %v454
      %v456 = vsel %vm428, %v455, %v454
      %vm457 = vcmp.lt.s32.totalorder %v225, 0
      %v458 = vsub.s32 0, %v225
      %v459 = vsel %vm457, %v458, %v225
      %v460 = vand.u32 %v459, 65535
      %v461 = vshrl.u32 %v459, 16
      %v463 = vmul.u32 %v460, 14564
      %v464 = vmul.u32 %v460, 58254
      %v465 = vmul.u32 %v461, 14564
      %v466 = vmul.u32 %v461, 58254
      %v467 = vshll.u32 %v464, 16
      %v468 = vshrl.u32 %v464, 16
      %v469 = vshll.u32 %v465, 16
      %v470 = vshrl.u32 %v465, 16
      %vm471 = vc.u32 %v463, %v467
      %v472 = vsel %vm471, 1, 0
      %v473 = vadd.s32 %v463, %v467
      %v474 = vadd.s32 %v466, %v472
      %vm475 = vc.u32 %v473, %v469
      %v476 = vsel %vm475, 1, 0
      %v477 = vadd.s32 %v473, %v469
      %v478 = vadd.s32 %v474, %v476
      %v479 = vadd.s32 %v478, %v468
      %v480 = vadd.s32 %v479, %v470
      %v481 = vshrl.u32 %v480, 4
      %v482 = vmul.u32 %v481, 18
      %v483 = vsub.s32 %v459, %v482
      %v484 = vsub.s32 0, %v483
      %v485 = vsel %vm457, %v484, %v483
      %vm486 = vcmp.lt.s32.totalorder %v226, 0
      %v487 = vsub.s32 0, %v226
      %v488 = vsel %vm486, %v487, %v226
      %v489 = vand.u32 %v488, 65535
      %v490 = vshrl.u32 %v488, 16
      %v492 = vmul.u32 %v489, 14564
      %v493 = vmul.u32 %v489, 58254
      %v494 = vmul.u32 %v490, 14564
      %v495 = vmul.u32 %v490, 58254
      %v496 = vshll.u32 %v493, 16
      %v497 = vshrl.u32 %v493, 16
      %v498 = vshll.u32 %v494, 16
      %v499 = vshrl.u32 %v494, 16
      %vm500 = vc.u32 %v492, %v496
      %v501 = vsel %vm500, 1, 0
      %v502 = vadd.s32 %v492, %v496
      %v503 = vadd.s32 %v495, %v501
      %vm504 = vc.u32 %v502, %v498
      %v505 = vsel %vm504, 1, 0
      %v506 = vadd.s32 %v502, %v498
      %v507 = vadd.s32 %v503, %v505
      %v508 = vadd.s32 %v507, %v497
      %v509 = vadd.s32 %v508, %v499
      %v510 = vshrl.u32 %v509, 4
      %v511 = vmul.u32 %v510, 18
      %v512 = vsub.s32 %v488, %v511
      %v513 = vsub.s32 0, %v512
      %v514 = vsel %vm486, %v513, %v512
      %vm515 = vcmp.lt.s32.totalorder %v227, 0
      %v516 = vsub.s32 0, %v227
      %v517 = vsel %vm515, %v516, %v227
      %v518 = vand.u32 %v517, 65535
      %v519 = vshrl.u32 %v517, 16
      %v521 = vmul.u32 %v518, 14564
      %v522 = vmul.u32 %v518, 58254
      %v523 = vmul.u32 %v519, 14564
      %v524 = vmul.u32 %v519, 58254
      %v525 = vshll.u32 %v522, 16
      %v526 = vshrl.u32 %v522, 16
      %v527 = vshll.u32 %v523, 16
      %v528 = vshrl.u32 %v523, 16
      %vm529 = vc.u32 %v521, %v525
      %v530 = vsel %vm529, 1, 0
      %v531 = vadd.s32 %v521, %v525
      %v532 = vadd.s32 %v524, %v530
      %vm533 = vc.u32 %v531, %v527
      %v534 = vsel %vm533, 1, 0
      %v535 = vadd.s32 %v531, %v527
      %v536 = vadd.s32 %v532, %v534
      %v537 = vadd.s32 %v536, %v526
      %v538 = vadd.s32 %v537, %v528
      %v539 = vshrl.u32 %v538, 4
      %v540 = vmul.u32 %v539, 18
      %v541 = vsub.s32 %v517, %v540
      %v542 = vsub.s32 0, %v541
      %v543 = vsel %vm515, %v542, %v541
      %vm544 = vcmp.lt.s32.totalorder %v228, 0
      %v545 = vsub.s32 0, %v228
      %v546 = vsel %vm544, %v545, %v228
      %v547 = vand.u32 %v546, 65535
      %v548 = vshrl.u32 %v546, 16
      %v550 = vmul.u32 %v547, 14564
      %v551 = vmul.u32 %v547, 58254
      %v552 = vmul.u32 %v548, 14564
      %v553 = vmul.u32 %v548, 58254
      %v554 = vshll.u32 %v551, 16
      %v555 = vshrl.u32 %v551, 16
      %v556 = vshll.u32 %v552, 16
      %v557 = vshrl.u32 %v552, 16
      %vm558 = vc.u32 %v550, %v554
      %v559 = vsel %vm558, 1, 0
      %v560 = vadd.s32 %v550, %v554
      %v561 = vadd.s32 %v553, %v559
      %vm562 = vc.u32 %v560, %v556
      %v563 = vsel %vm562, 1, 0
      %v564 = vadd.s32 %v560, %v556
      %v565 = vadd.s32 %v561, %v563
      %v566 = vadd.s32 %v565, %v555
      %v567 = vadd.s32 %v566, %v557
      %v568 = vshrl.u32 %v567, 4
      %v569 = vmul.u32 %v568, 18
      %v570 = vsub.s32 %v546, %v569
      %v571 = vsub.s32 0, %v570
      %v572 = vsel %vm544, %v571, %v570
      %vm573 = vcmp.lt.s32.totalorder %v229, 0
      %v574 = vsub.s32 0, %v229
      %v575 = vsel %vm573, %v574, %v229
      %v576 = vand.u32 %v575, 65535
      %v577 = vshrl.u32 %v575, 16
      %v579 = vmul.u32 %v576, 14564
      %v580 = vmul.u32 %v576, 58254
      %v581 = vmul.u32 %v577, 14564
      %v582 = vmul.u32 %v577, 58254
      %v583 = vshll.u32 %v580, 16
      %v584 = vshrl.u32 %v580, 16
      %v585 = vshll.u32 %v581, 16
      %v586 = vshrl.u32 %v581, 16
      %vm587 = vc.u32 %v579, %v583
      %v588 = vsel %vm587, 1, 0
      %v589 = vadd.s32 %v579, %v583
      %v590 = vadd.s32 %v582, %v588
      %vm591 = vc.u32 %v589, %v585
      %v592 = vsel %vm591, 1, 0
      %v593 = vadd.s32 %v589, %v585
      %v594 = vadd.s32 %v590, %v592
      %v595 = vadd.s32 %v594, %v584
      %v596 = vadd.s32 %v595, %v586
      %v597 = vshrl.u32 %v596, 4
      %v598 = vmul.u32 %v597, 18
      %v599 = vsub.s32 %v575, %v598
      %v600 = vsub.s32 0, %v599
      %v601 = vsel %vm573, %v600, %v599
      %vm602 = vcmp.lt.s32.totalorder %v230, 0
      %v603 = vsub.s32 0, %v230
      %v604 = vsel %vm602, %v603, %v230
      %v605 = vand.u32 %v604, 65535
      %v606 = vshrl.u32 %v604, 16
      %v608 = vmul.u32 %v605, 14564
      %v609 = vmul.u32 %v605, 58254
      %v610 = vmul.u32 %v606, 14564
      %v611 = vmul.u32 %v606, 58254
      %v612 = vshll.u32 %v609, 16
      %v613 = vshrl.u32 %v609, 16
      %v614 = vshll.u32 %v610, 16
      %v615 = vshrl.u32 %v610, 16
      %vm616 = vc.u32 %v608, %v612
      %v617 = vsel %vm616, 1, 0
      %v618 = vadd.s32 %v608, %v612
      %v619 = vadd.s32 %v611, %v617
      %vm620 = vc.u32 %v618, %v614
      %v621 = vsel %vm620, 1, 0
      %v622 = vadd.s32 %v618, %v614
      %v623 = vadd.s32 %v619, %v621
      %v624 = vadd.s32 %v623, %v613
      %v625 = vadd.s32 %v624, %v615
      %v626 = vshrl.u32 %v625, 4
      %v627 = vmul.u32 %v626, 18
      %v628 = vsub.s32 %v604, %v627
      %v629 = vsub.s32 0, %v628
      %v630 = vsel %vm602, %v629, %v628
      %vm631 = vcmp.lt.s32.totalorder %v231, 0
      %v632 = vsub.s32 0, %v231
      %v633 = vsel %vm631, %v632, %v231
      %v634 = vand.u32 %v633, 65535
      %v635 = vshrl.u32 %v633, 16
      %v637 = vmul.u32 %v634, 14564
      %v638 = vmul.u32 %v634, 58254
      %v639 = vmul.u32 %v635, 14564
      %v640 = vmul.u32 %v635, 58254
      %v641 = vshll.u32 %v638, 16
      %v642 = vshrl.u32 %v638, 16
      %v643 = vshll.u32 %v639, 16
      %v644 = vshrl.u32 %v639, 16
      %vm645 = vc.u32 %v637, %v641
      %v646 = vsel %vm645, 1, 0
      %v647 = vadd.s32 %v637, %v641
      %v648 = vadd.s32 %v640, %v646
      %vm649 = vc.u32 %v647, %v643
      %v650 = vsel %vm649, 1, 0
      %v651 = vadd.s32 %v647, %v643
      %v652 = vadd.s32 %v648, %v650
      %v653 = vadd.s32 %v652, %v642
      %v654 = vadd.s32 %v653, %v644
      %v655 = vshrl.u32 %v654, 4
      %v656 = vmul.u32 %v655, 18
      %v657 = vsub.s32 %v633, %v656
      %v658 = vsub.s32 0, %v657
      %v659 = vsel %vm631, %v658, %v657
      %vm660 = vcmp.lt.s32.totalorder %v232, 0
      %v661 = vsub.s32 0, %v232
      %v662 = vsel %vm660, %v661, %v232
      %v663 = vand.u32 %v662, 65535
      %v664 = vshrl.u32 %v662, 16
      %v666 = vmul.u32 %v663, 14564
      %v667 = vmul.u32 %v663, 58254
      %v668 = vmul.u32 %v664, 14564
      %v669 = vmul.u32 %v664, 58254
      %v670 = vshll.u32 %v667, 16
      %v671 = vshrl.u32 %v667, 16
      %v672 = vshll.u32 %v668, 16
      %v673 = vshrl.u32 %v668, 16
      %vm674 = vc.u32 %v666, %v670
      %v675 = vsel %vm674, 1, 0
      %v676 = vadd.s32 %v666, %v670
      %v677 = vadd.s32 %v669, %v675
      %vm678 = vc.u32 %v676, %v672
      %v679 = vsel %vm678, 1, 0
      %v680 = vadd.s32 %v676, %v672
      %v681 = vadd.s32 %v677, %v679
      %v682 = vadd.s32 %v681, %v671
      %v683 = vadd.s32 %v682, %v673
      %v684 = vshrl.u32 %v683, 4
      %v685 = vmul.u32 %v684, 18
      %v686 = vsub.s32 %v662, %v685
      %v687 = vsub.s32 0, %v686
      %v688 = vsel %vm660, %v687, %v686
      %vm689 = vcmp.lt.s32.totalorder %v233, 0
      %v690 = vsub.s32 0, %v233
      %v691 = vsel %vm689, %v690, %v233
      %v692 = vand.u32 %v691, 65535
      %v693 = vshrl.u32 %v691, 16
      %v695 = vmul.u32 %v692, 14564
      %v696 = vmul.u32 %v692, 58254
      %v697 = vmul.u32 %v693, 14564
      %v698 = vmul.u32 %v693, 58254
      %v699 = vshll.u32 %v696, 16
      %v700 = vshrl.u32 %v696, 16
      %v701 = vshll.u32 %v697, 16
      %v702 = vshrl.u32 %v697, 16
      %vm703 = vc.u32 %v695, %v699
      %v704 = vsel %vm703, 1, 0
      %v705 = vadd.s32 %v695, %v699
      %v706 = vadd.s32 %v698, %v704
      %vm707 = vc.u32 %v705, %v701
      %v708 = vsel %vm707, 1, 0
      %v709 = vadd.s32 %v705, %v701
      %v710 = vadd.s32 %v706, %v708
      %v711 = vadd.s32 %v710, %v700
      %v712 = vadd.s32 %v711, %v702
      %v713 = vshrl.u32 %v712, 4
      %v714 = vmul.u32 %v713, 18
      %v715 = vsub.s32 %v691, %v714
      %v716 = vsub.s32 0, %v715
      %v717 = vsel %vm689, %v716, %v715
      %vm718 = vcmp.lt.s32.totalorder %v234, 0
      %v719 = vsub.s32 0, %v234
      %v720 = vsel %vm718, %v719, %v234
      %v721 = vand.u32 %v720, 65535
      %v722 = vshrl.u32 %v720, 16
      %v724 = vmul.u32 %v721, 14564
      %v725 = vmul.u32 %v721, 58254
      %v726 = vmul.u32 %v722, 14564
      %v727 = vmul.u32 %v722, 58254
      %v728 = vshll.u32 %v725, 16
      %v729 = vshrl.u32 %v725, 16
      %v730 = vshll.u32 %v726, 16
      %v731 = vshrl.u32 %v726, 16
      %vm732 = vc.u32 %v724, %v728
      %v733 = vsel %vm732, 1, 0
      %v734 = vadd.s32 %v724, %v728
      %v735 = vadd.s32 %v727, %v733
      %vm736 = vc.u32 %v734, %v730
      %v737 = vsel %vm736, 1, 0
      %v738 = vadd.s32 %v734, %v730
      %v739 = vadd.s32 %v735, %v737
      %v740 = vadd.s32 %v739, %v729
      %v741 = vadd.s32 %v740, %v731
      %v742 = vshrl.u32 %v741, 4
      %v743 = vmul.u32 %v742, 18
      %v744 = vsub.s32 %v720, %v743
      %v745 = vsub.s32 0, %v744
      %v746 = vsel %vm718, %v745, %v744
      %vm747 = vcmp.lt.s32.totalorder %v235, 0
      %v748 = vsub.s32 0, %v235
      %v749 = vsel %vm747, %v748, %v235
      %v750 = vand.u32 %v749, 65535
      %v751 = vshrl.u32 %v749, 16
      %v753 = vmul.u32 %v750, 14564
      %v754 = vmul.u32 %v750, 58254
      %v755 = vmul.u32 %v751, 14564
      %v756 = vmul.u32 %v751, 58254
      %v757 = vshll.u32 %v754, 16
      %v758 = vshrl.u32 %v754, 16
      %v759 = vshll.u32 %v755, 16
      %v760 = vshrl.u32 %v755, 16
      %vm761 = vc.u32 %v753, %v757
      %v762 = vsel %vm761, 1, 0
      %v763 = vadd.s32 %v753, %v757
      %v764 = vadd.s32 %v756, %v762
      %vm765 = vc.u32 %v763, %v759
      %v766 = vsel %vm765, 1, 0
      %v767 = vadd.s32 %v763, %v759
      %v768 = vadd.s32 %v764, %v766
      %v769 = vadd.s32 %v768, %v758
      %v770 = vadd.s32 %v769, %v760
      %v771 = vshrl.u32 %v770, 4
      %v772 = vmul.u32 %v771, 18
      %v773 = vsub.s32 %v749, %v772
      %v774 = vsub.s32 0, %v773
      %v775 = vsel %vm747, %v774, %v773
      %vm776 = vcmp.lt.s32.totalorder %v236, 0
      %v777 = vsub.s32 0, %v236
      %v778 = vsel %vm776, %v777, %v236
      %v779 = vand.u32 %v778, 65535
      %v780 = vshrl.u32 %v778, 16
      %v782 = vmul.u32 %v779, 14564
      %v783 = vmul.u32 %v779, 58254
      %v784 = vmul.u32 %v780, 14564
      %v785 = vmul.u32 %v780, 58254
      %v786 = vshll.u32 %v783, 16
      %v787 = vshrl.u32 %v783, 16
      %v788 = vshll.u32 %v784, 16
      %v789 = vshrl.u32 %v784, 16
      %vm790 = vc.u32 %v782, %v786
      %v791 = vsel %vm790, 1, 0
      %v792 = vadd.s32 %v782, %v786
      %v793 = vadd.s32 %v785, %v791
      %vm794 = vc.u32 %v792, %v788
      %v795 = vsel %vm794, 1, 0
      %v796 = vadd.s32 %v792, %v788
      %v797 = vadd.s32 %v793, %v795
      %v798 = vadd.s32 %v797, %v787
      %v799 = vadd.s32 %v798, %v789
      %v800 = vshrl.u32 %v799, 4
      %v801 = vmul.u32 %v800, 18
      %v802 = vsub.s32 %v778, %v801
      %v803 = vsub.s32 0, %v802
      %v804 = vsel %vm776, %v803, %v802
      %vm805 = vcmp.lt.s32.totalorder %v237, 0
      %v806 = vsub.s32 0, %v237
      %v807 = vsel %vm805, %v806, %v237
      %v808 = vand.u32 %v807, 65535
      %v809 = vshrl.u32 %v807, 16
      %v811 = vmul.u32 %v808, 14564
      %v812 = vmul.u32 %v808, 58254
      %v813 = vmul.u32 %v809, 14564
      %v814 = vmul.u32 %v809, 58254
      %v815 = vshll.u32 %v812, 16
      %v816 = vshrl.u32 %v812, 16
      %v817 = vshll.u32 %v813, 16
      %v818 = vshrl.u32 %v813, 16
      %vm819 = vc.u32 %v811, %v815
      %v820 = vsel %vm819, 1, 0
      %v821 = vadd.s32 %v811, %v815
      %v822 = vadd.s32 %v814, %v820
      %vm823 = vc.u32 %v821, %v817
      %v824 = vsel %vm823, 1, 0
      %v825 = vadd.s32 %v821, %v817
      %v826 = vadd.s32 %v822, %v824
      %v827 = vadd.s32 %v826, %v816
      %v828 = vadd.s32 %v827, %v818
      %v829 = vshrl.u32 %v828, 4
      %v830 = vmul.u32 %v829, 18
      %v831 = vsub.s32 %v807, %v830
      %v832 = vsub.s32 0, %v831
      %v833 = vsel %vm805, %v832, %v831
      %vm834 = vcmp.lt.s32.totalorder %v238, 0
      %v835 = vsub.s32 0, %v238
      %v836 = vsel %vm834, %v835, %v238
      %v837 = vand.u32 %v836, 65535
      %v838 = vshrl.u32 %v836, 16
      %v840 = vmul.u32 %v837, 14564
      %v841 = vmul.u32 %v837, 58254
      %v842 = vmul.u32 %v838, 14564
      %v843 = vmul.u32 %v838, 58254
      %v844 = vshll.u32 %v841, 16
      %v845 = vshrl.u32 %v841, 16
      %v846 = vshll.u32 %v842, 16
      %v847 = vshrl.u32 %v842, 16
      %vm848 = vc.u32 %v840, %v844
      %v849 = vsel %vm848, 1, 0
      %v850 = vadd.s32 %v840, %v844
      %v851 = vadd.s32 %v843, %v849
      %vm852 = vc.u32 %v850, %v846
      %v853 = vsel %vm852, 1, 0
      %v854 = vadd.s32 %v850, %v846
      %v855 = vadd.s32 %v851, %v853
      %v856 = vadd.s32 %v855, %v845
      %v857 = vadd.s32 %v856, %v847
      %v858 = vshrl.u32 %v857, 4
      %v859 = vmul.u32 %v858, 18
      %v860 = vsub.s32 %v836, %v859
      %v861 = vsub.s32 0, %v860
      %v862 = vsel %vm834, %v861, %v860
      %vm863 = vcmp.lt.s32.totalorder %v239, 0
      %v864 = vsub.s32 0, %v239
      %v865 = vsel %vm863, %v864, %v239
      %v866 = vand.u32 %v865, 65535
      %v867 = vshrl.u32 %v865, 16
      %v869 = vmul.u32 %v866, 14564
      %v870 = vmul.u32 %v866, 58254
      %v871 = vmul.u32 %v867, 14564
      %v872 = vmul.u32 %v867, 58254
      %v873 = vshll.u32 %v870, 16
      %v874 = vshrl.u32 %v870, 16
      %v875 = vshll.u32 %v871, 16
      %v876 = vshrl.u32 %v871, 16
      %vm877 = vc.u32 %v869, %v873
      %v878 = vsel %vm877, 1, 0
      %v879 = vadd.s32 %v869, %v873
      %v880 = vadd.s32 %v872, %v878
      %vm881 = vc.u32 %v879, %v875
      %v882 = vsel %vm881, 1, 0
      %v883 = vadd.s32 %v879, %v875
      %v884 = vadd.s32 %v880, %v882
      %v885 = vadd.s32 %v884, %v874
      %v886 = vadd.s32 %v885, %v876
      %v887 = vshrl.u32 %v886, 4
      %v888 = vmul.u32 %v887, 18
      %v889 = vsub.s32 %v865, %v888
      %v890 = vsub.s32 0, %v889
      %v891 = vsel %vm863, %v890, %v889
      %vm892 = vcmp.lt.s32.totalorder %v240, 0
      %v893 = vsub.s32 0, %v240
      %v894 = vsel %vm892, %v893, %v240
      %v895 = vand.u32 %v894, 65535
      %v896 = vshrl.u32 %v894, 16
      %v898 = vmul.u32 %v895, 14564
      %v899 = vmul.u32 %v895, 58254
      %v900 = vmul.u32 %v896, 14564
      %v901 = vmul.u32 %v896, 58254
      %v902 = vshll.u32 %v899, 16
      %v903 = vshrl.u32 %v899, 16
      %v904 = vshll.u32 %v900, 16
      %v905 = vshrl.u32 %v900, 16
      %vm906 = vc.u32 %v898, %v902
      %v907 = vsel %vm906, 1, 0
      %v908 = vadd.s32 %v898, %v902
      %v909 = vadd.s32 %v901, %v907
      %vm910 = vc.u32 %v908, %v904
      %v911 = vsel %vm910, 1, 0
      %v912 = vadd.s32 %v908, %v904
      %v913 = vadd.s32 %v909, %v911
      %v914 = vadd.s32 %v913, %v903
      %v915 = vadd.s32 %v914, %v905
      %v916 = vshrl.u32 %v915, 4
      %v917 = vmul.u32 %v916, 18
      %v918 = vsub.s32 %v894, %v917
      %v919 = vsub.s32 0, %v918
      %v920 = vsel %vm892, %v919, %v918
      %vm921 = vcmp.lt.s32.totalorder %v241, 0
      %v922 = vsub.s32 0, %v241
      %v923 = vsel %vm921, %v922, %v241
      %v924 = vand.u32 %v923, 65535
      %v925 = vshrl.u32 %v923, 16
      %v927 = vmul.u32 %v924, 14564
      %v928 = vmul.u32 %v924, 58254
      %v929 = vmul.u32 %v925, 14564
      %v930 = vmul.u32 %v925, 58254
      %v931 = vshll.u32 %v928, 16
      %v932 = vshrl.u32 %v928, 16
      %v933 = vshll.u32 %v929, 16
      %v934 = vshrl.u32 %v929, 16
      %vm935 = vc.u32 %v927, %v931
      %v936 = vsel %vm935, 1, 0
      %v937 = vadd.s32 %v927, %v931
      %v938 = vadd.s32 %v930, %v936
      %vm939 = vc.u32 %v937, %v933
      %v940 = vsel %vm939, 1, 0
      %v941 = vadd.s32 %v937, %v933
      %v942 = vadd.s32 %v938, %v940
      %v943 = vadd.s32 %v942, %v932
      %v944 = vadd.s32 %v943, %v934
      %v945 = vshrl.u32 %v944, 4
      %v946 = vmul.u32 %v945, 18
      %v947 = vsub.s32 %v923, %v946
      %v948 = vsub.s32 0, %v947
      %v949 = vsel %vm921, %v948, %v947
      %vm950 = vcmp.lt.s32.totalorder %v242, 0
      %v951 = vsub.s32 0, %v242
      %v952 = vsel %vm950, %v951, %v242
      %v953 = vand.u32 %v952, 65535
      %v954 = vshrl.u32 %v952, 16
      %v956 = vmul.u32 %v953, 14564
      %v957 = vmul.u32 %v953, 58254
      %v958 = vmul.u32 %v954, 14564
      %v959 = vmul.u32 %v954, 58254
      %v960 = vshll.u32 %v957, 16
      %v961 = vshrl.u32 %v957, 16
      %v962 = vshll.u32 %v958, 16
      %v963 = vshrl.u32 %v958, 16
      %vm964 = vc.u32 %v956, %v960
      %v965 = vsel %vm964, 1, 0
      %v966 = vadd.s32 %v956, %v960
      %v967 = vadd.s32 %v959, %v965
      %vm968 = vc.u32 %v966, %v962
      %v969 = vsel %vm968, 1, 0
      %v970 = vadd.s32 %v966, %v962
      %v971 = vadd.s32 %v967, %v969
      %v972 = vadd.s32 %v971, %v961
      %v973 = vadd.s32 %v972, %v963
      %v974 = vshrl.u32 %v973, 4
      %v975 = vmul.u32 %v974, 18
      %v976 = vsub.s32 %v952, %v975
      %v977 = vsub.s32 0, %v976
      %v978 = vsel %vm950, %v977, %v976
      %vm979 = vcmp.lt.s32.totalorder %v243, 0
      %v980 = vsub.s32 0, %v243
      %v981 = vsel %vm979, %v980, %v243
      %v982 = vand.u32 %v981, 65535
      %v983 = vshrl.u32 %v981, 16
      %v985 = vmul.u32 %v982, 14564
      %v986 = vmul.u32 %v982, 58254
      %v987 = vmul.u32 %v983, 14564
      %v988 = vmul.u32 %v983, 58254
      %v989 = vshll.u32 %v986, 16
      %v990 = vshrl.u32 %v986, 16
      %v991 = vshll.u32 %v987, 16
      %v992 = vshrl.u32 %v987, 16
      %vm993 = vc.u32 %v985, %v989
      %v994 = vsel %vm993, 1, 0
      %v995 = vadd.s32 %v985, %v989
      %v996 = vadd.s32 %v988, %v994
      %vm997 = vc.u32 %v995, %v991
      %v998 = vsel %vm997, 1, 0
      %v999 = vadd.s32 %v995, %v991
      %v1000 = vadd.s32 %v996, %v998
      %v1001 = vadd.s32 %v1000, %v990
      %v1002 = vadd.s32 %v1001, %v992
      %v1003 = vshrl.u32 %v1002, 4
      %v1004 = vmul.u32 %v1003, 18
      %v1005 = vsub.s32 %v981, %v1004
      %v1006 = vsub.s32 0, %v1005
      %v1007 = vsel %vm979, %v1006, %v1005
      %vm1008 = vcmp.lt.s32.totalorder %v244, 0
      %v1009 = vsub.s32 0, %v244
      %v1010 = vsel %vm1008, %v1009, %v244
      %v1011 = vand.u32 %v1010, 65535
      %v1012 = vshrl.u32 %v1010, 16
      %v1014 = vmul.u32 %v1011, 14564
      %v1015 = vmul.u32 %v1011, 58254
      %v1016 = vmul.u32 %v1012, 14564
      %v1017 = vmul.u32 %v1012, 58254
      %v1018 = vshll.u32 %v1015, 16
      %v1019 = vshrl.u32 %v1015, 16
      %v1020 = vshll.u32 %v1016, 16
      %v1021 = vshrl.u32 %v1016, 16
      %vm1022 = vc.u32 %v1014, %v1018
      %v1023 = vsel %vm1022, 1, 0
      %v1024 = vadd.s32 %v1014, %v1018
      %v1025 = vadd.s32 %v1017, %v1023
      %vm1026 = vc.u32 %v1024, %v1020
      %v1027 = vsel %vm1026, 1, 0
      %v1028 = vadd.s32 %v1024, %v1020
      %v1029 = vadd.s32 %v1025, %v1027
      %v1030 = vadd.s32 %v1029, %v1019
      %v1031 = vadd.s32 %v1030, %v1021
      %v1032 = vshrl.u32 %v1031, 4
      %v1033 = vmul.u32 %v1032, 18
      %v1034 = vsub.s32 %v1010, %v1033
      %v1035 = vsub.s32 0, %v1034
      %v1036 = vsel %vm1008, %v1035, %v1034
      %vm1037 = vcmp.lt.s32.totalorder %v245, 0
      %v1038 = vsub.s32 0, %v245
      %v1039 = vsel %vm1037, %v1038, %v245
      %v1040 = vand.u32 %v1039, 65535
      %v1041 = vshrl.u32 %v1039, 16
      %v1043 = vmul.u32 %v1040, 14564
      %v1044 = vmul.u32 %v1040, 58254
      %v1045 = vmul.u32 %v1041, 14564
      %v1046 = vmul.u32 %v1041, 58254
      %v1047 = vshll.u32 %v1044, 16
      %v1048 = vshrl.u32 %v1044, 16
      %v1049 = vshll.u32 %v1045, 16
      %v1050 = vshrl.u32 %v1045, 16
      %vm1051 = vc.u32 %v1043, %v1047
      %v1052 = vsel %vm1051, 1, 0
      %v1053 = vadd.s32 %v1043, %v1047
      %v1054 = vadd.s32 %v1046, %v1052
      %vm1055 = vc.u32 %v1053, %v1049
      %v1056 = vsel %vm1055, 1, 0
      %v1057 = vadd.s32 %v1053, %v1049
      %v1058 = vadd.s32 %v1054, %v1056
      %v1059 = vadd.s32 %v1058, %v1048
      %v1060 = vadd.s32 %v1059, %v1050
      %v1061 = vshrl.u32 %v1060, 4
      %v1062 = vmul.u32 %v1061, 18
      %v1063 = vsub.s32 %v1039, %v1062
      %v1064 = vsub.s32 0, %v1063
      %v1065 = vsel %vm1037, %v1064, %v1063
      %vm1066 = vcmp.lt.s32.totalorder %v246, 0
      %v1067 = vsub.s32 0, %v246
      %v1068 = vsel %vm1066, %v1067, %v246
      %v1069 = vand.u32 %v1068, 65535
      %v1070 = vshrl.u32 %v1068, 16
      %v1072 = vmul.u32 %v1069, 14564
      %v1073 = vmul.u32 %v1069, 58254
      %v1074 = vmul.u32 %v1070, 14564
      %v1075 = vmul.u32 %v1070, 58254
      %v1076 = vshll.u32 %v1073, 16
      %v1077 = vshrl.u32 %v1073, 16
      %v1078 = vshll.u32 %v1074, 16
      %v1079 = vshrl.u32 %v1074, 16
      %vm1080 = vc.u32 %v1072, %v1076
      %v1081 = vsel %vm1080, 1, 0
      %v1082 = vadd.s32 %v1072, %v1076
      %v1083 = vadd.s32 %v1075, %v1081
      %vm1084 = vc.u32 %v1082, %v1078
      %v1085 = vsel %vm1084, 1, 0
      %v1086 = vadd.s32 %v1082, %v1078
      %v1087 = vadd.s32 %v1083, %v1085
      %v1088 = vadd.s32 %v1087, %v1077
      %v1089 = vadd.s32 %v1088, %v1079
      %v1090 = vshrl.u32 %v1089, 4
      %v1091 = vmul.u32 %v1090, 18
      %v1092 = vsub.s32 %v1068, %v1091
      %v1093 = vsub.s32 0, %v1092
      %v1094 = vsel %vm1066, %v1093, %v1092
      %vm1095 = vcmp.lt.s32.totalorder %v247, 0
      %v1096 = vsub.s32 0, %v247
      %v1097 = vsel %vm1095, %v1096, %v247
      %v1098 = vand.u32 %v1097, 65535
      %v1099 = vshrl.u32 %v1097, 16
      %v1101 = vmul.u32 %v1098, 14564
      %v1102 = vmul.u32 %v1098, 58254
      %v1103 = vmul.u32 %v1099, 14564
      %v1104 = vmul.u32 %v1099, 58254
      %v1105 = vshll.u32 %v1102, 16
      %v1106 = vshrl.u32 %v1102, 16
      %v1107 = vshll.u32 %v1103, 16
      %v1108 = vshrl.u32 %v1103, 16
      %vm1109 = vc.u32 %v1101, %v1105
      %v1110 = vsel %vm1109, 1, 0
      %v1111 = vadd.s32 %v1101, %v1105
      %v1112 = vadd.s32 %v1104, %v1110
      %vm1113 = vc.u32 %v1111, %v1107
      %v1114 = vsel %vm1113, 1, 0
      %v1115 = vadd.s32 %v1111, %v1107
      %v1116 = vadd.s32 %v1112, %v1114
      %v1117 = vadd.s32 %v1116, %v1106
      %v1118 = vadd.s32 %v1117, %v1108
      %v1119 = vshrl.u32 %v1118, 4
      %v1120 = vmul.u32 %v1119, 18
      %v1121 = vsub.s32 %v1097, %v1120
      %v1122 = vsub.s32 0, %v1121
      %v1123 = vsel %vm1095, %v1122, %v1121
      %vm1124 = vcmp.lt.s32.totalorder %v248, 0
      %v1125 = vsub.s32 0, %v248
      %v1126 = vsel %vm1124, %v1125, %v248
      %v1127 = vand.u32 %v1126, 65535
      %v1128 = vshrl.u32 %v1126, 16
      %v1130 = vmul.u32 %v1127, 14564
      %v1131 = vmul.u32 %v1127, 58254
      %v1132 = vmul.u32 %v1128, 14564
      %v1133 = vmul.u32 %v1128, 58254
      %v1134 = vshll.u32 %v1131, 16
      %v1135 = vshrl.u32 %v1131, 16
      %v1136 = vshll.u32 %v1132, 16
      %v1137 = vshrl.u32 %v1132, 16
      %vm1138 = vc.u32 %v1130, %v1134
      %v1139 = vsel %vm1138, 1, 0
      %v1140 = vadd.s32 %v1130, %v1134
      %v1141 = vadd.s32 %v1133, %v1139
      %vm1142 = vc.u32 %v1140, %v1136
      %v1143 = vsel %vm1142, 1, 0
      %v1144 = vadd.s32 %v1140, %v1136
      %v1145 = vadd.s32 %v1141, %v1143
      %v1146 = vadd.s32 %v1145, %v1135
      %v1147 = vadd.s32 %v1146, %v1137
      %v1148 = vshrl.u32 %v1147, 4
      %v1149 = vmul.u32 %v1148, 18
      %v1150 = vsub.s32 %v1126, %v1149
      %v1151 = vsub.s32 0, %v1150
      %v1152 = vsel %vm1124, %v1151, %v1150
      %vm1153 = vcmp.lt.s32.totalorder %v249, 0
      %v1154 = vsub.s32 0, %v249
      %v1155 = vsel %vm1153, %v1154, %v249
      %v1156 = vand.u32 %v1155, 65535
      %v1157 = vshrl.u32 %v1155, 16
      %v1159 = vmul.u32 %v1156, 14564
      %v1160 = vmul.u32 %v1156, 58254
      %v1161 = vmul.u32 %v1157, 14564
      %v1162 = vmul.u32 %v1157, 58254
      %v1163 = vshll.u32 %v1160, 16
      %v1164 = vshrl.u32 %v1160, 16
      %v1165 = vshll.u32 %v1161, 16
      %v1166 = vshrl.u32 %v1161, 16
      %vm1167 = vc.u32 %v1159, %v1163
      %v1168 = vsel %vm1167, 1, 0
      %v1169 = vadd.s32 %v1159, %v1163
      %v1170 = vadd.s32 %v1162, %v1168
      %vm1171 = vc.u32 %v1169, %v1165
      %v1172 = vsel %vm1171, 1, 0
      %v1173 = vadd.s32 %v1169, %v1165
      %v1174 = vadd.s32 %v1170, %v1172
      %v1175 = vadd.s32 %v1174, %v1164
      %v1176 = vadd.s32 %v1175, %v1166
      %v1177 = vshrl.u32 %v1176, 4
      %v1178 = vmul.u32 %v1177, 18
      %v1179 = vsub.s32 %v1155, %v1178
      %v1180 = vsub.s32 0, %v1179
      %v1181 = vsel %vm1153, %v1180, %v1179
      %vm1182 = vcmp.lt.s32.totalorder %v250, 0
      %v1183 = vsub.s32 0, %v250
      %v1184 = vsel %vm1182, %v1183, %v250
      %v1185 = vand.u32 %v1184, 65535
      %v1186 = vshrl.u32 %v1184, 16
      %v1188 = vmul.u32 %v1185, 14564
      %v1189 = vmul.u32 %v1185, 58254
      %v1190 = vmul.u32 %v1186, 14564
      %v1191 = vmul.u32 %v1186, 58254
      %v1192 = vshll.u32 %v1189, 16
      %v1193 = vshrl.u32 %v1189, 16
      %v1194 = vshll.u32 %v1190, 16
      %v1195 = vshrl.u32 %v1190, 16
      %vm1196 = vc.u32 %v1188, %v1192
      %v1197 = vsel %vm1196, 1, 0
      %v1198 = vadd.s32 %v1188, %v1192
      %v1199 = vadd.s32 %v1191, %v1197
      %vm1200 = vc.u32 %v1198, %v1194
      %v1201 = vsel %vm1200, 1, 0
      %v1202 = vadd.s32 %v1198, %v1194
      %v1203 = vadd.s32 %v1199, %v1201
      %v1204 = vadd.s32 %v1203, %v1193
      %v1205 = vadd.s32 %v1204, %v1195
      %v1206 = vshrl.u32 %v1205, 4
      %v1207 = vmul.u32 %v1206, 18
      %v1208 = vsub.s32 %v1184, %v1207
      %v1209 = vsub.s32 0, %v1208
      %v1210 = vsel %vm1182, %v1209, %v1208
      %vm1211 = vcmp.lt.s32.totalorder %v251, 0
      %v1212 = vsub.s32 0, %v251
      %v1213 = vsel %vm1211, %v1212, %v251
      %v1214 = vand.u32 %v1213, 65535
      %v1215 = vshrl.u32 %v1213, 16
      %v1217 = vmul.u32 %v1214, 14564
      %v1218 = vmul.u32 %v1214, 58254
      %v1219 = vmul.u32 %v1215, 14564
      %v1220 = vmul.u32 %v1215, 58254
      %v1221 = vshll.u32 %v1218, 16
      %v1222 = vshrl.u32 %v1218, 16
      %v1223 = vshll.u32 %v1219, 16
      %v1224 = vshrl.u32 %v1219, 16
      %vm1225 = vc.u32 %v1217, %v1221
      %v1226 = vsel %vm1225, 1, 0
      %v1227 = vadd.s32 %v1217, %v1221
      %v1228 = vadd.s32 %v1220, %v1226
      %vm1229 = vc.u32 %v1227, %v1223
      %v1230 = vsel %vm1229, 1, 0
      %v1231 = vadd.s32 %v1227, %v1223
      %v1232 = vadd.s32 %v1228, %v1230
      %v1233 = vadd.s32 %v1232, %v1222
      %v1234 = vadd.s32 %v1233, %v1224
      %v1235 = vshrl.u32 %v1234, 4
      %v1236 = vmul.u32 %v1235, 18
      %v1237 = vsub.s32 %v1213, %v1236
      %v1238 = vsub.s32 0, %v1237
      %v1239 = vsel %vm1211, %v1238, %v1237
      %vm1240 = vcmp.lt.s32.totalorder %v252, 0
      %v1241 = vsub.s32 0, %v252
      %v1242 = vsel %vm1240, %v1241, %v252
      %v1243 = vand.u32 %v1242, 65535
      %v1244 = vshrl.u32 %v1242, 16
      %v1246 = vmul.u32 %v1243, 14564
      %v1247 = vmul.u32 %v1243, 58254
      %v1248 = vmul.u32 %v1244, 14564
      %v1249 = vmul.u32 %v1244, 58254
      %v1250 = vshll.u32 %v1247, 16
      %v1251 = vshrl.u32 %v1247, 16
      %v1252 = vshll.u32 %v1248, 16
      %v1253 = vshrl.u32 %v1248, 16
      %vm1254 = vc.u32 %v1246, %v1250
      %v1255 = vsel %vm1254, 1, 0
      %v1256 = vadd.s32 %v1246, %v1250
      %v1257 = vadd.s32 %v1249, %v1255
      %vm1258 = vc.u32 %v1256, %v1252
      %v1259 = vsel %vm1258, 1, 0
      %v1260 = vadd.s32 %v1256, %v1252
      %v1261 = vadd.s32 %v1257, %v1259
      %v1262 = vadd.s32 %v1261, %v1251
      %v1263 = vadd.s32 %v1262, %v1253
      %v1264 = vshrl.u32 %v1263, 4
      %v1265 = vmul.u32 %v1264, 18
      %v1266 = vsub.s32 %v1242, %v1265
      %v1267 = vsub.s32 0, %v1266
      %v1268 = vsel %vm1240, %v1267, %v1266
      %vm1269 = vcmp.lt.s32.totalorder %v253, 0
      %v1270 = vsub.s32 0, %v253
      %v1271 = vsel %vm1269, %v1270, %v253
      %v1272 = vand.u32 %v1271, 65535
      %v1273 = vshrl.u32 %v1271, 16
      %v1275 = vmul.u32 %v1272, 14564
      %v1276 = vmul.u32 %v1272, 58254
      %v1277 = vmul.u32 %v1273, 14564
      %v1278 = vmul.u32 %v1273, 58254
      %v1279 = vshll.u32 %v1276, 16
      %v1280 = vshrl.u32 %v1276, 16
      %v1281 = vshll.u32 %v1277, 16
      %v1282 = vshrl.u32 %v1277, 16
      %vm1283 = vc.u32 %v1275, %v1279
      %v1284 = vsel %vm1283, 1, 0
      %v1285 = vadd.s32 %v1275, %v1279
      %v1286 = vadd.s32 %v1278, %v1284
      %vm1287 = vc.u32 %v1285, %v1281
      %v1288 = vsel %vm1287, 1, 0
      %v1289 = vadd.s32 %v1285, %v1281
      %v1290 = vadd.s32 %v1286, %v1288
      %v1291 = vadd.s32 %v1290, %v1280
      %v1292 = vadd.s32 %v1291, %v1282
      %v1293 = vshrl.u32 %v1292, 4
      %v1294 = vmul.u32 %v1293, 18
      %v1295 = vsub.s32 %v1271, %v1294
      %v1296 = vsub.s32 0, %v1295
      %v1297 = vsel %vm1269, %v1296, %v1295
      %vm1298 = vcmp.ne.s32.totalorder %v282, 0
      %vm1299 = vcmp.ne.s32.totalorder %v311, 0
      %vm1300 = vcmp.ne.s32.totalorder %v340, 0
      %vm1301 = vcmp.ne.s32.totalorder %v369, 0
      %vm1302 = vcmp.ne.s32.totalorder %v398, 0
      %vm1303 = vcmp.ne.s32.totalorder %v427, 0
      %vm1304 = vcmp.ne.s32.totalorder %v456, 0
      %vm1305 = vcmp.ne.s32.totalorder %v485, 0
      %vm1306 = vcmp.ne.s32.totalorder %v514, 0
      %vm1307 = vcmp.ne.s32.totalorder %v543, 0
      %vm1308 = vcmp.ne.s32.totalorder %v572, 0
      %vm1309 = vcmp.ne.s32.totalorder %v601, 0
      %vm1310 = vcmp.ne.s32.totalorder %v630, 0
      %vm1311 = vcmp.ne.s32.totalorder %v659, 0
      %vm1312 = vcmp.ne.s32.totalorder %v688, 0
      %vm1313 = vcmp.ne.s32.totalorder %v717, 0
      %vm1314 = vcmp.ne.s32.totalorder %v746, 0
      %vm1315 = vcmp.ne.s32.totalorder %v775, 0
      %vm1316 = vcmp.ne.s32.totalorder %v804, 0
      %vm1317 = vcmp.ne.s32.totalorder %v833, 0
      %vm1318 = vcmp.ne.s32.totalorder %v862, 0
      %vm1319 = vcmp.ne.s32.totalorder %v891, 0
      %vm1320 = vcmp.ne.s32.totalorder %v920, 0
      %vm1321 = vcmp.ne.s32.totalorder %v949, 0
      %vm1322 = vcmp.ne.s32.totalorder %v978, 0
      %vm1323 = vcmp.ne.s32.totalorder %v1007, 0
      %vm1324 = vcmp.ne.s32.totalorder %v1036, 0
      %vm1325 = vcmp.ne.s32.totalorder %v1065, 0
      %vm1326 = vcmp.ne.s32.totalorder %v1094, 0
      %vm1327 = vcmp.ne.s32.totalorder %v1123, 0
      %vm1328 = vcmp.ne.s32.totalorder %v1152, 0
      %vm1329 = vcmp.ne.s32.totalorder %v1181, 0
      %vm1330 = vcmp.ne.s32.totalorder %v1210, 0
      %vm1331 = vcmp.ne.s32.totalorder %v1239, 0
      %vm1332 = vcmp.ne.s32.totalorder %v1268, 0
      %vm1333 = vcmp.ne.s32.totalorder %v1297, 0
      %vm1334 = vcmp.lt.s32.totalorder %v282, 0
      %vm1335 = vcmp.lt.s32.totalorder %v311, 0
      %vm1336 = vcmp.lt.s32.totalorder %v340, 0
      %vm1337 = vcmp.lt.s32.totalorder %v369, 0
      %vm1338 = vcmp.lt.s32.totalorder %v398, 0
      %vm1339 = vcmp.lt.s32.totalorder %v427, 0
      %vm1340 = vcmp.lt.s32.totalorder %v456, 0
      %vm1341 = vcmp.lt.s32.totalorder %v485, 0
      %vm1342 = vcmp.lt.s32.totalorder %v514, 0
      %vm1343 = vcmp.lt.s32.totalorder %v543, 0
      %vm1344 = vcmp.lt.s32.totalorder %v572, 0
      %vm1345 = vcmp.lt.s32.totalorder %v601, 0
      %vm1346 = vcmp.lt.s32.totalorder %v630, 0
      %vm1347 = vcmp.lt.s32.totalorder %v659, 0
      %vm1348 = vcmp.lt.s32.totalorder %v688, 0
      %vm1349 = vcmp.lt.s32.totalorder %v717, 0
      %vm1350 = vcmp.lt.s32.totalorder %v746, 0
      %vm1351 = vcmp.lt.s32.totalorder %v775, 0
      %vm1352 = vcmp.lt.s32.totalorder %v804, 0
      %vm1353 = vcmp.lt.s32.totalorder %v833, 0
      %vm1354 = vcmp.lt.s32.totalorder %v862, 0
      %vm1355 = vcmp.lt.s32.totalorder %v891, 0
      %vm1356 = vcmp.lt.s32.totalorder %v920, 0
      %vm1357 = vcmp.lt.s32.totalorder %v949, 0
      %vm1358 = vcmp.lt.s32.totalorder %v978, 0
      %vm1359 = vcmp.lt.s32.totalorder %v1007, 0
      %vm1360 = vcmp.lt.s32.totalorder %v1036, 0
      %vm1361 = vcmp.lt.s32.totalorder %v1065, 0
      %vm1362 = vcmp.lt.s32.totalorder %v1094, 0
      %vm1363 = vcmp.lt.s32.totalorder %v1123, 0
      %vm1364 = vcmp.lt.s32.totalorder %v1152, 0
      %vm1365 = vcmp.lt.s32.totalorder %v1181, 0
      %vm1366 = vcmp.lt.s32.totalorder %v1210, 0
      %vm1367 = vcmp.lt.s32.totalorder %v1239, 0
      %vm1368 = vcmp.lt.s32.totalorder %v1268, 0
      %vm1369 = vcmp.lt.s32.totalorder %v1297, 0
      %vm1370 = vmand %vm1334, %vm1298
      %vm1371 = vmand %vm1335, %vm1299
      %vm1372 = vmand %vm1336, %vm1300
      %vm1373 = vmand %vm1337, %vm1301
      %vm1374 = vmand %vm1338, %vm1302
      %vm1375 = vmand %vm1339, %vm1303
      %vm1376 = vmand %vm1340, %vm1304
      %vm1377 = vmand %vm1341, %vm1305
      %vm1378 = vmand %vm1342, %vm1306
      %vm1379 = vmand %vm1343, %vm1307
      %vm1380 = vmand %vm1344, %vm1308
      %vm1381 = vmand %vm1345, %vm1309
      %vm1382 = vmand %vm1346, %vm1310
      %vm1383 = vmand %vm1347, %vm1311
      %vm1384 = vmand %vm1348, %vm1312
      %vm1385 = vmand %vm1349, %vm1313
      %vm1386 = vmand %vm1350, %vm1314
      %vm1387 = vmand %vm1351, %vm1315
      %vm1388 = vmand %vm1352, %vm1316
      %vm1389 = vmand %vm1353, %vm1317
      %vm1390 = vmand %vm1354, %vm1318
      %vm1391 = vmand %vm1355, %vm1319
      %vm1392 = vmand %vm1356, %vm1320
      %vm1393 = vmand %vm1357, %vm1321
      %vm1394 = vmand %vm1358, %vm1322
      %vm1395 = vmand %vm1359, %vm1323
      %vm1396 = vmand %vm1360, %vm1324
      %vm1397 = vmand %vm1361, %vm1325
      %vm1398 = vmand %vm1362, %vm1326
      %vm1399 = vmand %vm1363, %vm1327
      %vm1400 = vmand %vm1364, %vm1328
      %vm1401 = vmand %vm1365, %vm1329
      %vm1402 = vmand %vm1366, %vm1330
      %vm1403 = vmand %vm1367, %vm1331
      %vm1404 = vmand %vm1368, %vm1332
      %vm1405 = vmand %vm1369, %vm1333
      %v1406 = vadd.s32 %v282, 18
      %v1407 = vadd.s32 %v311, 18
      %v1408 = vadd.s32 %v340, 18
      %v1409 = vadd.s32 %v369, 18
      %v1410 = vadd.s32 %v398, 18
      %v1411 = vadd.s32 %v427, 18
      %v1412 = vadd.s32 %v456, 18
      %v1413 = vadd.s32 %v485, 18
      %v1414 = vadd.s32 %v514, 18
      %v1415 = vadd.s32 %v543, 18
      %v1416 = vadd.s32 %v572, 18
      %v1417 = vadd.s32 %v601, 18
      %v1418 = vadd.s32 %v630, 18
      %v1419 = vadd.s32 %v659, 18
      %v1420 = vadd.s32 %v688, 18
      %v1421 = vadd.s32 %v717, 18
      %v1422 = vadd.s32 %v746, 18
      %v1423 = vadd.s32 %v775, 18
      %v1424 = vadd.s32 %v804, 18
      %v1425 = vadd.s32 %v833, 18
      %v1426 = vadd.s32 %v862, 18
      %v1427 = vadd.s32 %v891, 18
      %v1428 = vadd.s32 %v920, 18
      %v1429 = vadd.s32 %v949, 18
      %v1430 = vadd.s32 %v978, 18
      %v1431 = vadd.s32 %v1007, 18
      %v1432 = vadd.s32 %v1036, 18
      %v1433 = vadd.s32 %v1065, 18
      %v1434 = vadd.s32 %v1094, 18
      %v1435 = vadd.s32 %v1123, 18
      %v1436 = vadd.s32 %v1152, 18
      %v1437 = vadd.s32 %v1181, 18
      %v1438 = vadd.s32 %v1210, 18
      %v1439 = vadd.s32 %v1239, 18
      %v1440 = vadd.s32 %v1268, 18
      %v1441 = vadd.s32 %v1297, 18
      %v1442 = vsel %vm1370, %v1406, %v282
      %v1443 = vsel %vm1371, %v1407, %v311
      %v1444 = vsel %vm1372, %v1408, %v340
      %v1445 = vsel %vm1373, %v1409, %v369
      %v1446 = vsel %vm1374, %v1410, %v398
      %v1447 = vsel %vm1375, %v1411, %v427
      %v1448 = vsel %vm1376, %v1412, %v456
      %v1449 = vsel %vm1377, %v1413, %v485
      %v1450 = vsel %vm1378, %v1414, %v514
      %v1451 = vsel %vm1379, %v1415, %v543
      %v1452 = vsel %vm1380, %v1416, %v572
      %v1453 = vsel %vm1381, %v1417, %v601
      %v1454 = vsel %vm1382, %v1418, %v630
      %v1455 = vsel %vm1383, %v1419, %v659
      %v1456 = vsel %vm1384, %v1420, %v688
      %v1457 = vsel %vm1385, %v1421, %v717
      %v1458 = vsel %vm1386, %v1422, %v746
      %v1459 = vsel %vm1387, %v1423, %v775
      %v1460 = vsel %vm1388, %v1424, %v804
      %v1461 = vsel %vm1389, %v1425, %v833
      %v1462 = vsel %vm1390, %v1426, %v862
      %v1463 = vsel %vm1391, %v1427, %v891
      %v1464 = vsel %vm1392, %v1428, %v920
      %v1465 = vsel %vm1393, %v1429, %v949
      %v1466 = vsel %vm1394, %v1430, %v978
      %v1467 = vsel %vm1395, %v1431, %v1007
      %v1468 = vsel %vm1396, %v1432, %v1036
      %v1469 = vsel %vm1397, %v1433, %v1065
      %v1470 = vsel %vm1398, %v1434, %v1094
      %v1471 = vsel %vm1399, %v1435, %v1123
      %v1472 = vsel %vm1400, %v1436, %v1152
      %v1473 = vsel %vm1401, %v1437, %v1181
      %v1474 = vsel %vm1402, %v1438, %v1210
      %v1475 = vsel %vm1403, %v1439, %v1239
      %v1476 = vsel %vm1404, %v1440, %v1268
      %v1477 = vsel %vm1405, %v1441, %v1297
      %vm1478 = vcmp.lt.s32.totalorder %v1442, 16
      %vm1479 = vcmp.lt.s32.totalorder %v1443, 16
      %vm1480 = vcmp.lt.s32.totalorder %v1444, 16
      %vm1481 = vcmp.lt.s32.totalorder %v1445, 16
      %vm1482 = vcmp.lt.s32.totalorder %v1446, 16
      %vm1483 = vcmp.lt.s32.totalorder %v1447, 16
      %vm1484 = vcmp.lt.s32.totalorder %v1448, 16
      %vm1485 = vcmp.lt.s32.totalorder %v1449, 16
      %vm1486 = vcmp.lt.s32.totalorder %v1450, 16
      %vm1487 = vcmp.lt.s32.totalorder %v1451, 16
      %vm1488 = vcmp.lt.s32.totalorder %v1452, 16
      %vm1489 = vcmp.lt.s32.totalorder %v1453, 16
      %vm1490 = vcmp.lt.s32.totalorder %v1454, 16
      %vm1491 = vcmp.lt.s32.totalorder %v1455, 16
      %vm1492 = vcmp.lt.s32.totalorder %v1456, 16
      %vm1493 = vcmp.lt.s32.totalorder %v1457, 16
      %vm1494 = vcmp.lt.s32.totalorder %v1458, 16
      %vm1495 = vcmp.lt.s32.totalorder %v1459, 16
      %vm1496 = vcmp.lt.s32.totalorder %v1460, 16
      %vm1497 = vcmp.lt.s32.totalorder %v1461, 16
      %vm1498 = vcmp.lt.s32.totalorder %v1462, 16
      %vm1499 = vcmp.lt.s32.totalorder %v1463, 16
      %vm1500 = vcmp.lt.s32.totalorder %v1464, 16
      %vm1501 = vcmp.lt.s32.totalorder %v1465, 16
      %vm1502 = vcmp.lt.s32.totalorder %v1466, 16
      %vm1503 = vcmp.lt.s32.totalorder %v1467, 16
      %vm1504 = vcmp.lt.s32.totalorder %v1468, 16
      %vm1505 = vcmp.lt.s32.totalorder %v1469, 16
      %vm1506 = vcmp.lt.s32.totalorder %v1470, 16
      %vm1507 = vcmp.lt.s32.totalorder %v1471, 16
      %vm1508 = vcmp.lt.s32.totalorder %v1472, 16
      %vm1509 = vcmp.lt.s32.totalorder %v1473, 16
      %vm1510 = vcmp.lt.s32.totalorder %v1474, 16
      %vm1511 = vcmp.lt.s32.totalorder %v1475, 16
      %vm1512 = vcmp.lt.s32.totalorder %v1476, 16
      %vm1513 = vcmp.lt.s32.totalorder %v1477, 16
      %v1514 = vld [vmem:[%s192] sm:$0xff]
      %v1515 = vld [vmem:[%s192 + $0x8] sm:$0xff]
      %v1516 = vld [vmem:[%s192 + $0x10] sm:$0xff]
      %v1517 = vld [vmem:[%s192 + $0x18] sm:$0xff]
      %v1518 = vld [vmem:[%s192 + $0x20] sm:$0xff]
      %v1519 = vld [vmem:[%s192 + $0x28] sm:$0xff]
      %v1520 = vld [vmem:[%s192 + $0x30] sm:$0xff]
      %v1521 = vld [vmem:[%s192 + $0x38] sm:$0xff]
      %v1522 = vld [vmem:[%s192 + $0x40] sm:$0xff]
      %v1523 = vld [vmem:[%s192 + $0x48] sm:$0xff]
      %v1524 = vld [vmem:[%s192 + $0x50] sm:$0xff]
      %v1525 = vld [vmem:[%s192 + $0x58] sm:$0xff]
      %v1526 = vld [vmem:[%s192 + $0x60] sm:$0xff]
      %v1527 = vld [vmem:[%s192 + $0x68] sm:$0xff]
      %v1528 = vld [vmem:[%s192 + $0x70] sm:$0xff]
      %v1529 = vld [vmem:[%s192 + $0x78] sm:$0xff]
      %v1530 = vld [vmem:[%s192 + $0x80] sm:$0xff]
      %v1531 = vld [vmem:[%s192 + $0x88] sm:$0xff]
      %v1532 = vld [vmem:[%s192 + $0x90] sm:$0xff]
      %v1533 = vld [vmem:[%s192 + $0x98] sm:$0xff]
      %v1534 = vld [vmem:[%s192 + $0xa0] sm:$0xff]
      %v1535 = vld [vmem:[%s192 + $0xa8] sm:$0xff]
      %v1536 = vld [vmem:[%s192 + $0xb0] sm:$0xff]
      %v1537 = vld [vmem:[%s192 + $0xb8] sm:$0xff]
      %v1538 = vld [vmem:[%s192 + $0xc0] sm:$0xff]
      %v1539 = vld [vmem:[%s192 + $0xc8] sm:$0xff]
      %v1540 = vld [vmem:[%s192 + $0xd0] sm:$0xff]
      %v1541 = vld [vmem:[%s192 + $0xd8] sm:$0xff]
      %v1542 = vld [vmem:[%s192 + $0xe0] sm:$0xff]
      %v1543 = vld [vmem:[%s192 + $0xe8] sm:$0xff]
      %v1544 = vld [vmem:[%s192 + $0xf0] sm:$0xff]
      %v1545 = vld [vmem:[%s192 + $0xf8] sm:$0xff]
      %v1546 = vld [vmem:[%s192 + $0x100] sm:$0xff]
      %v1547 = vld [vmem:[%s192 + $0x108] sm:$0xff]
      %v1548 = vld [vmem:[%s192 + $0x110] sm:$0xff]
      %v1549 = vld [vmem:[%s192 + $0x118] sm:$0xff]
      %v1550 = vld [vmem:[%s1] sm:$0xff]
      %v1551 = vld [vmem:[%s1 + $0x8] sm:$0xff]
      %v1552 = vld [vmem:[%s1 + $0x10] sm:$0xff]
      %v1553 = vld [vmem:[%s1 + $0x18] sm:$0x7]
      %vm1554 = vcmask 220160
      %v1556 = vsel %vm1554, %v1514, 0
      %v1559 = vsel %vm1554, %v1515, 0
      %v1562 = vsel %vm1554, %v1516, 0
      %v1565 = vsel %vm1554, %v1517, 0
      %v1568 = vsel %vm1554, %v1518, 0
      %v1571 = vsel %vm1554, %v1519, 0
      %v1574 = vsel %vm1554, %v1520, 0
      %v1577 = vsel %vm1554, %v1521, 0
      %v1580 = vsel %vm1554, %v1522, 0
      %v1583 = vsel %vm1554, %v1523, 0
      %v1586 = vsel %vm1554, %v1524, 0
      %v1589 = vsel %vm1554, %v1525, 0
      %v1592 = vsel %vm1554, %v1526, 0
      %v1595 = vsel %vm1554, %v1527, 0
      %v1598 = vsel %vm1554, %v1528, 0
      %v1601 = vsel %vm1554, %v1529, 0
      %v1604 = vsel %vm1554, %v1530, 0
      %v1607 = vsel %vm1554, %v1531, 0
      %v1610 = vsel %vm1554, %v1532, 0
      %v1613 = vsel %vm1554, %v1533, 0
      %v1616 = vsel %vm1554, %v1534, 0
      %v1619 = vsel %vm1554, %v1535, 0
      %v1622 = vsel %vm1554, %v1536, 0
      %v1625 = vsel %vm1554, %v1537, 0
      %v1628 = vsel %vm1554, %v1538, 0
      %v1631 = vsel %vm1554, %v1539, 0
      %v1634 = vsel %vm1554, %v1540, 0
      %v1637 = vsel %vm1554, %v1541, 0
      %v1640 = vsel %vm1554, %v1542, 0
      %v1643 = vsel %vm1554, %v1543, 0
      %v1646 = vsel %vm1554, %v1544, 0
      %v1649 = vsel %vm1554, %v1545, 0
      %v1652 = vsel %vm1554, %v1546, 0
      %v1655 = vsel %vm1554, %v1547, 0
      %v1658 = vsel %vm1554, %v1548, 0
      %v1661 = vsel %vm1554, %v1549, 0
      %vm1663 = vcmask 1042432
      %v1665 = vsel %vm1663, %v1553, 0
      %1667 = vmatpush.msra.mxu0 0.0
      %1668 = vmatpush.msra.mxu0 0.0
      %1669 = vmatpush.msra.mxu0 0.0
      %1670 = vmatpush.msra.mxu0 0.0
      %1671 = vmatpush.msra.mxu0 0.0
      %1672 = vmatpush.msra.mxu0 0.0
      %1673 = vmatpush.msra.mxu0 0.0
      %1674 = vmatpush.msra.mxu0 0.0
      %1675 = vmatpush.msra.mxu0 0.0
      %1676 = vmatpush.msra.mxu0 0.0
      %1677 = vmatpush.msra.mxu0 0.0
      %1678 = vmatpush.msra.mxu0 0.0
      %1679 = vmatpush.msra.mxu0 %v1665
      %1680 = vmatpush.msra.mxu0 %v1552
      %1681 = vmatpush.msra.mxu0 %v1551
      %1682 = vmatpush.msra.mxu0 %v1550
      %1683 = vmatmul.f32.gmra.mxu0 %v1556
      %v1684 = vpop.f32.mrf.mxu0
      %v1685 = vadd.f32 0.0, %v1684
      %1686 = vmatmul.f32.gmra.mxu0 %v1559
      %v1687 = vpop.f32.mrf.mxu0
      %v1688 = vadd.f32 0.0, %v1687
      %1689 = vmatmul.f32.gmra.mxu0 %v1562
      %v1690 = vpop.f32.mrf.mxu0
      %v1691 = vadd.f32 0.0, %v1690
      %1692 = vmatmul.f32.gmra.mxu0 %v1565
      %v1693 = vpop.f32.mrf.mxu0
      %v1694 = vadd.f32 0.0, %v1693
      %1695 = vmatmul.f32.gmra.mxu0 %v1568
      %v1696 = vpop.f32.mrf.mxu0
      %v1697 = vadd.f32 0.0, %v1696
      %1698 = vmatmul.f32.gmra.mxu0 %v1571
      %v1699 = vpop.f32.mrf.mxu0
      %v1700 = vadd.f32 0.0, %v1699
      %1701 = vmatmul.f32.gmra.mxu0 %v1574
      %v1702 = vpop.f32.mrf.mxu0
      %v1703 = vadd.f32 0.0, %v1702
      %1704 = vmatmul.f32.gmra.mxu0 %v1577
      %v1705 = vpop.f32.mrf.mxu0
      %v1706 = vadd.f32 0.0, %v1705
      %1707 = vmatmul.f32.gmra.mxu0 %v1580
      %v1708 = vpop.f32.mrf.mxu0
      %v1709 = vadd.f32 0.0, %v1708
      %1710 = vmatmul.f32.gmra.mxu0 %v1583
      %v1711 = vpop.f32.mrf.mxu0
      %v1712 = vadd.f32 0.0, %v1711
      %1713 = vmatmul.f32.gmra.mxu0 %v1586
      %v1714 = vpop.f32.mrf.mxu0
      %v1715 = vadd.f32 0.0, %v1714
      %1716 = vmatmul.f32.gmra.mxu0 %v1589
      %v1717 = vpop.f32.mrf.mxu0
      %v1718 = vadd.f32 0.0, %v1717
      %1719 = vmatmul.f32.gmra.mxu0 %v1592
      %v1720 = vpop.f32.mrf.mxu0
      %v1721 = vadd.f32 0.0, %v1720
      %1722 = vmatmul.f32.gmra.mxu0 %v1595
      %v1723 = vpop.f32.mrf.mxu0
      %v1724 = vadd.f32 0.0, %v1723
      %1725 = vmatmul.f32.gmra.mxu0 %v1598
      %v1726 = vpop.f32.mrf.mxu0
      %v1727 = vadd.f32 0.0, %v1726
      %1728 = vmatmul.f32.gmra.mxu0 %v1601
      %v1729 = vpop.f32.mrf.mxu0
      %v1730 = vadd.f32 0.0, %v1729
      %1731 = vmatmul.f32.gmra.mxu0 %v1604
      %v1732 = vpop.f32.mrf.mxu0
      %v1733 = vadd.f32 0.0, %v1732
      %1734 = vmatmul.f32.gmra.mxu0 %v1607
      %v1735 = vpop.f32.mrf.mxu0
      %v1736 = vadd.f32 0.0, %v1735
      %1737 = vmatmul.f32.gmra.mxu0 %v1610
      %v1738 = vpop.f32.mrf.mxu0
      %v1739 = vadd.f32 0.0, %v1738
      %1740 = vmatmul.f32.gmra.mxu0 %v1613
      %v1741 = vpop.f32.mrf.mxu0
      %v1742 = vadd.f32 0.0, %v1741
      %1743 = vmatmul.f32.gmra.mxu0 %v1616
      %v1744 = vpop.f32.mrf.mxu0
      %v1745 = vadd.f32 0.0, %v1744
      %1746 = vmatmul.f32.gmra.mxu0 %v1619
      %v1747 = vpop.f32.mrf.mxu0
      %v1748 = vadd.f32 0.0, %v1747
      %1749 = vmatmul.f32.gmra.mxu0 %v1622
      %v1750 = vpop.f32.mrf.mxu0
      %v1751 = vadd.f32 0.0, %v1750
      %1752 = vmatmul.f32.gmra.mxu0 %v1625
      %v1753 = vpop.f32.mrf.mxu0
      %v1754 = vadd.f32 0.0, %v1753
      %1755 = vmatmul.f32.gmra.mxu0 %v1628
      %v1756 = vpop.f32.mrf.mxu0
      %v1757 = vadd.f32 0.0, %v1756
      %1758 = vmatmul.f32.gmra.mxu0 %v1631
      %v1759 = vpop.f32.mrf.mxu0
      %v1760 = vadd.f32 0.0, %v1759
      %1761 = vmatmul.f32.gmra.mxu0 %v1634
      %v1762 = vpop.f32.mrf.mxu0
      %v1763 = vadd.f32 0.0, %v1762
      %1764 = vmatmul.f32.gmra.mxu0 %v1637
      %v1765 = vpop.f32.mrf.mxu0
      %v1766 = vadd.f32 0.0, %v1765
      %1767 = vmatmul.f32.gmra.mxu0 %v1640
      %v1768 = vpop.f32.mrf.mxu0
      %v1769 = vadd.f32 0.0, %v1768
      %1770 = vmatmul.f32.gmra.mxu0 %v1643
      %v1771 = vpop.f32.mrf.mxu0
      %v1772 = vadd.f32 0.0, %v1771
      %1773 = vmatmul.f32.gmra.mxu0 %v1646
      %v1774 = vpop.f32.mrf.mxu0
      %v1775 = vadd.f32 0.0, %v1774
      %1776 = vmatmul.f32.gmra.mxu0 %v1649
      %v1777 = vpop.f32.mrf.mxu0
      %v1778 = vadd.f32 0.0, %v1777
      %1779 = vmatmul.f32.gmra.mxu0 %v1652
      %v1780 = vpop.f32.mrf.mxu0
      %v1781 = vadd.f32 0.0, %v1780
      %1782 = vmatmul.f32.gmra.mxu0 %v1655
      %v1783 = vpop.f32.mrf.mxu0
      %v1784 = vadd.f32 0.0, %v1783
      %1785 = vmatmul.f32.gmra.mxu0 %v1658
      %v1786 = vpop.f32.mrf.mxu0
      %v1787 = vadd.f32 0.0, %v1786
      %1788 = vmatmul.f32.gmra.mxu0 %v1661
      %v1789 = vpop.f32.mrf.mxu0
      %v1790 = vadd.f32 0.0, %v1789
      %1791 = vdwg.mxu0
      %v1792 = vmax.f32 %v1685, 0.0
      %v1793 = vmax.f32 %v1688, 0.0
      %v1794 = vmax.f32 %v1691, 0.0
      %v1795 = vmax.f32 %v1694, 0.0
      %v1796 = vmax.f32 %v1697, 0.0
      %v1797 = vmax.f32 %v1700, 0.0
      %v1798 = vmax.f32 %v1703, 0.0
      %v1799 = vmax.f32 %v1706, 0.0
      %v1800 = vmax.f32 %v1709, 0.0
      %v1801 = vmax.f32 %v1712, 0.0
      %v1802 = vmax.f32 %v1715, 0.0
      %v1803 = vmax.f32 %v1718, 0.0
      %v1804 = vmax.f32 %v1721, 0.0
      %v1805 = vmax.f32 %v1724, 0.0
      %v1806 = vmax.f32 %v1727, 0.0
      %v1807 = vmax.f32 %v1730, 0.0
      %v1808 = vmax.f32 %v1733, 0.0
      %v1809 = vmax.f32 %v1736, 0.0
      %v1810 = vmax.f32 %v1739, 0.0
      %v1811 = vmax.f32 %v1742, 0.0
      %v1812 = vmax.f32 %v1745, 0.0
      %v1813 = vmax.f32 %v1748, 0.0
      %v1814 = vmax.f32 %v1751, 0.0
      %v1815 = vmax.f32 %v1754, 0.0
      %v1816 = vmax.f32 %v1757, 0.0
      %v1817 = vmax.f32 %v1760, 0.0
      %v1818 = vmax.f32 %v1763, 0.0
      %v1819 = vmax.f32 %v1766, 0.0
      %v1820 = vmax.f32 %v1769, 0.0
      %v1821 = vmax.f32 %v1772, 0.0
      %v1822 = vmax.f32 %v1775, 0.0
      %v1823 = vmax.f32 %v1778, 0.0
      %v1824 = vmax.f32 %v1781, 0.0
      %v1825 = vmax.f32 %v1784, 0.0
      %v1826 = vmax.f32 %v1787, 0.0
      %v1827 = vmax.f32 %v1790, 0.0
      %v1828 = vsel %vm1478, 1, 0
      %v1829 = vsel %vm1479, 1, 0
      %v1830 = vsel %vm1480, 1, 0
      %v1831 = vsel %vm1481, 1, 0
      %v1832 = vsel %vm1482, 1, 0
      %v1833 = vsel %vm1483, 1, 0
      %v1834 = vsel %vm1484, 1, 0
      %v1835 = vsel %vm1485, 1, 0
      %v1836 = vsel %vm1486, 1, 0
      %v1837 = vsel %vm1487, 1, 0
      %v1838 = vsel %vm1488, 1, 0
      %v1839 = vsel %vm1489, 1, 0
      %v1840 = vsel %vm1490, 1, 0
      %v1841 = vsel %vm1491, 1, 0
      %v1842 = vsel %vm1492, 1, 0
      %v1843 = vsel %vm1493, 1, 0
      %v1844 = vsel %vm1494, 1, 0
      %v1845 = vsel %vm1495, 1, 0
      %v1846 = vsel %vm1496, 1, 0
      %v1847 = vsel %vm1497, 1, 0
      %v1848 = vsel %vm1498, 1, 0
      %v1849 = vsel %vm1499, 1, 0
      %v1850 = vsel %vm1500, 1, 0
      %v1851 = vsel %vm1501, 1, 0
      %v1852 = vsel %vm1502, 1, 0
      %v1853 = vsel %vm1503, 1, 0
      %v1854 = vsel %vm1504, 1, 0
      %v1855 = vsel %vm1505, 1, 0
      %v1856 = vsel %vm1506, 1, 0
      %v1857 = vsel %vm1507, 1, 0
      %v1858 = vsel %vm1508, 1, 0
      %v1859 = vsel %vm1509, 1, 0
      %v1860 = vsel %vm1510, 1, 0
      %v1861 = vsel %vm1511, 1, 0
      %v1862 = vsel %vm1512, 1, 0
      %v1863 = vsel %vm1513, 1, 0
      %vm1864 = vcmp.eq.s32.totalorder %v1828, 1
      %vm1865 = vcmp.eq.s32.totalorder %v1829, 1
      %vm1866 = vcmp.eq.s32.totalorder %v1830, 1
      %vm1867 = vcmp.eq.s32.totalorder %v1831, 1
      %vm1868 = vcmp.eq.s32.totalorder %v1832, 1
      %vm1869 = vcmp.eq.s32.totalorder %v1833, 1
      %vm1870 = vcmp.eq.s32.totalorder %v1834, 1
      %vm1871 = vcmp.eq.s32.totalorder %v1835, 1
      %vm1872 = vcmp.eq.s32.totalorder %v1836, 1
      %vm1873 = vcmp.eq.s32.totalorder %v1837, 1
      %vm1874 = vcmp.eq.s32.totalorder %v1838, 1
      %vm1875 = vcmp.eq.s32.totalorder %v1839, 1
      %vm1876 = vcmp.eq.s32.totalorder %v1840, 1
      %vm1877 = vcmp.eq.s32.totalorder %v1841, 1
      %vm1878 = vcmp.eq.s32.totalorder %v1842, 1
      %vm1879 = vcmp.eq.s32.totalorder %v1843, 1
      %vm1880 = vcmp.eq.s32.totalorder %v1844, 1
      %vm1881 = vcmp.eq.s32.totalorder %v1845, 1
      %vm1882 = vcmp.eq.s32.totalorder %v1846, 1
      %vm1883 = vcmp.eq.s32.totalorder %v1847, 1
      %vm1884 = vcmp.eq.s32.totalorder %v1848, 1
      %vm1885 = vcmp.eq.s32.totalorder %v1849, 1
      %vm1886 = vcmp.eq.s32.totalorder %v1850, 1
      %vm1887 = vcmp.eq.s32.totalorder %v1851, 1
      %vm1888 = vcmp.eq.s32.totalorder %v1852, 1
      %vm1889 = vcmp.eq.s32.totalorder %v1853, 1
      %vm1890 = vcmp.eq.s32.totalorder %v1854, 1
      %vm1891 = vcmp.eq.s32.totalorder %v1855, 1
      %vm1892 = vcmp.eq.s32.totalorder %v1856, 1
      %vm1893 = vcmp.eq.s32.totalorder %v1857, 1
      %vm1894 = vcmp.eq.s32.totalorder %v1858, 1
      %vm1895 = vcmp.eq.s32.totalorder %v1859, 1
      %vm1896 = vcmp.eq.s32.totalorder %v1860, 1
      %vm1897 = vcmp.eq.s32.totalorder %v1861, 1
      %vm1898 = vcmp.eq.s32.totalorder %v1862, 1
      %vm1899 = vcmp.eq.s32.totalorder %v1863, 1
      %v1900 = vsel %vm1864, %v1792, 0.0
      %v1901 = vsel %vm1865, %v1793, 0.0
      %v1902 = vsel %vm1866, %v1794, 0.0
      %v1903 = vsel %vm1867, %v1795, 0.0
      %v1904 = vsel %vm1868, %v1796, 0.0
      %v1905 = vsel %vm1869, %v1797, 0.0
      %v1906 = vsel %vm1870, %v1798, 0.0
      %v1907 = vsel %vm1871, %v1799, 0.0
      %v1908 = vsel %vm1872, %v1800, 0.0
      %v1909 = vsel %vm1873, %v1801, 0.0
      %v1910 = vsel %vm1874, %v1802, 0.0
      %v1911 = vsel %vm1875, %v1803, 0.0
      %v1912 = vsel %vm1876, %v1804, 0.0
      %v1913 = vsel %vm1877, %v1805, 0.0
      %v1914 = vsel %vm1878, %v1806, 0.0
      %v1915 = vsel %vm1879, %v1807, 0.0
      %v1916 = vsel %vm1880, %v1808, 0.0
      %v1917 = vsel %vm1881, %v1809, 0.0
      %v1918 = vsel %vm1882, %v1810, 0.0
      %v1919 = vsel %vm1883, %v1811, 0.0
      %v1920 = vsel %vm1884, %v1812, 0.0
      %v1921 = vsel %vm1885, %v1813, 0.0
      %v1922 = vsel %vm1886, %v1814, 0.0
      %v1923 = vsel %vm1887, %v1815, 0.0
      %v1924 = vsel %vm1888, %v1816, 0.0
      %v1925 = vsel %vm1889, %v1817, 0.0
      %v1926 = vsel %vm1890, %v1818, 0.0
      %v1927 = vsel %vm1891, %v1819, 0.0
      %v1928 = vsel %vm1892, %v1820, 0.0
      %v1929 = vsel %vm1893, %v1821, 0.0
      %v1930 = vsel %vm1894, %v1822, 0.0
      %v1931 = vsel %vm1895, %v1823, 0.0
      %v1932 = vsel %vm1896, %v1824, 0.0
      %v1933 = vsel %vm1897, %v1825, 0.0
      %v1934 = vsel %vm1898, %v1826, 0.0
      %v1935 = vsel %vm1899, %v1827, 0.0
      %vm1936 = vcmask 523264
      %1937 = vst.msk [vmem:[#allocation2 + $0x13] sm:$0xff] %vm1936, %v1900
      %1938 = vst.msk [vmem:[#allocation2 + $0x1b] sm:$0xff] %vm1936, %v1901
      %1939 = vst.msk [vmem:[#allocation2 + $0x23] sm:$0xff] %vm1936, %v1902
      %1940 = vst.msk [vmem:[#allocation2 + $0x2b] sm:$0xff] %vm1936, %v1903
      %1941 = vst.msk [vmem:[#allocation2 + $0x33] sm:$0xff] %vm1936, %v1904
      %1942 = vst.msk [vmem:[#allocation2 + $0x3b] sm:$0xff] %vm1936, %v1905
      %1943 = vst.msk [vmem:[#allocation2 + $0x43] sm:$0xff] %vm1936, %v1906
      %1944 = vst.msk [vmem:[#allocation2 + $0x4b] sm:$0xff] %vm1936, %v1907
      %1945 = vst.msk [vmem:[#allocation2 + $0x53] sm:$0xff] %vm1936, %v1908
      %1946 = vst.msk [vmem:[#allocation2 + $0x5b] sm:$0xff] %vm1936, %v1909
      %1947 = vst.msk [vmem:[#allocation2 + $0x63] sm:$0xff] %vm1936, %v1910
      %1948 = vst.msk [vmem:[#allocation2 + $0x6b] sm:$0xff] %vm1936, %v1911
      %1949 = vst.msk [vmem:[#allocation2 + $0x73] sm:$0xff] %vm1936, %v1912
      %1950 = vst.msk [vmem:[#allocation2 + $0x7b] sm:$0xff] %vm1936, %v1913
      %1951 = vst.msk [vmem:[#allocation2 + $0x83] sm:$0xff] %vm1936, %v1914
      %1952 = vst.msk [vmem:[#allocation2 + $0x8b] sm:$0xff] %vm1936, %v1915
      %1953 = vst.msk [vmem:[#allocation2 + $0x93] sm:$0xff] %vm1936, %v1916
      %1954 = vst.msk [vmem:[#allocation2 + $0x9b] sm:$0xff] %vm1936, %v1917
      %1955 = vst.msk [vmem:[#allocation2 + $0xa3] sm:$0xff] %vm1936, %v1918
      %1956 = vst.msk [vmem:[#allocation2 + $0xab] sm:$0xff] %vm1936, %v1919
      %1957 = vst.msk [vmem:[#allocation2 + $0xb3] sm:$0xff] %vm1936, %v1920
      %1958 = vst.msk [vmem:[#allocation2 + $0xbb] sm:$0xff] %vm1936, %v1921
      %1959 = vst.msk [vmem:[#allocation2 + $0xc3] sm:$0xff] %vm1936, %v1922
      %1960 = vst.msk [vmem:[#allocation2 + $0xcb] sm:$0xff] %vm1936, %v1923
      %1961 = vst.msk [vmem:[#allocation2 + $0xd3] sm:$0xff] %vm1936, %v1924
      %1962 = vst.msk [vmem:[#allocation2 + $0xdb] sm:$0xff] %vm1936, %v1925
      %1963 = vst.msk [vmem:[#allocation2 + $0xe3] sm:$0xff] %vm1936, %v1926
      %1964 = vst.msk [vmem:[#allocation2 + $0xeb] sm:$0xff] %vm1936, %v1927
      %1965 = vst.msk [vmem:[#allocation2 + $0xf3] sm:$0xff] %vm1936, %v1928
      %1966 = vst.msk [vmem:[#allocation2 + $0xfb] sm:$0xff] %vm1936, %v1929
      %1967 = vst.msk [vmem:[#allocation2 + $0x103] sm:$0xff] %vm1936, %v1930
      %1968 = vst.msk [vmem:[#allocation2 + $0x10b] sm:$0xff] %vm1936, %v1931
      %1969 = vst.msk [vmem:[#allocation2 + $0x113] sm:$0xff] %vm1936, %v1932
      %1970 = vst.msk [vmem:[#allocation2 + $0x11b] sm:$0xff] %vm1936, %v1933
      %1971 = vst.msk [vmem:[#allocation2 + $0x123] sm:$0xff] %vm1936, %v1934
      %1972 = vst.msk [vmem:[#allocation2 + $0x12b] sm:$0xff] %vm1936, %v1935
      %v1973 = vld [vmem:[#allocation2] sm:$0xff]
      %v1974 = vld [vmem:[#allocation2 + $0x8] sm:$0xff]
      %v1975 = vld [vmem:[#allocation2 + $0x10] sm:$0xff]
      %v1976 = vld [vmem:[#allocation2 + $0x18] sm:$0xff]
      %v1977 = vld [vmem:[#allocation2 + $0x20] sm:$0xff]
      %v1978 = vld [vmem:[#allocation2 + $0x28] sm:$0xff]
      %v1979 = vld [vmem:[#allocation2 + $0x30] sm:$0xff]
      %v1980 = vld [vmem:[#allocation2 + $0x38] sm:$0xff]
      %v1981 = vld [vmem:[#allocation2 + $0x40] sm:$0xff]
      %v1982 = vld [vmem:[#allocation2 + $0x48] sm:$0xff]
      %v1983 = vld [vmem:[#allocation2 + $0x50] sm:$0xff]
      %v1984 = vld [vmem:[#allocation2 + $0x58] sm:$0xff]
      %v1985 = vld [vmem:[#allocation2 + $0x60] sm:$0xff]
      %v1986 = vld [vmem:[#allocation2 + $0x68] sm:$0xff]
      %v1987 = vld [vmem:[#allocation2 + $0x70] sm:$0xff]
      %v1988 = vld [vmem:[#allocation2 + $0x78] sm:$0xff]
      %v1989 = vld [vmem:[#allocation2 + $0x80] sm:$0xff]
      %v1990 = vld [vmem:[#allocation2 + $0x88] sm:$0xff]
      %v1991 = vld [vmem:[#allocation2 + $0x90] sm:$0xff]
      %v1992 = vld [vmem:[#allocation2 + $0x98] sm:$0xff]
      %v1993 = vld [vmem:[#allocation2 + $0xa0] sm:$0xff]
      %v1994 = vld [vmem:[#allocation2 + $0xa8] sm:$0xff]
      %v1995 = vld [vmem:[#allocation2 + $0xb0] sm:$0xff]
      %v1996 = vld [vmem:[#allocation2 + $0xb8] sm:$0xff]
      %v1997 = vld [vmem:[#allocation2 + $0xc0] sm:$0xff]
      %v1998 = vld [vmem:[#allocation2 + $0xc8] sm:$0xff]
      %v1999 = vld [vmem:[#allocation2 + $0xd0] sm:$0xff]
      %v2000 = vld [vmem:[#allocation2 + $0xd8] sm:$0xff]
      %v2001 = vld [vmem:[#allocation2 + $0xe0] sm:$0xff]
      %v2002 = vld [vmem:[#allocation2 + $0xe8] sm:$0xff]
      %v2003 = vld [vmem:[#allocation2 + $0xf0] sm:$0xff]
      %v2004 = vld [vmem:[#allocation2 + $0xf8] sm:$0xff]
      %v2005 = vld [vmem:[#allocation2 + $0x100] sm:$0xff]
      %v2006 = vld [vmem:[#allocation2 + $0x108] sm:$0xff]
      %v2007 = vld [vmem:[#allocation2 + $0x110] sm:$0xff]
      %v2008 = vld [vmem:[#allocation2 + $0x118] sm:$0xff]
      %v2009 = vld [vmem:[#allocation2 + $0x1] sm:$0xff]
      %v2010 = vld [vmem:[#allocation2 + $0x9] sm:$0xff]
      %v2011 = vld [vmem:[#allocation2 + $0x11] sm:$0xff]
      %v2012 = vld [vmem:[#allocation2 + $0x19] sm:$0xff]
      %v2013 = vld [vmem:[#allocation2 + $0x21] sm:$0xff]
      %v2014 = vld [vmem:[#allocation2 + $0x29] sm:$0xff]
      %v2015 = vld [vmem:[#allocation2 + $0x31] sm:$0xff]
      %v2016 = vld [vmem:[#allocation2 + $0x39] sm:$0xff]
      %v2017 = vld [vmem:[#allocation2 + $0x41] sm:$0xff]
      %v2018 = vld [vmem:[#allocation2 + $0x49] sm:$0xff]
      %v2019 = vld [vmem:[#allocation2 + $0x51] sm:$0xff]
      %v2020 = vld [vmem:[#allocation2 + $0x59] sm:$0xff]
      %v2021 = vld [vmem:[#allocation2 + $0x61] sm:$0xff]
      %v2022 = vld [vmem:[#allocation2 + $0x69] sm:$0xff]
      %v2023 = vld [vmem:[#allocation2 + $0x71] sm:$0xff]
      %v2024 = vld [vmem:[#allocation2 + $0x79] sm:$0xff]
      %v2025 = vld [vmem:[#allocation2 + $0x81] sm:$0xff]
      %v2026 = vld [vmem:[#allocation2 + $0x89] sm:$0xff]
      %v2027 = vld [vmem:[#allocation2 + $0x91] sm:$0xff]
      %v2028 = vld [vmem:[#allocation2 + $0x99] sm:$0xff]
      %v2029 = vld [vmem:[#allocation2 + $0xa1] sm:$0xff]
      %v2030 = vld [vmem:[#allocation2 + $0xa9] sm:$0xff]
      %v2031 = vld [vmem:[#allocation2 + $0xb1] sm:$0xff]
      %v2032 = vld [vmem:[#allocation2 + $0xb9] sm:$0xff]
      %v2033 = vld [vmem:[#allocation2 + $0xc1] sm:$0xff]
      %v2034 = vld [vmem:[#allocation2 + $0xc9] sm:$0xff]
      %v2035 = vld [vmem:[#allocation2 + $0xd1] sm:$0xff]
      %v2036 = vld [vmem:[#allocation2 + $0xd9] sm:$0xff]
      %v2037 = vld [vmem:[#allocation2 + $0xe1] sm:$0xff]
      %v2038 = vld [vmem:[#allocation2 + $0xe9] sm:$0xff]
      %v2039 = vld [vmem:[#allocation2 + $0xf1] sm:$0xff]
      %v2040 = vld [vmem:[#allocation2 + $0xf9] sm:$0xff]
      %v2041 = vld [vmem:[#allocation2 + $0x101] sm:$0xff]
      %v2042 = vld [vmem:[#allocation2 + $0x109] sm:$0xff]
      %v2043 = vld [vmem:[#allocation2 + $0x111] sm:$0xff]
      %v2044 = vld [vmem:[#allocation2 + $0x119] sm:$0xff]
      %v2045 = vld [vmem:[#allocation2 + $0x2] sm:$0xff]
      %v2046 = vld [vmem:[#allocation2 + $0xa] sm:$0xff]
      %v2047 = vld [vmem:[#allocation2 + $0x12] sm:$0xff]
      %v2048 = vld [vmem:[#allocation2 + $0x1a] sm:$0xff]
      %v2049 = vld [vmem:[#allocation2 + $0x22] sm:$0xff]
      %v2050 = vld [vmem:[#allocation2 + $0x2a] sm:$0xff]
      %v2051 = vld [vmem:[#allocation2 + $0x32] sm:$0xff]
      %v2052 = vld [vmem:[#allocation2 + $0x3a] sm:$0xff]
      %v2053 = vld [vmem:[#allocation2 + $0x42] sm:$0xff]
      %v2054 = vld [vmem:[#allocation2 + $0x4a] sm:$0xff]
      %v2055 = vld [vmem:[#allocation2 + $0x52] sm:$0xff]
      %v2056 = vld [vmem:[#allocation2 + $0x5a] sm:$0xff]
      %v2057 = vld [vmem:[#allocation2 + $0x62] sm:$0xff]
      %v2058 = vld [vmem:[#allocation2 + $0x6a] sm:$0xff]
      %v2059 = vld [vmem:[#allocation2 + $0x72] sm:$0xff]
      %v2060 = vld [vmem:[#allocation2 + $0x7a] sm:$0xff]
      %v2061 = vld [vmem:[#allocation2 + $0x82] sm:$0xff]
      %v2062 = vld [vmem:[#allocation2 + $0x8a] sm:$0xff]
      %v2063 = vld [vmem:[#allocation2 + $0x92] sm:$0xff]
      %v2064 = vld [vmem:[#allocation2 + $0x9a] sm:$0xff]
      %v2065 = vld [vmem:[#allocation2 + $0xa2] sm:$0xff]
      %v2066 = vld [vmem:[#allocation2 + $0xaa] sm:$0xff]
      %v2067 = vld [vmem:[#allocation2 + $0xb2] sm:$0xff]
      %v2068 = vld [vmem:[#allocation2 + $0xba] sm:$0xff]
      %v2069 = vld [vmem:[#allocation2 + $0xc2] sm:$0xff]
      %v2070 = vld [vmem:[#allocation2 + $0xca] sm:$0xff]
      %v2071 = vld [vmem:[#allocation2 + $0xd2] sm:$0xff]
      %v2072 = vld [vmem:[#allocation2 + $0xda] sm:$0xff]
      %v2073 = vld [vmem:[#allocation2 + $0xe2] sm:$0xff]
      %v2074 = vld [vmem:[#allocation2 + $0xea] sm:$0xff]
      %v2075 = vld [vmem:[#allocation2 + $0xf2] sm:$0xff]
      %v2076 = vld [vmem:[#allocation2 + $0xfa] sm:$0xff]
      %v2077 = vld [vmem:[#allocation2 + $0x102] sm:$0xff]
      %v2078 = vld [vmem:[#allocation2 + $0x10a] sm:$0xff]
      %v2079 = vld [vmem:[#allocation2 + $0x112] sm:$0xff]
      %v2080 = vld [vmem:[#allocation2 + $0x11a] sm:$0xff]
      %2117 = vrot.lane.b32.xlu0 %v2009, 64
      %v2118 = vpop.permute.xlu0 %2117
      %2119 = vrot.lane.b32.xlu0 %v2010, 64
      %v2120 = vpop.permute.xlu0 %2119
      %2121 = vrot.lane.b32.xlu0 %v2011, 64
      %v2122 = vpop.permute.xlu0 %2121
      %2123 = vrot.lane.b32.xlu0 %v2012, 64
      %v2124 = vpop.permute.xlu0 %2123
      %2125 = vrot.lane.b32.xlu0 %v2013, 64
      %v2126 = vpop.permute.xlu0 %2125
      %2127 = vrot.lane.b32.xlu0 %v2014, 64
      %v2128 = vpop.permute.xlu0 %2127
      %2129 = vrot.lane.b32.xlu0 %v2015, 64
      %v2130 = vpop.permute.xlu0 %2129
      %2131 = vrot.lane.b32.xlu0 %v2016, 64
      %v2132 = vpop.permute.xlu0 %2131
      %2133 = vrot.lane.b32.xlu0 %v2017, 64
      %v2134 = vpop.permute.xlu0 %2133
      %2135 = vrot.lane.b32.xlu0 %v2018, 64
      %v2136 = vpop.permute.xlu0 %2135
      %2137 = vrot.lane.b32.xlu0 %v2019, 64
      %v2138 = vpop.permute.xlu0 %2137
      %2139 = vrot.lane.b32.xlu0 %v2020, 64
      %v2140 = vpop.permute.xlu0 %2139
      %2141 = vrot.lane.b32.xlu0 %v2021, 64
      %v2142 = vpop.permute.xlu0 %2141
      %2143 = vrot.lane.b32.xlu0 %v2022, 64
      %v2144 = vpop.permute.xlu0 %2143
      %2145 = vrot.lane.b32.xlu0 %v2023, 64
      %v2146 = vpop.permute.xlu0 %2145
      %2147 = vrot.lane.b32.xlu0 %v2024, 64
      %v2148 = vpop.permute.xlu0 %2147
      %2149 = vrot.lane.b32.xlu0 %v2025, 64
      %v2150 = vpop.permute.xlu0 %2149
      %2151 = vrot.lane.b32.xlu0 %v2026, 64
      %v2152 = vpop.permute.xlu0 %2151
      %2153 = vrot.lane.b32.xlu0 %v2027, 64
      %v2154 = vpop.permute.xlu0 %2153
      %2155 = vrot.lane.b32.xlu0 %v2028, 64
      %v2156 = vpop.permute.xlu0 %2155
      %2157 = vrot.lane.b32.xlu0 %v2029, 64
      %v2158 = vpop.permute.xlu0 %2157
      %2159 = vrot.lane.b32.xlu0 %v2030, 64
      %v2160 = vpop.permute.xlu0 %2159
      %2161 = vrot.lane.b32.xlu0 %v2031, 64
      %v2162 = vpop.permute.xlu0 %2161
      %2163 = vrot.lane.b32.xlu0 %v2032, 64
      %v2164 = vpop.permute.xlu0 %2163
      %2165 = vrot.lane.b32.xlu0 %v2033, 64
      %v2166 = vpop.permute.xlu0 %2165
      %2167 = vrot.lane.b32.xlu0 %v2034, 64
      %v2168 = vpop.permute.xlu0 %2167
      %2169 = vrot.lane.b32.xlu0 %v2035, 64
      %v2170 = vpop.permute.xlu0 %2169
      %2171 = vrot.lane.b32.xlu0 %v2036, 64
      %v2172 = vpop.permute.xlu0 %2171
      %2173 = vrot.lane.b32.xlu0 %v2037, 64
      %v2174 = vpop.permute.xlu0 %2173
      %2175 = vrot.lane.b32.xlu0 %v2038, 64
      %v2176 = vpop.permute.xlu0 %2175
      %2177 = vrot.lane.b32.xlu0 %v2039, 64
      %v2178 = vpop.permute.xlu0 %2177
      %2179 = vrot.lane.b32.xlu0 %v2040, 64
      %v2180 = vpop.permute.xlu0 %2179
      %2181 = vrot.lane.b32.xlu0 %v2041, 64
      %v2182 = vpop.permute.xlu0 %2181
      %2183 = vrot.lane.b32.xlu0 %v2042, 64
      %v2184 = vpop.permute.xlu0 %2183
      %2185 = vrot.lane.b32.xlu0 %v2043, 64
      %v2186 = vpop.permute.xlu0 %2185
      %2187 = vrot.lane.b32.xlu0 %v2044, 64
      %v2188 = vpop.permute.xlu0 %2187
      %v2225 = vsel %vm1936, %v1973, %v2118
      %v2226 = vsel %vm1936, %v1974, %v2120
      %v2227 = vsel %vm1936, %v1975, %v2122
      %v2228 = vsel %vm1936, %v1976, %v2124
      %v2229 = vsel %vm1936, %v1977, %v2126
      %v2230 = vsel %vm1936, %v1978, %v2128
      %v2231 = vsel %vm1936, %v1979, %v2130
      %v2232 = vsel %vm1936, %v1980, %v2132
      %v2233 = vsel %vm1936, %v1981, %v2134
      %v2234 = vsel %vm1936, %v1982, %v2136
      %v2235 = vsel %vm1936, %v1983, %v2138
      %v2236 = vsel %vm1936, %v1984, %v2140
      %v2237 = vsel %vm1936, %v1985, %v2142
      %v2238 = vsel %vm1936, %v1986, %v2144
      %v2239 = vsel %vm1936, %v1987, %v2146
      %v2240 = vsel %vm1936, %v1988, %v2148
      %v2241 = vsel %vm1936, %v1989, %v2150
      %v2242 = vsel %vm1936, %v1990, %v2152
      %v2243 = vsel %vm1936, %v1991, %v2154
      %v2244 = vsel %vm1936, %v1992, %v2156
      %v2245 = vsel %vm1936, %v1993, %v2158
      %v2246 = vsel %vm1936, %v1994, %v2160
      %v2247 = vsel %vm1936, %v1995, %v2162
      %v2248 = vsel %vm1936, %v1996, %v2164
      %v2249 = vsel %vm1936, %v1997, %v2166
      %v2250 = vsel %vm1936, %v1998, %v2168
      %v2251 = vsel %vm1936, %v1999, %v2170
      %v2252 = vsel %vm1936, %v2000, %v2172
      %v2253 = vsel %vm1936, %v2001, %v2174
      %v2254 = vsel %vm1936, %v2002, %v2176
      %v2255 = vsel %vm1936, %v2003, %v2178
      %v2256 = vsel %vm1936, %v2004, %v2180
      %v2257 = vsel %vm1936, %v2005, %v2182
      %v2258 = vsel %vm1936, %v2006, %v2184
      %v2259 = vsel %vm1936, %v2007, %v2186
      %v2260 = vsel %vm1936, %v2008, %v2188
      %v2261 = vld [vmem:[%s2] sm:$0xff]
      %v2262 = vld [vmem:[%s2 + $0x8] sm:$0xff]
      %v2263 = vld [vmem:[%s2 + $0x10] sm:$0xff]
      %v2264 = vld [vmem:[%s2 + $0x18] sm:$0xff]
      %v2265 = vld [vmem:[%s2 + $0x20] sm:$0xff]
      %v2266 = vld [vmem:[%s2 + $0x28] sm:$0xff]
      %v2267 = vld [vmem:[%s2 + $0x30] sm:$0xff]
      %v2268 = vld [vmem:[%s2 + $0x38] sm:$0xff]
      %v2269 = vld [vmem:[%s2 + $0x40] sm:$0xff]
      %v2270 = vld [vmem:[%s2 + $0x48] sm:$0xff]
      %v2271 = vld [vmem:[%s2 + $0x50] sm:$0xff]
      %v2272 = vld [vmem:[%s2 + $0x58] sm:$0xff]
      %v2273 = vld [vmem:[%s2 + $0x60] sm:$0xff]
      %v2274 = vld [vmem:[%s2 + $0x68] sm:$0xff]
      %v2275 = vld [vmem:[%s2 + $0x70] sm:$0xff]
      %v2276 = vld [vmem:[%s2 + $0x78] sm:$0xff]
      %v2277 = vld [vmem:[%s2 + $0x80] sm:$0xff]
      %v2278 = vld [vmem:[%s2 + $0x88] sm:$0xff]
      %v2279 = vld [vmem:[%s2 + $0x90] sm:$0xff]
      %v2280 = vld [vmem:[%s2 + $0x98] sm:$0xff]
      %v2281 = vld [vmem:[%s2 + $0xa0] sm:$0xff]
      %v2282 = vld [vmem:[%s2 + $0xa8] sm:$0xff]
      %v2283 = vld [vmem:[%s2 + $0xb0] sm:$0xff]
      %v2284 = vld [vmem:[%s2 + $0xb8] sm:$0xff]
      %v2285 = vld [vmem:[#allocation2 + $0x122] sm:$0xff]
      %v2286 = vld [vmem:[#allocation2 + $0x12a] sm:$0xff]
      %v2287 = vld [vmem:[#allocation2 + $0x13] sm:$0xff]
      %v2288 = vld [vmem:[#allocation2 + $0x1b] sm:$0xff]
      %v2289 = vld [vmem:[#allocation2 + $0x23] sm:$0xff]
      %v2290 = vld [vmem:[#allocation2 + $0x2b] sm:$0xff]
      %v2291 = vld [vmem:[#allocation2 + $0x33] sm:$0xff]
      %v2292 = vld [vmem:[#allocation2 + $0x3b] sm:$0xff]
      %v2293 = vld [vmem:[#allocation2 + $0x43] sm:$0xff]
      %v2294 = vld [vmem:[#allocation2 + $0x4b] sm:$0xff]
      %v2295 = vld [vmem:[#allocation2 + $0x53] sm:$0xff]
      %v2296 = vld [vmem:[#allocation2 + $0x5b] sm:$0xff]
      %v2297 = vld [vmem:[#allocation2 + $0x63] sm:$0xff]
      %v2298 = vld [vmem:[#allocation2 + $0x6b] sm:$0xff]
      %v2299 = vld [vmem:[#allocation2 + $0x73] sm:$0xff]
      %v2300 = vld [vmem:[#allocation2 + $0x7b] sm:$0xff]
      %v2301 = vld [vmem:[#allocation2 + $0x83] sm:$0xff]
      %v2302 = vld [vmem:[#allocation2 + $0x8b] sm:$0xff]
      %v2303 = vld [vmem:[#allocation2 + $0x93] sm:$0xff]
      %v2304 = vld [vmem:[#allocation2 + $0x9b] sm:$0xff]
      %v2305 = vld [vmem:[#allocation2 + $0xa3] sm:$0xff]
      %v2306 = vld [vmem:[#allocation2 + $0xab] sm:$0xff]
      %v2307 = vld [vmem:[#allocation2 + $0xb3] sm:$0xff]
      %v2308 = vld [vmem:[#allocation2 + $0xbb] sm:$0xff]
      %v2309 = vld [vmem:[#allocation2 + $0xc3] sm:$0xff]
      %v2310 = vld [vmem:[#allocation2 + $0xcb] sm:$0xff]
      %v2311 = vld [vmem:[#allocation2 + $0xd3] sm:$0xff]
      %v2312 = vld [vmem:[#allocation2 + $0xdb] sm:$0xff]
      %v2313 = vld [vmem:[#allocation2 + $0xe3] sm:$0xff]
      %v2314 = vld [vmem:[#allocation2 + $0xeb] sm:$0xff]
      %v2315 = vld [vmem:[#allocation2 + $0xf3] sm:$0xff]
      %v2316 = vld [vmem:[#allocation2 + $0xfb] sm:$0xff]
      %v2317 = vld [vmem:[#allocation2 + $0x103] sm:$0xff]
      %v2318 = vld [vmem:[#allocation2 + $0x10b] sm:$0xff]
      %v2319 = vld [vmem:[#allocation2 + $0x113] sm:$0xff]
      %v2320 = vld [vmem:[#allocation2 + $0x11b] sm:$0xff]
      %v2321 = vld [vmem:[#allocation2 + $0x123] sm:$0xff]
      %v2322 = vld [vmem:[#allocation2 + $0x12b] sm:$0xff]
      %v2323 = vld [vmem:[#allocation2 + $0x14] sm:$0xff]
      %v2324 = vld [vmem:[#allocation2 + $0x1c] sm:$0xff]
      %v2325 = vld [vmem:[#allocation2 + $0x24] sm:$0xff]
      %v2326 = vld [vmem:[#allocation2 + $0x2c] sm:$0xff]
      %v2327 = vld [vmem:[#allocation2 + $0x34] sm:$0xff]
      %v2328 = vld [vmem:[#allocation2 + $0x3c] sm:$0xff]
      %v2329 = vld [vmem:[#allocation2 + $0x44] sm:$0xff]
      %v2330 = vld [vmem:[#allocation2 + $0x4c] sm:$0xff]
      %v2331 = vld [vmem:[#allocation2 + $0x54] sm:$0xff]
      %v2332 = vld [vmem:[#allocation2 + $0x5c] sm:$0xff]
      %v2333 = vld [vmem:[#allocation2 + $0x64] sm:$0xff]
      %v2334 = vld [vmem:[#allocation2 + $0x6c] sm:$0xff]
      %v2335 = vld [vmem:[#allocation2 + $0x74] sm:$0xff]
      %v2336 = vld [vmem:[#allocation2 + $0x7c] sm:$0xff]
      %v2337 = vld [vmem:[#allocation2 + $0x84] sm:$0xff]
      %v2338 = vld [vmem:[#allocation2 + $0x8c] sm:$0xff]
      %v2339 = vld [vmem:[#allocation2 + $0x94] sm:$0xff]
      %v2340 = vld [vmem:[#allocation2 + $0x9c] sm:$0xff]
      %v2341 = vld [vmem:[#allocation2 + $0xa4] sm:$0xff]
      %v2342 = vld [vmem:[#allocation2 + $0xac] sm:$0xff]
      %v2343 = vld [vmem:[#allocation2 + $0xb4] sm:$0xff]
      %v2344 = vld [vmem:[#allocation2 + $0xbc] sm:$0xff]
      %v2345 = vld [vmem:[#allocation2 + $0xc4] sm:$0xff]
      %v2346 = vld [vmem:[#allocation2 + $0xcc] sm:$0xff]
      %v2347 = vld [vmem:[#allocation2 + $0xd4] sm:$0xff]
      %v2348 = vld [vmem:[#allocation2 + $0xdc] sm:$0xff]
      %v2349 = vld [vmem:[#allocation2 + $0xe4] sm:$0xff]
      %v2350 = vld [vmem:[#allocation2 + $0xec] sm:$0xff]
      %v2351 = vld [vmem:[#allocation2 + $0xf4] sm:$0xff]
      %v2352 = vld [vmem:[#allocation2 + $0xfc] sm:$0xff]
      %v2353 = vld [vmem:[#allocation2 + $0x104] sm:$0xff]
      %v2354 = vld [vmem:[#allocation2 + $0x10c] sm:$0xff]
      %v2355 = vld [vmem:[#allocation2 + $0x114] sm:$0xff]
      %v2356 = vld [vmem:[#allocation2 + $0x11c] sm:$0xff]
      %v2357 = vld [vmem:[#allocation2 + $0x124] sm:$0xff]
      %v2358 = vld [vmem:[#allocation2 + $0x12c] sm:$0xff]
      %2395 = vrot.lane.b32.xlu0 %v2287, 64
      %v2396 = vpop.permute.xlu0 %2395
      %2397 = vrot.lane.b32.xlu0 %v2288, 64
      %v2398 = vpop.permute.xlu0 %2397
      %2399 = vrot.lane.b32.xlu0 %v2289, 64
      %v2400 = vpop.permute.xlu0 %2399
      %2401 = vrot.lane.b32.xlu0 %v2290, 64
      %v2402 = vpop.permute.xlu0 %2401
      %2403 = vrot.lane.b32.xlu0 %v2291, 64
      %v2404 = vpop.permute.xlu0 %2403
      %2405 = vrot.lane.b32.xlu0 %v2292, 64
      %v2406 = vpop.permute.xlu0 %2405
      %2407 = vrot.lane.b32.xlu0 %v2293, 64
      %v2408 = vpop.permute.xlu0 %2407
      %2409 = vrot.lane.b32.xlu0 %v2294, 64
      %v2410 = vpop.permute.xlu0 %2409
      %2411 = vrot.lane.b32.xlu0 %v2295, 64
      %v2412 = vpop.permute.xlu0 %2411
      %2413 = vrot.lane.b32.xlu0 %v2296, 64
      %v2414 = vpop.permute.xlu0 %2413
      %2415 = vrot.lane.b32.xlu0 %v2297, 64
      %v2416 = vpop.permute.xlu0 %2415
      %2417 = vrot.lane.b32.xlu0 %v2298, 64
      %v2418 = vpop.permute.xlu0 %2417
      %2419 = vrot.lane.b32.xlu0 %v2299, 64
      %v2420 = vpop.permute.xlu0 %2419
      %2421 = vrot.lane.b32.xlu0 %v2300, 64
      %v2422 = vpop.permute.xlu0 %2421
      %2423 = vrot.lane.b32.xlu0 %v2301, 64
      %v2424 = vpop.permute.xlu0 %2423
      %2425 = vrot.lane.b32.xlu0 %v2302, 64
      %v2426 = vpop.permute.xlu0 %2425
      %2427 = vrot.lane.b32.xlu0 %v2303, 64
      %v2428 = vpop.permute.xlu0 %2427
      %2429 = vrot.lane.b32.xlu0 %v2304, 64
      %v2430 = vpop.permute.xlu0 %2429
      %2431 = vrot.lane.b32.xlu0 %v2305, 64
      %v2432 = vpop.permute.xlu0 %2431
      %2433 = vrot.lane.b32.xlu0 %v2306, 64
      %v2434 = vpop.permute.xlu0 %2433
      %2435 = vrot.lane.b32.xlu0 %v2307, 64
      %v2436 = vpop.permute.xlu0 %2435
      %2437 = vrot.lane.b32.xlu0 %v2308, 64
      %v2438 = vpop.permute.xlu0 %2437
      %2439 = vrot.lane.b32.xlu0 %v2309, 64
      %v2440 = vpop.permute.xlu0 %2439
      %2441 = vrot.lane.b32.xlu0 %v2310, 64
      %v2442 = vpop.permute.xlu0 %2441
      %2443 = vrot.lane.b32.xlu0 %v2311, 64
      %v2444 = vpop.permute.xlu0 %2443
      %2445 = vrot.lane.b32.xlu0 %v2312, 64
      %v2446 = vpop.permute.xlu0 %2445
      %2447 = vrot.lane.b32.xlu0 %v2313, 64
      %v2448 = vpop.permute.xlu0 %2447
      %2449 = vrot.lane.b32.xlu0 %v2314, 64
      %v2450 = vpop.permute.xlu0 %2449
      %2451 = vrot.lane.b32.xlu0 %v2315, 64
      %v2452 = vpop.permute.xlu0 %2451
      %2453 = vrot.lane.b32.xlu0 %v2316, 64
      %v2454 = vpop.permute.xlu0 %2453
      %2455 = vrot.lane.b32.xlu0 %v2317, 64
      %v2456 = vpop.permute.xlu0 %2455
      %2457 = vrot.lane.b32.xlu0 %v2318, 64
      %v2458 = vpop.permute.xlu0 %2457
      %2459 = vrot.lane.b32.xlu0 %v2319, 64
      %v2460 = vpop.permute.xlu0 %2459
      %2461 = vrot.lane.b32.xlu0 %v2320, 64
      %v2462 = vpop.permute.xlu0 %2461
      %2463 = vrot.lane.b32.xlu0 %v2321, 64
      %v2464 = vpop.permute.xlu0 %2463
      %2465 = vrot.lane.b32.xlu0 %v2322, 64
      %v2466 = vpop.permute.xlu0 %2465
      %v2503 = vsel %vm1936, %v2047, %v2396
      %v2504 = vsel %vm1936, %v2048, %v2398
      %v2505 = vsel %vm1936, %v2049, %v2400
      %v2506 = vsel %vm1936, %v2050, %v2402
      %v2507 = vsel %vm1936, %v2051, %v2404
      %v2508 = vsel %vm1936, %v2052, %v2406
      %v2509 = vsel %vm1936, %v2053, %v2408
      %v2510 = vsel %vm1936, %v2054, %v2410
      %v2511 = vsel %vm1936, %v2055, %v2412
      %v2512 = vsel %vm1936, %v2056, %v2414
      %v2513 = vsel %vm1936, %v2057, %v2416
      %v2514 = vsel %vm1936, %v2058, %v2418
      %v2515 = vsel %vm1936, %v2059, %v2420
      %v2516 = vsel %vm1936, %v2060, %v2422
      %v2517 = vsel %vm1936, %v2061, %v2424
      %v2518 = vsel %vm1936, %v2062, %v2426
      %v2519 = vsel %vm1936, %v2063, %v2428
      %v2520 = vsel %vm1936, %v2064, %v2430
      %v2521 = vsel %vm1936, %v2065, %v2432
      %v2522 = vsel %vm1936, %v2066, %v2434
      %v2523 = vsel %vm1936, %v2067, %v2436
      %v2524 = vsel %vm1936, %v2068, %v2438
      %v2525 = vsel %vm1936, %v2069, %v2440
      %v2526 = vsel %vm1936, %v2070, %v2442
      %v2527 = vsel %vm1936, %v2071, %v2444
      %v2528 = vsel %vm1936, %v2072, %v2446
      %v2529 = vsel %vm1936, %v2073, %v2448
      %v2530 = vsel %vm1936, %v2074, %v2450
      %v2531 = vsel %vm1936, %v2075, %v2452
      %v2532 = vsel %vm1936, %v2076, %v2454
      %v2533 = vsel %vm1936, %v2077, %v2456
      %v2534 = vsel %vm1936, %v2078, %v2458
      %v2535 = vsel %vm1936, %v2079, %v2460
      %v2536 = vsel %vm1936, %v2080, %v2462
      %v2537 = vsel %vm1936, %v2285, %v2464
      %v2538 = vsel %vm1936, %v2286, %v2466
      %s2539 = scalar_lea.vmem %s2, 192
      %v2540 = vld [vmem:[%s2539] sm:$0xff]
      %v2541 = vld [vmem:[%s2539 + $0x8] sm:$0xff]
      %v2542 = vld [vmem:[%s2539 + $0x10] sm:$0xff]
      %v2543 = vld [vmem:[%s2539 + $0x18] sm:$0xff]
      %v2544 = vld [vmem:[%s2539 + $0x20] sm:$0xff]
      %v2545 = vld [vmem:[%s2539 + $0x28] sm:$0xff]
      %v2546 = vld [vmem:[%s2539 + $0x30] sm:$0xff]
      %v2547 = vld [vmem:[%s2539 + $0x38] sm:$0xff]
      %v2548 = vld [vmem:[%s2539 + $0x40] sm:$0xff]
      %v2549 = vld [vmem:[%s2539 + $0x48] sm:$0xff]
      %v2550 = vld [vmem:[%s2539 + $0x50] sm:$0xff]
      %v2551 = vld [vmem:[%s2539 + $0x58] sm:$0xff]
      %v2552 = vld [vmem:[%s2539 + $0x60] sm:$0xff]
      %v2553 = vld [vmem:[%s2539 + $0x68] sm:$0xff]
      %v2554 = vld [vmem:[%s2539 + $0x70] sm:$0xff]
      %v2555 = vld [vmem:[%s2539 + $0x78] sm:$0xff]
      %v2556 = vld [vmem:[%s2539 + $0x80] sm:$0xff]
      %v2557 = vld [vmem:[%s2539 + $0x88] sm:$0xff]
      %v2558 = vld [vmem:[%s2539 + $0x90] sm:$0xff]
      %v2559 = vld [vmem:[%s2539 + $0x98] sm:$0xff]
      %v2560 = vld [vmem:[%s2539 + $0xa0] sm:$0xff]
      %v2561 = vld [vmem:[%s2539 + $0xa8] sm:$0xff]
      %v2562 = vld [vmem:[%s2539 + $0xb0] sm:$0xff]
      %v2563 = vld [vmem:[%s2539 + $0xb8] sm:$0xff]
      %v2565 = vsel %vm1936, %v2323, 0
      %v2568 = vsel %vm1936, %v2324, 0
      %v2571 = vsel %vm1936, %v2325, 0
      %v2574 = vsel %vm1936, %v2326, 0
      %v2577 = vsel %vm1936, %v2327, 0
      %v2580 = vsel %vm1936, %v2328, 0
      %v2583 = vsel %vm1936, %v2329, 0
      %v2586 = vsel %vm1936, %v2330, 0
      %v2589 = vsel %vm1936, %v2331, 0
      %v2592 = vsel %vm1936, %v2332, 0
      %v2595 = vsel %vm1936, %v2333, 0
      %v2598 = vsel %vm1936, %v2334, 0
      %v2601 = vsel %vm1936, %v2335, 0
      %v2604 = vsel %vm1936, %v2336, 0
      %v2607 = vsel %vm1936, %v2337, 0
      %v2610 = vsel %vm1936, %v2338, 0
      %v2613 = vsel %vm1936, %v2339, 0
      %v2616 = vsel %vm1936, %v2340, 0
      %v2619 = vsel %vm1936, %v2341, 0
      %v2622 = vsel %vm1936, %v2342, 0
      %v2625 = vsel %vm1936, %v2343, 0
      %v2628 = vsel %vm1936, %v2344, 0
      %v2631 = vsel %vm1936, %v2345, 0
      %v2634 = vsel %vm1936, %v2346, 0
      %v2637 = vsel %vm1936, %v2347, 0
      %v2640 = vsel %vm1936, %v2348, 0
      %v2643 = vsel %vm1936, %v2349, 0
      %v2646 = vsel %vm1936, %v2350, 0
      %v2649 = vsel %vm1936, %v2351, 0
      %v2652 = vsel %vm1936, %v2352, 0
      %v2655 = vsel %vm1936, %v2353, 0
      %v2658 = vsel %vm1936, %v2354, 0
      %v2661 = vsel %vm1936, %v2355, 0
      %v2664 = vsel %vm1936, %v2356, 0
      %v2667 = vsel %vm1936, %v2357, 0
      %v2670 = vsel %vm1936, %v2358, 0
      %2672 = vmatpush.msra.mxu0 %v2555
      %2673 = vmatpush.msra.mxu0 %v2554
      %2674 = vmatpush.msra.mxu0 %v2553
      %2675 = vmatpush.msra.mxu0 %v2552
      %2676 = vmatpush.msra.mxu0 %v2551
      %2677 = vmatpush.msra.mxu0 %v2550
      %2678 = vmatpush.msra.mxu0 %v2549
      %2679 = vmatpush.msra.mxu0 %v2548
      %2680 = vmatpush.msra.mxu0 %v2547
      %2681 = vmatpush.msra.mxu0 %v2546
      %2682 = vmatpush.msra.mxu0 %v2545
      %2683 = vmatpush.msra.mxu0 %v2544
      %2684 = vmatpush.msra.mxu0 %v2543
      %2685 = vmatpush.msra.mxu0 %v2542
      %2686 = vmatpush.msra.mxu0 %v2541
      %2687 = vmatpush.msra.mxu0 %v2540
      %2688 = vmatmul.f32.gmra.mxu0 %v2503
      %v2689 = vpop.f32.mrf.mxu0
      %v2690 = vadd.f32 0.0, %v2689
      %2691 = vmatmul.f32.gmra.mxu0 %v2504
      %v2692 = vpop.f32.mrf.mxu0
      %v2693 = vadd.f32 0.0, %v2692
      %2694 = vmatmul.f32.gmra.mxu0 %v2505
      %v2695 = vpop.f32.mrf.mxu0
      %v2696 = vadd.f32 0.0, %v2695
      %2697 = vmatmul.f32.gmra.mxu0 %v2506
      %v2698 = vpop.f32.mrf.mxu0
      %v2699 = vadd.f32 0.0, %v2698
      %2700 = vmatmul.f32.gmra.mxu0 %v2507
      %v2701 = vpop.f32.mrf.mxu0
      %v2702 = vadd.f32 0.0, %v2701
      %2703 = vmatmul.f32.gmra.mxu0 %v2508
      %v2704 = vpop.f32.mrf.mxu0
      %v2705 = vadd.f32 0.0, %v2704
      %2706 = vmatmul.f32.gmra.mxu0 %v2509
      %v2707 = vpop.f32.mrf.mxu0
      %v2708 = vadd.f32 0.0, %v2707
      %2709 = vmatmul.f32.gmra.mxu0 %v2510
      %v2710 = vpop.f32.mrf.mxu0
      %v2711 = vadd.f32 0.0, %v2710
      %2712 = vmatmul.f32.gmra.mxu0 %v2511
      %v2713 = vpop.f32.mrf.mxu0
      %v2714 = vadd.f32 0.0, %v2713
      %2715 = vmatmul.f32.gmra.mxu0 %v2512
      %v2716 = vpop.f32.mrf.mxu0
      %v2717 = vadd.f32 0.0, %v2716
      %2718 = vmatmul.f32.gmra.mxu0 %v2513
      %v2719 = vpop.f32.mrf.mxu0
      %v2720 = vadd.f32 0.0, %v2719
      %2721 = vmatmul.f32.gmra.mxu0 %v2514
      %v2722 = vpop.f32.mrf.mxu0
      %v2723 = vadd.f32 0.0, %v2722
      %2724 = vmatmul.f32.gmra.mxu0 %v2515
      %v2725 = vpop.f32.mrf.mxu0
      %v2726 = vadd.f32 0.0, %v2725
      %2727 = vmatmul.f32.gmra.mxu0 %v2516
      %v2728 = vpop.f32.mrf.mxu0
      %v2729 = vadd.f32 0.0, %v2728
      %2730 = vmatmul.f32.gmra.mxu0 %v2517
      %v2731 = vpop.f32.mrf.mxu0
      %v2732 = vadd.f32 0.0, %v2731
      %2733 = vmatmul.f32.gmra.mxu0 %v2518
      %v2734 = vpop.f32.mrf.mxu0
      %v2735 = vadd.f32 0.0, %v2734
      %2736 = vmatmul.f32.gmra.mxu0 %v2519
      %v2737 = vpop.f32.mrf.mxu0
      %v2738 = vadd.f32 0.0, %v2737
      %2739 = vmatmul.f32.gmra.mxu0 %v2520
      %v2740 = vpop.f32.mrf.mxu0
      %v2741 = vadd.f32 0.0, %v2740
      %2742 = vmatmul.f32.gmra.mxu0 %v2521
      %v2743 = vpop.f32.mrf.mxu0
      %v2744 = vadd.f32 0.0, %v2743
      %2745 = vmatmul.f32.gmra.mxu0 %v2522
      %v2746 = vpop.f32.mrf.mxu0
      %v2747 = vadd.f32 0.0, %v2746
      %2748 = vmatmul.f32.gmra.mxu0 %v2523
      %v2749 = vpop.f32.mrf.mxu0
      %v2750 = vadd.f32 0.0, %v2749
      %2751 = vmatmul.f32.gmra.mxu0 %v2524
      %v2752 = vpop.f32.mrf.mxu0
      %v2753 = vadd.f32 0.0, %v2752
      %2754 = vmatmul.f32.gmra.mxu0 %v2525
      %v2755 = vpop.f32.mrf.mxu0
      %v2756 = vadd.f32 0.0, %v2755
      %2757 = vmatmul.f32.gmra.mxu0 %v2526
      %v2758 = vpop.f32.mrf.mxu0
      %v2759 = vadd.f32 0.0, %v2758
      %2760 = vmatmul.f32.gmra.mxu0 %v2527
      %v2761 = vpop.f32.mrf.mxu0
      %v2762 = vadd.f32 0.0, %v2761
      %2763 = vmatmul.f32.gmra.mxu0 %v2528
      %v2764 = vpop.f32.mrf.mxu0
      %v2765 = vadd.f32 0.0, %v2764
      %2766 = vmatmul.f32.gmra.mxu0 %v2529
      %v2767 = vpop.f32.mrf.mxu0
      %v2768 = vadd.f32 0.0, %v2767
      %2769 = vmatmul.f32.gmra.mxu0 %v2530
      %v2770 = vpop.f32.mrf.mxu0
      %v2771 = vadd.f32 0.0, %v2770
      %2772 = vmatmul.f32.gmra.mxu0 %v2531
      %v2773 = vpop.f32.mrf.mxu0
      %v2774 = vadd.f32 0.0, %v2773
      %2775 = vmatmul.f32.gmra.mxu0 %v2532
      %v2776 = vpop.f32.mrf.mxu0
      %v2777 = vadd.f32 0.0, %v2776
      %2778 = vmatmul.f32.gmra.mxu0 %v2533
      %v2779 = vpop.f32.mrf.mxu0
      %v2780 = vadd.f32 0.0, %v2779
      %2781 = vmatmul.f32.gmra.mxu0 %v2534
      %v2782 = vpop.f32.mrf.mxu0
      %v2783 = vadd.f32 0.0, %v2782
      %2784 = vmatmul.f32.gmra.mxu0 %v2535
      %v2785 = vpop.f32.mrf.mxu0
      %v2786 = vadd.f32 0.0, %v2785
      %2787 = vmatmul.f32.gmra.mxu0 %v2536
      %v2788 = vpop.f32.mrf.mxu0
      %v2789 = vadd.f32 0.0, %v2788
      %2790 = vmatmul.f32.gmra.mxu0 %v2537
      %v2791 = vpop.f32.mrf.mxu0
      %v2792 = vadd.f32 0.0, %v2791
      %2793 = vmatmul.f32.gmra.mxu0 %v2538
      %v2794 = vpop.f32.mrf.mxu0
      %v2795 = vadd.f32 0.0, %v2794
      %2796 = vdwg.mxu0
      %2797 = vmatpush.msra.mxu0 0.0
      %2798 = vmatpush.msra.mxu0 0.0
      %2799 = vmatpush.msra.mxu0 0.0
      %2800 = vmatpush.msra.mxu0 0.0
      %2801 = vmatpush.msra.mxu0 0.0
      %2802 = vmatpush.msra.mxu0 0.0
      %2803 = vmatpush.msra.mxu0 0.0
      %2804 = vmatpush.msra.mxu0 0.0
      %2805 = vmatpush.msra.mxu0 %v2563
      %2806 = vmatpush.msra.mxu0 %v2562
      %2807 = vmatpush.msra.mxu0 %v2561
      %2808 = vmatpush.msra.mxu0 %v2560
      %2809 = vmatpush.msra.mxu0 %v2559
      %2810 = vmatpush.msra.mxu0 %v2558
      %2811 = vmatpush.msra.mxu0 %v2557
      %2812 = vmatpush.msra.mxu0 %v2556
      %2813 = vmatmul.f32.gmra.mxu0 %v2565
      %v2814 = vpop.f32.mrf.mxu0
      %v2815 = vadd.f32 %v2690, %v2814
      %2816 = vmatmul.f32.gmra.mxu0 %v2568
      %v2817 = vpop.f32.mrf.mxu0
      %v2818 = vadd.f32 %v2693, %v2817
      %2819 = vmatmul.f32.gmra.mxu0 %v2571
      %v2820 = vpop.f32.mrf.mxu0
      %v2821 = vadd.f32 %v2696, %v2820
      %2822 = vmatmul.f32.gmra.mxu0 %v2574
      %v2823 = vpop.f32.mrf.mxu0
      %v2824 = vadd.f32 %v2699, %v2823
      %2825 = vmatmul.f32.gmra.mxu0 %v2577
      %v2826 = vpop.f32.mrf.mxu0
      %v2827 = vadd.f32 %v2702, %v2826
      %2828 = vmatmul.f32.gmra.mxu0 %v2580
      %v2829 = vpop.f32.mrf.mxu0
      %v2830 = vadd.f32 %v2705, %v2829
      %2831 = vmatmul.f32.gmra.mxu0 %v2583
      %v2832 = vpop.f32.mrf.mxu0
      %v2833 = vadd.f32 %v2708, %v2832
      %2834 = vmatmul.f32.gmra.mxu0 %v2586
      %v2835 = vpop.f32.mrf.mxu0
      %v2836 = vadd.f32 %v2711, %v2835
      %2837 = vmatmul.f32.gmra.mxu0 %v2589
      %v2838 = vpop.f32.mrf.mxu0
      %v2839 = vadd.f32 %v2714, %v2838
      %2840 = vmatmul.f32.gmra.mxu0 %v2592
      %v2841 = vpop.f32.mrf.mxu0
      %v2842 = vadd.f32 %v2717, %v2841
      %2843 = vmatmul.f32.gmra.mxu0 %v2595
      %v2844 = vpop.f32.mrf.mxu0
      %v2845 = vadd.f32 %v2720, %v2844
      %2846 = vmatmul.f32.gmra.mxu0 %v2598
      %v2847 = vpop.f32.mrf.mxu0
      %v2848 = vadd.f32 %v2723, %v2847
      %2849 = vmatmul.f32.gmra.mxu0 %v2601
      %v2850 = vpop.f32.mrf.mxu0
      %v2851 = vadd.f32 %v2726, %v2850
      %2852 = vmatmul.f32.gmra.mxu0 %v2604
      %v2853 = vpop.f32.mrf.mxu0
      %v2854 = vadd.f32 %v2729, %v2853
      %2855 = vmatmul.f32.gmra.mxu0 %v2607
      %v2856 = vpop.f32.mrf.mxu0
      %v2857 = vadd.f32 %v2732, %v2856
      %2858 = vmatmul.f32.gmra.mxu0 %v2610
      %v2859 = vpop.f32.mrf.mxu0
      %v2860 = vadd.f32 %v2735, %v2859
      %2861 = vmatmul.f32.gmra.mxu0 %v2613
      %v2862 = vpop.f32.mrf.mxu0
      %v2863 = vadd.f32 %v2738, %v2862
      %2864 = vmatmul.f32.gmra.mxu0 %v2616
      %v2865 = vpop.f32.mrf.mxu0
      %v2866 = vadd.f32 %v2741, %v2865
      %2867 = vmatmul.f32.gmra.mxu0 %v2619
      %v2868 = vpop.f32.mrf.mxu0
      %v2869 = vadd.f32 %v2744, %v2868
      %2870 = vmatmul.f32.gmra.mxu0 %v2622
      %v2871 = vpop.f32.mrf.mxu0
      %v2872 = vadd.f32 %v2747, %v2871
      %2873 = vmatmul.f32.gmra.mxu0 %v2625
      %v2874 = vpop.f32.mrf.mxu0
      %v2875 = vadd.f32 %v2750, %v2874
      %2876 = vmatmul.f32.gmra.mxu0 %v2628
      %v2877 = vpop.f32.mrf.mxu0
      %v2878 = vadd.f32 %v2753, %v2877
      %2879 = vmatmul.f32.gmra.mxu0 %v2631
      %v2880 = vpop.f32.mrf.mxu0
      %v2881 = vadd.f32 %v2756, %v2880
      %2882 = vmatmul.f32.gmra.mxu0 %v2634
      %v2883 = vpop.f32.mrf.mxu0
      %v2884 = vadd.f32 %v2759, %v2883
      %2885 = vmatmul.f32.gmra.mxu0 %v2637
      %v2886 = vpop.f32.mrf.mxu0
      %v2887 = vadd.f32 %v2762, %v2886
      %2888 = vmatmul.f32.gmra.mxu0 %v2640
      %v2889 = vpop.f32.mrf.mxu0
      %v2890 = vadd.f32 %v2765, %v2889
      %2891 = vmatmul.f32.gmra.mxu0 %v2643
      %v2892 = vpop.f32.mrf.mxu0
      %v2893 = vadd.f32 %v2768, %v2892
      %2894 = vmatmul.f32.gmra.mxu0 %v2646
      %v2895 = vpop.f32.mrf.mxu0
      %v2896 = vadd.f32 %v2771, %v2895
      %2897 = vmatmul.f32.gmra.mxu0 %v2649
      %v2898 = vpop.f32.mrf.mxu0
      %v2899 = vadd.f32 %v2774, %v2898
      %2900 = vmatmul.f32.gmra.mxu0 %v2652
      %v2901 = vpop.f32.mrf.mxu0
      %v2902 = vadd.f32 %v2777, %v2901
      %2903 = vmatmul.f32.gmra.mxu0 %v2655
      %v2904 = vpop.f32.mrf.mxu0
      %v2905 = vadd.f32 %v2780, %v2904
      %2906 = vmatmul.f32.gmra.mxu0 %v2658
      %v2907 = vpop.f32.mrf.mxu0
      %v2908 = vadd.f32 %v2783, %v2907
      %2909 = vmatmul.f32.gmra.mxu0 %v2661
      %v2910 = vpop.f32.mrf.mxu0
      %v2911 = vadd.f32 %v2786, %v2910
      %2912 = vmatmul.f32.gmra.mxu0 %v2664
      %v2913 = vpop.f32.mrf.mxu0
      %v2914 = vadd.f32 %v2789, %v2913
      %2915 = vmatmul.f32.gmra.mxu0 %v2667
      %v2916 = vpop.f32.mrf.mxu0
      %v2917 = vadd.f32 %v2792, %v2916
      %2918 = vmatmul.f32.gmra.mxu0 %v2670
      %v2919 = vpop.f32.mrf.mxu0
      %v2920 = vadd.f32 %v2795, %v2919
      %2921 = vdwg.mxu0
      %v2923 = vsel %vm1936, %v2045, 0
      %v2926 = vsel %vm1936, %v2046, 0
      %v2929 = vsel %vm1936, %v2047, 0
      %v2932 = vsel %vm1936, %v2048, 0
      %v2935 = vsel %vm1936, %v2049, 0
      %v2938 = vsel %vm1936, %v2050, 0
      %v2941 = vsel %vm1936, %v2051, 0
      %v2944 = vsel %vm1936, %v2052, 0
      %v2947 = vsel %vm1936, %v2053, 0
      %v2950 = vsel %vm1936, %v2054, 0
      %v2953 = vsel %vm1936, %v2055, 0
      %v2956 = vsel %vm1936, %v2056, 0
      %v2959 = vsel %vm1936, %v2057, 0
      %v2962 = vsel %vm1936, %v2058, 0
      %v2965 = vsel %vm1936, %v2059, 0
      %v2968 = vsel %vm1936, %v2060, 0
      %v2971 = vsel %vm1936, %v2061, 0
      %v2974 = vsel %vm1936, %v2062, 0
      %v2977 = vsel %vm1936, %v2063, 0
      %v2980 = vsel %vm1936, %v2064, 0
      %v2983 = vsel %vm1936, %v2065, 0
      %v2986 = vsel %vm1936, %v2066, 0
      %v2989 = vsel %vm1936, %v2067, 0
      %v2992 = vsel %vm1936, %v2068, 0
      %v2995 = vsel %vm1936, %v2069, 0
      %v2998 = vsel %vm1936, %v2070, 0
      %v3001 = vsel %vm1936, %v2071, 0
      %v3004 = vsel %vm1936, %v2072, 0
      %v3007 = vsel %vm1936, %v2073, 0
      %v3010 = vsel %vm1936, %v2074, 0
      %v3013 = vsel %vm1936, %v2075, 0
      %v3016 = vsel %vm1936, %v2076, 0
      %v3019 = vsel %vm1936, %v2077, 0
      %v3022 = vsel %vm1936, %v2078, 0
      %v3025 = vsel %vm1936, %v2079, 0
      %v3028 = vsel %vm1936, %v2080, 0
      %3030 = vmatpush.msra.mxu0 %v2276
      %3031 = vmatpush.msra.mxu0 %v2275
      %3032 = vmatpush.msra.mxu0 %v2274
      %3033 = vmatpush.msra.mxu0 %v2273
      %3034 = vmatpush.msra.mxu0 %v2272
      %3035 = vmatpush.msra.mxu0 %v2271
      %3036 = vmatpush.msra.mxu0 %v2270
      %3037 = vmatpush.msra.mxu0 %v2269
      %3038 = vmatpush.msra.mxu0 %v2268
      %3039 = vmatpush.msra.mxu0 %v2267
      %3040 = vmatpush.msra.mxu0 %v2266
      %3041 = vmatpush.msra.mxu0 %v2265
      %3042 = vmatpush.msra.mxu0 %v2264
      %3043 = vmatpush.msra.mxu0 %v2263
      %3044 = vmatpush.msra.mxu0 %v2262
      %3045 = vmatpush.msra.mxu0 %v2261
      %3046 = vmatmul.f32.gmra.mxu0 %v2225
      %v3047 = vpop.f32.mrf.mxu0
      %v3048 = vadd.f32 %v2815, %v3047
      %3049 = vmatmul.f32.gmra.mxu0 %v2226
      %v3050 = vpop.f32.mrf.mxu0
      %v3051 = vadd.f32 %v2818, %v3050
      %3052 = vmatmul.f32.gmra.mxu0 %v2227
      %v3053 = vpop.f32.mrf.mxu0
      %v3054 = vadd.f32 %v2821, %v3053
      %3055 = vmatmul.f32.gmra.mxu0 %v2228
      %v3056 = vpop.f32.mrf.mxu0
      %v3057 = vadd.f32 %v2824, %v3056
      %3058 = vmatmul.f32.gmra.mxu0 %v2229
      %v3059 = vpop.f32.mrf.mxu0
      %v3060 = vadd.f32 %v2827, %v3059
      %3061 = vmatmul.f32.gmra.mxu0 %v2230
      %v3062 = vpop.f32.mrf.mxu0
      %v3063 = vadd.f32 %v2830, %v3062
      %3064 = vmatmul.f32.gmra.mxu0 %v2231
      %v3065 = vpop.f32.mrf.mxu0
      %v3066 = vadd.f32 %v2833, %v3065
      %3067 = vmatmul.f32.gmra.mxu0 %v2232
      %v3068 = vpop.f32.mrf.mxu0
      %v3069 = vadd.f32 %v2836, %v3068
      %3070 = vmatmul.f32.gmra.mxu0 %v2233
      %v3071 = vpop.f32.mrf.mxu0
      %v3072 = vadd.f32 %v2839, %v3071
      %3073 = vmatmul.f32.gmra.mxu0 %v2234
      %v3074 = vpop.f32.mrf.mxu0
      %v3075 = vadd.f32 %v2842, %v3074
      %3076 = vmatmul.f32.gmra.mxu0 %v2235
      %v3077 = vpop.f32.mrf.mxu0
      %v3078 = vadd.f32 %v2845, %v3077
      %3079 = vmatmul.f32.gmra.mxu0 %v2236
      %v3080 = vpop.f32.mrf.mxu0
      %v3081 = vadd.f32 %v2848, %v3080
      %3082 = vmatmul.f32.gmra.mxu0 %v2237
      %v3083 = vpop.f32.mrf.mxu0
      %v3084 = vadd.f32 %v2851, %v3083
      %3085 = vmatmul.f32.gmra.mxu0 %v2238
      %v3086 = vpop.f32.mrf.mxu0
      %v3087 = vadd.f32 %v2854, %v3086
      %3088 = vmatmul.f32.gmra.mxu0 %v2239
      %v3089 = vpop.f32.mrf.mxu0
      %v3090 = vadd.f32 %v2857, %v3089
      %3091 = vmatmul.f32.gmra.mxu0 %v2240
      %v3092 = vpop.f32.mrf.mxu0
      %v3093 = vadd.f32 %v2860, %v3092
      %3094 = vmatmul.f32.gmra.mxu0 %v2241
      %v3095 = vpop.f32.mrf.mxu0
      %v3096 = vadd.f32 %v2863, %v3095
      %3097 = vmatmul.f32.gmra.mxu0 %v2242
      %v3098 = vpop.f32.mrf.mxu0
      %v3099 = vadd.f32 %v2866, %v3098
      %3100 = vmatmul.f32.gmra.mxu0 %v2243
      %v3101 = vpop.f32.mrf.mxu0
      %v3102 = vadd.f32 %v2869, %v3101
      %3103 = vmatmul.f32.gmra.mxu0 %v2244
      %v3104 = vpop.f32.mrf.mxu0
      %v3105 = vadd.f32 %v2872, %v3104
      %3106 = vmatmul.f32.gmra.mxu0 %v2245
      %v3107 = vpop.f32.mrf.mxu0
      %v3108 = vadd.f32 %v2875, %v3107
      %3109 = vmatmul.f32.gmra.mxu0 %v2246
      %v3110 = vpop.f32.mrf.mxu0
      %v3111 = vadd.f32 %v2878, %v3110
      %3112 = vmatmul.f32.gmra.mxu0 %v2247
      %v3113 = vpop.f32.mrf.mxu0
      %v3114 = vadd.f32 %v2881, %v3113
      %3115 = vmatmul.f32.gmra.mxu0 %v2248
      %v3116 = vpop.f32.mrf.mxu0
      %v3117 = vadd.f32 %v2884, %v3116
      %3118 = vmatmul.f32.gmra.mxu0 %v2249
      %v3119 = vpop.f32.mrf.mxu0
      %v3120 = vadd.f32 %v2887, %v3119
      %3121 = vmatmul.f32.gmra.mxu0 %v2250
      %v3122 = vpop.f32.mrf.mxu0
      %v3123 = vadd.f32 %v2890, %v3122
      %3124 = vmatmul.f32.gmra.mxu0 %v2251
      %v3125 = vpop.f32.mrf.mxu0
      %v3126 = vadd.f32 %v2893, %v3125
      %3127 = vmatmul.f32.gmra.mxu0 %v2252
      %v3128 = vpop.f32.mrf.mxu0
      %v3129 = vadd.f32 %v2896, %v3128
      %3130 = vmatmul.f32.gmra.mxu0 %v2253
      %v3131 = vpop.f32.mrf.mxu0
      %v3132 = vadd.f32 %v2899, %v3131
      %3133 = vmatmul.f32.gmra.mxu0 %v2254
      %v3134 = vpop.f32.mrf.mxu0
      %v3135 = vadd.f32 %v2902, %v3134
      %3136 = vmatmul.f32.gmra.mxu0 %v2255
      %v3137 = vpop.f32.mrf.mxu0
      %v3138 = vadd.f32 %v2905, %v3137
      %3139 = vmatmul.f32.gmra.mxu0 %v2256
      %v3140 = vpop.f32.mrf.mxu0
      %v3141 = vadd.f32 %v2908, %v3140
      %3142 = vmatmul.f32.gmra.mxu0 %v2257
      %v3143 = vpop.f32.mrf.mxu0
      %v3144 = vadd.f32 %v2911, %v3143
      %3145 = vmatmul.f32.gmra.mxu0 %v2258
      %v3146 = vpop.f32.mrf.mxu0
      %v3147 = vadd.f32 %v2914, %v3146
      %3148 = vmatmul.f32.gmra.mxu0 %v2259
      %v3149 = vpop.f32.mrf.mxu0
      %v3150 = vadd.f32 %v2917, %v3149
      %3151 = vmatmul.f32.gmra.mxu0 %v2260
      %v3152 = vpop.f32.mrf.mxu0
      %v3153 = vadd.f32 %v2920, %v3152
      %3154 = vdwg.mxu0
      %3155 = vmatpush.msra.mxu0 0.0
      %3156 = vmatpush.msra.mxu0 0.0
      %3157 = vmatpush.msra.mxu0 0.0
      %3158 = vmatpush.msra.mxu0 0.0
      %3159 = vmatpush.msra.mxu0 0.0
      %3160 = vmatpush.msra.mxu0 0.0
      %3161 = vmatpush.msra.mxu0 0.0
      %3162 = vmatpush.msra.mxu0 0.0
      %3163 = vmatpush.msra.mxu0 %v2284
      %3164 = vmatpush.msra.mxu0 %v2283
      %3165 = vmatpush.msra.mxu0 %v2282
      %3166 = vmatpush.msra.mxu0 %v2281
      %3167 = vmatpush.msra.mxu0 %v2280
      %3168 = vmatpush.msra.mxu0 %v2279
      %3169 = vmatpush.msra.mxu0 %v2278
      %3170 = vmatpush.msra.mxu0 %v2277
      %3171 = vmatmul.f32.gmra.mxu0 %v2923
      %v3172 = vpop.f32.mrf.mxu0
      %v3173 = vadd.f32 %v3048, %v3172
      %3174 = vmatmul.f32.gmra.mxu0 %v2926
      %v3175 = vpop.f32.mrf.mxu0
      %v3176 = vadd.f32 %v3051, %v3175
      %3177 = vmatmul.f32.gmra.mxu0 %v2929
      %v3178 = vpop.f32.mrf.mxu0
      %v3179 = vadd.f32 %v3054, %v3178
      %3180 = vmatmul.f32.gmra.mxu0 %v2932
      %v3181 = vpop.f32.mrf.mxu0
      %v3182 = vadd.f32 %v3057, %v3181
      %3183 = vmatmul.f32.gmra.mxu0 %v2935
      %v3184 = vpop.f32.mrf.mxu0
      %v3185 = vadd.f32 %v3060, %v3184
      %3186 = vmatmul.f32.gmra.mxu0 %v2938
      %v3187 = vpop.f32.mrf.mxu0
      %v3188 = vadd.f32 %v3063, %v3187
      %3189 = vmatmul.f32.gmra.mxu0 %v2941
      %v3190 = vpop.f32.mrf.mxu0
      %v3191 = vadd.f32 %v3066, %v3190
      %3192 = vmatmul.f32.gmra.mxu0 %v2944
      %v3193 = vpop.f32.mrf.mxu0
      %v3194 = vadd.f32 %v3069, %v3193
      %3195 = vmatmul.f32.gmra.mxu0 %v2947
      %v3196 = vpop.f32.mrf.mxu0
      %v3197 = vadd.f32 %v3072, %v3196
      %3198 = vmatmul.f32.gmra.mxu0 %v2950
      %v3199 = vpop.f32.mrf.mxu0
      %v3200 = vadd.f32 %v3075, %v3199
      %3201 = vmatmul.f32.gmra.mxu0 %v2953
      %v3202 = vpop.f32.mrf.mxu0
      %v3203 = vadd.f32 %v3078, %v3202
      %3204 = vmatmul.f32.gmra.mxu0 %v2956
      %v3205 = vpop.f32.mrf.mxu0
      %v3206 = vadd.f32 %v3081, %v3205
      %3207 = vmatmul.f32.gmra.mxu0 %v2959
      %v3208 = vpop.f32.mrf.mxu0
      %v3209 = vadd.f32 %v3084, %v3208
      %3210 = vmatmul.f32.gmra.mxu0 %v2962
      %v3211 = vpop.f32.mrf.mxu0
      %v3212 = vadd.f32 %v3087, %v3211
      %3213 = vmatmul.f32.gmra.mxu0 %v2965
      %v3214 = vpop.f32.mrf.mxu0
      %v3215 = vadd.f32 %v3090, %v3214
      %3216 = vmatmul.f32.gmra.mxu0 %v2968
      %v3217 = vpop.f32.mrf.mxu0
      %v3218 = vadd.f32 %v3093, %v3217
      %3219 = vmatmul.f32.gmra.mxu0 %v2971
      %v3220 = vpop.f32.mrf.mxu0
      %v3221 = vadd.f32 %v3096, %v3220
      %3222 = vmatmul.f32.gmra.mxu0 %v2974
      %v3223 = vpop.f32.mrf.mxu0
      %v3224 = vadd.f32 %v3099, %v3223
      %3225 = vmatmul.f32.gmra.mxu0 %v2977
      %v3226 = vpop.f32.mrf.mxu0
      %v3227 = vadd.f32 %v3102, %v3226
      %3228 = vmatmul.f32.gmra.mxu0 %v2980
      %v3229 = vpop.f32.mrf.mxu0
      %v3230 = vadd.f32 %v3105, %v3229
      %3231 = vmatmul.f32.gmra.mxu0 %v2983
      %v3232 = vpop.f32.mrf.mxu0
      %v3233 = vadd.f32 %v3108, %v3232
      %3234 = vmatmul.f32.gmra.mxu0 %v2986
      %v3235 = vpop.f32.mrf.mxu0
      %v3236 = vadd.f32 %v3111, %v3235
      %3237 = vmatmul.f32.gmra.mxu0 %v2989
      %v3238 = vpop.f32.mrf.mxu0
      %v3239 = vadd.f32 %v3114, %v3238
      %3240 = vmatmul.f32.gmra.mxu0 %v2992
      %v3241 = vpop.f32.mrf.mxu0
      %v3242 = vadd.f32 %v3117, %v3241
      %3243 = vmatmul.f32.gmra.mxu0 %v2995
      %v3244 = vpop.f32.mrf.mxu0
      %v3245 = vadd.f32 %v3120, %v3244
      %3246 = vmatmul.f32.gmra.mxu0 %v2998
      %v3247 = vpop.f32.mrf.mxu0
      %v3248 = vadd.f32 %v3123, %v3247
      %3249 = vmatmul.f32.gmra.mxu0 %v3001
      %v3250 = vpop.f32.mrf.mxu0
      %v3251 = vadd.f32 %v3126, %v3250
      %3252 = vmatmul.f32.gmra.mxu0 %v3004
      %v3253 = vpop.f32.mrf.mxu0
      %v3254 = vadd.f32 %v3129, %v3253
      %3255 = vmatmul.f32.gmra.mxu0 %v3007
      %v3256 = vpop.f32.mrf.mxu0
      %v3257 = vadd.f32 %v3132, %v3256
      %3258 = vmatmul.f32.gmra.mxu0 %v3010
      %v3259 = vpop.f32.mrf.mxu0
      %v3260 = vadd.f32 %v3135, %v3259
      %3261 = vmatmul.f32.gmra.mxu0 %v3013
      %v3262 = vpop.f32.mrf.mxu0
      %v3263 = vadd.f32 %v3138, %v3262
      %3264 = vmatmul.f32.gmra.mxu0 %v3016
      %v3265 = vpop.f32.mrf.mxu0
      %v3266 = vadd.f32 %v3141, %v3265
      %3267 = vmatmul.f32.gmra.mxu0 %v3019
      %v3268 = vpop.f32.mrf.mxu0
      %v3269 = vadd.f32 %v3144, %v3268
      %3270 = vmatmul.f32.gmra.mxu0 %v3022
      %v3271 = vpop.f32.mrf.mxu0
      %v3272 = vadd.f32 %v3147, %v3271
      %3273 = vmatmul.f32.gmra.mxu0 %v3025
      %v3274 = vpop.f32.mrf.mxu0
      %v3275 = vadd.f32 %v3150, %v3274
      %3276 = vmatmul.f32.gmra.mxu0 %v3028
      %v3277 = vpop.f32.mrf.mxu0
      %v3278 = vadd.f32 %v3153, %v3277
      %3279 = vdwg.mxu0
      %v3280 = vld [vmem:[#allocation2 + $0x24] sm:$0xff]
      %v3281 = vld [vmem:[#allocation2 + $0x2c] sm:$0xff]
      %v3282 = vld [vmem:[#allocation2 + $0x34] sm:$0xff]
      %v3283 = vld [vmem:[#allocation2 + $0x3c] sm:$0xff]
      %v3284 = vld [vmem:[#allocation2 + $0x44] sm:$0xff]
      %v3285 = vld [vmem:[#allocation2 + $0x4c] sm:$0xff]
      %v3286 = vld [vmem:[#allocation2 + $0x54] sm:$0xff]
      %v3287 = vld [vmem:[#allocation2 + $0x5c] sm:$0xff]
      %v3288 = vld [vmem:[#allocation2 + $0x64] sm:$0xff]
      %v3289 = vld [vmem:[#allocation2 + $0x6c] sm:$0xff]
      %v3290 = vld [vmem:[#allocation2 + $0x74] sm:$0xff]
      %v3291 = vld [vmem:[#allocation2 + $0x7c] sm:$0xff]
      %v3292 = vld [vmem:[#allocation2 + $0x84] sm:$0xff]
      %v3293 = vld [vmem:[#allocation2 + $0x8c] sm:$0xff]
      %v3294 = vld [vmem:[#allocation2 + $0x94] sm:$0xff]
      %v3295 = vld [vmem:[#allocation2 + $0x9c] sm:$0xff]
      %v3296 = vld [vmem:[#allocation2 + $0xa4] sm:$0xff]
      %v3297 = vld [vmem:[#allocation2 + $0xac] sm:$0xff]
      %v3298 = vld [vmem:[#allocation2 + $0xb4] sm:$0xff]
      %v3299 = vld [vmem:[#allocation2 + $0xbc] sm:$0xff]
      %v3300 = vld [vmem:[#allocation2 + $0xc4] sm:$0xff]
      %v3301 = vld [vmem:[#allocation2 + $0xcc] sm:$0xff]
      %v3302 = vld [vmem:[#allocation2 + $0xd4] sm:$0xff]
      %v3303 = vld [vmem:[#allocation2 + $0xdc] sm:$0xff]
      %v3304 = vld [vmem:[#allocation2 + $0xe4] sm:$0xff]
      %v3305 = vld [vmem:[#allocation2 + $0xec] sm:$0xff]
      %v3306 = vld [vmem:[#allocation2 + $0xf4] sm:$0xff]
      %v3307 = vld [vmem:[#allocation2 + $0xfc] sm:$0xff]
      %v3308 = vld [vmem:[#allocation2 + $0x104] sm:$0xff]
      %v3309 = vld [vmem:[#allocation2 + $0x10c] sm:$0xff]
      %v3310 = vld [vmem:[#allocation2 + $0x114] sm:$0xff]
      %v3311 = vld [vmem:[#allocation2 + $0x11c] sm:$0xff]
      %v3312 = vld [vmem:[#allocation2 + $0x124] sm:$0xff]
      %v3313 = vld [vmem:[#allocation2 + $0x12c] sm:$0xff]
      %v3314 = vld [vmem:[#allocation2 + $0x134] sm:$0xff]
      %v3315 = vld [vmem:[#allocation2 + $0x13c] sm:$0xff]
      %v3316 = vld [vmem:[#allocation2 + $0x25] sm:$0xff]
      %v3317 = vld [vmem:[#allocation2 + $0x2d] sm:$0xff]
      %v3318 = vld [vmem:[#allocation2 + $0x35] sm:$0xff]
      %v3319 = vld [vmem:[#allocation2 + $0x3d] sm:$0xff]
      %v3320 = vld [vmem:[#allocation2 + $0x45] sm:$0xff]
      %v3321 = vld [vmem:[#allocation2 + $0x4d] sm:$0xff]
      %v3322 = vld [vmem:[#allocation2 + $0x55] sm:$0xff]
      %v3323 = vld [vmem:[#allocation2 + $0x5d] sm:$0xff]
      %v3324 = vld [vmem:[#allocation2 + $0x65] sm:$0xff]
      %v3325 = vld [vmem:[#allocation2 + $0x6d] sm:$0xff]
      %v3326 = vld [vmem:[#allocation2 + $0x75] sm:$0xff]
      %v3327 = vld [vmem:[#allocation2 + $0x7d] sm:$0xff]
      %v3328 = vld [vmem:[#allocation2 + $0x85] sm:$0xff]
      %v3329 = vld [vmem:[#allocation2 + $0x8d] sm:$0xff]
      %v3330 = vld [vmem:[#allocation2 + $0x95] sm:$0xff]
      %v3331 = vld [vmem:[#allocation2 + $0x9d] sm:$0xff]
      %v3332 = vld [vmem:[#allocation2 + $0xa5] sm:$0xff]
      %v3333 = vld [vmem:[#allocation2 + $0xad] sm:$0xff]
      %v3334 = vld [vmem:[#allocation2 + $0xb5] sm:$0xff]
      %v3335 = vld [vmem:[#allocation2 + $0xbd] sm:$0xff]
      %v3336 = vld [vmem:[#allocation2 + $0xc5] sm:$0xff]
      %v3337 = vld [vmem:[#allocation2 + $0xcd] sm:$0xff]
      %v3338 = vld [vmem:[#allocation2 + $0xd5] sm:$0xff]
      %v3339 = vld [vmem:[#allocation2 + $0xdd] sm:$0xff]
      %v3340 = vld [vmem:[#allocation2 + $0xe5] sm:$0xff]
      %v3341 = vld [vmem:[#allocation2 + $0xed] sm:$0xff]
      %v3342 = vld [vmem:[#allocation2 + $0xf5] sm:$0xff]
      %v3343 = vld [vmem:[#allocation2 + $0xfd] sm:$0xff]
      %v3344 = vld [vmem:[#allocation2 + $0x105] sm:$0xff]
      %v3345 = vld [vmem:[#allocation2 + $0x10d] sm:$0xff]
      %v3346 = vld [vmem:[#allocation2 + $0x115] sm:$0xff]
      %v3347 = vld [vmem:[#allocation2 + $0x11d] sm:$0xff]
      %v3348 = vld [vmem:[#allocation2 + $0x125] sm:$0xff]
      %v3349 = vld [vmem:[#allocation2 + $0x12d] sm:$0xff]
      %v3350 = vld [vmem:[#allocation2 + $0x135] sm:$0xff]
      %v3351 = vld [vmem:[#allocation2 + $0x13d] sm:$0xff]
      %v3352 = vld [vmem:[#allocation2 + $0x26] sm:$0xff]
      %v3353 = vld [vmem:[#allocation2 + $0x2e] sm:$0xff]
      %v3354 = vld [vmem:[#allocation2 + $0x36] sm:$0xff]
      %v3355 = vld [vmem:[#allocation2 + $0x3e] sm:$0xff]
      %v3356 = vld [vmem:[#allocation2 + $0x46] sm:$0xff]
      %v3357 = vld [vmem:[#allocation2 + $0x4e] sm:$0xff]
      %v3358 = vld [vmem:[#allocation2 + $0x56] sm:$0xff]
      %v3359 = vld [vmem:[#allocation2 + $0x5e] sm:$0xff]
      %v3360 = vld [vmem:[#allocation2 + $0x66] sm:$0xff]
      %v3361 = vld [vmem:[#allocation2 + $0x6e] sm:$0xff]
      %v3362 = vld [vmem:[#allocation2 + $0x76] sm:$0xff]
      %v3363 = vld [vmem:[#allocation2 + $0x7e] sm:$0xff]
      %v3364 = vld [vmem:[#allocation2 + $0x86] sm:$0xff]
      %v3365 = vld [vmem:[#allocation2 + $0x8e] sm:$0xff]
      %v3366 = vld [vmem:[#allocation2 + $0x96] sm:$0xff]
      %v3367 = vld [vmem:[#allocation2 + $0x9e] sm:$0xff]
      %v3368 = vld [vmem:[#allocation2 + $0xa6] sm:$0xff]
      %v3369 = vld [vmem:[#allocation2 + $0xae] sm:$0xff]
      %v3370 = vld [vmem:[#allocation2 + $0xb6] sm:$0xff]
      %v3371 = vld [vmem:[#allocation2 + $0xbe] sm:$0xff]
      %v3372 = vld [vmem:[#allocation2 + $0xc6] sm:$0xff]
      %v3373 = vld [vmem:[#allocation2 + $0xce] sm:$0xff]
      %v3374 = vld [vmem:[#allocation2 + $0xd6] sm:$0xff]
      %v3375 = vld [vmem:[#allocation2 + $0xde] sm:$0xff]
      %v3376 = vld [vmem:[#allocation2 + $0xe6] sm:$0xff]
      %v3377 = vld [vmem:[#allocation2 + $0xee] sm:$0xff]
      %v3378 = vld [vmem:[#allocation2 + $0xf6] sm:$0xff]
      %v3379 = vld [vmem:[#allocation2 + $0xfe] sm:$0xff]
      %v3380 = vld [vmem:[#allocation2 + $0x106] sm:$0xff]
      %v3381 = vld [vmem:[#allocation2 + $0x10e] sm:$0xff]
      %v3382 = vld [vmem:[#allocation2 + $0x116] sm:$0xff]
      %v3383 = vld [vmem:[#allocation2 + $0x11e] sm:$0xff]
      %v3384 = vld [vmem:[#allocation2 + $0x126] sm:$0xff]
      %v3385 = vld [vmem:[#allocation2 + $0x12e] sm:$0xff]
      %v3386 = vld [vmem:[#allocation2 + $0x136] sm:$0xff]
      %v3387 = vld [vmem:[#allocation2 + $0x13e] sm:$0xff]
      %3424 = vrot.lane.b32.xlu0 %v3316, 64
      %v3425 = vpop.permute.xlu0 %3424
      %3426 = vrot.lane.b32.xlu0 %v3317, 64
      %v3427 = vpop.permute.xlu0 %3426
      %3428 = vrot.lane.b32.xlu0 %v3318, 64
      %v3429 = vpop.permute.xlu0 %3428
      %3430 = vrot.lane.b32.xlu0 %v3319, 64
      %v3431 = vpop.permute.xlu0 %3430
      %3432 = vrot.lane.b32.xlu0 %v3320, 64
      %v3433 = vpop.permute.xlu0 %3432
      %3434 = vrot.lane.b32.xlu0 %v3321, 64
      %v3435 = vpop.permute.xlu0 %3434
      %3436 = vrot.lane.b32.xlu0 %v3322, 64
      %v3437 = vpop.permute.xlu0 %3436
      %3438 = vrot.lane.b32.xlu0 %v3323, 64
      %v3439 = vpop.permute.xlu0 %3438
      %3440 = vrot.lane.b32.xlu0 %v3324, 64
      %v3441 = vpop.permute.xlu0 %3440
      %3442 = vrot.lane.b32.xlu0 %v3325, 64
      %v3443 = vpop.permute.xlu0 %3442
      %3444 = vrot.lane.b32.xlu0 %v3326, 64
      %v3445 = vpop.permute.xlu0 %3444
      %3446 = vrot.lane.b32.xlu0 %v3327, 64
      %v3447 = vpop.permute.xlu0 %3446
      %3448 = vrot.lane.b32.xlu0 %v3328, 64
      %v3449 = vpop.permute.xlu0 %3448
      %3450 = vrot.lane.b32.xlu0 %v3329, 64
      %v3451 = vpop.permute.xlu0 %3450
      %3452 = vrot.lane.b32.xlu0 %v3330, 64
      %v3453 = vpop.permute.xlu0 %3452
      %3454 = vrot.lane.b32.xlu0 %v3331, 64
      %v3455 = vpop.permute.xlu0 %3454
      %3456 = vrot.lane.b32.xlu0 %v3332, 64
      %v3457 = vpop.permute.xlu0 %3456
      %3458 = vrot.lane.b32.xlu0 %v3333, 64
      %v3459 = vpop.permute.xlu0 %3458
      %3460 = vrot.lane.b32.xlu0 %v3334, 64
      %v3461 = vpop.permute.xlu0 %3460
      %3462 = vrot.lane.b32.xlu0 %v3335, 64
      %v3463 = vpop.permute.xlu0 %3462
      %3464 = vrot.lane.b32.xlu0 %v3336, 64
      %v3465 = vpop.permute.xlu0 %3464
      %3466 = vrot.lane.b32.xlu0 %v3337, 64
      %v3467 = vpop.permute.xlu0 %3466
      %3468 = vrot.lane.b32.xlu0 %v3338, 64
      %v3469 = vpop.permute.xlu0 %3468
      %3470 = vrot.lane.b32.xlu0 %v3339, 64
      %v3471 = vpop.permute.xlu0 %3470
      %3472 = vrot.lane.b32.xlu0 %v3340, 64
      %v3473 = vpop.permute.xlu0 %3472
      %3474 = vrot.lane.b32.xlu0 %v3341, 64
      %v3475 = vpop.permute.xlu0 %3474
      %3476 = vrot.lane.b32.xlu0 %v3342, 64
      %v3477 = vpop.permute.xlu0 %3476
      %3478 = vrot.lane.b32.xlu0 %v3343, 64
      %v3479 = vpop.permute.xlu0 %3478
      %3480 = vrot.lane.b32.xlu0 %v3344, 64
      %v3481 = vpop.permute.xlu0 %3480
      %3482 = vrot.lane.b32.xlu0 %v3345, 64
      %v3483 = vpop.permute.xlu0 %3482
      %3484 = vrot.lane.b32.xlu0 %v3346, 64
      %v3485 = vpop.permute.xlu0 %3484
      %3486 = vrot.lane.b32.xlu0 %v3347, 64
      %v3487 = vpop.permute.xlu0 %3486
      %3488 = vrot.lane.b32.xlu0 %v3348, 64
      %v3489 = vpop.permute.xlu0 %3488
      %3490 = vrot.lane.b32.xlu0 %v3349, 64
      %v3491 = vpop.permute.xlu0 %3490
      %3492 = vrot.lane.b32.xlu0 %v3350, 64
      %v3493 = vpop.permute.xlu0 %3492
      %3494 = vrot.lane.b32.xlu0 %v3351, 64
      %v3495 = vpop.permute.xlu0 %3494
      %v3532 = vsel %vm1936, %v3280, %v3425
      %v3533 = vsel %vm1936, %v3281, %v3427
      %v3534 = vsel %vm1936, %v3282, %v3429
      %v3535 = vsel %vm1936, %v3283, %v3431
      %v3536 = vsel %vm1936, %v3284, %v3433
      %v3537 = vsel %vm1936, %v3285, %v3435
      %v3538 = vsel %vm1936, %v3286, %v3437
      %v3539 = vsel %vm1936, %v3287, %v3439
      %v3540 = vsel %vm1936, %v3288, %v3441
      %v3541 = vsel %vm1936, %v3289, %v3443
      %v3542 = vsel %vm1936, %v3290, %v3445
      %v3543 = vsel %vm1936, %v3291, %v3447
      %v3544 = vsel %vm1936, %v3292, %v3449
      %v3545 = vsel %vm1936, %v3293, %v3451
      %v3546 = vsel %vm1936, %v3294, %v3453
      %v3547 = vsel %vm1936, %v3295, %v3455
      %v3548 = vsel %vm1936, %v3296, %v3457
      %v3549 = vsel %vm1936, %v3297, %v3459
      %v3550 = vsel %vm1936, %v3298, %v3461
      %v3551 = vsel %vm1936, %v3299, %v3463
      %v3552 = vsel %vm1936, %v3300, %v3465
      %v3553 = vsel %vm1936, %v3301, %v3467
      %v3554 = vsel %vm1936, %v3302, %v3469
      %v3555 = vsel %vm1936, %v3303, %v3471
      %v3556 = vsel %vm1936, %v3304, %v3473
      %v3557 = vsel %vm1936, %v3305, %v3475
      %v3558 = vsel %vm1936, %v3306, %v3477
      %v3559 = vsel %vm1936, %v3307, %v3479
      %v3560 = vsel %vm1936, %v3308, %v3481
      %v3561 = vsel %vm1936, %v3309, %v3483
      %v3562 = vsel %vm1936, %v3310, %v3485
      %v3563 = vsel %vm1936, %v3311, %v3487
      %v3564 = vsel %vm1936, %v3312, %v3489
      %v3565 = vsel %vm1936, %v3313, %v3491
      %v3566 = vsel %vm1936, %v3314, %v3493
      %v3567 = vsel %vm1936, %v3315, %v3495
      %s3568 = scalar_lea.vmem %s2, 384
      %v3569 = vld [vmem:[%s3568] sm:$0xff]
      %v3570 = vld [vmem:[%s3568 + $0x8] sm:$0xff]
      %v3571 = vld [vmem:[%s3568 + $0x10] sm:$0xff]
      %v3572 = vld [vmem:[%s3568 + $0x18] sm:$0xff]
      %v3573 = vld [vmem:[%s3568 + $0x20] sm:$0xff]
      %v3574 = vld [vmem:[%s3568 + $0x28] sm:$0xff]
      %v3575 = vld [vmem:[%s3568 + $0x30] sm:$0xff]
      %v3576 = vld [vmem:[%s3568 + $0x38] sm:$0xff]
      %v3577 = vld [vmem:[%s3568 + $0x40] sm:$0xff]
      %v3578 = vld [vmem:[%s3568 + $0x48] sm:$0xff]
      %v3579 = vld [vmem:[%s3568 + $0x50] sm:$0xff]
      %v3580 = vld [vmem:[%s3568 + $0x58] sm:$0xff]
      %v3581 = vld [vmem:[%s3568 + $0x60] sm:$0xff]
      %v3582 = vld [vmem:[%s3568 + $0x68] sm:$0xff]
      %v3583 = vld [vmem:[%s3568 + $0x70] sm:$0xff]
      %v3584 = vld [vmem:[%s3568 + $0x78] sm:$0xff]
      %v3585 = vld [vmem:[%s3568 + $0x80] sm:$0xff]
      %v3586 = vld [vmem:[%s3568 + $0x88] sm:$0xff]
      %v3587 = vld [vmem:[%s3568 + $0x90] sm:$0xff]
      %v3588 = vld [vmem:[%s3568 + $0x98] sm:$0xff]
      %v3589 = vld [vmem:[%s3568 + $0xa0] sm:$0xff]
      %v3590 = vld [vmem:[%s3568 + $0xa8] sm:$0xff]
      %v3591 = vld [vmem:[%s3568 + $0xb0] sm:$0xff]
      %v3592 = vld [vmem:[%s3568 + $0xb8] sm:$0xff]
      %v3594 = vsel %vm1936, %v3352, 0
      %v3597 = vsel %vm1936, %v3353, 0
      %v3600 = vsel %vm1936, %v3354, 0
      %v3603 = vsel %vm1936, %v3355, 0
      %v3606 = vsel %vm1936, %v3356, 0
      %v3609 = vsel %vm1936, %v3357, 0
      %v3612 = vsel %vm1936, %v3358, 0
      %v3615 = vsel %vm1936, %v3359, 0
      %v3618 = vsel %vm1936, %v3360, 0
      %v3621 = vsel %vm1936, %v3361, 0
      %v3624 = vsel %vm1936, %v3362, 0
      %v3627 = vsel %vm1936, %v3363, 0
      %v3630 = vsel %vm1936, %v3364, 0
      %v3633 = vsel %vm1936, %v3365, 0
      %v3636 = vsel %vm1936, %v3366, 0
      %v3639 = vsel %vm1936, %v3367, 0
      %v3642 = vsel %vm1936, %v3368, 0
      %v3645 = vsel %vm1936, %v3369, 0
      %v3648 = vsel %vm1936, %v3370, 0
      %v3651 = vsel %vm1936, %v3371, 0
      %v3654 = vsel %vm1936, %v3372, 0
      %v3657 = vsel %vm1936, %v3373, 0
      %v3660 = vsel %vm1936, %v3374, 0
      %v3663 = vsel %vm1936, %v3375, 0
      %v3666 = vsel %vm1936, %v3376, 0
      %v3669 = vsel %vm1936, %v3377, 0
      %v3672 = vsel %vm1936, %v3378, 0
      %v3675 = vsel %vm1936, %v3379, 0
      %v3678 = vsel %vm1936, %v3380, 0
      %v3681 = vsel %vm1936, %v3381, 0
      %v3684 = vsel %vm1936, %v3382, 0
      %v3687 = vsel %vm1936, %v3383, 0
      %v3690 = vsel %vm1936, %v3384, 0
      %v3693 = vsel %vm1936, %v3385, 0
      %v3696 = vsel %vm1936, %v3386, 0
      %v3699 = vsel %vm1936, %v3387, 0
      %3701 = vmatpush.msra.mxu0 %v3584
      %3702 = vmatpush.msra.mxu0 %v3583
      %3703 = vmatpush.msra.mxu0 %v3582
      %3704 = vmatpush.msra.mxu0 %v3581
      %3705 = vmatpush.msra.mxu0 %v3580
      %3706 = vmatpush.msra.mxu0 %v3579
      %3707 = vmatpush.msra.mxu0 %v3578
      %3708 = vmatpush.msra.mxu0 %v3577
      %3709 = vmatpush.msra.mxu0 %v3576
      %3710 = vmatpush.msra.mxu0 %v3575
      %3711 = vmatpush.msra.mxu0 %v3574
      %3712 = vmatpush.msra.mxu0 %v3573
      %3713 = vmatpush.msra.mxu0 %v3572
      %3714 = vmatpush.msra.mxu0 %v3571
      %3715 = vmatpush.msra.mxu0 %v3570
      %3716 = vmatpush.msra.mxu0 %v3569
      %3717 = vmatmul.f32.gmra.mxu0 %v3532
      %v3718 = vpop.f32.mrf.mxu0
      %v3719 = vadd.f32 0.0, %v3718
      %3720 = vmatmul.f32.gmra.mxu0 %v3533
      %v3721 = vpop.f32.mrf.mxu0
      %v3722 = vadd.f32 0.0, %v3721
      %3723 = vmatmul.f32.gmra.mxu0 %v3534
      %v3724 = vpop.f32.mrf.mxu0
      %v3725 = vadd.f32 0.0, %v3724
      %3726 = vmatmul.f32.gmra.mxu0 %v3535
      %v3727 = vpop.f32.mrf.mxu0
      %v3728 = vadd.f32 0.0, %v3727
      %3729 = vmatmul.f32.gmra.mxu0 %v3536
      %v3730 = vpop.f32.mrf.mxu0
      %v3731 = vadd.f32 0.0, %v3730
      %3732 = vmatmul.f32.gmra.mxu0 %v3537
      %v3733 = vpop.f32.mrf.mxu0
      %v3734 = vadd.f32 0.0, %v3733
      %3735 = vmatmul.f32.gmra.mxu0 %v3538
      %v3736 = vpop.f32.mrf.mxu0
      %v3737 = vadd.f32 0.0, %v3736
      %3738 = vmatmul.f32.gmra.mxu0 %v3539
      %v3739 = vpop.f32.mrf.mxu0
      %v3740 = vadd.f32 0.0, %v3739
      %3741 = vmatmul.f32.gmra.mxu0 %v3540
      %v3742 = vpop.f32.mrf.mxu0
      %v3743 = vadd.f32 0.0, %v3742
      %3744 = vmatmul.f32.gmra.mxu0 %v3541
      %v3745 = vpop.f32.mrf.mxu0
      %v3746 = vadd.f32 0.0, %v3745
      %3747 = vmatmul.f32.gmra.mxu0 %v3542
      %v3748 = vpop.f32.mrf.mxu0
      %v3749 = vadd.f32 0.0, %v3748
      %3750 = vmatmul.f32.gmra.mxu0 %v3543
      %v3751 = vpop.f32.mrf.mxu0
      %v3752 = vadd.f32 0.0, %v3751
      %3753 = vmatmul.f32.gmra.mxu0 %v3544
      %v3754 = vpop.f32.mrf.mxu0
      %v3755 = vadd.f32 0.0, %v3754
      %3756 = vmatmul.f32.gmra.mxu0 %v3545
      %v3757 = vpop.f32.mrf.mxu0
      %v3758 = vadd.f32 0.0, %v3757
      %3759 = vmatmul.f32.gmra.mxu0 %v3546
      %v3760 = vpop.f32.mrf.mxu0
      %v3761 = vadd.f32 0.0, %v3760
      %3762 = vmatmul.f32.gmra.mxu0 %v3547
      %v3763 = vpop.f32.mrf.mxu0
      %v3764 = vadd.f32 0.0, %v3763
      %3765 = vmatmul.f32.gmra.mxu0 %v3548
      %v3766 = vpop.f32.mrf.mxu0
      %v3767 = vadd.f32 0.0, %v3766
      %3768 = vmatmul.f32.gmra.mxu0 %v3549
      %v3769 = vpop.f32.mrf.mxu0
      %v3770 = vadd.f32 0.0, %v3769
      %3771 = vmatmul.f32.gmra.mxu0 %v3550
      %v3772 = vpop.f32.mrf.mxu0
      %v3773 = vadd.f32 0.0, %v3772
      %3774 = vmatmul.f32.gmra.mxu0 %v3551
      %v3775 = vpop.f32.mrf.mxu0
      %v3776 = vadd.f32 0.0, %v3775
      %3777 = vmatmul.f32.gmra.mxu0 %v3552
      %v3778 = vpop.f32.mrf.mxu0
      %v3779 = vadd.f32 0.0, %v3778
      %3780 = vmatmul.f32.gmra.mxu0 %v3553
      %v3781 = vpop.f32.mrf.mxu0
      %v3782 = vadd.f32 0.0, %v3781
      %3783 = vmatmul.f32.gmra.mxu0 %v3554
      %v3784 = vpop.f32.mrf.mxu0
      %v3785 = vadd.f32 0.0, %v3784
      %3786 = vmatmul.f32.gmra.mxu0 %v3555
      %v3787 = vpop.f32.mrf.mxu0
      %v3788 = vadd.f32 0.0, %v3787
      %3789 = vmatmul.f32.gmra.mxu0 %v3556
      %v3790 = vpop.f32.mrf.mxu0
      %v3791 = vadd.f32 0.0, %v3790
      %3792 = vmatmul.f32.gmra.mxu0 %v3557
      %v3793 = vpop.f32.mrf.mxu0
      %v3794 = vadd.f32 0.0, %v3793
      %3795 = vmatmul.f32.gmra.mxu0 %v3558
      %v3796 = vpop.f32.mrf.mxu0
      %v3797 = vadd.f32 0.0, %v3796
      %3798 = vmatmul.f32.gmra.mxu0 %v3559
      %v3799 = vpop.f32.mrf.mxu0
      %v3800 = vadd.f32 0.0, %v3799
      %3801 = vmatmul.f32.gmra.mxu0 %v3560
      %v3802 = vpop.f32.mrf.mxu0
      %v3803 = vadd.f32 0.0, %v3802
      %3804 = vmatmul.f32.gmra.mxu0 %v3561
      %v3805 = vpop.f32.mrf.mxu0
      %v3806 = vadd.f32 0.0, %v3805
      %3807 = vmatmul.f32.gmra.mxu0 %v3562
      %v3808 = vpop.f32.mrf.mxu0
      %v3809 = vadd.f32 0.0, %v3808
      %3810 = vmatmul.f32.gmra.mxu0 %v3563
      %v3811 = vpop.f32.mrf.mxu0
      %v3812 = vadd.f32 0.0, %v3811
      %3813 = vmatmul.f32.gmra.mxu0 %v3564
      %v3814 = vpop.f32.mrf.mxu0
      %v3815 = vadd.f32 0.0, %v3814
      %3816 = vmatmul.f32.gmra.mxu0 %v3565
      %v3817 = vpop.f32.mrf.mxu0
      %v3818 = vadd.f32 0.0, %v3817
      %3819 = vmatmul.f32.gmra.mxu0 %v3566
      %v3820 = vpop.f32.mrf.mxu0
      %v3821 = vadd.f32 0.0, %v3820
      %3822 = vmatmul.f32.gmra.mxu0 %v3567
      %v3823 = vpop.f32.mrf.mxu0
      %v3824 = vadd.f32 0.0, %v3823
      %3825 = vdwg.mxu0
      %3826 = vmatpush.msra.mxu0 0.0
      %3827 = vmatpush.msra.mxu0 0.0
      %3828 = vmatpush.msra.mxu0 0.0
      %3829 = vmatpush.msra.mxu0 0.0
      %3830 = vmatpush.msra.mxu0 0.0
      %3831 = vmatpush.msra.mxu0 0.0
      %3832 = vmatpush.msra.mxu0 0.0
      %3833 = vmatpush.msra.mxu0 0.0
      %3834 = vmatpush.msra.mxu0 %v3592
      %3835 = vmatpush.msra.mxu0 %v3591
      %3836 = vmatpush.msra.mxu0 %v3590
      %3837 = vmatpush.msra.mxu0 %v3589
      %3838 = vmatpush.msra.mxu0 %v3588
      %3839 = vmatpush.msra.mxu0 %v3587
      %3840 = vmatpush.msra.mxu0 %v3586
      %3841 = vmatpush.msra.mxu0 %v3585
      %3842 = vmatmul.f32.gmra.mxu0 %v3594
      %v3843 = vpop.f32.mrf.mxu0
      %v3844 = vadd.f32 %v3719, %v3843
      %3845 = vmatmul.f32.gmra.mxu0 %v3597
      %v3846 = vpop.f32.mrf.mxu0
      %v3847 = vadd.f32 %v3722, %v3846
      %3848 = vmatmul.f32.gmra.mxu0 %v3600
      %v3849 = vpop.f32.mrf.mxu0
      %v3850 = vadd.f32 %v3725, %v3849
      %3851 = vmatmul.f32.gmra.mxu0 %v3603
      %v3852 = vpop.f32.mrf.mxu0
      %v3853 = vadd.f32 %v3728, %v3852
      %3854 = vmatmul.f32.gmra.mxu0 %v3606
      %v3855 = vpop.f32.mrf.mxu0
      %v3856 = vadd.f32 %v3731, %v3855
      %3857 = vmatmul.f32.gmra.mxu0 %v3609
      %v3858 = vpop.f32.mrf.mxu0
      %v3859 = vadd.f32 %v3734, %v3858
      %3860 = vmatmul.f32.gmra.mxu0 %v3612
      %v3861 = vpop.f32.mrf.mxu0
      %v3862 = vadd.f32 %v3737, %v3861
      %3863 = vmatmul.f32.gmra.mxu0 %v3615
      %v3864 = vpop.f32.mrf.mxu0
      %v3865 = vadd.f32 %v3740, %v3864
      %3866 = vmatmul.f32.gmra.mxu0 %v3618
      %v3867 = vpop.f32.mrf.mxu0
      %v3868 = vadd.f32 %v3743, %v3867
      %3869 = vmatmul.f32.gmra.mxu0 %v3621
      %v3870 = vpop.f32.mrf.mxu0
      %v3871 = vadd.f32 %v3746, %v3870
      %3872 = vmatmul.f32.gmra.mxu0 %v3624
      %v3873 = vpop.f32.mrf.mxu0
      %v3874 = vadd.f32 %v3749, %v3873
      %3875 = vmatmul.f32.gmra.mxu0 %v3627
      %v3876 = vpop.f32.mrf.mxu0
      %v3877 = vadd.f32 %v3752, %v3876
      %3878 = vmatmul.f32.gmra.mxu0 %v3630
      %v3879 = vpop.f32.mrf.mxu0
      %v3880 = vadd.f32 %v3755, %v3879
      %3881 = vmatmul.f32.gmra.mxu0 %v3633
      %v3882 = vpop.f32.mrf.mxu0
      %v3883 = vadd.f32 %v3758, %v3882
      %3884 = vmatmul.f32.gmra.mxu0 %v3636
      %v3885 = vpop.f32.mrf.mxu0
      %v3886 = vadd.f32 %v3761, %v3885
      %3887 = vmatmul.f32.gmra.mxu0 %v3639
      %v3888 = vpop.f32.mrf.mxu0
      %v3889 = vadd.f32 %v3764, %v3888
      %3890 = vmatmul.f32.gmra.mxu0 %v3642
      %v3891 = vpop.f32.mrf.mxu0
      %v3892 = vadd.f32 %v3767, %v3891
      %3893 = vmatmul.f32.gmra.mxu0 %v3645
      %v3894 = vpop.f32.mrf.mxu0
      %v3895 = vadd.f32 %v3770, %v3894
      %3896 = vmatmul.f32.gmra.mxu0 %v3648
      %v3897 = vpop.f32.mrf.mxu0
      %v3898 = vadd.f32 %v3773, %v3897
      %3899 = vmatmul.f32.gmra.mxu0 %v3651
      %v3900 = vpop.f32.mrf.mxu0
      %v3901 = vadd.f32 %v3776, %v3900
      %3902 = vmatmul.f32.gmra.mxu0 %v3654
      %v3903 = vpop.f32.mrf.mxu0
      %v3904 = vadd.f32 %v3779, %v3903
      %3905 = vmatmul.f32.gmra.mxu0 %v3657
      %v3906 = vpop.f32.mrf.mxu0
      %v3907 = vadd.f32 %v3782, %v3906
      %3908 = vmatmul.f32.gmra.mxu0 %v3660
      %v3909 = vpop.f32.mrf.mxu0
      %v3910 = vadd.f32 %v3785, %v3909
      %3911 = vmatmul.f32.gmra.mxu0 %v3663
      %v3912 = vpop.f32.mrf.mxu0
      %v3913 = vadd.f32 %v3788, %v3912
      %3914 = vmatmul.f32.gmra.mxu0 %v3666
      %v3915 = vpop.f32.mrf.mxu0
      %v3916 = vadd.f32 %v3791, %v3915
      %3917 = vmatmul.f32.gmra.mxu0 %v3669
      %v3918 = vpop.f32.mrf.mxu0
      %v3919 = vadd.f32 %v3794, %v3918
      %3920 = vmatmul.f32.gmra.mxu0 %v3672
      %v3921 = vpop.f32.mrf.mxu0
      %v3922 = vadd.f32 %v3797, %v3921
      %3923 = vmatmul.f32.gmra.mxu0 %v3675
      %v3924 = vpop.f32.mrf.mxu0
      %v3925 = vadd.f32 %v3800, %v3924
      %3926 = vmatmul.f32.gmra.mxu0 %v3678
      %v3927 = vpop.f32.mrf.mxu0
      %v3928 = vadd.f32 %v3803, %v3927
      %3929 = vmatmul.f32.gmra.mxu0 %v3681
      %v3930 = vpop.f32.mrf.mxu0
      %v3931 = vadd.f32 %v3806, %v3930
      %3932 = vmatmul.f32.gmra.mxu0 %v3684
      %v3933 = vpop.f32.mrf.mxu0
      %v3934 = vadd.f32 %v3809, %v3933
      %3935 = vmatmul.f32.gmra.mxu0 %v3687
      %v3936 = vpop.f32.mrf.mxu0
      %v3937 = vadd.f32 %v3812, %v3936
      %3938 = vmatmul.f32.gmra.mxu0 %v3690
      %v3939 = vpop.f32.mrf.mxu0
      %v3940 = vadd.f32 %v3815, %v3939
      %3941 = vmatmul.f32.gmra.mxu0 %v3693
      %v3942 = vpop.f32.mrf.mxu0
      %v3943 = vadd.f32 %v3818, %v3942
      %3944 = vmatmul.f32.gmra.mxu0 %v3696
      %v3945 = vpop.f32.mrf.mxu0
      %v3946 = vadd.f32 %v3821, %v3945
      %3947 = vmatmul.f32.gmra.mxu0 %v3699
      %v3948 = vpop.f32.mrf.mxu0
      %v3949 = vadd.f32 %v3824, %v3948
      %3950 = vdwg.mxu0
      %v3951 = vadd.f32 %v3173, %v3844
      %v3952 = vadd.f32 %v3176, %v3847
      %v3953 = vadd.f32 %v3179, %v3850
      %v3954 = vadd.f32 %v3182, %v3853
      %v3955 = vadd.f32 %v3185, %v3856
      %v3956 = vadd.f32 %v3188, %v3859
      %v3957 = vadd.f32 %v3191, %v3862
      %v3958 = vadd.f32 %v3194, %v3865
      %v3959 = vadd.f32 %v3197, %v3868
      %v3960 = vadd.f32 %v3200, %v3871
      %v3961 = vadd.f32 %v3203, %v3874
      %v3962 = vadd.f32 %v3206, %v3877
      %v3963 = vadd.f32 %v3209, %v3880
      %v3964 = vadd.f32 %v3212, %v3883
      %v3965 = vadd.f32 %v3215, %v3886
      %v3966 = vadd.f32 %v3218, %v3889
      %v3967 = vadd.f32 %v3221, %v3892
      %v3968 = vadd.f32 %v3224, %v3895
      %v3969 = vadd.f32 %v3227, %v3898
      %v3970 = vadd.f32 %v3230, %v3901
      %v3971 = vadd.f32 %v3233, %v3904
      %v3972 = vadd.f32 %v3236, %v3907
      %v3973 = vadd.f32 %v3239, %v3910
      %v3974 = vadd.f32 %v3242, %v3913
      %v3975 = vadd.f32 %v3245, %v3916
      %v3976 = vadd.f32 %v3248, %v3919
      %v3977 = vadd.f32 %v3251, %v3922
      %v3978 = vadd.f32 %v3254, %v3925
      %v3979 = vadd.f32 %v3257, %v3928
      %v3980 = vadd.f32 %v3260, %v3931
      %v3981 = vadd.f32 %v3263, %v3934
      %v3982 = vadd.f32 %v3266, %v3937
      %v3983 = vadd.f32 %v3269, %v3940
      %v3984 = vadd.f32 %v3272, %v3943
      %v3985 = vadd.f32 %v3275, %v3946
      %v3986 = vadd.f32 %v3278, %v3949
      %v3987 = vmax.f32 %v3951, 0.0
      %v3988 = vmax.f32 %v3952, 0.0
      %v3989 = vmax.f32 %v3953, 0.0
      %v3990 = vmax.f32 %v3954, 0.0
      %v3991 = vmax.f32 %v3955, 0.0
      %v3992 = vmax.f32 %v3956, 0.0
      %v3993 = vmax.f32 %v3957, 0.0
      %v3994 = vmax.f32 %v3958, 0.0
      %v3995 = vmax.f32 %v3959, 0.0
      %v3996 = vmax.f32 %v3960, 0.0
      %v3997 = vmax.f32 %v3961, 0.0
      %v3998 = vmax.f32 %v3962, 0.0
      %v3999 = vmax.f32 %v3963, 0.0
      %v4000 = vmax.f32 %v3964, 0.0
      %v4001 = vmax.f32 %v3965, 0.0
      %v4002 = vmax.f32 %v3966, 0.0
      %v4003 = vmax.f32 %v3967, 0.0
      %v4004 = vmax.f32 %v3968, 0.0
      %v4005 = vmax.f32 %v3969, 0.0
      %v4006 = vmax.f32 %v3970, 0.0
      %v4007 = vmax.f32 %v3971, 0.0
      %v4008 = vmax.f32 %v3972, 0.0
      %v4009 = vmax.f32 %v3973, 0.0
      %v4010 = vmax.f32 %v3974, 0.0
      %v4011 = vmax.f32 %v3975, 0.0
      %v4012 = vmax.f32 %v3976, 0.0
      %v4013 = vmax.f32 %v3977, 0.0
      %v4014 = vmax.f32 %v3978, 0.0
      %v4015 = vmax.f32 %v3979, 0.0
      %v4016 = vmax.f32 %v3980, 0.0
      %v4017 = vmax.f32 %v3981, 0.0
      %v4018 = vmax.f32 %v3982, 0.0
      %v4019 = vmax.f32 %v3983, 0.0
      %v4020 = vmax.f32 %v3984, 0.0
      %v4021 = vmax.f32 %v3985, 0.0
      %v4022 = vmax.f32 %v3986, 0.0
      %v4023 = vsel %vm1864, %v3987, 0.0
      %v4024 = vsel %vm1865, %v3988, 0.0
      %v4025 = vsel %vm1866, %v3989, 0.0
      %v4026 = vsel %vm1867, %v3990, 0.0
      %v4027 = vsel %vm1868, %v3991, 0.0
      %v4028 = vsel %vm1869, %v3992, 0.0
      %v4029 = vsel %vm1870, %v3993, 0.0
      %v4030 = vsel %vm1871, %v3994, 0.0
      %v4031 = vsel %vm1872, %v3995, 0.0
      %v4032 = vsel %vm1873, %v3996, 0.0
      %v4033 = vsel %vm1874, %v3997, 0.0
      %v4034 = vsel %vm1875, %v3998, 0.0
      %v4035 = vsel %vm1876, %v3999, 0.0
      %v4036 = vsel %vm1877, %v4000, 0.0
      %v4037 = vsel %vm1878, %v4001, 0.0
      %v4038 = vsel %vm1879, %v4002, 0.0
      %v4039 = vsel %vm1880, %v4003, 0.0
      %v4040 = vsel %vm1881, %v4004, 0.0
      %v4041 = vsel %vm1882, %v4005, 0.0
      %v4042 = vsel %vm1883, %v4006, 0.0
      %v4043 = vsel %vm1884, %v4007, 0.0
      %v4044 = vsel %vm1885, %v4008, 0.0
      %v4045 = vsel %vm1886, %v4009, 0.0
      %v4046 = vsel %vm1887, %v4010, 0.0
      %v4047 = vsel %vm1888, %v4011, 0.0
      %v4048 = vsel %vm1889, %v4012, 0.0
      %v4049 = vsel %vm1890, %v4013, 0.0
      %v4050 = vsel %vm1891, %v4014, 0.0
      %v4051 = vsel %vm1892, %v4015, 0.0
      %v4052 = vsel %vm1893, %v4016, 0.0
      %v4053 = vsel %vm1894, %v4017, 0.0
      %v4054 = vsel %vm1895, %v4018, 0.0
      %v4055 = vsel %vm1896, %v4019, 0.0
      %v4056 = vsel %vm1897, %v4020, 0.0
      %v4057 = vsel %vm1898, %v4021, 0.0
      %v4058 = vsel %vm1899, %v4022, 0.0
      %4059 = vst.msk [vmem:[#allocation3 + $0x13] sm:$0xff] %vm1936, %v4023
      %4060 = vst.msk [vmem:[#allocation3 + $0x1b] sm:$0xff] %vm1936, %v4024
      %4061 = vst.msk [vmem:[#allocation3 + $0x23] sm:$0xff] %vm1936, %v4025
      %4062 = vst.msk [vmem:[#allocation3 + $0x2b] sm:$0xff] %vm1936, %v4026
      %4063 = vst.msk [vmem:[#allocation3 + $0x33] sm:$0xff] %vm1936, %v4027
      %4064 = vst.msk [vmem:[#allocation3 + $0x3b] sm:$0xff] %vm1936, %v4028
      %4065 = vst.msk [vmem:[#allocation3 + $0x43] sm:$0xff] %vm1936, %v4029
      %4066 = vst.msk [vmem:[#allocation3 + $0x4b] sm:$0xff] %vm1936, %v4030
      %4067 = vst.msk [vmem:[#allocation3 + $0x53] sm:$0xff] %vm1936, %v4031
      %4068 = vst.msk [vmem:[#allocation3 + $0x5b] sm:$0xff] %vm1936, %v4032
      %4069 = vst.msk [vmem:[#allocation3 + $0x63] sm:$0xff] %vm1936, %v4033
      %4070 = vst.msk [vmem:[#allocation3 + $0x6b] sm:$0xff] %vm1936, %v4034
      %4071 = vst.msk [vmem:[#allocation3 + $0x73] sm:$0xff] %vm1936, %v4035
      %4072 = vst.msk [vmem:[#allocation3 + $0x7b] sm:$0xff] %vm1936, %v4036
      %4073 = vst.msk [vmem:[#allocation3 + $0x83] sm:$0xff] %vm1936, %v4037
      %4074 = vst.msk [vmem:[#allocation3 + $0x8b] sm:$0xff] %vm1936, %v4038
      %4075 = vst.msk [vmem:[#allocation3 + $0x93] sm:$0xff] %vm1936, %v4039
      %4076 = vst.msk [vmem:[#allocation3 + $0x9b] sm:$0xff] %vm1936, %v4040
      %4077 = vst.msk [vmem:[#allocation3 + $0xa3] sm:$0xff] %vm1936, %v4041
      %4078 = vst.msk [vmem:[#allocation3 + $0xab] sm:$0xff] %vm1936, %v4042
      %4079 = vst.msk [vmem:[#allocation3 + $0xb3] sm:$0xff] %vm1936, %v4043
      %4080 = vst.msk [vmem:[#allocation3 + $0xbb] sm:$0xff] %vm1936, %v4044
      %4081 = vst.msk [vmem:[#allocation3 + $0xc3] sm:$0xff] %vm1936, %v4045
      %4082 = vst.msk [vmem:[#allocation3 + $0xcb] sm:$0xff] %vm1936, %v4046
      %4083 = vst.msk [vmem:[#allocation3 + $0xd3] sm:$0xff] %vm1936, %v4047
      %4084 = vst.msk [vmem:[#allocation3 + $0xdb] sm:$0xff] %vm1936, %v4048
      %4085 = vst.msk [vmem:[#allocation3 + $0xe3] sm:$0xff] %vm1936, %v4049
      %4086 = vst.msk [vmem:[#allocation3 + $0xeb] sm:$0xff] %vm1936, %v4050
      %4087 = vst.msk [vmem:[#allocation3 + $0xf3] sm:$0xff] %vm1936, %v4051
      %4088 = vst.msk [vmem:[#allocation3 + $0xfb] sm:$0xff] %vm1936, %v4052
      %4089 = vst.msk [vmem:[#allocation3 + $0x103] sm:$0xff] %vm1936, %v4053
      %4090 = vst.msk [vmem:[#allocation3 + $0x10b] sm:$0xff] %vm1936, %v4054
      %4091 = vst.msk [vmem:[#allocation3 + $0x113] sm:$0xff] %vm1936, %v4055
      %4092 = vst.msk [vmem:[#allocation3 + $0x11b] sm:$0xff] %vm1936, %v4056
      %4093 = vst.msk [vmem:[#allocation3 + $0x123] sm:$0xff] %vm1936, %v4057
      %4094 = vst.msk [vmem:[#allocation3 + $0x12b] sm:$0xff] %vm1936, %v4058
      %v4095 = vld [vmem:[#allocation3] sm:$0xff]
      %v4096 = vld [vmem:[#allocation3 + $0x8] sm:$0xff]
      %v4097 = vld [vmem:[#allocation3 + $0x10] sm:$0xff]
      %v4098 = vld [vmem:[#allocation3 + $0x18] sm:$0xff]
      %v4099 = vld [vmem:[#allocation3 + $0x20] sm:$0xff]
      %v4100 = vld [vmem:[#allocation3 + $0x28] sm:$0xff]
      %v4101 = vld [vmem:[#allocation3 + $0x30] sm:$0xff]
      %v4102 = vld [vmem:[#allocation3 + $0x38] sm:$0xff]
      %v4103 = vld [vmem:[#allocation3 + $0x40] sm:$0xff]
      %v4104 = vld [vmem:[#allocation3 + $0x48] sm:$0xff]
      %v4105 = vld [vmem:[#allocation3 + $0x50] sm:$0xff]
      %v4106 = vld [vmem:[#allocation3 + $0x58] sm:$0xff]
      %v4107 = vld [vmem:[#allocation3 + $0x60] sm:$0xff]
      %v4108 = vld [vmem:[#allocation3 + $0x68] sm:$0xff]
      %v4109 = vld [vmem:[#allocation3 + $0x70] sm:$0xff]
      %v4110 = vld [vmem:[#allocation3 + $0x78] sm:$0xff]
      %v4111 = vld [vmem:[#allocation3 + $0x80] sm:$0xff]
      %v4112 = vld [vmem:[#allocation3 + $0x88] sm:$0xff]
      %v4113 = vld [vmem:[#allocation3 + $0x90] sm:$0xff]
      %v4114 = vld [vmem:[#allocation3 + $0x98] sm:$0xff]
      %v4115 = vld [vmem:[#allocation3 + $0xa0] sm:$0xff]
      %v4116 = vld [vmem:[#allocation3 + $0xa8] sm:$0xff]
      %v4117 = vld [vmem:[#allocation3 + $0xb0] sm:$0xff]
      %v4118 = vld [vmem:[#allocation3 + $0xb8] sm:$0xff]
      %v4119 = vld [vmem:[#allocation3 + $0xc0] sm:$0xff]
      %v4120 = vld [vmem:[#allocation3 + $0xc8] sm:$0xff]
      %v4121 = vld [vmem:[#allocation3 + $0xd0] sm:$0xff]
      %v4122 = vld [vmem:[#allocation3 + $0xd8] sm:$0xff]
      %v4123 = vld [vmem:[#allocation3 + $0xe0] sm:$0xff]
      %v4124 = vld [vmem:[#allocation3 + $0xe8] sm:$0xff]
      %v4125 = vld [vmem:[#allocation3 + $0xf0] sm:$0xff]
      %v4126 = vld [vmem:[#allocation3 + $0xf8] sm:$0xff]
      %v4127 = vld [vmem:[#allocation3 + $0x100] sm:$0xff]
      %v4128 = vld [vmem:[#allocation3 + $0x108] sm:$0xff]
      %v4129 = vld [vmem:[#allocation3 + $0x110] sm:$0xff]
      %v4130 = vld [vmem:[#allocation3 + $0x118] sm:$0xff]
      %v4131 = vld [vmem:[#allocation3 + $0x1] sm:$0xff]
      %v4132 = vld [vmem:[#allocation3 + $0x9] sm:$0xff]
      %v4133 = vld [vmem:[#allocation3 + $0x11] sm:$0xff]
      %v4134 = vld [vmem:[#allocation3 + $0x19] sm:$0xff]
      %v4135 = vld [vmem:[#allocation3 + $0x21] sm:$0xff]
      %v4136 = vld [vmem:[#allocation3 + $0x29] sm:$0xff]
      %v4137 = vld [vmem:[#allocation3 + $0x31] sm:$0xff]
      %v4138 = vld [vmem:[#allocation3 + $0x39] sm:$0xff]
      %v4139 = vld [vmem:[#allocation3 + $0x41] sm:$0xff]
      %v4140 = vld [vmem:[#allocation3 + $0x49] sm:$0xff]
      %v4141 = vld [vmem:[#allocation3 + $0x51] sm:$0xff]
      %v4142 = vld [vmem:[#allocation3 + $0x59] sm:$0xff]
      %v4143 = vld [vmem:[#allocation3 + $0x61] sm:$0xff]
      %v4144 = vld [vmem:[#allocation3 + $0x69] sm:$0xff]
      %v4145 = vld [vmem:[#allocation3 + $0x71] sm:$0xff]
      %v4146 = vld [vmem:[#allocation3 + $0x79] sm:$0xff]
      %v4147 = vld [vmem:[#allocation3 + $0x81] sm:$0xff]
      %v4148 = vld [vmem:[#allocation3 + $0x89] sm:$0xff]
      %v4149 = vld [vmem:[#allocation3 + $0x91] sm:$0xff]
      %v4150 = vld [vmem:[#allocation3 + $0x99] sm:$0xff]
      %v4151 = vld [vmem:[#allocation3 + $0xa1] sm:$0xff]
      %v4152 = vld [vmem:[#allocation3 + $0xa9] sm:$0xff]
      %v4153 = vld [vmem:[#allocation3 + $0xb1] sm:$0xff]
      %v4154 = vld [vmem:[#allocation3 + $0xb9] sm:$0xff]
      %v4155 = vld [vmem:[#allocation3 + $0xc1] sm:$0xff]
      %v4156 = vld [vmem:[#allocation3 + $0xc9] sm:$0xff]
      %v4157 = vld [vmem:[#allocation3 + $0xd1] sm:$0xff]
      %v4158 = vld [vmem:[#allocation3 + $0xd9] sm:$0xff]
      %v4159 = vld [vmem:[#allocation3 + $0xe1] sm:$0xff]
      %v4160 = vld [vmem:[#allocation3 + $0xe9] sm:$0xff]
      %v4161 = vld [vmem:[#allocation3 + $0xf1] sm:$0xff]
      %v4162 = vld [vmem:[#allocation3 + $0xf9] sm:$0xff]
      %v4163 = vld [vmem:[#allocation3 + $0x101] sm:$0xff]
      %v4164 = vld [vmem:[#allocation3 + $0x109] sm:$0xff]
      %v4165 = vld [vmem:[#allocation3 + $0x111] sm:$0xff]
      %v4166 = vld [vmem:[#allocation3 + $0x119] sm:$0xff]
      %v4167 = vld [vmem:[#allocation3 + $0x2] sm:$0xff]
      %v4168 = vld [vmem:[#allocation3 + $0xa] sm:$0xff]
      %v4169 = vld [vmem:[#allocation3 + $0x12] sm:$0xff]
      %v4170 = vld [vmem:[#allocation3 + $0x1a] sm:$0xff]
      %v4171 = vld [vmem:[#allocation3 + $0x22] sm:$0xff]
      %v4172 = vld [vmem:[#allocation3 + $0x2a] sm:$0xff]
      %v4173 = vld [vmem:[#allocation3 + $0x32] sm:$0xff]
      %v4174 = vld [vmem:[#allocation3 + $0x3a] sm:$0xff]
      %v4175 = vld [vmem:[#allocation3 + $0x42] sm:$0xff]
      %v4176 = vld [vmem:[#allocation3 + $0x4a] sm:$0xff]
      %v4177 = vld [vmem:[#allocation3 + $0x52] sm:$0xff]
      %v4178 = vld [vmem:[#allocation3 + $0x5a] sm:$0xff]
      %v4179 = vld [vmem:[#allocation3 + $0x62] sm:$0xff]
      %v4180 = vld [vmem:[#allocation3 + $0x6a] sm:$0xff]
      %v4181 = vld [vmem:[#allocation3 + $0x72] sm:$0xff]
      %v4182 = vld [vmem:[#allocation3 + $0x7a] sm:$0xff]
      %v4183 = vld [vmem:[#allocation3 + $0x82] sm:$0xff]
      %v4184 = vld [vmem:[#allocation3 + $0x8a] sm:$0xff]
      %v4185 = vld [vmem:[#allocation3 + $0x92] sm:$0xff]
      %v4186 = vld [vmem:[#allocation3 + $0x9a] sm:$0xff]
      %v4187 = vld [vmem:[#allocation3 + $0xa2] sm:$0xff]
      %v4188 = vld [vmem:[#allocation3 + $0xaa] sm:$0xff]
      %v4189 = vld [vmem:[#allocation3 + $0xb2] sm:$0xff]
      %v4190 = vld [vmem:[#allocation3 + $0xba] sm:$0xff]
      %v4191 = vld [vmem:[#allocation3 + $0xc2] sm:$0xff]
      %v4192 = vld [vmem:[#allocation3 + $0xca] sm:$0xff]
      %v4193 = vld [vmem:[#allocation3 + $0xd2] sm:$0xff]
      %v4194 = vld [vmem:[#allocation3 + $0xda] sm:$0xff]
      %v4195 = vld [vmem:[#allocation3 + $0xe2] sm:$0xff]
      %v4196 = vld [vmem:[#allocation3 + $0xea] sm:$0xff]
      %v4197 = vld [vmem:[#allocation3 + $0xf2] sm:$0xff]
      %v4198 = vld [vmem:[#allocation3 + $0xfa] sm:$0xff]
      %v4199 = vld [vmem:[#allocation3 + $0x102] sm:$0xff]
      %v4200 = vld [vmem:[#allocation3 + $0x10a] sm:$0xff]
      %v4201 = vld [vmem:[#allocation3 + $0x112] sm:$0xff]
      %v4202 = vld [vmem:[#allocation3 + $0x11a] sm:$0xff]
      %4239 = vrot.lane.b32.xlu0 %v4131, 64
      %v4240 = vpop.permute.xlu0 %4239
      %4241 = vrot.lane.b32.xlu0 %v4132, 64
      %v4242 = vpop.permute.xlu0 %4241
      %4243 = vrot.lane.b32.xlu0 %v4133, 64
      %v4244 = vpop.permute.xlu0 %4243
      %4245 = vrot.lane.b32.xlu0 %v4134, 64
      %v4246 = vpop.permute.xlu0 %4245
      %4247 = vrot.lane.b32.xlu0 %v4135, 64
      %v4248 = vpop.permute.xlu0 %4247
      %4249 = vrot.lane.b32.xlu0 %v4136, 64
      %v4250 = vpop.permute.xlu0 %4249
      %4251 = vrot.lane.b32.xlu0 %v4137, 64
      %v4252 = vpop.permute.xlu0 %4251
      %4253 = vrot.lane.b32.xlu0 %v4138, 64
      %v4254 = vpop.permute.xlu0 %4253
      %4255 = vrot.lane.b32.xlu0 %v4139, 64
      %v4256 = vpop.permute.xlu0 %4255
      %4257 = vrot.lane.b32.xlu0 %v4140, 64
      %v4258 = vpop.permute.xlu0 %4257
      %4259 = vrot.lane.b32.xlu0 %v4141, 64
      %v4260 = vpop.permute.xlu0 %4259
      %4261 = vrot.lane.b32.xlu0 %v4142, 64
      %v4262 = vpop.permute.xlu0 %4261
      %4263 = vrot.lane.b32.xlu0 %v4143, 64
      %v4264 = vpop.permute.xlu0 %4263
      %4265 = vrot.lane.b32.xlu0 %v4144, 64
      %v4266 = vpop.permute.xlu0 %4265
      %4267 = vrot.lane.b32.xlu0 %v4145, 64
      %v4268 = vpop.permute.xlu0 %4267
      %4269 = vrot.lane.b32.xlu0 %v4146, 64
      %v4270 = vpop.permute.xlu0 %4269
      %4271 = vrot.lane.b32.xlu0 %v4147, 64
      %v4272 = vpop.permute.xlu0 %4271
      %4273 = vrot.lane.b32.xlu0 %v4148, 64
      %v4274 = vpop.permute.xlu0 %4273
      %4275 = vrot.lane.b32.xlu0 %v4149, 64
      %v4276 = vpop.permute.xlu0 %4275
      %4277 = vrot.lane.b32.xlu0 %v4150, 64
      %v4278 = vpop.permute.xlu0 %4277
      %4279 = vrot.lane.b32.xlu0 %v4151, 64
      %v4280 = vpop.permute.xlu0 %4279
      %4281 = vrot.lane.b32.xlu0 %v4152, 64
      %v4282 = vpop.permute.xlu0 %4281
      %4283 = vrot.lane.b32.xlu0 %v4153, 64
      %v4284 = vpop.permute.xlu0 %4283
      %4285 = vrot.lane.b32.xlu0 %v4154, 64
      %v4286 = vpop.permute.xlu0 %4285
      %4287 = vrot.lane.b32.xlu0 %v4155, 64
      %v4288 = vpop.permute.xlu0 %4287
      %4289 = vrot.lane.b32.xlu0 %v4156, 64
      %v4290 = vpop.permute.xlu0 %4289
      %4291 = vrot.lane.b32.xlu0 %v4157, 64
      %v4292 = vpop.permute.xlu0 %4291
      %4293 = vrot.lane.b32.xlu0 %v4158, 64
      %v4294 = vpop.permute.xlu0 %4293
      %4295 = vrot.lane.b32.xlu0 %v4159, 64
      %v4296 = vpop.permute.xlu0 %4295
      %4297 = vrot.lane.b32.xlu0 %v4160, 64
      %v4298 = vpop.permute.xlu0 %4297
      %4299 = vrot.lane.b32.xlu0 %v4161, 64
      %v4300 = vpop.permute.xlu0 %4299
      %4301 = vrot.lane.b32.xlu0 %v4162, 64
      %v4302 = vpop.permute.xlu0 %4301
      %4303 = vrot.lane.b32.xlu0 %v4163, 64
      %v4304 = vpop.permute.xlu0 %4303
      %4305 = vrot.lane.b32.xlu0 %v4164, 64
      %v4306 = vpop.permute.xlu0 %4305
      %4307 = vrot.lane.b32.xlu0 %v4165, 64
      %v4308 = vpop.permute.xlu0 %4307
      %4309 = vrot.lane.b32.xlu0 %v4166, 64
      %v4310 = vpop.permute.xlu0 %4309
      %v4347 = vsel %vm1936, %v4095, %v4240
      %v4348 = vsel %vm1936, %v4096, %v4242
      %v4349 = vsel %vm1936, %v4097, %v4244
      %v4350 = vsel %vm1936, %v4098, %v4246
      %v4351 = vsel %vm1936, %v4099, %v4248
      %v4352 = vsel %vm1936, %v4100, %v4250
      %v4353 = vsel %vm1936, %v4101, %v4252
      %v4354 = vsel %vm1936, %v4102, %v4254
      %v4355 = vsel %vm1936, %v4103, %v4256
      %v4356 = vsel %vm1936, %v4104, %v4258
      %v4357 = vsel %vm1936, %v4105, %v4260
      %v4358 = vsel %vm1936, %v4106, %v4262
      %v4359 = vsel %vm1936, %v4107, %v4264
      %v4360 = vsel %vm1936, %v4108, %v4266
      %v4361 = vsel %vm1936, %v4109, %v4268
      %v4362 = vsel %vm1936, %v4110, %v4270
      %v4363 = vsel %vm1936, %v4111, %v4272
      %v4364 = vsel %vm1936, %v4112, %v4274
      %v4365 = vsel %vm1936, %v4113, %v4276
      %v4366 = vsel %vm1936, %v4114, %v4278
      %v4367 = vsel %vm1936, %v4115, %v4280
      %v4368 = vsel %vm1936, %v4116, %v4282
      %v4369 = vsel %vm1936, %v4117, %v4284
      %v4370 = vsel %vm1936, %v4118, %v4286
      %v4371 = vsel %vm1936, %v4119, %v4288
      %v4372 = vsel %vm1936, %v4120, %v4290
      %v4373 = vsel %vm1936, %v4121, %v4292
      %v4374 = vsel %vm1936, %v4122, %v4294
      %v4375 = vsel %vm1936, %v4123, %v4296
      %v4376 = vsel %vm1936, %v4124, %v4298
      %v4377 = vsel %vm1936, %v4125, %v4300
      %v4378 = vsel %vm1936, %v4126, %v4302
      %v4379 = vsel %vm1936, %v4127, %v4304
      %v4380 = vsel %vm1936, %v4128, %v4306
      %v4381 = vsel %vm1936, %v4129, %v4308
      %v4382 = vsel %vm1936, %v4130, %v4310
      %s4383 = scalar_lea.vmem %s2, 576
      %v4384 = vld [vmem:[%s4383] sm:$0xff]
      %v4385 = vld [vmem:[%s4383 + $0x8] sm:$0xff]
      %v4386 = vld [vmem:[%s4383 + $0x10] sm:$0xff]
      %v4387 = vld [vmem:[%s4383 + $0x18] sm:$0xff]
      %v4388 = vld [vmem:[%s4383 + $0x20] sm:$0xff]
      %v4389 = vld [vmem:[%s4383 + $0x28] sm:$0xff]
      %v4390 = vld [vmem:[%s4383 + $0x30] sm:$0xff]
      %v4391 = vld [vmem:[%s4383 + $0x38] sm:$0xff]
      %v4392 = vld [vmem:[%s4383 + $0x40] sm:$0xff]
      %v4393 = vld [vmem:[%s4383 + $0x48] sm:$0xff]
      %v4394 = vld [vmem:[%s4383 + $0x50] sm:$0xff]
      %v4395 = vld [vmem:[%s4383 + $0x58] sm:$0xff]
      %v4396 = vld [vmem:[%s4383 + $0x60] sm:$0xff]
      %v4397 = vld [vmem:[%s4383 + $0x68] sm:$0xff]
      %v4398 = vld [vmem:[%s4383 + $0x70] sm:$0xff]
      %v4399 = vld [vmem:[%s4383 + $0x78] sm:$0xff]
      %v4400 = vld [vmem:[%s4383 + $0x80] sm:$0xff]
      %v4401 = vld [vmem:[%s4383 + $0x88] sm:$0xff]
      %v4402 = vld [vmem:[%s4383 + $0x90] sm:$0xff]
      %v4403 = vld [vmem:[%s4383 + $0x98] sm:$0xff]
      %v4404 = vld [vmem:[%s4383 + $0xa0] sm:$0xff]
      %v4405 = vld [vmem:[%s4383 + $0xa8] sm:$0xff]
      %v4406 = vld [vmem:[%s4383 + $0xb0] sm:$0xff]
      %v4407 = vld [vmem:[%s4383 + $0xb8] sm:$0xff]
      %v4408 = vld [vmem:[#allocation3 + $0x122] sm:$0xff]
      %v4409 = vld [vmem:[#allocation3 + $0x12a] sm:$0xff]
      %v4410 = vld [vmem:[#allocation3 + $0x13] sm:$0xff]
      %v4411 = vld [vmem:[#allocation3 + $0x1b] sm:$0xff]
      %v4412 = vld [vmem:[#allocation3 + $0x23] sm:$0xff]
      %v4413 = vld [vmem:[#allocation3 + $0x2b] sm:$0xff]
      %v4414 = vld [vmem:[#allocation3 + $0x33] sm:$0xff]
      %v4415 = vld [vmem:[#allocation3 + $0x3b] sm:$0xff]
      %v4416 = vld [vmem:[#allocation3 + $0x43] sm:$0xff]
      %v4417 = vld [vmem:[#allocation3 + $0x4b] sm:$0xff]
      %v4418 = vld [vmem:[#allocation3 + $0x53] sm:$0xff]
      %v4419 = vld [vmem:[#allocation3 + $0x5b] sm:$0xff]
      %v4420 = vld [vmem:[#allocation3 + $0x63] sm:$0xff]
      %v4421 = vld [vmem:[#allocation3 + $0x6b] sm:$0xff]
      %v4422 = vld [vmem:[#allocation3 + $0x73] sm:$0xff]
      %v4423 = vld [vmem:[#allocation3 + $0x7b] sm:$0xff]
      %v4424 = vld [vmem:[#allocation3 + $0x83] sm:$0xff]
      %v4425 = vld [vmem:[#allocation3 + $0x8b] sm:$0xff]
      %v4426 = vld [vmem:[#allocation3 + $0x93] sm:$0xff]
      %v4427 = vld [vmem:[#allocation3 + $0x9b] sm:$0xff]
      %v4428 = vld [vmem:[#allocation3 + $0xa3] sm:$0xff]
      %v4429 = vld [vmem:[#allocation3 + $0xab] sm:$0xff]
      %v4430 = vld [vmem:[#allocation3 + $0xb3] sm:$0xff]
      %v4431 = vld [vmem:[#allocation3 + $0xbb] sm:$0xff]
      %v4432 = vld [vmem:[#allocation3 + $0xc3] sm:$0xff]
      %v4433 = vld [vmem:[#allocation3 + $0xcb] sm:$0xff]
      %v4434 = vld [vmem:[#allocation3 + $0xd3] sm:$0xff]
      %v4435 = vld [vmem:[#allocation3 + $0xdb] sm:$0xff]
      %v4436 = vld [vmem:[#allocation3 + $0xe3] sm:$0xff]
      %v4437 = vld [vmem:[#allocation3 + $0xeb] sm:$0xff]
      %v4438 = vld [vmem:[#allocation3 + $0xf3] sm:$0xff]
      %v4439 = vld [vmem:[#allocation3 + $0xfb] sm:$0xff]
      %v4440 = vld [vmem:[#allocation3 + $0x103] sm:$0xff]
      %v4441 = vld [vmem:[#allocation3 + $0x10b] sm:$0xff]
      %v4442 = vld [vmem:[#allocation3 + $0x113] sm:$0xff]
      %v4443 = vld [vmem:[#allocation3 + $0x11b] sm:$0xff]
      %v4444 = vld [vmem:[#allocation3 + $0x123] sm:$0xff]
      %v4445 = vld [vmem:[#allocation3 + $0x12b] sm:$0xff]
      %v4446 = vld [vmem:[#allocation3 + $0x14] sm:$0xff]
      %v4447 = vld [vmem:[#allocation3 + $0x1c] sm:$0xff]
      %v4448 = vld [vmem:[#allocation3 + $0x24] sm:$0xff]
      %v4449 = vld [vmem:[#allocation3 + $0x2c] sm:$0xff]
      %v4450 = vld [vmem:[#allocation3 + $0x34] sm:$0xff]
      %v4451 = vld [vmem:[#allocation3 + $0x3c] sm:$0xff]
      %v4452 = vld [vmem:[#allocation3 + $0x44] sm:$0xff]
      %v4453 = vld [vmem:[#allocation3 + $0x4c] sm:$0xff]
      %v4454 = vld [vmem:[#allocation3 + $0x54] sm:$0xff]
      %v4455 = vld [vmem:[#allocation3 + $0x5c] sm:$0xff]
      %v4456 = vld [vmem:[#allocation3 + $0x64] sm:$0xff]
      %v4457 = vld [vmem:[#allocation3 + $0x6c] sm:$0xff]
      %v4458 = vld [vmem:[#allocation3 + $0x74] sm:$0xff]
      %v4459 = vld [vmem:[#allocation3 + $0x7c] sm:$0xff]
      %v4460 = vld [vmem:[#allocation3 + $0x84] sm:$0xff]
      %v4461 = vld [vmem:[#allocation3 + $0x8c] sm:$0xff]
      %v4462 = vld [vmem:[#allocation3 + $0x94] sm:$0xff]
      %v4463 = vld [vmem:[#allocation3 + $0x9c] sm:$0xff]
      %v4464 = vld [vmem:[#allocation3 + $0xa4] sm:$0xff]
      %v4465 = vld [vmem:[#allocation3 + $0xac] sm:$0xff]
      %v4466 = vld [vmem:[#allocation3 + $0xb4] sm:$0xff]
      %v4467 = vld [vmem:[#allocation3 + $0xbc] sm:$0xff]
      %v4468 = vld [vmem:[#allocation3 + $0xc4] sm:$0xff]
      %v4469 = vld [vmem:[#allocation3 + $0xcc] sm:$0xff]
      %v4470 = vld [vmem:[#allocation3 + $0xd4] sm:$0xff]
      %v4471 = vld [vmem:[#allocation3 + $0xdc] sm:$0xff]
      %v4472 = vld [vmem:[#allocation3 + $0xe4] sm:$0xff]
      %v4473 = vld [vmem:[#allocation3 + $0xec] sm:$0xff]
      %v4474 = vld [vmem:[#allocation3 + $0xf4] sm:$0xff]
      %v4475 = vld [vmem:[#allocation3 + $0xfc] sm:$0xff]
      %v4476 = vld [vmem:[#allocation3 + $0x104] sm:$0xff]
      %v4477 = vld [vmem:[#allocation3 + $0x10c] sm:$0xff]
      %v4478 = vld [vmem:[#allocation3 + $0x114] sm:$0xff]
      %v4479 = vld [vmem:[#allocation3 + $0x11c] sm:$0xff]
      %v4480 = vld [vmem:[#allocation3 + $0x124] sm:$0xff]
      %v4481 = vld [vmem:[#allocation3 + $0x12c] sm:$0xff]
      %4518 = vrot.lane.b32.xlu0 %v4410, 64
      %v4519 = vpop.permute.xlu0 %4518
      %4520 = vrot.lane.b32.xlu0 %v4411, 64
      %v4521 = vpop.permute.xlu0 %4520
      %4522 = vrot.lane.b32.xlu0 %v4412, 64
      %v4523 = vpop.permute.xlu0 %4522
      %4524 = vrot.lane.b32.xlu0 %v4413, 64
      %v4525 = vpop.permute.xlu0 %4524
      %4526 = vrot.lane.b32.xlu0 %v4414, 64
      %v4527 = vpop.permute.xlu0 %4526
      %4528 = vrot.lane.b32.xlu0 %v4415, 64
      %v4529 = vpop.permute.xlu0 %4528
      %4530 = vrot.lane.b32.xlu0 %v4416, 64
      %v4531 = vpop.permute.xlu0 %4530
      %4532 = vrot.lane.b32.xlu0 %v4417, 64
      %v4533 = vpop.permute.xlu0 %4532
      %4534 = vrot.lane.b32.xlu0 %v4418, 64
      %v4535 = vpop.permute.xlu0 %4534
      %4536 = vrot.lane.b32.xlu0 %v4419, 64
      %v4537 = vpop.permute.xlu0 %4536
      %4538 = vrot.lane.b32.xlu0 %v4420, 64
      %v4539 = vpop.permute.xlu0 %4538
      %4540 = vrot.lane.b32.xlu0 %v4421, 64
      %v4541 = vpop.permute.xlu0 %4540
      %4542 = vrot.lane.b32.xlu0 %v4422, 64
      %v4543 = vpop.permute.xlu0 %4542
      %4544 = vrot.lane.b32.xlu0 %v4423, 64
      %v4545 = vpop.permute.xlu0 %4544
      %4546 = vrot.lane.b32.xlu0 %v4424, 64
      %v4547 = vpop.permute.xlu0 %4546
      %4548 = vrot.lane.b32.xlu0 %v4425, 64
      %v4549 = vpop.permute.xlu0 %4548
      %4550 = vrot.lane.b32.xlu0 %v4426, 64
      %v4551 = vpop.permute.xlu0 %4550
      %4552 = vrot.lane.b32.xlu0 %v4427, 64
      %v4553 = vpop.permute.xlu0 %4552
      %4554 = vrot.lane.b32.xlu0 %v4428, 64
      %v4555 = vpop.permute.xlu0 %4554
      %4556 = vrot.lane.b32.xlu0 %v4429, 64
      %v4557 = vpop.permute.xlu0 %4556
      %4558 = vrot.lane.b32.xlu0 %v4430, 64
      %v4559 = vpop.permute.xlu0 %4558
      %4560 = vrot.lane.b32.xlu0 %v4431, 64
      %v4561 = vpop.permute.xlu0 %4560
      %4562 = vrot.lane.b32.xlu0 %v4432, 64
      %v4563 = vpop.permute.xlu0 %4562
      %4564 = vrot.lane.b32.xlu0 %v4433, 64
      %v4565 = vpop.permute.xlu0 %4564
      %4566 = vrot.lane.b32.xlu0 %v4434, 64
      %v4567 = vpop.permute.xlu0 %4566
      %4568 = vrot.lane.b32.xlu0 %v4435, 64
      %v4569 = vpop.permute.xlu0 %4568
      %4570 = vrot.lane.b32.xlu0 %v4436, 64
      %v4571 = vpop.permute.xlu0 %4570
      %4572 = vrot.lane.b32.xlu0 %v4437, 64
      %v4573 = vpop.permute.xlu0 %4572
      %4574 = vrot.lane.b32.xlu0 %v4438, 64
      %v4575 = vpop.permute.xlu0 %4574
      %4576 = vrot.lane.b32.xlu0 %v4439, 64
      %v4577 = vpop.permute.xlu0 %4576
      %4578 = vrot.lane.b32.xlu0 %v4440, 64
      %v4579 = vpop.permute.xlu0 %4578
      %4580 = vrot.lane.b32.xlu0 %v4441, 64
      %v4581 = vpop.permute.xlu0 %4580
      %4582 = vrot.lane.b32.xlu0 %v4442, 64
      %v4583 = vpop.permute.xlu0 %4582
      %4584 = vrot.lane.b32.xlu0 %v4443, 64
      %v4585 = vpop.permute.xlu0 %4584
      %4586 = vrot.lane.b32.xlu0 %v4444, 64
      %v4587 = vpop.permute.xlu0 %4586
      %4588 = vrot.lane.b32.xlu0 %v4445, 64
      %v4589 = vpop.permute.xlu0 %4588
      %v4626 = vsel %vm1936, %v4169, %v4519
      %v4627 = vsel %vm1936, %v4170, %v4521
      %v4628 = vsel %vm1936, %v4171, %v4523
      %v4629 = vsel %vm1936, %v4172, %v4525
      %v4630 = vsel %vm1936, %v4173, %v4527
      %v4631 = vsel %vm1936, %v4174, %v4529
      %v4632 = vsel %vm1936, %v4175, %v4531
      %v4633 = vsel %vm1936, %v4176, %v4533
      %v4634 = vsel %vm1936, %v4177, %v4535
      %v4635 = vsel %vm1936, %v4178, %v4537
      %v4636 = vsel %vm1936, %v4179, %v4539
      %v4637 = vsel %vm1936, %v4180, %v4541
      %v4638 = vsel %vm1936, %v4181, %v4543
      %v4639 = vsel %vm1936, %v4182, %v4545
      %v4640 = vsel %vm1936, %v4183, %v4547
      %v4641 = vsel %vm1936, %v4184, %v4549
      %v4642 = vsel %vm1936, %v4185, %v4551
      %v4643 = vsel %vm1936, %v4186, %v4553
      %v4644 = vsel %vm1936, %v4187, %v4555
      %v4645 = vsel %vm1936, %v4188, %v4557
      %v4646 = vsel %vm1936, %v4189, %v4559
      %v4647 = vsel %vm1936, %v4190, %v4561
      %v4648 = vsel %vm1936, %v4191, %v4563
      %v4649 = vsel %vm1936, %v4192, %v4565
      %v4650 = vsel %vm1936, %v4193, %v4567
      %v4651 = vsel %vm1936, %v4194, %v4569
      %v4652 = vsel %vm1936, %v4195, %v4571
      %v4653 = vsel %vm1936, %v4196, %v4573
      %v4654 = vsel %vm1936, %v4197, %v4575
      %v4655 = vsel %vm1936, %v4198, %v4577
      %v4656 = vsel %vm1936, %v4199, %v4579
      %v4657 = vsel %vm1936, %v4200, %v4581
      %v4658 = vsel %vm1936, %v4201, %v4583
      %v4659 = vsel %vm1936, %v4202, %v4585
      %v4660 = vsel %vm1936, %v4408, %v4587
      %v4661 = vsel %vm1936, %v4409, %v4589
      %s4662 = scalar_lea.vmem %s2, 768
      %v4663 = vld [vmem:[%s4662] sm:$0xff]
      %v4664 = vld [vmem:[%s4662 + $0x8] sm:$0xff]
      %v4665 = vld [vmem:[%s4662 + $0x10] sm:$0xff]
      %v4666 = vld [vmem:[%s4662 + $0x18] sm:$0xff]
      %v4667 = vld [vmem:[%s4662 + $0x20] sm:$0xff]
      %v4668 = vld [vmem:[%s4662 + $0x28] sm:$0xff]
      %v4669 = vld [vmem:[%s4662 + $0x30] sm:$0xff]
      %v4670 = vld [vmem:[%s4662 + $0x38] sm:$0xff]
      %v4671 = vld [vmem:[%s4662 + $0x40] sm:$0xff]
      %v4672 = vld [vmem:[%s4662 + $0x48] sm:$0xff]
      %v4673 = vld [vmem:[%s4662 + $0x50] sm:$0xff]
      %v4674 = vld [vmem:[%s4662 + $0x58] sm:$0xff]
      %v4675 = vld [vmem:[%s4662 + $0x60] sm:$0xff]
      %v4676 = vld [vmem:[%s4662 + $0x68] sm:$0xff]
      %v4677 = vld [vmem:[%s4662 + $0x70] sm:$0xff]
      %v4678 = vld [vmem:[%s4662 + $0x78] sm:$0xff]
      %v4679 = vld [vmem:[%s4662 + $0x80] sm:$0xff]
      %v4680 = vld [vmem:[%s4662 + $0x88] sm:$0xff]
      %v4681 = vld [vmem:[%s4662 + $0x90] sm:$0xff]
      %v4682 = vld [vmem:[%s4662 + $0x98] sm:$0xff]
      %v4683 = vld [vmem:[%s4662 + $0xa0] sm:$0xff]
      %v4684 = vld [vmem:[%s4662 + $0xa8] sm:$0xff]
      %v4685 = vld [vmem:[%s4662 + $0xb0] sm:$0xff]
      %v4686 = vld [vmem:[%s4662 + $0xb8] sm:$0xff]
      %v4688 = vsel %vm1936, %v4446, 0
      %v4691 = vsel %vm1936, %v4447, 0
      %v4694 = vsel %vm1936, %v4448, 0
      %v4697 = vsel %vm1936, %v4449, 0
      %v4700 = vsel %vm1936, %v4450, 0
      %v4703 = vsel %vm1936, %v4451, 0
      %v4706 = vsel %vm1936, %v4452, 0
      %v4709 = vsel %vm1936, %v4453, 0
      %v4712 = vsel %vm1936, %v4454, 0
      %v4715 = vsel %vm1936, %v4455, 0
      %v4718 = vsel %vm1936, %v4456, 0
      %v4721 = vsel %vm1936, %v4457, 0
      %v4724 = vsel %vm1936, %v4458, 0
      %v4727 = vsel %vm1936, %v4459, 0
      %v4730 = vsel %vm1936, %v4460, 0
      %v4733 = vsel %vm1936, %v4461, 0
      %v4736 = vsel %vm1936, %v4462, 0
      %v4739 = vsel %vm1936, %v4463, 0
      %v4742 = vsel %vm1936, %v4464, 0
      %v4745 = vsel %vm1936, %v4465, 0
      %v4748 = vsel %vm1936, %v4466, 0
      %v4751 = vsel %vm1936, %v4467, 0
      %v4754 = vsel %vm1936, %v4468, 0
      %v4757 = vsel %vm1936, %v4469, 0
      %v4760 = vsel %vm1936, %v4470, 0
      %v4763 = vsel %vm1936, %v4471, 0
      %v4766 = vsel %vm1936, %v4472, 0
      %v4769 = vsel %vm1936, %v4473, 0
      %v4772 = vsel %vm1936, %v4474, 0
      %v4775 = vsel %vm1936, %v4475, 0
      %v4778 = vsel %vm1936, %v4476, 0
      %v4781 = vsel %vm1936, %v4477, 0
      %v4784 = vsel %vm1936, %v4478, 0
      %v4787 = vsel %vm1936, %v4479, 0
      %v4790 = vsel %vm1936, %v4480, 0
      %v4793 = vsel %vm1936, %v4481, 0
      %4795 = vmatpush.msra.mxu0 %v4678
      %4796 = vmatpush.msra.mxu0 %v4677
      %4797 = vmatpush.msra.mxu0 %v4676
      %4798 = vmatpush.msra.mxu0 %v4675
      %4799 = vmatpush.msra.mxu0 %v4674
      %4800 = vmatpush.msra.mxu0 %v4673
      %4801 = vmatpush.msra.mxu0 %v4672
      %4802 = vmatpush.msra.mxu0 %v4671
      %4803 = vmatpush.msra.mxu0 %v4670
      %4804 = vmatpush.msra.mxu0 %v4669
      %4805 = vmatpush.msra.mxu0 %v4668
      %4806 = vmatpush.msra.mxu0 %v4667
      %4807 = vmatpush.msra.mxu0 %v4666
      %4808 = vmatpush.msra.mxu0 %v4665
      %4809 = vmatpush.msra.mxu0 %v4664
      %4810 = vmatpush.msra.mxu0 %v4663
      %4811 = vmatmul.f32.gmra.mxu0 %v4626
      %v4812 = vpop.f32.mrf.mxu0
      %v4813 = vadd.f32 0.0, %v4812
      %4814 = vmatmul.f32.gmra.mxu0 %v4627
      %v4815 = vpop.f32.mrf.mxu0
      %v4816 = vadd.f32 0.0, %v4815
      %4817 = vmatmul.f32.gmra.mxu0 %v4628
      %v4818 = vpop.f32.mrf.mxu0
      %v4819 = vadd.f32 0.0, %v4818
      %4820 = vmatmul.f32.gmra.mxu0 %v4629
      %v4821 = vpop.f32.mrf.mxu0
      %v4822 = vadd.f32 0.0, %v4821
      %4823 = vmatmul.f32.gmra.mxu0 %v4630
      %v4824 = vpop.f32.mrf.mxu0
      %v4825 = vadd.f32 0.0, %v4824
      %4826 = vmatmul.f32.gmra.mxu0 %v4631
      %v4827 = vpop.f32.mrf.mxu0
      %v4828 = vadd.f32 0.0, %v4827
      %4829 = vmatmul.f32.gmra.mxu0 %v4632
      %v4830 = vpop.f32.mrf.mxu0
      %v4831 = vadd.f32 0.0, %v4830
      %4832 = vmatmul.f32.gmra.mxu0 %v4633
      %v4833 = vpop.f32.mrf.mxu0
      %v4834 = vadd.f32 0.0, %v4833
      %4835 = vmatmul.f32.gmra.mxu0 %v4634
      %v4836 = vpop.f32.mrf.mxu0
      %v4837 = vadd.f32 0.0, %v4836
      %4838 = vmatmul.f32.gmra.mxu0 %v4635
      %v4839 = vpop.f32.mrf.mxu0
      %v4840 = vadd.f32 0.0, %v4839
      %4841 = vmatmul.f32.gmra.mxu0 %v4636
      %v4842 = vpop.f32.mrf.mxu0
      %v4843 = vadd.f32 0.0, %v4842
      %4844 = vmatmul.f32.gmra.mxu0 %v4637
      %v4845 = vpop.f32.mrf.mxu0
      %v4846 = vadd.f32 0.0, %v4845
      %4847 = vmatmul.f32.gmra.mxu0 %v4638
      %v4848 = vpop.f32.mrf.mxu0
      %v4849 = vadd.f32 0.0, %v4848
      %4850 = vmatmul.f32.gmra.mxu0 %v4639
      %v4851 = vpop.f32.mrf.mxu0
      %v4852 = vadd.f32 0.0, %v4851
      %4853 = vmatmul.f32.gmra.mxu0 %v4640
      %v4854 = vpop.f32.mrf.mxu0
      %v4855 = vadd.f32 0.0, %v4854
      %4856 = vmatmul.f32.gmra.mxu0 %v4641
      %v4857 = vpop.f32.mrf.mxu0
      %v4858 = vadd.f32 0.0, %v4857
      %4859 = vmatmul.f32.gmra.mxu0 %v4642
      %v4860 = vpop.f32.mrf.mxu0
      %v4861 = vadd.f32 0.0, %v4860
      %4862 = vmatmul.f32.gmra.mxu0 %v4643
      %v4863 = vpop.f32.mrf.mxu0
      %v4864 = vadd.f32 0.0, %v4863
      %4865 = vmatmul.f32.gmra.mxu0 %v4644
      %v4866 = vpop.f32.mrf.mxu0
      %v4867 = vadd.f32 0.0, %v4866
      %4868 = vmatmul.f32.gmra.mxu0 %v4645
      %v4869 = vpop.f32.mrf.mxu0
      %v4870 = vadd.f32 0.0, %v4869
      %4871 = vmatmul.f32.gmra.mxu0 %v4646
      %v4872 = vpop.f32.mrf.mxu0
      %v4873 = vadd.f32 0.0, %v4872
      %4874 = vmatmul.f32.gmra.mxu0 %v4647
      %v4875 = vpop.f32.mrf.mxu0
      %v4876 = vadd.f32 0.0, %v4875
      %4877 = vmatmul.f32.gmra.mxu0 %v4648
      %v4878 = vpop.f32.mrf.mxu0
      %v4879 = vadd.f32 0.0, %v4878
      %4880 = vmatmul.f32.gmra.mxu0 %v4649
      %v4881 = vpop.f32.mrf.mxu0
      %v4882 = vadd.f32 0.0, %v4881
      %4883 = vmatmul.f32.gmra.mxu0 %v4650
      %v4884 = vpop.f32.mrf.mxu0
      %v4885 = vadd.f32 0.0, %v4884
      %4886 = vmatmul.f32.gmra.mxu0 %v4651
      %v4887 = vpop.f32.mrf.mxu0
      %v4888 = vadd.f32 0.0, %v4887
      %4889 = vmatmul.f32.gmra.mxu0 %v4652
      %v4890 = vpop.f32.mrf.mxu0
      %v4891 = vadd.f32 0.0, %v4890
      %4892 = vmatmul.f32.gmra.mxu0 %v4653
      %v4893 = vpop.f32.mrf.mxu0
      %v4894 = vadd.f32 0.0, %v4893
      %4895 = vmatmul.f32.gmra.mxu0 %v4654
      %v4896 = vpop.f32.mrf.mxu0
      %v4897 = vadd.f32 0.0, %v4896
      %4898 = vmatmul.f32.gmra.mxu0 %v4655
      %v4899 = vpop.f32.mrf.mxu0
      %v4900 = vadd.f32 0.0, %v4899
      %4901 = vmatmul.f32.gmra.mxu0 %v4656
      %v4902 = vpop.f32.mrf.mxu0
      %v4903 = vadd.f32 0.0, %v4902
      %4904 = vmatmul.f32.gmra.mxu0 %v4657
      %v4905 = vpop.f32.mrf.mxu0
      %v4906 = vadd.f32 0.0, %v4905
      %4907 = vmatmul.f32.gmra.mxu0 %v4658
      %v4908 = vpop.f32.mrf.mxu0
      %v4909 = vadd.f32 0.0, %v4908
      %4910 = vmatmul.f32.gmra.mxu0 %v4659
      %v4911 = vpop.f32.mrf.mxu0
      %v4912 = vadd.f32 0.0, %v4911
      %4913 = vmatmul.f32.gmra.mxu0 %v4660
      %v4914 = vpop.f32.mrf.mxu0
      %v4915 = vadd.f32 0.0, %v4914
      %4916 = vmatmul.f32.gmra.mxu0 %v4661
      %v4917 = vpop.f32.mrf.mxu0
      %v4918 = vadd.f32 0.0, %v4917
      %4919 = vdwg.mxu0
      %4920 = vmatpush.msra.mxu0 0.0
      %4921 = vmatpush.msra.mxu0 0.0
      %4922 = vmatpush.msra.mxu0 0.0
      %4923 = vmatpush.msra.mxu0 0.0
      %4924 = vmatpush.msra.mxu0 0.0
      %4925 = vmatpush.msra.mxu0 0.0
      %4926 = vmatpush.msra.mxu0 0.0
      %4927 = vmatpush.msra.mxu0 0.0
      %4928 = vmatpush.msra.mxu0 %v4686
      %4929 = vmatpush.msra.mxu0 %v4685
      %4930 = vmatpush.msra.mxu0 %v4684
      %4931 = vmatpush.msra.mxu0 %v4683
      %4932 = vmatpush.msra.mxu0 %v4682
      %4933 = vmatpush.msra.mxu0 %v4681
      %4934 = vmatpush.msra.mxu0 %v4680
      %4935 = vmatpush.msra.mxu0 %v4679
      %4936 = vmatmul.f32.gmra.mxu0 %v4688
      %v4937 = vpop.f32.mrf.mxu0
      %v4938 = vadd.f32 %v4813, %v4937
      %4939 = vmatmul.f32.gmra.mxu0 %v4691
      %v4940 = vpop.f32.mrf.mxu0
      %v4941 = vadd.f32 %v4816, %v4940
      %4942 = vmatmul.f32.gmra.mxu0 %v4694
      %v4943 = vpop.f32.mrf.mxu0
      %v4944 = vadd.f32 %v4819, %v4943
      %4945 = vmatmul.f32.gmra.mxu0 %v4697
      %v4946 = vpop.f32.mrf.mxu0
      %v4947 = vadd.f32 %v4822, %v4946
      %4948 = vmatmul.f32.gmra.mxu0 %v4700
      %v4949 = vpop.f32.mrf.mxu0
      %v4950 = vadd.f32 %v4825, %v4949
      %4951 = vmatmul.f32.gmra.mxu0 %v4703
      %v4952 = vpop.f32.mrf.mxu0
      %v4953 = vadd.f32 %v4828, %v4952
      %4954 = vmatmul.f32.gmra.mxu0 %v4706
      %v4955 = vpop.f32.mrf.mxu0
      %v4956 = vadd.f32 %v4831, %v4955
      %4957 = vmatmul.f32.gmra.mxu0 %v4709
      %v4958 = vpop.f32.mrf.mxu0
      %v4959 = vadd.f32 %v4834, %v4958
      %4960 = vmatmul.f32.gmra.mxu0 %v4712
      %v4961 = vpop.f32.mrf.mxu0
      %v4962 = vadd.f32 %v4837, %v4961
      %4963 = vmatmul.f32.gmra.mxu0 %v4715
      %v4964 = vpop.f32.mrf.mxu0
      %v4965 = vadd.f32 %v4840, %v4964
      %4966 = vmatmul.f32.gmra.mxu0 %v4718
      %v4967 = vpop.f32.mrf.mxu0
      %v4968 = vadd.f32 %v4843, %v4967
      %4969 = vmatmul.f32.gmra.mxu0 %v4721
      %v4970 = vpop.f32.mrf.mxu0
      %v4971 = vadd.f32 %v4846, %v4970
      %4972 = vmatmul.f32.gmra.mxu0 %v4724
      %v4973 = vpop.f32.mrf.mxu0
      %v4974 = vadd.f32 %v4849, %v4973
      %4975 = vmatmul.f32.gmra.mxu0 %v4727
      %v4976 = vpop.f32.mrf.mxu0
      %v4977 = vadd.f32 %v4852, %v4976
      %4978 = vmatmul.f32.gmra.mxu0 %v4730
      %v4979 = vpop.f32.mrf.mxu0
      %v4980 = vadd.f32 %v4855, %v4979
      %4981 = vmatmul.f32.gmra.mxu0 %v4733
      %v4982 = vpop.f32.mrf.mxu0
      %v4983 = vadd.f32 %v4858, %v4982
      %4984 = vmatmul.f32.gmra.mxu0 %v4736
      %v4985 = vpop.f32.mrf.mxu0
      %v4986 = vadd.f32 %v4861, %v4985
      %4987 = vmatmul.f32.gmra.mxu0 %v4739
      %v4988 = vpop.f32.mrf.mxu0
      %v4989 = vadd.f32 %v4864, %v4988
      %4990 = vmatmul.f32.gmra.mxu0 %v4742
      %v4991 = vpop.f32.mrf.mxu0
      %v4992 = vadd.f32 %v4867, %v4991
      %4993 = vmatmul.f32.gmra.mxu0 %v4745
      %v4994 = vpop.f32.mrf.mxu0
      %v4995 = vadd.f32 %v4870, %v4994
      %4996 = vmatmul.f32.gmra.mxu0 %v4748
      %v4997 = vpop.f32.mrf.mxu0
      %v4998 = vadd.f32 %v4873, %v4997
      %4999 = vmatmul.f32.gmra.mxu0 %v4751
      %v5000 = vpop.f32.mrf.mxu0
      %v5001 = vadd.f32 %v4876, %v5000
      %5002 = vmatmul.f32.gmra.mxu0 %v4754
      %v5003 = vpop.f32.mrf.mxu0
      %v5004 = vadd.f32 %v4879, %v5003
      %5005 = vmatmul.f32.gmra.mxu0 %v4757
      %v5006 = vpop.f32.mrf.mxu0
      %v5007 = vadd.f32 %v4882, %v5006
      %5008 = vmatmul.f32.gmra.mxu0 %v4760
      %v5009 = vpop.f32.mrf.mxu0
      %v5010 = vadd.f32 %v4885, %v5009
      %5011 = vmatmul.f32.gmra.mxu0 %v4763
      %v5012 = vpop.f32.mrf.mxu0
      %v5013 = vadd.f32 %v4888, %v5012
      %5014 = vmatmul.f32.gmra.mxu0 %v4766
      %v5015 = vpop.f32.mrf.mxu0
      %v5016 = vadd.f32 %v4891, %v5015
      %5017 = vmatmul.f32.gmra.mxu0 %v4769
      %v5018 = vpop.f32.mrf.mxu0
      %v5019 = vadd.f32 %v4894, %v5018
      %5020 = vmatmul.f32.gmra.mxu0 %v4772
      %v5021 = vpop.f32.mrf.mxu0
      %v5022 = vadd.f32 %v4897, %v5021
      %5023 = vmatmul.f32.gmra.mxu0 %v4775
      %v5024 = vpop.f32.mrf.mxu0
      %v5025 = vadd.f32 %v4900, %v5024
      %5026 = vmatmul.f32.gmra.mxu0 %v4778
      %v5027 = vpop.f32.mrf.mxu0
      %v5028 = vadd.f32 %v4903, %v5027
      %5029 = vmatmul.f32.gmra.mxu0 %v4781
      %v5030 = vpop.f32.mrf.mxu0
      %v5031 = vadd.f32 %v4906, %v5030
      %5032 = vmatmul.f32.gmra.mxu0 %v4784
      %v5033 = vpop.f32.mrf.mxu0
      %v5034 = vadd.f32 %v4909, %v5033
      %5035 = vmatmul.f32.gmra.mxu0 %v4787
      %v5036 = vpop.f32.mrf.mxu0
      %v5037 = vadd.f32 %v4912, %v5036
      %5038 = vmatmul.f32.gmra.mxu0 %v4790
      %v5039 = vpop.f32.mrf.mxu0
      %v5040 = vadd.f32 %v4915, %v5039
      %5041 = vmatmul.f32.gmra.mxu0 %v4793
      %v5042 = vpop.f32.mrf.mxu0
      %v5043 = vadd.f32 %v4918, %v5042
      %5044 = vdwg.mxu0
      %v5046 = vsel %vm1936, %v4167, 0
      %v5049 = vsel %vm1936, %v4168, 0
      %v5052 = vsel %vm1936, %v4169, 0
      %v5055 = vsel %vm1936, %v4170, 0
      %v5058 = vsel %vm1936, %v4171, 0
      %v5061 = vsel %vm1936, %v4172, 0
      %v5064 = vsel %vm1936, %v4173, 0
      %v5067 = vsel %vm1936, %v4174, 0
      %v5070 = vsel %vm1936, %v4175, 0
      %v5073 = vsel %vm1936, %v4176, 0
      %v5076 = vsel %vm1936, %v4177, 0
      %v5079 = vsel %vm1936, %v4178, 0
      %v5082 = vsel %vm1936, %v4179, 0
      %v5085 = vsel %vm1936, %v4180, 0
      %v5088 = vsel %vm1936, %v4181, 0
      %v5091 = vsel %vm1936, %v4182, 0
      %v5094 = vsel %vm1936, %v4183, 0
      %v5097 = vsel %vm1936, %v4184, 0
      %v5100 = vsel %vm1936, %v4185, 0
      %v5103 = vsel %vm1936, %v4186, 0
      %v5106 = vsel %vm1936, %v4187, 0
      %v5109 = vsel %vm1936, %v4188, 0
      %v5112 = vsel %vm1936, %v4189, 0
      %v5115 = vsel %vm1936, %v4190, 0
      %v5118 = vsel %vm1936, %v4191, 0
      %v5121 = vsel %vm1936, %v4192, 0
      %v5124 = vsel %vm1936, %v4193, 0
      %v5127 = vsel %vm1936, %v4194, 0
      %v5130 = vsel %vm1936, %v4195, 0
      %v5133 = vsel %vm1936, %v4196, 0
      %v5136 = vsel %vm1936, %v4197, 0
      %v5139 = vsel %vm1936, %v4198, 0
      %v5142 = vsel %vm1936, %v4199, 0
      %v5145 = vsel %vm1936, %v4200, 0
      %v5148 = vsel %vm1936, %v4201, 0
      %v5151 = vsel %vm1936, %v4202, 0
      %5153 = vmatpush.msra.mxu0 %v4399
      %5154 = vmatpush.msra.mxu0 %v4398
      %5155 = vmatpush.msra.mxu0 %v4397
      %5156 = vmatpush.msra.mxu0 %v4396
      %5157 = vmatpush.msra.mxu0 %v4395
      %5158 = vmatpush.msra.mxu0 %v4394
      %5159 = vmatpush.msra.mxu0 %v4393
      %5160 = vmatpush.msra.mxu0 %v4392
      %5161 = vmatpush.msra.mxu0 %v4391
      %5162 = vmatpush.msra.mxu0 %v4390
      %5163 = vmatpush.msra.mxu0 %v4389
      %5164 = vmatpush.msra.mxu0 %v4388
      %5165 = vmatpush.msra.mxu0 %v4387
      %5166 = vmatpush.msra.mxu0 %v4386
      %5167 = vmatpush.msra.mxu0 %v4385
      %5168 = vmatpush.msra.mxu0 %v4384
      %5169 = vmatmul.f32.gmra.mxu0 %v4347
      %v5170 = vpop.f32.mrf.mxu0
      %v5171 = vadd.f32 %v4938, %v5170
      %5172 = vmatmul.f32.gmra.mxu0 %v4348
      %v5173 = vpop.f32.mrf.mxu0
      %v5174 = vadd.f32 %v4941, %v5173
      %5175 = vmatmul.f32.gmra.mxu0 %v4349
      %v5176 = vpop.f32.mrf.mxu0
      %v5177 = vadd.f32 %v4944, %v5176
      %5178 = vmatmul.f32.gmra.mxu0 %v4350
      %v5179 = vpop.f32.mrf.mxu0
      %v5180 = vadd.f32 %v4947, %v5179
      %5181 = vmatmul.f32.gmra.mxu0 %v4351
      %v5182 = vpop.f32.mrf.mxu0
      %v5183 = vadd.f32 %v4950, %v5182
      %5184 = vmatmul.f32.gmra.mxu0 %v4352
      %v5185 = vpop.f32.mrf.mxu0
      %v5186 = vadd.f32 %v4953, %v5185
      %5187 = vmatmul.f32.gmra.mxu0 %v4353
      %v5188 = vpop.f32.mrf.mxu0
      %v5189 = vadd.f32 %v4956, %v5188
      %5190 = vmatmul.f32.gmra.mxu0 %v4354
      %v5191 = vpop.f32.mrf.mxu0
      %v5192 = vadd.f32 %v4959, %v5191
      %5193 = vmatmul.f32.gmra.mxu0 %v4355
      %v5194 = vpop.f32.mrf.mxu0
      %v5195 = vadd.f32 %v4962, %v5194
      %5196 = vmatmul.f32.gmra.mxu0 %v4356
      %v5197 = vpop.f32.mrf.mxu0
      %v5198 = vadd.f32 %v4965, %v5197
      %5199 = vmatmul.f32.gmra.mxu0 %v4357
      %v5200 = vpop.f32.mrf.mxu0
      %v5201 = vadd.f32 %v4968, %v5200
      %5202 = vmatmul.f32.gmra.mxu0 %v4358
      %v5203 = vpop.f32.mrf.mxu0
      %v5204 = vadd.f32 %v4971, %v5203
      %5205 = vmatmul.f32.gmra.mxu0 %v4359
      %v5206 = vpop.f32.mrf.mxu0
      %v5207 = vadd.f32 %v4974, %v5206
      %5208 = vmatmul.f32.gmra.mxu0 %v4360
      %v5209 = vpop.f32.mrf.mxu0
      %v5210 = vadd.f32 %v4977, %v5209
      %5211 = vmatmul.f32.gmra.mxu0 %v4361
      %v5212 = vpop.f32.mrf.mxu0
      %v5213 = vadd.f32 %v4980, %v5212
      %5214 = vmatmul.f32.gmra.mxu0 %v4362
      %v5215 = vpop.f32.mrf.mxu0
      %v5216 = vadd.f32 %v4983, %v5215
      %5217 = vmatmul.f32.gmra.mxu0 %v4363
      %v5218 = vpop.f32.mrf.mxu0
      %v5219 = vadd.f32 %v4986, %v5218
      %5220 = vmatmul.f32.gmra.mxu0 %v4364
      %v5221 = vpop.f32.mrf.mxu0
      %v5222 = vadd.f32 %v4989, %v5221
      %5223 = vmatmul.f32.gmra.mxu0 %v4365
      %v5224 = vpop.f32.mrf.mxu0
      %v5225 = vadd.f32 %v4992, %v5224
      %5226 = vmatmul.f32.gmra.mxu0 %v4366
      %v5227 = vpop.f32.mrf.mxu0
      %v5228 = vadd.f32 %v4995, %v5227
      %5229 = vmatmul.f32.gmra.mxu0 %v4367
      %v5230 = vpop.f32.mrf.mxu0
      %v5231 = vadd.f32 %v4998, %v5230
      %5232 = vmatmul.f32.gmra.mxu0 %v4368
      %v5233 = vpop.f32.mrf.mxu0
      %v5234 = vadd.f32 %v5001, %v5233
      %5235 = vmatmul.f32.gmra.mxu0 %v4369
      %v5236 = vpop.f32.mrf.mxu0
      %v5237 = vadd.f32 %v5004, %v5236
      %5238 = vmatmul.f32.gmra.mxu0 %v4370
      %v5239 = vpop.f32.mrf.mxu0
      %v5240 = vadd.f32 %v5007, %v5239
      %5241 = vmatmul.f32.gmra.mxu0 %v4371
      %v5242 = vpop.f32.mrf.mxu0
      %v5243 = vadd.f32 %v5010, %v5242
      %5244 = vmatmul.f32.gmra.mxu0 %v4372
      %v5245 = vpop.f32.mrf.mxu0
      %v5246 = vadd.f32 %v5013, %v5245
      %5247 = vmatmul.f32.gmra.mxu0 %v4373
      %v5248 = vpop.f32.mrf.mxu0
      %v5249 = vadd.f32 %v5016, %v5248
      %5250 = vmatmul.f32.gmra.mxu0 %v4374
      %v5251 = vpop.f32.mrf.mxu0
      %v5252 = vadd.f32 %v5019, %v5251
      %5253 = vmatmul.f32.gmra.mxu0 %v4375
      %v5254 = vpop.f32.mrf.mxu0
      %v5255 = vadd.f32 %v5022, %v5254
      %5256 = vmatmul.f32.gmra.mxu0 %v4376
      %v5257 = vpop.f32.mrf.mxu0
      %v5258 = vadd.f32 %v5025, %v5257
      %5259 = vmatmul.f32.gmra.mxu0 %v4377
      %v5260 = vpop.f32.mrf.mxu0
      %v5261 = vadd.f32 %v5028, %v5260
      %5262 = vmatmul.f32.gmra.mxu0 %v4378
      %v5263 = vpop.f32.mrf.mxu0
      %v5264 = vadd.f32 %v5031, %v5263
      %5265 = vmatmul.f32.gmra.mxu0 %v4379
      %v5266 = vpop.f32.mrf.mxu0
      %v5267 = vadd.f32 %v5034, %v5266
      %5268 = vmatmul.f32.gmra.mxu0 %v4380
      %v5269 = vpop.f32.mrf.mxu0
      %v5270 = vadd.f32 %v5037, %v5269
      %5271 = vmatmul.f32.gmra.mxu0 %v4381
      %v5272 = vpop.f32.mrf.mxu0
      %v5273 = vadd.f32 %v5040, %v5272
      %5274 = vmatmul.f32.gmra.mxu0 %v4382
      %v5275 = vpop.f32.mrf.mxu0
      %v5276 = vadd.f32 %v5043, %v5275
      %5277 = vdwg.mxu0
      %5278 = vmatpush.msra.mxu0 0.0
      %5279 = vmatpush.msra.mxu0 0.0
      %5280 = vmatpush.msra.mxu0 0.0
      %5281 = vmatpush.msra.mxu0 0.0
      %5282 = vmatpush.msra.mxu0 0.0
      %5283 = vmatpush.msra.mxu0 0.0
      %5284 = vmatpush.msra.mxu0 0.0
      %5285 = vmatpush.msra.mxu0 0.0
      %5286 = vmatpush.msra.mxu0 %v4407
      %5287 = vmatpush.msra.mxu0 %v4406
      %5288 = vmatpush.msra.mxu0 %v4405
      %5289 = vmatpush.msra.mxu0 %v4404
      %5290 = vmatpush.msra.mxu0 %v4403
      %5291 = vmatpush.msra.mxu0 %v4402
      %5292 = vmatpush.msra.mxu0 %v4401
      %5293 = vmatpush.msra.mxu0 %v4400
      %5294 = vmatmul.f32.gmra.mxu0 %v5046
      %v5295 = vpop.f32.mrf.mxu0
      %v5296 = vadd.f32 %v5171, %v5295
      %5297 = vmatmul.f32.gmra.mxu0 %v5049
      %v5298 = vpop.f32.mrf.mxu0
      %v5299 = vadd.f32 %v5174, %v5298
      %5300 = vmatmul.f32.gmra.mxu0 %v5052
      %v5301 = vpop.f32.mrf.mxu0
      %v5302 = vadd.f32 %v5177, %v5301
      %5303 = vmatmul.f32.gmra.mxu0 %v5055
      %v5304 = vpop.f32.mrf.mxu0
      %v5305 = vadd.f32 %v5180, %v5304
      %5306 = vmatmul.f32.gmra.mxu0 %v5058
      %v5307 = vpop.f32.mrf.mxu0
      %v5308 = vadd.f32 %v5183, %v5307
      %5309 = vmatmul.f32.gmra.mxu0 %v5061
      %v5310 = vpop.f32.mrf.mxu0
      %v5311 = vadd.f32 %v5186, %v5310
      %5312 = vmatmul.f32.gmra.mxu0 %v5064
      %v5313 = vpop.f32.mrf.mxu0
      %v5314 = vadd.f32 %v5189, %v5313
      %5315 = vmatmul.f32.gmra.mxu0 %v5067
      %v5316 = vpop.f32.mrf.mxu0
      %v5317 = vadd.f32 %v5192, %v5316
      %5318 = vmatmul.f32.gmra.mxu0 %v5070
      %v5319 = vpop.f32.mrf.mxu0
      %v5320 = vadd.f32 %v5195, %v5319
      %5321 = vmatmul.f32.gmra.mxu0 %v5073
      %v5322 = vpop.f32.mrf.mxu0
      %v5323 = vadd.f32 %v5198, %v5322
      %5324 = vmatmul.f32.gmra.mxu0 %v5076
      %v5325 = vpop.f32.mrf.mxu0
      %v5326 = vadd.f32 %v5201, %v5325
      %5327 = vmatmul.f32.gmra.mxu0 %v5079
      %v5328 = vpop.f32.mrf.mxu0
      %v5329 = vadd.f32 %v5204, %v5328
      %5330 = vmatmul.f32.gmra.mxu0 %v5082
      %v5331 = vpop.f32.mrf.mxu0
      %v5332 = vadd.f32 %v5207, %v5331
      %5333 = vmatmul.f32.gmra.mxu0 %v5085
      %v5334 = vpop.f32.mrf.mxu0
      %v5335 = vadd.f32 %v5210, %v5334
      %5336 = vmatmul.f32.gmra.mxu0 %v5088
      %v5337 = vpop.f32.mrf.mxu0
      %v5338 = vadd.f32 %v5213, %v5337
      %5339 = vmatmul.f32.gmra.mxu0 %v5091
      %v5340 = vpop.f32.mrf.mxu0
      %v5341 = vadd.f32 %v5216, %v5340
      %5342 = vmatmul.f32.gmra.mxu0 %v5094
      %v5343 = vpop.f32.mrf.mxu0
      %v5344 = vadd.f32 %v5219, %v5343
      %5345 = vmatmul.f32.gmra.mxu0 %v5097
      %v5346 = vpop.f32.mrf.mxu0
      %v5347 = vadd.f32 %v5222, %v5346
      %5348 = vmatmul.f32.gmra.mxu0 %v5100
      %v5349 = vpop.f32.mrf.mxu0
      %v5350 = vadd.f32 %v5225, %v5349
      %5351 = vmatmul.f32.gmra.mxu0 %v5103
      %v5352 = vpop.f32.mrf.mxu0
      %v5353 = vadd.f32 %v5228, %v5352
      %5354 = vmatmul.f32.gmra.mxu0 %v5106
      %v5355 = vpop.f32.mrf.mxu0
      %v5356 = vadd.f32 %v5231, %v5355
      %5357 = vmatmul.f32.gmra.mxu0 %v5109
      %v5358 = vpop.f32.mrf.mxu0
      %v5359 = vadd.f32 %v5234, %v5358
      %5360 = vmatmul.f32.gmra.mxu0 %v5112
      %v5361 = vpop.f32.mrf.mxu0
      %v5362 = vadd.f32 %v5237, %v5361
      %5363 = vmatmul.f32.gmra.mxu0 %v5115
      %v5364 = vpop.f32.mrf.mxu0
      %v5365 = vadd.f32 %v5240, %v5364
      %5366 = vmatmul.f32.gmra.mxu0 %v5118
      %v5367 = vpop.f32.mrf.mxu0
      %v5368 = vadd.f32 %v5243, %v5367
      %5369 = vmatmul.f32.gmra.mxu0 %v5121
      %v5370 = vpop.f32.mrf.mxu0
      %v5371 = vadd.f32 %v5246, %v5370
      %5372 = vmatmul.f32.gmra.mxu0 %v5124
      %v5373 = vpop.f32.mrf.mxu0
      %v5374 = vadd.f32 %v5249, %v5373
      %5375 = vmatmul.f32.gmra.mxu0 %v5127
      %v5376 = vpop.f32.mrf.mxu0
      %v5377 = vadd.f32 %v5252, %v5376
      %5378 = vmatmul.f32.gmra.mxu0 %v5130
      %v5379 = vpop.f32.mrf.mxu0
      %v5380 = vadd.f32 %v5255, %v5379
      %5381 = vmatmul.f32.gmra.mxu0 %v5133
      %v5382 = vpop.f32.mrf.mxu0
      %v5383 = vadd.f32 %v5258, %v5382
      %5384 = vmatmul.f32.gmra.mxu0 %v5136
      %v5385 = vpop.f32.mrf.mxu0
      %v5386 = vadd.f32 %v5261, %v5385
      %5387 = vmatmul.f32.gmra.mxu0 %v5139
      %v5388 = vpop.f32.mrf.mxu0
      %v5389 = vadd.f32 %v5264, %v5388
      %5390 = vmatmul.f32.gmra.mxu0 %v5142
      %v5391 = vpop.f32.mrf.mxu0
      %v5392 = vadd.f32 %v5267, %v5391
      %5393 = vmatmul.f32.gmra.mxu0 %v5145
      %v5394 = vpop.f32.mrf.mxu0
      %v5395 = vadd.f32 %v5270, %v5394
      %5396 = vmatmul.f32.gmra.mxu0 %v5148
      %v5397 = vpop.f32.mrf.mxu0
      %v5398 = vadd.f32 %v5273, %v5397
      %5399 = vmatmul.f32.gmra.mxu0 %v5151
      %v5400 = vpop.f32.mrf.mxu0
      %v5401 = vadd.f32 %v5276, %v5400
      %5402 = vdwg.mxu0
      %v5403 = vld [vmem:[#allocation3 + $0x24] sm:$0xff]
      %v5404 = vld [vmem:[#allocation3 + $0x2c] sm:$0xff]
      %v5405 = vld [vmem:[#allocation3 + $0x34] sm:$0xff]
      %v5406 = vld [vmem:[#allocation3 + $0x3c] sm:$0xff]
      %v5407 = vld [vmem:[#allocation3 + $0x44] sm:$0xff]
      %v5408 = vld [vmem:[#allocation3 + $0x4c] sm:$0xff]
      %v5409 = vld [vmem:[#allocation3 + $0x54] sm:$0xff]
      %v5410 = vld [vmem:[#allocation3 + $0x5c] sm:$0xff]
      %v5411 = vld [vmem:[#allocation3 + $0x64] sm:$0xff]
      %v5412 = vld [vmem:[#allocation3 + $0x6c] sm:$0xff]
      %v5413 = vld [vmem:[#allocation3 + $0x74] sm:$0xff]
      %v5414 = vld [vmem:[#allocation3 + $0x7c] sm:$0xff]
      %v5415 = vld [vmem:[#allocation3 + $0x84] sm:$0xff]
      %v5416 = vld [vmem:[#allocation3 + $0x8c] sm:$0xff]
      %v5417 = vld [vmem:[#allocation3 + $0x94] sm:$0xff]
      %v5418 = vld [vmem:[#allocation3 + $0x9c] sm:$0xff]
      %v5419 = vld [vmem:[#allocation3 + $0xa4] sm:$0xff]
      %v5420 = vld [vmem:[#allocation3 + $0xac] sm:$0xff]
      %v5421 = vld [vmem:[#allocation3 + $0xb4] sm:$0xff]
      %v5422 = vld [vmem:[#allocation3 + $0xbc] sm:$0xff]
      %v5423 = vld [vmem:[#allocation3 + $0xc4] sm:$0xff]
      %v5424 = vld [vmem:[#allocation3 + $0xcc] sm:$0xff]
      %v5425 = vld [vmem:[#allocation3 + $0xd4] sm:$0xff]
      %v5426 = vld [vmem:[#allocation3 + $0xdc] sm:$0xff]
      %v5427 = vld [vmem:[#allocation3 + $0xe4] sm:$0xff]
      %v5428 = vld [vmem:[#allocation3 + $0xec] sm:$0xff]
      %v5429 = vld [vmem:[#allocation3 + $0xf4] sm:$0xff]
      %v5430 = vld [vmem:[#allocation3 + $0xfc] sm:$0xff]
      %v5431 = vld [vmem:[#allocation3 + $0x104] sm:$0xff]
      %v5432 = vld [vmem:[#allocation3 + $0x10c] sm:$0xff]
      %v5433 = vld [vmem:[#allocation3 + $0x114] sm:$0xff]
      %v5434 = vld [vmem:[#allocation3 + $0x11c] sm:$0xff]
      %v5435 = vld [vmem:[#allocation3 + $0x124] sm:$0xff]
      %v5436 = vld [vmem:[#allocation3 + $0x12c] sm:$0xff]
      %v5437 = vld [vmem:[#allocation3 + $0x134] sm:$0xff]
      %v5438 = vld [vmem:[#allocation3 + $0x13c] sm:$0xff]
      %v5439 = vld [vmem:[#allocation3 + $0x25] sm:$0xff]
      %v5440 = vld [vmem:[#allocation3 + $0x2d] sm:$0xff]
      %v5441 = vld [vmem:[#allocation3 + $0x35] sm:$0xff]
      %v5442 = vld [vmem:[#allocation3 + $0x3d] sm:$0xff]
      %v5443 = vld [vmem:[#allocation3 + $0x45] sm:$0xff]
      %v5444 = vld [vmem:[#allocation3 + $0x4d] sm:$0xff]
      %v5445 = vld [vmem:[#allocation3 + $0x55] sm:$0xff]
      %v5446 = vld [vmem:[#allocation3 + $0x5d] sm:$0xff]
      %v5447 = vld [vmem:[#allocation3 + $0x65] sm:$0xff]
      %v5448 = vld [vmem:[#allocation3 + $0x6d] sm:$0xff]
      %v5449 = vld [vmem:[#allocation3 + $0x75] sm:$0xff]
      %v5450 = vld [vmem:[#allocation3 + $0x7d] sm:$0xff]
      %v5451 = vld [vmem:[#allocation3 + $0x85] sm:$0xff]
      %v5452 = vld [vmem:[#allocation3 + $0x8d] sm:$0xff]
      %v5453 = vld [vmem:[#allocation3 + $0x95] sm:$0xff]
      %v5454 = vld [vmem:[#allocation3 + $0x9d] sm:$0xff]
      %v5455 = vld [vmem:[#allocation3 + $0xa5] sm:$0xff]
      %v5456 = vld [vmem:[#allocation3 + $0xad] sm:$0xff]
      %v5457 = vld [vmem:[#allocation3 + $0xb5] sm:$0xff]
      %v5458 = vld [vmem:[#allocation3 + $0xbd] sm:$0xff]
      %v5459 = vld [vmem:[#allocation3 + $0xc5] sm:$0xff]
      %v5460 = vld [vmem:[#allocation3 + $0xcd] sm:$0xff]
      %v5461 = vld [vmem:[#allocation3 + $0xd5] sm:$0xff]
      %v5462 = vld [vmem:[#allocation3 + $0xdd] sm:$0xff]
      %v5463 = vld [vmem:[#allocation3 + $0xe5] sm:$0xff]
      %v5464 = vld [vmem:[#allocation3 + $0xed] sm:$0xff]
      %v5465 = vld [vmem:[#allocation3 + $0xf5] sm:$0xff]
      %v5466 = vld [vmem:[#allocation3 + $0xfd] sm:$0xff]
      %v5467 = vld [vmem:[#allocation3 + $0x105] sm:$0xff]
      %v5468 = vld [vmem:[#allocation3 + $0x10d] sm:$0xff]
      %v5469 = vld [vmem:[#allocation3 + $0x115] sm:$0xff]
      %v5470 = vld [vmem:[#allocation3 + $0x11d] sm:$0xff]
      %v5471 = vld [vmem:[#allocation3 + $0x125] sm:$0xff]
      %v5472 = vld [vmem:[#allocation3 + $0x12d] sm:$0xff]
      %v5473 = vld [vmem:[#allocation3 + $0x135] sm:$0xff]
      %v5474 = vld [vmem:[#allocation3 + $0x13d] sm:$0xff]
      %v5475 = vld [vmem:[#allocation3 + $0x26] sm:$0xff]
      %v5476 = vld [vmem:[#allocation3 + $0x2e] sm:$0xff]
      %v5477 = vld [vmem:[#allocation3 + $0x36] sm:$0xff]
      %v5478 = vld [vmem:[#allocation3 + $0x3e] sm:$0xff]
      %v5479 = vld [vmem:[#allocation3 + $0x46] sm:$0xff]
      %v5480 = vld [vmem:[#allocation3 + $0x4e] sm:$0xff]
      %v5481 = vld [vmem:[#allocation3 + $0x56] sm:$0xff]
      %v5482 = vld [vmem:[#allocation3 + $0x5e] sm:$0xff]
      %v5483 = vld [vmem:[#allocation3 + $0x66] sm:$0xff]
      %v5484 = vld [vmem:[#allocation3 + $0x6e] sm:$0xff]
      %v5485 = vld [vmem:[#allocation3 + $0x76] sm:$0xff]
      %v5486 = vld [vmem:[#allocation3 + $0x7e] sm:$0xff]
      %v5487 = vld [vmem:[#allocation3 + $0x86] sm:$0xff]
      %v5488 = vld [vmem:[#allocation3 + $0x8e] sm:$0xff]
      %v5489 = vld [vmem:[#allocation3 + $0x96] sm:$0xff]
      %v5490 = vld [vmem:[#allocation3 + $0x9e] sm:$0xff]
      %v5491 = vld [vmem:[#allocation3 + $0xa6] sm:$0xff]
      %v5492 = vld [vmem:[#allocation3 + $0xae] sm:$0xff]
      %v5493 = vld [vmem:[#allocation3 + $0xb6] sm:$0xff]
      %v5494 = vld [vmem:[#allocation3 + $0xbe] sm:$0xff]
      %v5495 = vld [vmem:[#allocation3 + $0xc6] sm:$0xff]
      %v5496 = vld [vmem:[#allocation3 + $0xce] sm:$0xff]
      %v5497 = vld [vmem:[#allocation3 + $0xd6] sm:$0xff]
      %v5498 = vld [vmem:[#allocation3 + $0xde] sm:$0xff]
      %v5499 = vld [vmem:[#allocation3 + $0xe6] sm:$0xff]
      %v5500 = vld [vmem:[#allocation3 + $0xee] sm:$0xff]
      %v5501 = vld [vmem:[#allocation3 + $0xf6] sm:$0xff]
      %v5502 = vld [vmem:[#allocation3 + $0xfe] sm:$0xff]
      %v5503 = vld [vmem:[#allocation3 + $0x106] sm:$0xff]
      %v5504 = vld [vmem:[#allocation3 + $0x10e] sm:$0xff]
      %v5505 = vld [vmem:[#allocation3 + $0x116] sm:$0xff]
      %v5506 = vld [vmem:[#allocation3 + $0x11e] sm:$0xff]
      %v5507 = vld [vmem:[#allocation3 + $0x126] sm:$0xff]
      %v5508 = vld [vmem:[#allocation3 + $0x12e] sm:$0xff]
      %v5509 = vld [vmem:[#allocation3 + $0x136] sm:$0xff]
      %v5510 = vld [vmem:[#allocation3 + $0x13e] sm:$0xff]
      %5547 = vrot.lane.b32.xlu0 %v5439, 64
      %v5548 = vpop.permute.xlu0 %5547
      %5549 = vrot.lane.b32.xlu0 %v5440, 64
      %v5550 = vpop.permute.xlu0 %5549
      %5551 = vrot.lane.b32.xlu0 %v5441, 64
      %v5552 = vpop.permute.xlu0 %5551
      %5553 = vrot.lane.b32.xlu0 %v5442, 64
      %v5554 = vpop.permute.xlu0 %5553
      %5555 = vrot.lane.b32.xlu0 %v5443, 64
      %v5556 = vpop.permute.xlu0 %5555
      %5557 = vrot.lane.b32.xlu0 %v5444, 64
      %v5558 = vpop.permute.xlu0 %5557
      %5559 = vrot.lane.b32.xlu0 %v5445, 64
      %v5560 = vpop.permute.xlu0 %5559
      %5561 = vrot.lane.b32.xlu0 %v5446, 64
      %v5562 = vpop.permute.xlu0 %5561
      %5563 = vrot.lane.b32.xlu0 %v5447, 64
      %v5564 = vpop.permute.xlu0 %5563
      %5565 = vrot.lane.b32.xlu0 %v5448, 64
      %v5566 = vpop.permute.xlu0 %5565
      %5567 = vrot.lane.b32.xlu0 %v5449, 64
      %v5568 = vpop.permute.xlu0 %5567
      %5569 = vrot.lane.b32.xlu0 %v5450, 64
      %v5570 = vpop.permute.xlu0 %5569
      %5571 = vrot.lane.b32.xlu0 %v5451, 64
      %v5572 = vpop.permute.xlu0 %5571
      %5573 = vrot.lane.b32.xlu0 %v5452, 64
      %v5574 = vpop.permute.xlu0 %5573
      %5575 = vrot.lane.b32.xlu0 %v5453, 64
      %v5576 = vpop.permute.xlu0 %5575
      %5577 = vrot.lane.b32.xlu0 %v5454, 64
      %v5578 = vpop.permute.xlu0 %5577
      %5579 = vrot.lane.b32.xlu0 %v5455, 64
      %v5580 = vpop.permute.xlu0 %5579
      %5581 = vrot.lane.b32.xlu0 %v5456, 64
      %v5582 = vpop.permute.xlu0 %5581
      %5583 = vrot.lane.b32.xlu0 %v5457, 64
      %v5584 = vpop.permute.xlu0 %5583
      %5585 = vrot.lane.b32.xlu0 %v5458, 64
      %v5586 = vpop.permute.xlu0 %5585
      %5587 = vrot.lane.b32.xlu0 %v5459, 64
      %v5588 = vpop.permute.xlu0 %5587
      %5589 = vrot.lane.b32.xlu0 %v5460, 64
      %v5590 = vpop.permute.xlu0 %5589
      %5591 = vrot.lane.b32.xlu0 %v5461, 64
      %v5592 = vpop.permute.xlu0 %5591
      %5593 = vrot.lane.b32.xlu0 %v5462, 64
      %v5594 = vpop.permute.xlu0 %5593
      %5595 = vrot.lane.b32.xlu0 %v5463, 64
      %v5596 = vpop.permute.xlu0 %5595
      %5597 = vrot.lane.b32.xlu0 %v5464, 64
      %v5598 = vpop.permute.xlu0 %5597
      %5599 = vrot.lane.b32.xlu0 %v5465, 64
      %v5600 = vpop.permute.xlu0 %5599
      %5601 = vrot.lane.b32.xlu0 %v5466, 64
      %v5602 = vpop.permute.xlu0 %5601
      %5603 = vrot.lane.b32.xlu0 %v5467, 64
      %v5604 = vpop.permute.xlu0 %5603
      %5605 = vrot.lane.b32.xlu0 %v5468, 64
      %v5606 = vpop.permute.xlu0 %5605
      %5607 = vrot.lane.b32.xlu0 %v5469, 64
      %v5608 = vpop.permute.xlu0 %5607
      %5609 = vrot.lane.b32.xlu0 %v5470, 64
      %v5610 = vpop.permute.xlu0 %5609
      %5611 = vrot.lane.b32.xlu0 %v5471, 64
      %v5612 = vpop.permute.xlu0 %5611
      %5613 = vrot.lane.b32.xlu0 %v5472, 64
      %v5614 = vpop.permute.xlu0 %5613
      %5615 = vrot.lane.b32.xlu0 %v5473, 64
      %v5616 = vpop.permute.xlu0 %5615
      %5617 = vrot.lane.b32.xlu0 %v5474, 64
      %v5618 = vpop.permute.xlu0 %5617
      %v5655 = vsel %vm1936, %v5403, %v5548
      %v5656 = vsel %vm1936, %v5404, %v5550
      %v5657 = vsel %vm1936, %v5405, %v5552
      %v5658 = vsel %vm1936, %v5406, %v5554
      %v5659 = vsel %vm1936, %v5407, %v5556
      %v5660 = vsel %vm1936, %v5408, %v5558
      %v5661 = vsel %vm1936, %v5409, %v5560
      %v5662 = vsel %vm1936, %v5410, %v5562
      %v5663 = vsel %vm1936, %v5411, %v5564
      %v5664 = vsel %vm1936, %v5412, %v5566
      %v5665 = vsel %vm1936, %v5413, %v5568
      %v5666 = vsel %vm1936, %v5414, %v5570
      %v5667 = vsel %vm1936, %v5415, %v5572
      %v5668 = vsel %vm1936, %v5416, %v5574
      %v5669 = vsel %vm1936, %v5417, %v5576
      %v5670 = vsel %vm1936, %v5418, %v5578
      %v5671 = vsel %vm1936, %v5419, %v5580
      %v5672 = vsel %vm1936, %v5420, %v5582
      %v5673 = vsel %vm1936, %v5421, %v5584
      %v5674 = vsel %vm1936, %v5422, %v5586
      %v5675 = vsel %vm1936, %v5423, %v5588
      %v5676 = vsel %vm1936, %v5424, %v5590
      %v5677 = vsel %vm1936, %v5425, %v5592
      %v5678 = vsel %vm1936, %v5426, %v5594
      %v5679 = vsel %vm1936, %v5427, %v5596
      %v5680 = vsel %vm1936, %v5428, %v5598
      %v5681 = vsel %vm1936, %v5429, %v5600
      %v5682 = vsel %vm1936, %v5430, %v5602
      %v5683 = vsel %vm1936, %v5431, %v5604
      %v5684 = vsel %vm1936, %v5432, %v5606
      %v5685 = vsel %vm1936, %v5433, %v5608
      %v5686 = vsel %vm1936, %v5434, %v5610
      %v5687 = vsel %vm1936, %v5435, %v5612
      %v5688 = vsel %vm1936, %v5436, %v5614
      %v5689 = vsel %vm1936, %v5437, %v5616
      %v5690 = vsel %vm1936, %v5438, %v5618
      %s5691 = scalar_lea.vmem %s2, 960
      %v5692 = vld [vmem:[%s5691] sm:$0xff]
      %v5693 = vld [vmem:[%s5691 + $0x8] sm:$0xff]
      %v5694 = vld [vmem:[%s5691 + $0x10] sm:$0xff]
      %v5695 = vld [vmem:[%s5691 + $0x18] sm:$0xff]
      %v5696 = vld [vmem:[%s5691 + $0x20] sm:$0xff]
      %v5697 = vld [vmem:[%s5691 + $0x28] sm:$0xff]
      %v5698 = vld [vmem:[%s5691 + $0x30] sm:$0xff]
      %v5699 = vld [vmem:[%s5691 + $0x38] sm:$0xff]
      %v5700 = vld [vmem:[%s5691 + $0x40] sm:$0xff]
      %v5701 = vld [vmem:[%s5691 + $0x48] sm:$0xff]
      %v5702 = vld [vmem:[%s5691 + $0x50] sm:$0xff]
      %v5703 = vld [vmem:[%s5691 + $0x58] sm:$0xff]
      %v5704 = vld [vmem:[%s5691 + $0x60] sm:$0xff]
      %v5705 = vld [vmem:[%s5691 + $0x68] sm:$0xff]
      %v5706 = vld [vmem:[%s5691 + $0x70] sm:$0xff]
      %v5707 = vld [vmem:[%s5691 + $0x78] sm:$0xff]
      %v5708 = vld [vmem:[%s5691 + $0x80] sm:$0xff]
      %v5709 = vld [vmem:[%s5691 + $0x88] sm:$0xff]
      %v5710 = vld [vmem:[%s5691 + $0x90] sm:$0xff]
      %v5711 = vld [vmem:[%s5691 + $0x98] sm:$0xff]
      %v5712 = vld [vmem:[%s5691 + $0xa0] sm:$0xff]
      %v5713 = vld [vmem:[%s5691 + $0xa8] sm:$0xff]
      %v5714 = vld [vmem:[%s5691 + $0xb0] sm:$0xff]
      %v5715 = vld [vmem:[%s5691 + $0xb8] sm:$0xff]
      %v5717 = vsel %vm1936, %v5475, 0
      %v5720 = vsel %vm1936, %v5476, 0
      %v5723 = vsel %vm1936, %v5477, 0
      %v5726 = vsel %vm1936, %v5478, 0
      %v5729 = vsel %vm1936, %v5479, 0
      %v5732 = vsel %vm1936, %v5480, 0
      %v5735 = vsel %vm1936, %v5481, 0
      %v5738 = vsel %vm1936, %v5482, 0
      %v5741 = vsel %vm1936, %v5483, 0
      %v5744 = vsel %vm1936, %v5484, 0
      %v5747 = vsel %vm1936, %v5485, 0
      %v5750 = vsel %vm1936, %v5486, 0
      %v5753 = vsel %vm1936, %v5487, 0
      %v5756 = vsel %vm1936, %v5488, 0
      %v5759 = vsel %vm1936, %v5489, 0
      %v5762 = vsel %vm1936, %v5490, 0
      %v5765 = vsel %vm1936, %v5491, 0
      %v5768 = vsel %vm1936, %v5492, 0
      %v5771 = vsel %vm1936, %v5493, 0
      %v5774 = vsel %vm1936, %v5494, 0
      %v5777 = vsel %vm1936, %v5495, 0
      %v5780 = vsel %vm1936, %v5496, 0
      %v5783 = vsel %vm1936, %v5497, 0
      %v5786 = vsel %vm1936, %v5498, 0
      %v5789 = vsel %vm1936, %v5499, 0
      %v5792 = vsel %vm1936, %v5500, 0
      %v5795 = vsel %vm1936, %v5501, 0
      %v5798 = vsel %vm1936, %v5502, 0
      %v5801 = vsel %vm1936, %v5503, 0
      %v5804 = vsel %vm1936, %v5504, 0
      %v5807 = vsel %vm1936, %v5505, 0
      %v5810 = vsel %vm1936, %v5506, 0
      %v5813 = vsel %vm1936, %v5507, 0
      %v5816 = vsel %vm1936, %v5508, 0
      %v5819 = vsel %vm1936, %v5509, 0
      %v5822 = vsel %vm1936, %v5510, 0
      %5824 = vmatpush.msra.mxu0 %v5707
      %5825 = vmatpush.msra.mxu0 %v5706
      %5826 = vmatpush.msra.mxu0 %v5705
      %5827 = vmatpush.msra.mxu0 %v5704
      %5828 = vmatpush.msra.mxu0 %v5703
      %5829 = vmatpush.msra.mxu0 %v5702
      %5830 = vmatpush.msra.mxu0 %v5701
      %5831 = vmatpush.msra.mxu0 %v5700
      %5832 = vmatpush.msra.mxu0 %v5699
      %5833 = vmatpush.msra.mxu0 %v5698
      %5834 = vmatpush.msra.mxu0 %v5697
      %5835 = vmatpush.msra.mxu0 %v5696
      %5836 = vmatpush.msra.mxu0 %v5695
      %5837 = vmatpush.msra.mxu0 %v5694
      %5838 = vmatpush.msra.mxu0 %v5693
      %5839 = vmatpush.msra.mxu0 %v5692
      %5840 = vmatmul.f32.gmra.mxu0 %v5655
      %v5841 = vpop.f32.mrf.mxu0
      %v5842 = vadd.f32 0.0, %v5841
      %5843 = vmatmul.f32.gmra.mxu0 %v5656
      %v5844 = vpop.f32.mrf.mxu0
      %v5845 = vadd.f32 0.0, %v5844
      %5846 = vmatmul.f32.gmra.mxu0 %v5657
      %v5847 = vpop.f32.mrf.mxu0
      %v5848 = vadd.f32 0.0, %v5847
      %5849 = vmatmul.f32.gmra.mxu0 %v5658
      %v5850 = vpop.f32.mrf.mxu0
      %v5851 = vadd.f32 0.0, %v5850
      %5852 = vmatmul.f32.gmra.mxu0 %v5659
      %v5853 = vpop.f32.mrf.mxu0
      %v5854 = vadd.f32 0.0, %v5853
      %5855 = vmatmul.f32.gmra.mxu0 %v5660
      %v5856 = vpop.f32.mrf.mxu0
      %v5857 = vadd.f32 0.0, %v5856
      %5858 = vmatmul.f32.gmra.mxu0 %v5661
      %v5859 = vpop.f32.mrf.mxu0
      %v5860 = vadd.f32 0.0, %v5859
      %5861 = vmatmul.f32.gmra.mxu0 %v5662
      %v5862 = vpop.f32.mrf.mxu0
      %v5863 = vadd.f32 0.0, %v5862
      %5864 = vmatmul.f32.gmra.mxu0 %v5663
      %v5865 = vpop.f32.mrf.mxu0
      %v5866 = vadd.f32 0.0, %v5865
      %5867 = vmatmul.f32.gmra.mxu0 %v5664
      %v5868 = vpop.f32.mrf.mxu0
      %v5869 = vadd.f32 0.0, %v5868
      %5870 = vmatmul.f32.gmra.mxu0 %v5665
      %v5871 = vpop.f32.mrf.mxu0
      %v5872 = vadd.f32 0.0, %v5871
      %5873 = vmatmul.f32.gmra.mxu0 %v5666
      %v5874 = vpop.f32.mrf.mxu0
      %v5875 = vadd.f32 0.0, %v5874
      %5876 = vmatmul.f32.gmra.mxu0 %v5667
      %v5877 = vpop.f32.mrf.mxu0
      %v5878 = vadd.f32 0.0, %v5877
      %5879 = vmatmul.f32.gmra.mxu0 %v5668
      %v5880 = vpop.f32.mrf.mxu0
      %v5881 = vadd.f32 0.0, %v5880
      %5882 = vmatmul.f32.gmra.mxu0 %v5669
      %v5883 = vpop.f32.mrf.mxu0
      %v5884 = vadd.f32 0.0, %v5883
      %5885 = vmatmul.f32.gmra.mxu0 %v5670
      %v5886 = vpop.f32.mrf.mxu0
      %v5887 = vadd.f32 0.0, %v5886
      %5888 = vmatmul.f32.gmra.mxu0 %v5671
      %v5889 = vpop.f32.mrf.mxu0
      %v5890 = vadd.f32 0.0, %v5889
      %5891 = vmatmul.f32.gmra.mxu0 %v5672
      %v5892 = vpop.f32.mrf.mxu0
      %v5893 = vadd.f32 0.0, %v5892
      %5894 = vmatmul.f32.gmra.mxu0 %v5673
      %v5895 = vpop.f32.mrf.mxu0
      %v5896 = vadd.f32 0.0, %v5895
      %5897 = vmatmul.f32.gmra.mxu0 %v5674
      %v5898 = vpop.f32.mrf.mxu0
      %v5899 = vadd.f32 0.0, %v5898
      %5900 = vmatmul.f32.gmra.mxu0 %v5675
      %v5901 = vpop.f32.mrf.mxu0
      %v5902 = vadd.f32 0.0, %v5901
      %5903 = vmatmul.f32.gmra.mxu0 %v5676
      %v5904 = vpop.f32.mrf.mxu0
      %v5905 = vadd.f32 0.0, %v5904
      %5906 = vmatmul.f32.gmra.mxu0 %v5677
      %v5907 = vpop.f32.mrf.mxu0
      %v5908 = vadd.f32 0.0, %v5907
      %5909 = vmatmul.f32.gmra.mxu0 %v5678
      %v5910 = vpop.f32.mrf.mxu0
      %v5911 = vadd.f32 0.0, %v5910
      %5912 = vmatmul.f32.gmra.mxu0 %v5679
      %v5913 = vpop.f32.mrf.mxu0
      %v5914 = vadd.f32 0.0, %v5913
      %5915 = vmatmul.f32.gmra.mxu0 %v5680
      %v5916 = vpop.f32.mrf.mxu0
      %v5917 = vadd.f32 0.0, %v5916
      %5918 = vmatmul.f32.gmra.mxu0 %v5681
      %v5919 = vpop.f32.mrf.mxu0
      %v5920 = vadd.f32 0.0, %v5919
      %5921 = vmatmul.f32.gmra.mxu0 %v5682
      %v5922 = vpop.f32.mrf.mxu0
      %v5923 = vadd.f32 0.0, %v5922
      %5924 = vmatmul.f32.gmra.mxu0 %v5683
      %v5925 = vpop.f32.mrf.mxu0
      %v5926 = vadd.f32 0.0, %v5925
      %5927 = vmatmul.f32.gmra.mxu0 %v5684
      %v5928 = vpop.f32.mrf.mxu0
      %v5929 = vadd.f32 0.0, %v5928
      %5930 = vmatmul.f32.gmra.mxu0 %v5685
      %v5931 = vpop.f32.mrf.mxu0
      %v5932 = vadd.f32 0.0, %v5931
      %5933 = vmatmul.f32.gmra.mxu0 %v5686
      %v5934 = vpop.f32.mrf.mxu0
      %v5935 = vadd.f32 0.0, %v5934
      %5936 = vmatmul.f32.gmra.mxu0 %v5687
      %v5937 = vpop.f32.mrf.mxu0
      %v5938 = vadd.f32 0.0, %v5937
      %5939 = vmatmul.f32.gmra.mxu0 %v5688
      %v5940 = vpop.f32.mrf.mxu0
      %v5941 = vadd.f32 0.0, %v5940
      %5942 = vmatmul.f32.gmra.mxu0 %v5689
      %v5943 = vpop.f32.mrf.mxu0
      %v5944 = vadd.f32 0.0, %v5943
      %5945 = vmatmul.f32.gmra.mxu0 %v5690
      %v5946 = vpop.f32.mrf.mxu0
      %v5947 = vadd.f32 0.0, %v5946
      %5948 = vdwg.mxu0
      %5949 = vmatpush.msra.mxu0 0.0
      %5950 = vmatpush.msra.mxu0 0.0
      %5951 = vmatpush.msra.mxu0 0.0
      %5952 = vmatpush.msra.mxu0 0.0
      %5953 = vmatpush.msra.mxu0 0.0
      %5954 = vmatpush.msra.mxu0 0.0
      %5955 = vmatpush.msra.mxu0 0.0
      %5956 = vmatpush.msra.mxu0 0.0
      %5957 = vmatpush.msra.mxu0 %v5715
      %5958 = vmatpush.msra.mxu0 %v5714
      %5959 = vmatpush.msra.mxu0 %v5713
      %5960 = vmatpush.msra.mxu0 %v5712
      %5961 = vmatpush.msra.mxu0 %v5711
      %5962 = vmatpush.msra.mxu0 %v5710
      %5963 = vmatpush.msra.mxu0 %v5709
      %5964 = vmatpush.msra.mxu0 %v5708
      %5965 = vmatmul.f32.gmra.mxu0 %v5717
      %v5966 = vpop.f32.mrf.mxu0
      %v5967 = vadd.f32 %v5842, %v5966
      %5968 = vmatmul.f32.gmra.mxu0 %v5720
      %v5969 = vpop.f32.mrf.mxu0
      %v5970 = vadd.f32 %v5845, %v5969
      %5971 = vmatmul.f32.gmra.mxu0 %v5723
      %v5972 = vpop.f32.mrf.mxu0
      %v5973 = vadd.f32 %v5848, %v5972
      %5974 = vmatmul.f32.gmra.mxu0 %v5726
      %v5975 = vpop.f32.mrf.mxu0
      %v5976 = vadd.f32 %v5851, %v5975
      %5977 = vmatmul.f32.gmra.mxu0 %v5729
      %v5978 = vpop.f32.mrf.mxu0
      %v5979 = vadd.f32 %v5854, %v5978
      %5980 = vmatmul.f32.gmra.mxu0 %v5732
      %v5981 = vpop.f32.mrf.mxu0
      %v5982 = vadd.f32 %v5857, %v5981
      %5983 = vmatmul.f32.gmra.mxu0 %v5735
      %v5984 = vpop.f32.mrf.mxu0
      %v5985 = vadd.f32 %v5860, %v5984
      %5986 = vmatmul.f32.gmra.mxu0 %v5738
      %v5987 = vpop.f32.mrf.mxu0
      %v5988 = vadd.f32 %v5863, %v5987
      %5989 = vmatmul.f32.gmra.mxu0 %v5741
      %v5990 = vpop.f32.mrf.mxu0
      %v5991 = vadd.f32 %v5866, %v5990
      %5992 = vmatmul.f32.gmra.mxu0 %v5744
      %v5993 = vpop.f32.mrf.mxu0
      %v5994 = vadd.f32 %v5869, %v5993
      %5995 = vmatmul.f32.gmra.mxu0 %v5747
      %v5996 = vpop.f32.mrf.mxu0
      %v5997 = vadd.f32 %v5872, %v5996
      %5998 = vmatmul.f32.gmra.mxu0 %v5750
      %v5999 = vpop.f32.mrf.mxu0
      %v6000 = vadd.f32 %v5875, %v5999
      %6001 = vmatmul.f32.gmra.mxu0 %v5753
      %v6002 = vpop.f32.mrf.mxu0
      %v6003 = vadd.f32 %v5878, %v6002
      %6004 = vmatmul.f32.gmra.mxu0 %v5756
      %v6005 = vpop.f32.mrf.mxu0
      %v6006 = vadd.f32 %v5881, %v6005
      %6007 = vmatmul.f32.gmra.mxu0 %v5759
      %v6008 = vpop.f32.mrf.mxu0
      %v6009 = vadd.f32 %v5884, %v6008
      %6010 = vmatmul.f32.gmra.mxu0 %v5762
      %v6011 = vpop.f32.mrf.mxu0
      %v6012 = vadd.f32 %v5887, %v6011
      %6013 = vmatmul.f32.gmra.mxu0 %v5765
      %v6014 = vpop.f32.mrf.mxu0
      %v6015 = vadd.f32 %v5890, %v6014
      %6016 = vmatmul.f32.gmra.mxu0 %v5768
      %v6017 = vpop.f32.mrf.mxu0
      %v6018 = vadd.f32 %v5893, %v6017
      %6019 = vmatmul.f32.gmra.mxu0 %v5771
      %v6020 = vpop.f32.mrf.mxu0
      %v6021 = vadd.f32 %v5896, %v6020
      %6022 = vmatmul.f32.gmra.mxu0 %v5774
      %v6023 = vpop.f32.mrf.mxu0
      %v6024 = vadd.f32 %v5899, %v6023
      %6025 = vmatmul.f32.gmra.mxu0 %v5777
      %v6026 = vpop.f32.mrf.mxu0
      %v6027 = vadd.f32 %v5902, %v6026
      %6028 = vmatmul.f32.gmra.mxu0 %v5780
      %v6029 = vpop.f32.mrf.mxu0
      %v6030 = vadd.f32 %v5905, %v6029
      %6031 = vmatmul.f32.gmra.mxu0 %v5783
      %v6032 = vpop.f32.mrf.mxu0
      %v6033 = vadd.f32 %v5908, %v6032
      %6034 = vmatmul.f32.gmra.mxu0 %v5786
      %v6035 = vpop.f32.mrf.mxu0
      %v6036 = vadd.f32 %v5911, %v6035
      %6037 = vmatmul.f32.gmra.mxu0 %v5789
      %v6038 = vpop.f32.mrf.mxu0
      %v6039 = vadd.f32 %v5914, %v6038
      %6040 = vmatmul.f32.gmra.mxu0 %v5792
      %v6041 = vpop.f32.mrf.mxu0
      %v6042 = vadd.f32 %v5917, %v6041
      %6043 = vmatmul.f32.gmra.mxu0 %v5795
      %v6044 = vpop.f32.mrf.mxu0
      %v6045 = vadd.f32 %v5920, %v6044
      %6046 = vmatmul.f32.gmra.mxu0 %v5798
      %v6047 = vpop.f32.mrf.mxu0
      %v6048 = vadd.f32 %v5923, %v6047
      %6049 = vmatmul.f32.gmra.mxu0 %v5801
      %v6050 = vpop.f32.mrf.mxu0
      %v6051 = vadd.f32 %v5926, %v6050
      %6052 = vmatmul.f32.gmra.mxu0 %v5804
      %v6053 = vpop.f32.mrf.mxu0
      %v6054 = vadd.f32 %v5929, %v6053
      %6055 = vmatmul.f32.gmra.mxu0 %v5807
      %v6056 = vpop.f32.mrf.mxu0
      %v6057 = vadd.f32 %v5932, %v6056
      %6058 = vmatmul.f32.gmra.mxu0 %v5810
      %v6059 = vpop.f32.mrf.mxu0
      %v6060 = vadd.f32 %v5935, %v6059
      %6061 = vmatmul.f32.gmra.mxu0 %v5813
      %v6062 = vpop.f32.mrf.mxu0
      %v6063 = vadd.f32 %v5938, %v6062
      %6064 = vmatmul.f32.gmra.mxu0 %v5816
      %v6065 = vpop.f32.mrf.mxu0
      %v6066 = vadd.f32 %v5941, %v6065
      %6067 = vmatmul.f32.gmra.mxu0 %v5819
      %v6068 = vpop.f32.mrf.mxu0
      %v6069 = vadd.f32 %v5944, %v6068
      %6070 = vmatmul.f32.gmra.mxu0 %v5822
      %v6071 = vpop.f32.mrf.mxu0
      %v6072 = vadd.f32 %v5947, %v6071
      %6073 = vdwg.mxu0
      %v6074 = vadd.f32 %v5296, %v5967
      %v6075 = vadd.f32 %v5299, %v5970
      %v6076 = vadd.f32 %v5302, %v5973
      %v6077 = vadd.f32 %v5305, %v5976
      %v6078 = vadd.f32 %v5308, %v5979
      %v6079 = vadd.f32 %v5311, %v5982
      %v6080 = vadd.f32 %v5314, %v5985
      %v6081 = vadd.f32 %v5317, %v5988
      %v6082 = vadd.f32 %v5320, %v5991
      %v6083 = vadd.f32 %v5323, %v5994
      %v6084 = vadd.f32 %v5326, %v5997
      %v6085 = vadd.f32 %v5329, %v6000
      %v6086 = vadd.f32 %v5332, %v6003
      %v6087 = vadd.f32 %v5335, %v6006
      %v6088 = vadd.f32 %v5338, %v6009
      %v6089 = vadd.f32 %v5341, %v6012
      %v6090 = vadd.f32 %v5344, %v6015
      %v6091 = vadd.f32 %v5347, %v6018
      %v6092 = vadd.f32 %v5350, %v6021
      %v6093 = vadd.f32 %v5353, %v6024
      %v6094 = vadd.f32 %v5356, %v6027
      %v6095 = vadd.f32 %v5359, %v6030
      %v6096 = vadd.f32 %v5362, %v6033
      %v6097 = vadd.f32 %v5365, %v6036
      %v6098 = vadd.f32 %v5368, %v6039
      %v6099 = vadd.f32 %v5371, %v6042
      %v6100 = vadd.f32 %v5374, %v6045
      %v6101 = vadd.f32 %v5377, %v6048
      %v6102 = vadd.f32 %v5380, %v6051
      %v6103 = vadd.f32 %v5383, %v6054
      %v6104 = vadd.f32 %v5386, %v6057
      %v6105 = vadd.f32 %v5389, %v6060
      %v6106 = vadd.f32 %v5392, %v6063
      %v6107 = vadd.f32 %v5395, %v6066
      %v6108 = vadd.f32 %v5398, %v6069
      %v6109 = vadd.f32 %v5401, %v6072
      %v6110 = vmax.f32 %v6074, 0.0
      %v6111 = vmax.f32 %v6075, 0.0
      %v6112 = vmax.f32 %v6076, 0.0
      %v6113 = vmax.f32 %v6077, 0.0
      %v6114 = vmax.f32 %v6078, 0.0
      %v6115 = vmax.f32 %v6079, 0.0
      %v6116 = vmax.f32 %v6080, 0.0
      %v6117 = vmax.f32 %v6081, 0.0
      %v6118 = vmax.f32 %v6082, 0.0
      %v6119 = vmax.f32 %v6083, 0.0
      %v6120 = vmax.f32 %v6084, 0.0
      %v6121 = vmax.f32 %v6085, 0.0
      %v6122 = vmax.f32 %v6086, 0.0
      %v6123 = vmax.f32 %v6087, 0.0
      %v6124 = vmax.f32 %v6088, 0.0
      %v6125 = vmax.f32 %v6089, 0.0
      %v6126 = vmax.f32 %v6090, 0.0
      %v6127 = vmax.f32 %v6091, 0.0
      %v6128 = vmax.f32 %v6092, 0.0
      %v6129 = vmax.f32 %v6093, 0.0
      %v6130 = vmax.f32 %v6094, 0.0
      %v6131 = vmax.f32 %v6095, 0.0
      %v6132 = vmax.f32 %v6096, 0.0
      %v6133 = vmax.f32 %v6097, 0.0
      %v6134 = vmax.f32 %v6098, 0.0
      %v6135 = vmax.f32 %v6099, 0.0
      %v6136 = vmax.f32 %v6100, 0.0
      %v6137 = vmax.f32 %v6101, 0.0
      %v6138 = vmax.f32 %v6102, 0.0
      %v6139 = vmax.f32 %v6103, 0.0
      %v6140 = vmax.f32 %v6104, 0.0
      %v6141 = vmax.f32 %v6105, 0.0
      %v6142 = vmax.f32 %v6106, 0.0
      %v6143 = vmax.f32 %v6107, 0.0
      %v6144 = vmax.f32 %v6108, 0.0
      %v6145 = vmax.f32 %v6109, 0.0
      %v6146 = vsel %vm1864, %v6110, 0.0
      %v6147 = vsel %vm1865, %v6111, 0.0
      %v6148 = vsel %vm1866, %v6112, 0.0
      %v6149 = vsel %vm1867, %v6113, 0.0
      %v6150 = vsel %vm1868, %v6114, 0.0
      %v6151 = vsel %vm1869, %v6115, 0.0
      %v6152 = vsel %vm1870, %v6116, 0.0
      %v6153 = vsel %vm1871, %v6117, 0.0
      %v6154 = vsel %vm1872, %v6118, 0.0
      %v6155 = vsel %vm1873, %v6119, 0.0
      %v6156 = vsel %vm1874, %v6120, 0.0
      %v6157 = vsel %vm1875, %v6121, 0.0
      %v6158 = vsel %vm1876, %v6122, 0.0
      %v6159 = vsel %vm1877, %v6123, 0.0
      %v6160 = vsel %vm1878, %v6124, 0.0
      %v6161 = vsel %vm1879, %v6125, 0.0
      %v6162 = vsel %vm1880, %v6126, 0.0
      %v6163 = vsel %vm1881, %v6127, 0.0
      %v6164 = vsel %vm1882, %v6128, 0.0
      %v6165 = vsel %vm1883, %v6129, 0.0
      %v6166 = vsel %vm1884, %v6130, 0.0
      %v6167 = vsel %vm1885, %v6131, 0.0
      %v6168 = vsel %vm1886, %v6132, 0.0
      %v6169 = vsel %vm1887, %v6133, 0.0
      %v6170 = vsel %vm1888, %v6134, 0.0
      %v6171 = vsel %vm1889, %v6135, 0.0
      %v6172 = vsel %vm1890, %v6136, 0.0
      %v6173 = vsel %vm1891, %v6137, 0.0
      %v6174 = vsel %vm1892, %v6138, 0.0
      %v6175 = vsel %vm1893, %v6139, 0.0
      %v6176 = vsel %vm1894, %v6140, 0.0
      %v6177 = vsel %vm1895, %v6141, 0.0
      %v6178 = vsel %vm1896, %v6142, 0.0
      %v6179 = vsel %vm1897, %v6143, 0.0
      %v6180 = vsel %vm1898, %v6144, 0.0
      %v6181 = vsel %vm1899, %v6145, 0.0
      %6182 = vst.msk [vmem:[#allocation2 + $0x13] sm:$0xff] %vm1936, %v6146
      %6183 = vst.msk [vmem:[#allocation2 + $0x1b] sm:$0xff] %vm1936, %v6147
      %6184 = vst.msk [vmem:[#allocation2 + $0x23] sm:$0xff] %vm1936, %v6148
      %6185 = vst.msk [vmem:[#allocation2 + $0x2b] sm:$0xff] %vm1936, %v6149
      %6186 = vst.msk [vmem:[#allocation2 + $0x33] sm:$0xff] %vm1936, %v6150
      %6187 = vst.msk [vmem:[#allocation2 + $0x3b] sm:$0xff] %vm1936, %v6151
      %6188 = vst.msk [vmem:[#allocation2 + $0x43] sm:$0xff] %vm1936, %v6152
      %6189 = vst.msk [vmem:[#allocation2 + $0x4b] sm:$0xff] %vm1936, %v6153
      %6190 = vst.msk [vmem:[#allocation2 + $0x53] sm:$0xff] %vm1936, %v6154
      %6191 = vst.msk [vmem:[#allocation2 + $0x5b] sm:$0xff] %vm1936, %v6155
      %6192 = vst.msk [vmem:[#allocation2 + $0x63] sm:$0xff] %vm1936, %v6156
      %6193 = vst.msk [vmem:[#allocation2 + $0x6b] sm:$0xff] %vm1936, %v6157
      %6194 = vst.msk [vmem:[#allocation2 + $0x73] sm:$0xff] %vm1936, %v6158
      %6195 = vst.msk [vmem:[#allocation2 + $0x7b] sm:$0xff] %vm1936, %v6159
      %6196 = vst.msk [vmem:[#allocation2 + $0x83] sm:$0xff] %vm1936, %v6160
      %6197 = vst.msk [vmem:[#allocation2 + $0x8b] sm:$0xff] %vm1936, %v6161
      %6198 = vst.msk [vmem:[#allocation2 + $0x93] sm:$0xff] %vm1936, %v6162
      %6199 = vst.msk [vmem:[#allocation2 + $0x9b] sm:$0xff] %vm1936, %v6163
      %6200 = vst.msk [vmem:[#allocation2 + $0xa3] sm:$0xff] %vm1936, %v6164
      %6201 = vst.msk [vmem:[#allocation2 + $0xab] sm:$0xff] %vm1936, %v6165
      %6202 = vst.msk [vmem:[#allocation2 + $0xb3] sm:$0xff] %vm1936, %v6166
      %6203 = vst.msk [vmem:[#allocation2 + $0xbb] sm:$0xff] %vm1936, %v6167
      %6204 = vst.msk [vmem:[#allocation2 + $0xc3] sm:$0xff] %vm1936, %v6168
      %6205 = vst.msk [vmem:[#allocation2 + $0xcb] sm:$0xff] %vm1936, %v6169
      %6206 = vst.msk [vmem:[#allocation2 + $0xd3] sm:$0xff] %vm1936, %v6170
      %6207 = vst.msk [vmem:[#allocation2 + $0xdb] sm:$0xff] %vm1936, %v6171
      %6208 = vst.msk [vmem:[#allocation2 + $0xe3] sm:$0xff] %vm1936, %v6172
      %6209 = vst.msk [vmem:[#allocation2 + $0xeb] sm:$0xff] %vm1936, %v6173
      %6210 = vst.msk [vmem:[#allocation2 + $0xf3] sm:$0xff] %vm1936, %v6174
      %6211 = vst.msk [vmem:[#allocation2 + $0xfb] sm:$0xff] %vm1936, %v6175
      %6212 = vst.msk [vmem:[#allocation2 + $0x103] sm:$0xff] %vm1936, %v6176
      %6213 = vst.msk [vmem:[#allocation2 + $0x10b] sm:$0xff] %vm1936, %v6177
      %6214 = vst.msk [vmem:[#allocation2 + $0x113] sm:$0xff] %vm1936, %v6178
      %6215 = vst.msk [vmem:[#allocation2 + $0x11b] sm:$0xff] %vm1936, %v6179
      %6216 = vst.msk [vmem:[#allocation2 + $0x123] sm:$0xff] %vm1936, %v6180
      %6217 = vst.msk [vmem:[#allocation2 + $0x12b] sm:$0xff] %vm1936, %v6181
      %v6218 = vld [vmem:[#allocation2] sm:$0xff]
      %v6219 = vld [vmem:[#allocation2 + $0x8] sm:$0xff]
      %v6220 = vld [vmem:[#allocation2 + $0x10] sm:$0xff]
      %v6221 = vld [vmem:[#allocation2 + $0x18] sm:$0xff]
      %v6222 = vld [vmem:[#allocation2 + $0x20] sm:$0xff]
      %v6223 = vld [vmem:[#allocation2 + $0x28] sm:$0xff]
      %v6224 = vld [vmem:[#allocation2 + $0x30] sm:$0xff]
      %v6225 = vld [vmem:[#allocation2 + $0x38] sm:$0xff]
      %v6226 = vld [vmem:[#allocation2 + $0x40] sm:$0xff]
      %v6227 = vld [vmem:[#allocation2 + $0x48] sm:$0xff]
      %v6228 = vld [vmem:[#allocation2 + $0x50] sm:$0xff]
      %v6229 = vld [vmem:[#allocation2 + $0x58] sm:$0xff]
      %v6230 = vld [vmem:[#allocation2 + $0x60] sm:$0xff]
      %v6231 = vld [vmem:[#allocation2 + $0x68] sm:$0xff]
      %v6232 = vld [vmem:[#allocation2 + $0x70] sm:$0xff]
      %v6233 = vld [vmem:[#allocation2 + $0x78] sm:$0xff]
      %v6234 = vld [vmem:[#allocation2 + $0x80] sm:$0xff]
      %v6235 = vld [vmem:[#allocation2 + $0x88] sm:$0xff]
      %v6236 = vld [vmem:[#allocation2 + $0x90] sm:$0xff]
      %v6237 = vld [vmem:[#allocation2 + $0x98] sm:$0xff]
      %v6238 = vld [vmem:[#allocation2 + $0xa0] sm:$0xff]
      %v6239 = vld [vmem:[#allocation2 + $0xa8] sm:$0xff]
      %v6240 = vld [vmem:[#allocation2 + $0xb0] sm:$0xff]
      %v6241 = vld [vmem:[#allocation2 + $0xb8] sm:$0xff]
      %v6242 = vld [vmem:[#allocation2 + $0xc0] sm:$0xff]
      %v6243 = vld [vmem:[#allocation2 + $0xc8] sm:$0xff]
      %v6244 = vld [vmem:[#allocation2 + $0xd0] sm:$0xff]
      %v6245 = vld [vmem:[#allocation2 + $0xd8] sm:$0xff]
      %v6246 = vld [vmem:[#allocation2 + $0xe0] sm:$0xff]
      %v6247 = vld [vmem:[#allocation2 + $0xe8] sm:$0xff]
      %v6248 = vld [vmem:[#allocation2 + $0xf0] sm:$0xff]
      %v6249 = vld [vmem:[#allocation2 + $0xf8] sm:$0xff]
      %v6250 = vld [vmem:[#allocation2 + $0x100] sm:$0xff]
      %v6251 = vld [vmem:[#allocation2 + $0x108] sm:$0xff]
      %v6252 = vld [vmem:[#allocation2 + $0x110] sm:$0xff]
      %v6253 = vld [vmem:[#allocation2 + $0x118] sm:$0xff]
      %v6254 = vld [vmem:[#allocation2 + $0x1] sm:$0xff]
      %v6255 = vld [vmem:[#allocation2 + $0x9] sm:$0xff]
      %v6256 = vld [vmem:[#allocation2 + $0x11] sm:$0xff]
      %v6257 = vld [vmem:[#allocation2 + $0x19] sm:$0xff]
      %v6258 = vld [vmem:[#allocation2 + $0x21] sm:$0xff]
      %v6259 = vld [vmem:[#allocation2 + $0x29] sm:$0xff]
      %v6260 = vld [vmem:[#allocation2 + $0x31] sm:$0xff]
      %v6261 = vld [vmem:[#allocation2 + $0x39] sm:$0xff]
      %v6262 = vld [vmem:[#allocation2 + $0x41] sm:$0xff]
      %v6263 = vld [vmem:[#allocation2 + $0x49] sm:$0xff]
      %v6264 = vld [vmem:[#allocation2 + $0x51] sm:$0xff]
      %v6265 = vld [vmem:[#allocation2 + $0x59] sm:$0xff]
      %v6266 = vld [vmem:[#allocation2 + $0x61] sm:$0xff]
      %v6267 = vld [vmem:[#allocation2 + $0x69] sm:$0xff]
      %v6268 = vld [vmem:[#allocation2 + $0x71] sm:$0xff]
      %v6269 = vld [vmem:[#allocation2 + $0x79] sm:$0xff]
      %v6270 = vld [vmem:[#allocation2 + $0x81] sm:$0xff]
      %v6271 = vld [vmem:[#allocation2 + $0x89] sm:$0xff]
      %v6272 = vld [vmem:[#allocation2 + $0x91] sm:$0xff]
      %v6273 = vld [vmem:[#allocation2 + $0x99] sm:$0xff]
      %v6274 = vld [vmem:[#allocation2 + $0xa1] sm:$0xff]
      %v6275 = vld [vmem:[#allocation2 + $0xa9] sm:$0xff]
      %v6276 = vld [vmem:[#allocation2 + $0xb1] sm:$0xff]
      %v6277 = vld [vmem:[#allocation2 + $0xb9] sm:$0xff]
      %v6278 = vld [vmem:[#allocation2 + $0xc1] sm:$0xff]
      %v6279 = vld [vmem:[#allocation2 + $0xc9] sm:$0xff]
      %v6280 = vld [vmem:[#allocation2 + $0xd1] sm:$0xff]
      %v6281 = vld [vmem:[#allocation2 + $0xd9] sm:$0xff]
      %v6282 = vld [vmem:[#allocation2 + $0xe1] sm:$0xff]
      %v6283 = vld [vmem:[#allocation2 + $0xe9] sm:$0xff]
      %v6284 = vld [vmem:[#allocation2 + $0xf1] sm:$0xff]
      %v6285 = vld [vmem:[#allocation2 + $0xf9] sm:$0xff]
      %v6286 = vld [vmem:[#allocation2 + $0x101] sm:$0xff]
      %v6287 = vld [vmem:[#allocation2 + $0x109] sm:$0xff]
      %v6288 = vld [vmem:[#allocation2 + $0x111] sm:$0xff]
      %v6289 = vld [vmem:[#allocation2 + $0x119] sm:$0xff]
      %v6290 = vld [vmem:[#allocation2 + $0x2] sm:$0xff]
      %v6291 = vld [vmem:[#allocation2 + $0xa] sm:$0xff]
      %v6292 = vld [vmem:[#allocation2 + $0x12] sm:$0xff]
      %v6293 = vld [vmem:[#allocation2 + $0x1a] sm:$0xff]
      %v6294 = vld [vmem:[#allocation2 + $0x22] sm:$0xff]
      %v6295 = vld [vmem:[#allocation2 + $0x2a] sm:$0xff]
      %v6296 = vld [vmem:[#allocation2 + $0x32] sm:$0xff]
      %v6297 = vld [vmem:[#allocation2 + $0x3a] sm:$0xff]
      %v6298 = vld [vmem:[#allocation2 + $0x42] sm:$0xff]
      %v6299 = vld [vmem:[#allocation2 + $0x4a] sm:$0xff]
      %v6300 = vld [vmem:[#allocation2 + $0x52] sm:$0xff]
      %v6301 = vld [vmem:[#allocation2 + $0x5a] sm:$0xff]
      %v6302 = vld [vmem:[#allocation2 + $0x62] sm:$0xff]
      %v6303 = vld [vmem:[#allocation2 + $0x6a] sm:$0xff]
      %v6304 = vld [vmem:[#allocation2 + $0x72] sm:$0xff]
      %v6305 = vld [vmem:[#allocation2 + $0x7a] sm:$0xff]
      %v6306 = vld [vmem:[#allocation2 + $0x82] sm:$0xff]
      %v6307 = vld [vmem:[#allocation2 + $0x8a] sm:$0xff]
      %v6308 = vld [vmem:[#allocation2 + $0x92] sm:$0xff]
      %v6309 = vld [vmem:[#allocation2 + $0x9a] sm:$0xff]
      %v6310 = vld [vmem:[#allocation2 + $0xa2] sm:$0xff]
      %v6311 = vld [vmem:[#allocation2 + $0xaa] sm:$0xff]
      %v6312 = vld [vmem:[#allocation2 + $0xb2] sm:$0xff]
      %v6313 = vld [vmem:[#allocation2 + $0xba] sm:$0xff]
      %v6314 = vld [vmem:[#allocation2 + $0xc2] sm:$0xff]
      %v6315 = vld [vmem:[#allocation2 + $0xca] sm:$0xff]
      %v6316 = vld [vmem:[#allocation2 + $0xd2] sm:$0xff]
      %v6317 = vld [vmem:[#allocation2 + $0xda] sm:$0xff]
      %v6318 = vld [vmem:[#allocation2 + $0xe2] sm:$0xff]
      %v6319 = vld [vmem:[#allocation2 + $0xea] sm:$0xff]
      %v6320 = vld [vmem:[#allocation2 + $0xf2] sm:$0xff]
      %v6321 = vld [vmem:[#allocation2 + $0xfa] sm:$0xff]
      %v6322 = vld [vmem:[#allocation2 + $0x102] sm:$0xff]
      %v6323 = vld [vmem:[#allocation2 + $0x10a] sm:$0xff]
      %v6324 = vld [vmem:[#allocation2 + $0x112] sm:$0xff]
      %v6325 = vld [vmem:[#allocation2 + $0x11a] sm:$0xff]
      %6362 = vrot.lane.b32.xlu0 %v6254, 64
      %v6363 = vpop.permute.xlu0 %6362
      %6364 = vrot.lane.b32.xlu0 %v6255, 64
      %v6365 = vpop.permute.xlu0 %6364
      %6366 = vrot.lane.b32.xlu0 %v6256, 64
      %v6367 = vpop.permute.xlu0 %6366
      %6368 = vrot.lane.b32.xlu0 %v6257, 64
      %v6369 = vpop.permute.xlu0 %6368
      %6370 = vrot.lane.b32.xlu0 %v6258, 64
      %v6371 = vpop.permute.xlu0 %6370
      %6372 = vrot.lane.b32.xlu0 %v6259, 64
      %v6373 = vpop.permute.xlu0 %6372
      %6374 = vrot.lane.b32.xlu0 %v6260, 64
      %v6375 = vpop.permute.xlu0 %6374
      %6376 = vrot.lane.b32.xlu0 %v6261, 64
      %v6377 = vpop.permute.xlu0 %6376
      %6378 = vrot.lane.b32.xlu0 %v6262, 64
      %v6379 = vpop.permute.xlu0 %6378
      %6380 = vrot.lane.b32.xlu0 %v6263, 64
      %v6381 = vpop.permute.xlu0 %6380
      %6382 = vrot.lane.b32.xlu0 %v6264, 64
      %v6383 = vpop.permute.xlu0 %6382
      %6384 = vrot.lane.b32.xlu0 %v6265, 64
      %v6385 = vpop.permute.xlu0 %6384
      %6386 = vrot.lane.b32.xlu0 %v6266, 64
      %v6387 = vpop.permute.xlu0 %6386
      %6388 = vrot.lane.b32.xlu0 %v6267, 64
      %v6389 = vpop.permute.xlu0 %6388
      %6390 = vrot.lane.b32.xlu0 %v6268, 64
      %v6391 = vpop.permute.xlu0 %6390
      %6392 = vrot.lane.b32.xlu0 %v6269, 64
      %v6393 = vpop.permute.xlu0 %6392
      %6394 = vrot.lane.b32.xlu0 %v6270, 64
      %v6395 = vpop.permute.xlu0 %6394
      %6396 = vrot.lane.b32.xlu0 %v6271, 64
      %v6397 = vpop.permute.xlu0 %6396
      %6398 = vrot.lane.b32.xlu0 %v6272, 64
      %v6399 = vpop.permute.xlu0 %6398
      %6400 = vrot.lane.b32.xlu0 %v6273, 64
      %v6401 = vpop.permute.xlu0 %6400
      %6402 = vrot.lane.b32.xlu0 %v6274, 64
      %v6403 = vpop.permute.xlu0 %6402
      %6404 = vrot.lane.b32.xlu0 %v6275, 64
      %v6405 = vpop.permute.xlu0 %6404
      %6406 = vrot.lane.b32.xlu0 %v6276, 64
      %v6407 = vpop.permute.xlu0 %6406
      %6408 = vrot.lane.b32.xlu0 %v6277, 64
      %v6409 = vpop.permute.xlu0 %6408
      %6410 = vrot.lane.b32.xlu0 %v6278, 64
      %v6411 = vpop.permute.xlu0 %6410
      %6412 = vrot.lane.b32.xlu0 %v6279, 64
      %v6413 = vpop.permute.xlu0 %6412
      %6414 = vrot.lane.b32.xlu0 %v6280, 64
      %v6415 = vpop.permute.xlu0 %6414
      %6416 = vrot.lane.b32.xlu0 %v6281, 64
      %v6417 = vpop.permute.xlu0 %6416
      %6418 = vrot.lane.b32.xlu0 %v6282, 64
      %v6419 = vpop.permute.xlu0 %6418
      %6420 = vrot.lane.b32.xlu0 %v6283, 64
      %v6421 = vpop.permute.xlu0 %6420
      %6422 = vrot.lane.b32.xlu0 %v6284, 64
      %v6423 = vpop.permute.xlu0 %6422
      %6424 = vrot.lane.b32.xlu0 %v6285, 64
      %v6425 = vpop.permute.xlu0 %6424
      %6426 = vrot.lane.b32.xlu0 %v6286, 64
      %v6427 = vpop.permute.xlu0 %6426
      %6428 = vrot.lane.b32.xlu0 %v6287, 64
      %v6429 = vpop.permute.xlu0 %6428
      %6430 = vrot.lane.b32.xlu0 %v6288, 64
      %v6431 = vpop.permute.xlu0 %6430
      %6432 = vrot.lane.b32.xlu0 %v6289, 64
      %v6433 = vpop.permute.xlu0 %6432
      %v6470 = vsel %vm1936, %v6218, %v6363
      %v6471 = vsel %vm1936, %v6219, %v6365
      %v6472 = vsel %vm1936, %v6220, %v6367
      %v6473 = vsel %vm1936, %v6221, %v6369
      %v6474 = vsel %vm1936, %v6222, %v6371
      %v6475 = vsel %vm1936, %v6223, %v6373
      %v6476 = vsel %vm1936, %v6224, %v6375
      %v6477 = vsel %vm1936, %v6225, %v6377
      %v6478 = vsel %vm1936, %v6226, %v6379
      %v6479 = vsel %vm1936, %v6227, %v6381
      %v6480 = vsel %vm1936, %v6228, %v6383
      %v6481 = vsel %vm1936, %v6229, %v6385
      %v6482 = vsel %vm1936, %v6230, %v6387
      %v6483 = vsel %vm1936, %v6231, %v6389
      %v6484 = vsel %vm1936, %v6232, %v6391
      %v6485 = vsel %vm1936, %v6233, %v6393
      %v6486 = vsel %vm1936, %v6234, %v6395
      %v6487 = vsel %vm1936, %v6235, %v6397
      %v6488 = vsel %vm1936, %v6236, %v6399
      %v6489 = vsel %vm1936, %v6237, %v6401
      %v6490 = vsel %vm1936, %v6238, %v6403
      %v6491 = vsel %vm1936, %v6239, %v6405
      %v6492 = vsel %vm1936, %v6240, %v6407
      %v6493 = vsel %vm1936, %v6241, %v6409
      %v6494 = vsel %vm1936, %v6242, %v6411
      %v6495 = vsel %vm1936, %v6243, %v6413
      %v6496 = vsel %vm1936, %v6244, %v6415
      %v6497 = vsel %vm1936, %v6245, %v6417
      %v6498 = vsel %vm1936, %v6246, %v6419
      %v6499 = vsel %vm1936, %v6247, %v6421
      %v6500 = vsel %vm1936, %v6248, %v6423
      %v6501 = vsel %vm1936, %v6249, %v6425
      %v6502 = vsel %vm1936, %v6250, %v6427
      %v6503 = vsel %vm1936, %v6251, %v6429
      %v6504 = vsel %vm1936, %v6252, %v6431
      %v6505 = vsel %vm1936, %v6253, %v6433
      %s6506 = scalar_lea.vmem %s2, 1152
      %v6507 = vld [vmem:[%s6506] sm:$0xff]
      %v6508 = vld [vmem:[%s6506 + $0x8] sm:$0xff]
      %v6509 = vld [vmem:[%s6506 + $0x10] sm:$0xff]
      %v6510 = vld [vmem:[%s6506 + $0x18] sm:$0xff]
      %v6511 = vld [vmem:[%s6506 + $0x20] sm:$0xff]
      %v6512 = vld [vmem:[%s6506 + $0x28] sm:$0xff]
      %v6513 = vld [vmem:[%s6506 + $0x30] sm:$0xff]
      %v6514 = vld [vmem:[%s6506 + $0x38] sm:$0xff]
      %v6515 = vld [vmem:[%s6506 + $0x40] sm:$0xff]
      %v6516 = vld [vmem:[%s6506 + $0x48] sm:$0xff]
      %v6517 = vld [vmem:[%s6506 + $0x50] sm:$0xff]
      %v6518 = vld [vmem:[%s6506 + $0x58] sm:$0xff]
      %v6519 = vld [vmem:[%s6506 + $0x60] sm:$0xff]
      %v6520 = vld [vmem:[%s6506 + $0x68] sm:$0xff]
      %v6521 = vld [vmem:[%s6506 + $0x70] sm:$0xff]
      %v6522 = vld [vmem:[%s6506 + $0x78] sm:$0xff]
      %v6523 = vld [vmem:[%s6506 + $0x80] sm:$0xff]
      %v6524 = vld [vmem:[%s6506 + $0x88] sm:$0xff]
      %v6525 = vld [vmem:[%s6506 + $0x90] sm:$0xff]
      %v6526 = vld [vmem:[%s6506 + $0x98] sm:$0xff]
      %v6527 = vld [vmem:[%s6506 + $0xa0] sm:$0xff]
      %v6528 = vld [vmem:[%s6506 + $0xa8] sm:$0xff]
      %v6529 = vld [vmem:[%s6506 + $0xb0] sm:$0xff]
      %v6530 = vld [vmem:[%s6506 + $0xb8] sm:$0xff]
      %v6531 = vld [vmem:[#allocation2 + $0x122] sm:$0xff]
      %v6532 = vld [vmem:[#allocation2 + $0x12a] sm:$0xff]
      %v6533 = vld [vmem:[#allocation2 + $0x13] sm:$0xff]
      %v6534 = vld [vmem:[#allocation2 + $0x1b] sm:$0xff]
      %v6535 = vld [vmem:[#allocation2 + $0x23] sm:$0xff]
      %v6536 = vld [vmem:[#allocation2 + $0x2b] sm:$0xff]
      %v6537 = vld [vmem:[#allocation2 + $0x33] sm:$0xff]
      %v6538 = vld [vmem:[#allocation2 + $0x3b] sm:$0xff]
      %v6539 = vld [vmem:[#allocation2 + $0x43] sm:$0xff]
      %v6540 = vld [vmem:[#allocation2 + $0x4b] sm:$0xff]
      %v6541 = vld [vmem:[#allocation2 + $0x53] sm:$0xff]
      %v6542 = vld [vmem:[#allocation2 + $0x5b] sm:$0xff]
      %v6543 = vld [vmem:[#allocation2 + $0x63] sm:$0xff]
      %v6544 = vld [vmem:[#allocation2 + $0x6b] sm:$0xff]
      %v6545 = vld [vmem:[#allocation2 + $0x73] sm:$0xff]
      %v6546 = vld [vmem:[#allocation2 + $0x7b] sm:$0xff]
      %v6547 = vld [vmem:[#allocation2 + $0x83] sm:$0xff]
      %v6548 = vld [vmem:[#allocation2 + $0x8b] sm:$0xff]
      %v6549 = vld [vmem:[#allocation2 + $0x93] sm:$0xff]
      %v6550 = vld [vmem:[#allocation2 + $0x9b] sm:$0xff]
      %v6551 = vld [vmem:[#allocation2 + $0xa3] sm:$0xff]
      %v6552 = vld [vmem:[#allocation2 + $0xab] sm:$0xff]
      %v6553 = vld [vmem:[#allocation2 + $0xb3] sm:$0xff]
      %v6554 = vld [vmem:[#allocation2 + $0xbb] sm:$0xff]
      %v6555 = vld [vmem:[#allocation2 + $0xc3] sm:$0xff]
      %v6556 = vld [vmem:[#allocation2 + $0xcb] sm:$0xff]
      %v6557 = vld [vmem:[#allocation2 + $0xd3] sm:$0xff]
      %v6558 = vld [vmem:[#allocation2 + $0xdb] sm:$0xff]
      %v6559 = vld [vmem:[#allocation2 + $0xe3] sm:$0xff]
      %v6560 = vld [vmem:[#allocation2 + $0xeb] sm:$0xff]
      %v6561 = vld [vmem:[#allocation2 + $0xf3] sm:$0xff]
      %v6562 = vld [vmem:[#allocation2 + $0xfb] sm:$0xff]
      %v6563 = vld [vmem:[#allocation2 + $0x103] sm:$0xff]
      %v6564 = vld [vmem:[#allocation2 + $0x10b] sm:$0xff]
      %v6565 = vld [vmem:[#allocation2 + $0x113] sm:$0xff]
      %v6566 = vld [vmem:[#allocation2 + $0x11b] sm:$0xff]
      %v6567 = vld [vmem:[#allocation2 + $0x123] sm:$0xff]
      %v6568 = vld [vmem:[#allocation2 + $0x12b] sm:$0xff]
      %v6569 = vld [vmem:[#allocation2 + $0x14] sm:$0xff]
      %v6570 = vld [vmem:[#allocation2 + $0x1c] sm:$0xff]
      %v6571 = vld [vmem:[#allocation2 + $0x24] sm:$0xff]
      %v6572 = vld [vmem:[#allocation2 + $0x2c] sm:$0xff]
      %v6573 = vld [vmem:[#allocation2 + $0x34] sm:$0xff]
      %v6574 = vld [vmem:[#allocation2 + $0x3c] sm:$0xff]
      %v6575 = vld [vmem:[#allocation2 + $0x44] sm:$0xff]
      %v6576 = vld [vmem:[#allocation2 + $0x4c] sm:$0xff]
      %v6577 = vld [vmem:[#allocation2 + $0x54] sm:$0xff]
      %v6578 = vld [vmem:[#allocation2 + $0x5c] sm:$0xff]
      %v6579 = vld [vmem:[#allocation2 + $0x64] sm:$0xff]
      %v6580 = vld [vmem:[#allocation2 + $0x6c] sm:$0xff]
      %v6581 = vld [vmem:[#allocation2 + $0x74] sm:$0xff]
      %v6582 = vld [vmem:[#allocation2 + $0x7c] sm:$0xff]
      %v6583 = vld [vmem:[#allocation2 + $0x84] sm:$0xff]
      %v6584 = vld [vmem:[#allocation2 + $0x8c] sm:$0xff]
      %v6585 = vld [vmem:[#allocation2 + $0x94] sm:$0xff]
      %v6586 = vld [vmem:[#allocation2 + $0x9c] sm:$0xff]
      %v6587 = vld [vmem:[#allocation2 + $0xa4] sm:$0xff]
      %v6588 = vld [vmem:[#allocation2 + $0xac] sm:$0xff]
      %v6589 = vld [vmem:[#allocation2 + $0xb4] sm:$0xff]
      %v6590 = vld [vmem:[#allocation2 + $0xbc] sm:$0xff]
      %v6591 = vld [vmem:[#allocation2 + $0xc4] sm:$0xff]
      %v6592 = vld [vmem:[#allocation2 + $0xcc] sm:$0xff]
      %v6593 = vld [vmem:[#allocation2 + $0xd4] sm:$0xff]
      %v6594 = vld [vmem:[#allocation2 + $0xdc] sm:$0xff]
      %v6595 = vld [vmem:[#allocation2 + $0xe4] sm:$0xff]
      %v6596 = vld [vmem:[#allocation2 + $0xec] sm:$0xff]
      %v6597 = vld [vmem:[#allocation2 + $0xf4] sm:$0xff]
      %v6598 = vld [vmem:[#allocation2 + $0xfc] sm:$0xff]
      %v6599 = vld [vmem:[#allocation2 + $0x104] sm:$0xff]
      %v6600 = vld [vmem:[#allocation2 + $0x10c] sm:$0xff]
      %v6601 = vld [vmem:[#allocation2 + $0x114] sm:$0xff]
      %v6602 = vld [vmem:[#allocation2 + $0x11c] sm:$0xff]
      %v6603 = vld [vmem:[#allocation2 + $0x124] sm:$0xff]
      %v6604 = vld [vmem:[#allocation2 + $0x12c] sm:$0xff]
      %6641 = vrot.lane.b32.xlu0 %v6533, 64
      %v6642 = vpop.permute.xlu0 %6641
      %6643 = vrot.lane.b32.xlu0 %v6534, 64
      %v6644 = vpop.permute.xlu0 %6643
      %6645 = vrot.lane.b32.xlu0 %v6535, 64
      %v6646 = vpop.permute.xlu0 %6645
      %6647 = vrot.lane.b32.xlu0 %v6536, 64
      %v6648 = vpop.permute.xlu0 %6647
      %6649 = vrot.lane.b32.xlu0 %v6537, 64
      %v6650 = vpop.permute.xlu0 %6649
      %6651 = vrot.lane.b32.xlu0 %v6538, 64
      %v6652 = vpop.permute.xlu0 %6651
      %6653 = vrot.lane.b32.xlu0 %v6539, 64
      %v6654 = vpop.permute.xlu0 %6653
      %6655 = vrot.lane.b32.xlu0 %v6540, 64
      %v6656 = vpop.permute.xlu0 %6655
      %6657 = vrot.lane.b32.xlu0 %v6541, 64
      %v6658 = vpop.permute.xlu0 %6657
      %6659 = vrot.lane.b32.xlu0 %v6542, 64
      %v6660 = vpop.permute.xlu0 %6659
      %6661 = vrot.lane.b32.xlu0 %v6543, 64
      %v6662 = vpop.permute.xlu0 %6661
      %6663 = vrot.lane.b32.xlu0 %v6544, 64
      %v6664 = vpop.permute.xlu0 %6663
      %6665 = vrot.lane.b32.xlu0 %v6545, 64
      %v6666 = vpop.permute.xlu0 %6665
      %6667 = vrot.lane.b32.xlu0 %v6546, 64
      %v6668 = vpop.permute.xlu0 %6667
      %6669 = vrot.lane.b32.xlu0 %v6547, 64
      %v6670 = vpop.permute.xlu0 %6669
      %6671 = vrot.lane.b32.xlu0 %v6548, 64
      %v6672 = vpop.permute.xlu0 %6671
      %6673 = vrot.lane.b32.xlu0 %v6549, 64
      %v6674 = vpop.permute.xlu0 %6673
      %6675 = vrot.lane.b32.xlu0 %v6550, 64
      %v6676 = vpop.permute.xlu0 %6675
      %6677 = vrot.lane.b32.xlu0 %v6551, 64
      %v6678 = vpop.permute.xlu0 %6677
      %6679 = vrot.lane.b32.xlu0 %v6552, 64
      %v6680 = vpop.permute.xlu0 %6679
      %6681 = vrot.lane.b32.xlu0 %v6553, 64
      %v6682 = vpop.permute.xlu0 %6681
      %6683 = vrot.lane.b32.xlu0 %v6554, 64
      %v6684 = vpop.permute.xlu0 %6683
      %6685 = vrot.lane.b32.xlu0 %v6555, 64
      %v6686 = vpop.permute.xlu0 %6685
      %6687 = vrot.lane.b32.xlu0 %v6556, 64
      %v6688 = vpop.permute.xlu0 %6687
      %6689 = vrot.lane.b32.xlu0 %v6557, 64
      %v6690 = vpop.permute.xlu0 %6689
      %6691 = vrot.lane.b32.xlu0 %v6558, 64
      %v6692 = vpop.permute.xlu0 %6691
      %6693 = vrot.lane.b32.xlu0 %v6559, 64
      %v6694 = vpop.permute.xlu0 %6693
      %6695 = vrot.lane.b32.xlu0 %v6560, 64
      %v6696 = vpop.permute.xlu0 %6695
      %6697 = vrot.lane.b32.xlu0 %v6561, 64
      %v6698 = vpop.permute.xlu0 %6697
      %6699 = vrot.lane.b32.xlu0 %v6562, 64
      %v6700 = vpop.permute.xlu0 %6699
      %6701 = vrot.lane.b32.xlu0 %v6563, 64
      %v6702 = vpop.permute.xlu0 %6701
      %6703 = vrot.lane.b32.xlu0 %v6564, 64
      %v6704 = vpop.permute.xlu0 %6703
      %6705 = vrot.lane.b32.xlu0 %v6565, 64
      %v6706 = vpop.permute.xlu0 %6705
      %6707 = vrot.lane.b32.xlu0 %v6566, 64
      %v6708 = vpop.permute.xlu0 %6707
      %6709 = vrot.lane.b32.xlu0 %v6567, 64
      %v6710 = vpop.permute.xlu0 %6709
      %6711 = vrot.lane.b32.xlu0 %v6568, 64
      %v6712 = vpop.permute.xlu0 %6711
      %v6749 = vsel %vm1936, %v6292, %v6642
      %v6750 = vsel %vm1936, %v6293, %v6644
      %v6751 = vsel %vm1936, %v6294, %v6646
      %v6752 = vsel %vm1936, %v6295, %v6648
      %v6753 = vsel %vm1936, %v6296, %v6650
      %v6754 = vsel %vm1936, %v6297, %v6652
      %v6755 = vsel %vm1936, %v6298, %v6654
      %v6756 = vsel %vm1936, %v6299, %v6656
      %v6757 = vsel %vm1936, %v6300, %v6658
      %v6758 = vsel %vm1936, %v6301, %v6660
      %v6759 = vsel %vm1936, %v6302, %v6662
      %v6760 = vsel %vm1936, %v6303, %v6664
      %v6761 = vsel %vm1936, %v6304, %v6666
      %v6762 = vsel %vm1936, %v6305, %v6668
      %v6763 = vsel %vm1936, %v6306, %v6670
      %v6764 = vsel %vm1936, %v6307, %v6672
      %v6765 = vsel %vm1936, %v6308, %v6674
      %v6766 = vsel %vm1936, %v6309, %v6676
      %v6767 = vsel %vm1936, %v6310, %v6678
      %v6768 = vsel %vm1936, %v6311, %v6680
      %v6769 = vsel %vm1936, %v6312, %v6682
      %v6770 = vsel %vm1936, %v6313, %v6684
      %v6771 = vsel %vm1936, %v6314, %v6686
      %v6772 = vsel %vm1936, %v6315, %v6688
      %v6773 = vsel %vm1936, %v6316, %v6690
      %v6774 = vsel %vm1936, %v6317, %v6692
      %v6775 = vsel %vm1936, %v6318, %v6694
      %v6776 = vsel %vm1936, %v6319, %v6696
      %v6777 = vsel %vm1936, %v6320, %v6698
      %v6778 = vsel %vm1936, %v6321, %v6700
      %v6779 = vsel %vm1936, %v6322, %v6702
      %v6780 = vsel %vm1936, %v6323, %v6704
      %v6781 = vsel %vm1936, %v6324, %v6706
      %v6782 = vsel %vm1936, %v6325, %v6708
      %v6783 = vsel %vm1936, %v6531, %v6710
      %v6784 = vsel %vm1936, %v6532, %v6712
      %s6785 = scalar_lea.vmem %s2, 1344
      %v6786 = vld [vmem:[%s6785] sm:$0xff]
      %v6787 = vld [vmem:[%s6785 + $0x8] sm:$0xff]
      %v6788 = vld [vmem:[%s6785 + $0x10] sm:$0xff]
      %v6789 = vld [vmem:[%s6785 + $0x18] sm:$0xff]
      %v6790 = vld [vmem:[%s6785 + $0x20] sm:$0xff]
      %v6791 = vld [vmem:[%s6785 + $0x28] sm:$0xff]
      %v6792 = vld [vmem:[%s6785 + $0x30] sm:$0xff]
      %v6793 = vld [vmem:[%s6785 + $0x38] sm:$0xff]
      %v6794 = vld [vmem:[%s6785 + $0x40] sm:$0xff]
      %v6795 = vld [vmem:[%s6785 + $0x48] sm:$0xff]
      %v6796 = vld [vmem:[%s6785 + $0x50] sm:$0xff]
      %v6797 = vld [vmem:[%s6785 + $0x58] sm:$0xff]
      %v6798 = vld [vmem:[%s6785 + $0x60] sm:$0xff]
      %v6799 = vld [vmem:[%s6785 + $0x68] sm:$0xff]
      %v6800 = vld [vmem:[%s6785 + $0x70] sm:$0xff]
      %v6801 = vld [vmem:[%s6785 + $0x78] sm:$0xff]
      %v6802 = vld [vmem:[%s6785 + $0x80] sm:$0xff]
      %v6803 = vld [vmem:[%s6785 + $0x88] sm:$0xff]
      %v6804 = vld [vmem:[%s6785 + $0x90] sm:$0xff]
      %v6805 = vld [vmem:[%s6785 + $0x98] sm:$0xff]
      %v6806 = vld [vmem:[%s6785 + $0xa0] sm:$0xff]
      %v6807 = vld [vmem:[%s6785 + $0xa8] sm:$0xff]
      %v6808 = vld [vmem:[%s6785 + $0xb0] sm:$0xff]
      %v6809 = vld [vmem:[%s6785 + $0xb8] sm:$0xff]
      %v6811 = vsel %vm1936, %v6569, 0
      %v6814 = vsel %vm1936, %v6570, 0
      %v6817 = vsel %vm1936, %v6571, 0
      %v6820 = vsel %vm1936, %v6572, 0
      %v6823 = vsel %vm1936, %v6573, 0
      %v6826 = vsel %vm1936, %v6574, 0
      %v6829 = vsel %vm1936, %v6575, 0
      %v6832 = vsel %vm1936, %v6576, 0
      %v6835 = vsel %vm1936, %v6577, 0
      %v6838 = vsel %vm1936, %v6578, 0
      %v6841 = vsel %vm1936, %v6579, 0
      %v6844 = vsel %vm1936, %v6580, 0
      %v6847 = vsel %vm1936, %v6581, 0
      %v6850 = vsel %vm1936, %v6582, 0
      %v6853 = vsel %vm1936, %v6583, 0
      %v6856 = vsel %vm1936, %v6584, 0
      %v6859 = vsel %vm1936, %v6585, 0
      %v6862 = vsel %vm1936, %v6586, 0
      %v6865 = vsel %vm1936, %v6587, 0
      %v6868 = vsel %vm1936, %v6588, 0
      %v6871 = vsel %vm1936, %v6589, 0
      %v6874 = vsel %vm1936, %v6590, 0
      %v6877 = vsel %vm1936, %v6591, 0
      %v6880 = vsel %vm1936, %v6592, 0
      %v6883 = vsel %vm1936, %v6593, 0
      %v6886 = vsel %vm1936, %v6594, 0
      %v6889 = vsel %vm1936, %v6595, 0
      %v6892 = vsel %vm1936, %v6596, 0
      %v6895 = vsel %vm1936, %v6597, 0
      %v6898 = vsel %vm1936, %v6598, 0
      %v6901 = vsel %vm1936, %v6599, 0
      %v6904 = vsel %vm1936, %v6600, 0
      %v6907 = vsel %vm1936, %v6601, 0
      %v6910 = vsel %vm1936, %v6602, 0
      %v6913 = vsel %vm1936, %v6603, 0
      %v6916 = vsel %vm1936, %v6604, 0
      %6918 = vmatpush.msra.mxu0 %v6801
      %6919 = vmatpush.msra.mxu0 %v6800
      %6920 = vmatpush.msra.mxu0 %v6799
      %6921 = vmatpush.msra.mxu0 %v6798
      %6922 = vmatpush.msra.mxu0 %v6797
      %6923 = vmatpush.msra.mxu0 %v6796
      %6924 = vmatpush.msra.mxu0 %v6795
      %6925 = vmatpush.msra.mxu0 %v6794
      %6926 = vmatpush.msra.mxu0 %v6793
      %6927 = vmatpush.msra.mxu0 %v6792
      %6928 = vmatpush.msra.mxu0 %v6791
      %6929 = vmatpush.msra.mxu0 %v6790
      %6930 = vmatpush.msra.mxu0 %v6789
      %6931 = vmatpush.msra.mxu0 %v6788
      %6932 = vmatpush.msra.mxu0 %v6787
      %6933 = vmatpush.msra.mxu0 %v6786
      %6934 = vmatmul.f32.gmra.mxu0 %v6749
      %v6935 = vpop.f32.mrf.mxu0
      %v6936 = vadd.f32 0.0, %v6935
      %6937 = vmatmul.f32.gmra.mxu0 %v6750
      %v6938 = vpop.f32.mrf.mxu0
      %v6939 = vadd.f32 0.0, %v6938
      %6940 = vmatmul.f32.gmra.mxu0 %v6751
      %v6941 = vpop.f32.mrf.mxu0
      %v6942 = vadd.f32 0.0, %v6941
      %6943 = vmatmul.f32.gmra.mxu0 %v6752
      %v6944 = vpop.f32.mrf.mxu0
      %v6945 = vadd.f32 0.0, %v6944
      %6946 = vmatmul.f32.gmra.mxu0 %v6753
      %v6947 = vpop.f32.mrf.mxu0
      %v6948 = vadd.f32 0.0, %v6947
      %6949 = vmatmul.f32.gmra.mxu0 %v6754
      %v6950 = vpop.f32.mrf.mxu0
      %v6951 = vadd.f32 0.0, %v6950
      %6952 = vmatmul.f32.gmra.mxu0 %v6755
      %v6953 = vpop.f32.mrf.mxu0
      %v6954 = vadd.f32 0.0, %v6953
      %6955 = vmatmul.f32.gmra.mxu0 %v6756
      %v6956 = vpop.f32.mrf.mxu0
      %v6957 = vadd.f32 0.0, %v6956
      %6958 = vmatmul.f32.gmra.mxu0 %v6757
      %v6959 = vpop.f32.mrf.mxu0
      %v6960 = vadd.f32 0.0, %v6959
      %6961 = vmatmul.f32.gmra.mxu0 %v6758
      %v6962 = vpop.f32.mrf.mxu0
      %v6963 = vadd.f32 0.0, %v6962
      %6964 = vmatmul.f32.gmra.mxu0 %v6759
      %v6965 = vpop.f32.mrf.mxu0
      %v6966 = vadd.f32 0.0, %v6965
      %6967 = vmatmul.f32.gmra.mxu0 %v6760
      %v6968 = vpop.f32.mrf.mxu0
      %v6969 = vadd.f32 0.0, %v6968
      %6970 = vmatmul.f32.gmra.mxu0 %v6761
      %v6971 = vpop.f32.mrf.mxu0
      %v6972 = vadd.f32 0.0, %v6971
      %6973 = vmatmul.f32.gmra.mxu0 %v6762
      %v6974 = vpop.f32.mrf.mxu0
      %v6975 = vadd.f32 0.0, %v6974
      %6976 = vmatmul.f32.gmra.mxu0 %v6763
      %v6977 = vpop.f32.mrf.mxu0
      %v6978 = vadd.f32 0.0, %v6977
      %6979 = vmatmul.f32.gmra.mxu0 %v6764
      %v6980 = vpop.f32.mrf.mxu0
      %v6981 = vadd.f32 0.0, %v6980
      %6982 = vmatmul.f32.gmra.mxu0 %v6765
      %v6983 = vpop.f32.mrf.mxu0
      %v6984 = vadd.f32 0.0, %v6983
      %6985 = vmatmul.f32.gmra.mxu0 %v6766
      %v6986 = vpop.f32.mrf.mxu0
      %v6987 = vadd.f32 0.0, %v6986
      %6988 = vmatmul.f32.gmra.mxu0 %v6767
      %v6989 = vpop.f32.mrf.mxu0
      %v6990 = vadd.f32 0.0, %v6989
      %6991 = vmatmul.f32.gmra.mxu0 %v6768
      %v6992 = vpop.f32.mrf.mxu0
      %v6993 = vadd.f32 0.0, %v6992
      %6994 = vmatmul.f32.gmra.mxu0 %v6769
      %v6995 = vpop.f32.mrf.mxu0
      %v6996 = vadd.f32 0.0, %v6995
      %6997 = vmatmul.f32.gmra.mxu0 %v6770
      %v6998 = vpop.f32.mrf.mxu0
      %v6999 = vadd.f32 0.0, %v6998
      %7000 = vmatmul.f32.gmra.mxu0 %v6771
      %v7001 = vpop.f32.mrf.mxu0
      %v7002 = vadd.f32 0.0, %v7001
      %7003 = vmatmul.f32.gmra.mxu0 %v6772
      %v7004 = vpop.f32.mrf.mxu0
      %v7005 = vadd.f32 0.0, %v7004
      %7006 = vmatmul.f32.gmra.mxu0 %v6773
      %v7007 = vpop.f32.mrf.mxu0
      %v7008 = vadd.f32 0.0, %v7007
      %7009 = vmatmul.f32.gmra.mxu0 %v6774
      %v7010 = vpop.f32.mrf.mxu0
      %v7011 = vadd.f32 0.0, %v7010
      %7012 = vmatmul.f32.gmra.mxu0 %v6775
      %v7013 = vpop.f32.mrf.mxu0
      %v7014 = vadd.f32 0.0, %v7013
      %7015 = vmatmul.f32.gmra.mxu0 %v6776
      %v7016 = vpop.f32.mrf.mxu0
      %v7017 = vadd.f32 0.0, %v7016
      %7018 = vmatmul.f32.gmra.mxu0 %v6777
      %v7019 = vpop.f32.mrf.mxu0
      %v7020 = vadd.f32 0.0, %v7019
      %7021 = vmatmul.f32.gmra.mxu0 %v6778
      %v7022 = vpop.f32.mrf.mxu0
      %v7023 = vadd.f32 0.0, %v7022
      %7024 = vmatmul.f32.gmra.mxu0 %v6779
      %v7025 = vpop.f32.mrf.mxu0
      %v7026 = vadd.f32 0.0, %v7025
      %7027 = vmatmul.f32.gmra.mxu0 %v6780
      %v7028 = vpop.f32.mrf.mxu0
      %v7029 = vadd.f32 0.0, %v7028
      %7030 = vmatmul.f32.gmra.mxu0 %v6781
      %v7031 = vpop.f32.mrf.mxu0
      %v7032 = vadd.f32 0.0, %v7031
      %7033 = vmatmul.f32.gmra.mxu0 %v6782
      %v7034 = vpop.f32.mrf.mxu0
      %v7035 = vadd.f32 0.0, %v7034
      %7036 = vmatmul.f32.gmra.mxu0 %v6783
      %v7037 = vpop.f32.mrf.mxu0
      %v7038 = vadd.f32 0.0, %v7037
      %7039 = vmatmul.f32.gmra.mxu0 %v6784
      %v7040 = vpop.f32.mrf.mxu0
      %v7041 = vadd.f32 0.0, %v7040
      %7042 = vdwg.mxu0
      %7043 = vmatpush.msra.mxu0 0.0
      %7044 = vmatpush.msra.mxu0 0.0
      %7045 = vmatpush.msra.mxu0 0.0
      %7046 = vmatpush.msra.mxu0 0.0
      %7047 = vmatpush.msra.mxu0 0.0
      %7048 = vmatpush.msra.mxu0 0.0
      %7049 = vmatpush.msra.mxu0 0.0
      %7050 = vmatpush.msra.mxu0 0.0
      %7051 = vmatpush.msra.mxu0 %v6809
      %7052 = vmatpush.msra.mxu0 %v6808
      %7053 = vmatpush.msra.mxu0 %v6807
      %7054 = vmatpush.msra.mxu0 %v6806
      %7055 = vmatpush.msra.mxu0 %v6805
      %7056 = vmatpush.msra.mxu0 %v6804
      %7057 = vmatpush.msra.mxu0 %v6803
      %7058 = vmatpush.msra.mxu0 %v6802
      %7059 = vmatmul.f32.gmra.mxu0 %v6811
      %v7060 = vpop.f32.mrf.mxu0
      %v7061 = vadd.f32 %v6936, %v7060
      %7062 = vmatmul.f32.gmra.mxu0 %v6814
      %v7063 = vpop.f32.mrf.mxu0
      %v7064 = vadd.f32 %v6939, %v7063
      %7065 = vmatmul.f32.gmra.mxu0 %v6817
      %v7066 = vpop.f32.mrf.mxu0
      %v7067 = vadd.f32 %v6942, %v7066
      %7068 = vmatmul.f32.gmra.mxu0 %v6820
      %v7069 = vpop.f32.mrf.mxu0
      %v7070 = vadd.f32 %v6945, %v7069
      %7071 = vmatmul.f32.gmra.mxu0 %v6823
      %v7072 = vpop.f32.mrf.mxu0
      %v7073 = vadd.f32 %v6948, %v7072
      %7074 = vmatmul.f32.gmra.mxu0 %v6826
      %v7075 = vpop.f32.mrf.mxu0
      %v7076 = vadd.f32 %v6951, %v7075
      %7077 = vmatmul.f32.gmra.mxu0 %v6829
      %v7078 = vpop.f32.mrf.mxu0
      %v7079 = vadd.f32 %v6954, %v7078
      %7080 = vmatmul.f32.gmra.mxu0 %v6832
      %v7081 = vpop.f32.mrf.mxu0
      %v7082 = vadd.f32 %v6957, %v7081
      %7083 = vmatmul.f32.gmra.mxu0 %v6835
      %v7084 = vpop.f32.mrf.mxu0
      %v7085 = vadd.f32 %v6960, %v7084
      %7086 = vmatmul.f32.gmra.mxu0 %v6838
      %v7087 = vpop.f32.mrf.mxu0
      %v7088 = vadd.f32 %v6963, %v7087
      %7089 = vmatmul.f32.gmra.mxu0 %v6841
      %v7090 = vpop.f32.mrf.mxu0
      %v7091 = vadd.f32 %v6966, %v7090
      %7092 = vmatmul.f32.gmra.mxu0 %v6844
      %v7093 = vpop.f32.mrf.mxu0
      %v7094 = vadd.f32 %v6969, %v7093
      %7095 = vmatmul.f32.gmra.mxu0 %v6847
      %v7096 = vpop.f32.mrf.mxu0
      %v7097 = vadd.f32 %v6972, %v7096
      %7098 = vmatmul.f32.gmra.mxu0 %v6850
      %v7099 = vpop.f32.mrf.mxu0
      %v7100 = vadd.f32 %v6975, %v7099
      %7101 = vmatmul.f32.gmra.mxu0 %v6853
      %v7102 = vpop.f32.mrf.mxu0
      %v7103 = vadd.f32 %v6978, %v7102
      %7104 = vmatmul.f32.gmra.mxu0 %v6856
      %v7105 = vpop.f32.mrf.mxu0
      %v7106 = vadd.f32 %v6981, %v7105
      %7107 = vmatmul.f32.gmra.mxu0 %v6859
      %v7108 = vpop.f32.mrf.mxu0
      %v7109 = vadd.f32 %v6984, %v7108
      %7110 = vmatmul.f32.gmra.mxu0 %v6862
      %v7111 = vpop.f32.mrf.mxu0
      %v7112 = vadd.f32 %v6987, %v7111
      %7113 = vmatmul.f32.gmra.mxu0 %v6865
      %v7114 = vpop.f32.mrf.mxu0
      %v7115 = vadd.f32 %v6990, %v7114
      %7116 = vmatmul.f32.gmra.mxu0 %v6868
      %v7117 = vpop.f32.mrf.mxu0
      %v7118 = vadd.f32 %v6993, %v7117
      %7119 = vmatmul.f32.gmra.mxu0 %v6871
      %v7120 = vpop.f32.mrf.mxu0
      %v7121 = vadd.f32 %v6996, %v7120
      %7122 = vmatmul.f32.gmra.mxu0 %v6874
      %v7123 = vpop.f32.mrf.mxu0
      %v7124 = vadd.f32 %v6999, %v7123
      %7125 = vmatmul.f32.gmra.mxu0 %v6877
      %v7126 = vpop.f32.mrf.mxu0
      %v7127 = vadd.f32 %v7002, %v7126
      %7128 = vmatmul.f32.gmra.mxu0 %v6880
      %v7129 = vpop.f32.mrf.mxu0
      %v7130 = vadd.f32 %v7005, %v7129
      %7131 = vmatmul.f32.gmra.mxu0 %v6883
      %v7132 = vpop.f32.mrf.mxu0
      %v7133 = vadd.f32 %v7008, %v7132
      %7134 = vmatmul.f32.gmra.mxu0 %v6886
      %v7135 = vpop.f32.mrf.mxu0
      %v7136 = vadd.f32 %v7011, %v7135
      %7137 = vmatmul.f32.gmra.mxu0 %v6889
      %v7138 = vpop.f32.mrf.mxu0
      %v7139 = vadd.f32 %v7014, %v7138
      %7140 = vmatmul.f32.gmra.mxu0 %v6892
      %v7141 = vpop.f32.mrf.mxu0
      %v7142 = vadd.f32 %v7017, %v7141
      %7143 = vmatmul.f32.gmra.mxu0 %v6895
      %v7144 = vpop.f32.mrf.mxu0
      %v7145 = vadd.f32 %v7020, %v7144
      %7146 = vmatmul.f32.gmra.mxu0 %v6898
      %v7147 = vpop.f32.mrf.mxu0
      %v7148 = vadd.f32 %v7023, %v7147
      %7149 = vmatmul.f32.gmra.mxu0 %v6901
      %v7150 = vpop.f32.mrf.mxu0
      %v7151 = vadd.f32 %v7026, %v7150
      %7152 = vmatmul.f32.gmra.mxu0 %v6904
      %v7153 = vpop.f32.mrf.mxu0
      %v7154 = vadd.f32 %v7029, %v7153
      %7155 = vmatmul.f32.gmra.mxu0 %v6907
      %v7156 = vpop.f32.mrf.mxu0
      %v7157 = vadd.f32 %v7032, %v7156
      %7158 = vmatmul.f32.gmra.mxu0 %v6910
      %v7159 = vpop.f32.mrf.mxu0
      %v7160 = vadd.f32 %v7035, %v7159
      %7161 = vmatmul.f32.gmra.mxu0 %v6913
      %v7162 = vpop.f32.mrf.mxu0
      %v7163 = vadd.f32 %v7038, %v7162
      %7164 = vmatmul.f32.gmra.mxu0 %v6916
      %v7165 = vpop.f32.mrf.mxu0
      %v7166 = vadd.f32 %v7041, %v7165
      %7167 = vdwg.mxu0
      %v7169 = vsel %vm1936, %v6290, 0
      %v7172 = vsel %vm1936, %v6291, 0
      %v7175 = vsel %vm1936, %v6292, 0
      %v7178 = vsel %vm1936, %v6293, 0
      %v7181 = vsel %vm1936, %v6294, 0
      %v7184 = vsel %vm1936, %v6295, 0
      %v7187 = vsel %vm1936, %v6296, 0
      %v7190 = vsel %vm1936, %v6297, 0
      %v7193 = vsel %vm1936, %v6298, 0
      %v7196 = vsel %vm1936, %v6299, 0
      %v7199 = vsel %vm1936, %v6300, 0
      %v7202 = vsel %vm1936, %v6301, 0
      %v7205 = vsel %vm1936, %v6302, 0
      %v7208 = vsel %vm1936, %v6303, 0
      %v7211 = vsel %vm1936, %v6304, 0
      %v7214 = vsel %vm1936, %v6305, 0
      %v7217 = vsel %vm1936, %v6306, 0
      %v7220 = vsel %vm1936, %v6307, 0
      %v7223 = vsel %vm1936, %v6308, 0
      %v7226 = vsel %vm1936, %v6309, 0
      %v7229 = vsel %vm1936, %v6310, 0
      %v7232 = vsel %vm1936, %v6311, 0
      %v7235 = vsel %vm1936, %v6312, 0
      %v7238 = vsel %vm1936, %v6313, 0
      %v7241 = vsel %vm1936, %v6314, 0
      %v7244 = vsel %vm1936, %v6315, 0
      %v7247 = vsel %vm1936, %v6316, 0
      %v7250 = vsel %vm1936, %v6317, 0
      %v7253 = vsel %vm1936, %v6318, 0
      %v7256 = vsel %vm1936, %v6319, 0
      %v7259 = vsel %vm1936, %v6320, 0
      %v7262 = vsel %vm1936, %v6321, 0
      %v7265 = vsel %vm1936, %v6322, 0
      %v7268 = vsel %vm1936, %v6323, 0
      %v7271 = vsel %vm1936, %v6324, 0
      %v7274 = vsel %vm1936, %v6325, 0
      %7276 = vmatpush.msra.mxu0 %v6522
      %7277 = vmatpush.msra.mxu0 %v6521
      %7278 = vmatpush.msra.mxu0 %v6520
      %7279 = vmatpush.msra.mxu0 %v6519
      %7280 = vmatpush.msra.mxu0 %v6518
      %7281 = vmatpush.msra.mxu0 %v6517
      %7282 = vmatpush.msra.mxu0 %v6516
      %7283 = vmatpush.msra.mxu0 %v6515
      %7284 = vmatpush.msra.mxu0 %v6514
      %7285 = vmatpush.msra.mxu0 %v6513
      %7286 = vmatpush.msra.mxu0 %v6512
      %7287 = vmatpush.msra.mxu0 %v6511
      %7288 = vmatpush.msra.mxu0 %v6510
      %7289 = vmatpush.msra.mxu0 %v6509
      %7290 = vmatpush.msra.mxu0 %v6508
      %7291 = vmatpush.msra.mxu0 %v6507
      %7292 = vmatmul.f32.gmra.mxu0 %v6470
      %v7293 = vpop.f32.mrf.mxu0
      %v7294 = vadd.f32 %v7061, %v7293
      %7295 = vmatmul.f32.gmra.mxu0 %v6471
      %v7296 = vpop.f32.mrf.mxu0
      %v7297 = vadd.f32 %v7064, %v7296
      %7298 = vmatmul.f32.gmra.mxu0 %v6472
      %v7299 = vpop.f32.mrf.mxu0
      %v7300 = vadd.f32 %v7067, %v7299
      %7301 = vmatmul.f32.gmra.mxu0 %v6473
      %v7302 = vpop.f32.mrf.mxu0
      %v7303 = vadd.f32 %v7070, %v7302
      %7304 = vmatmul.f32.gmra.mxu0 %v6474
      %v7305 = vpop.f32.mrf.mxu0
      %v7306 = vadd.f32 %v7073, %v7305
      %7307 = vmatmul.f32.gmra.mxu0 %v6475
      %v7308 = vpop.f32.mrf.mxu0
      %v7309 = vadd.f32 %v7076, %v7308
      %7310 = vmatmul.f32.gmra.mxu0 %v6476
      %v7311 = vpop.f32.mrf.mxu0
      %v7312 = vadd.f32 %v7079, %v7311
      %7313 = vmatmul.f32.gmra.mxu0 %v6477
      %v7314 = vpop.f32.mrf.mxu0
      %v7315 = vadd.f32 %v7082, %v7314
      %7316 = vmatmul.f32.gmra.mxu0 %v6478
      %v7317 = vpop.f32.mrf.mxu0
      %v7318 = vadd.f32 %v7085, %v7317
      %7319 = vmatmul.f32.gmra.mxu0 %v6479
      %v7320 = vpop.f32.mrf.mxu0
      %v7321 = vadd.f32 %v7088, %v7320
      %7322 = vmatmul.f32.gmra.mxu0 %v6480
      %v7323 = vpop.f32.mrf.mxu0
      %v7324 = vadd.f32 %v7091, %v7323
      %7325 = vmatmul.f32.gmra.mxu0 %v6481
      %v7326 = vpop.f32.mrf.mxu0
      %v7327 = vadd.f32 %v7094, %v7326
      %7328 = vmatmul.f32.gmra.mxu0 %v6482
      %v7329 = vpop.f32.mrf.mxu0
      %v7330 = vadd.f32 %v7097, %v7329
      %7331 = vmatmul.f32.gmra.mxu0 %v6483
      %v7332 = vpop.f32.mrf.mxu0
      %v7333 = vadd.f32 %v7100, %v7332
      %7334 = vmatmul.f32.gmra.mxu0 %v6484
      %v7335 = vpop.f32.mrf.mxu0
      %v7336 = vadd.f32 %v7103, %v7335
      %7337 = vmatmul.f32.gmra.mxu0 %v6485
      %v7338 = vpop.f32.mrf.mxu0
      %v7339 = vadd.f32 %v7106, %v7338
      %7340 = vmatmul.f32.gmra.mxu0 %v6486
      %v7341 = vpop.f32.mrf.mxu0
      %v7342 = vadd.f32 %v7109, %v7341
      %7343 = vmatmul.f32.gmra.mxu0 %v6487
      %v7344 = vpop.f32.mrf.mxu0
      %v7345 = vadd.f32 %v7112, %v7344
      %7346 = vmatmul.f32.gmra.mxu0 %v6488
      %v7347 = vpop.f32.mrf.mxu0
      %v7348 = vadd.f32 %v7115, %v7347
      %7349 = vmatmul.f32.gmra.mxu0 %v6489
      %v7350 = vpop.f32.mrf.mxu0
      %v7351 = vadd.f32 %v7118, %v7350
      %7352 = vmatmul.f32.gmra.mxu0 %v6490
      %v7353 = vpop.f32.mrf.mxu0
      %v7354 = vadd.f32 %v7121, %v7353
      %7355 = vmatmul.f32.gmra.mxu0 %v6491
      %v7356 = vpop.f32.mrf.mxu0
      %v7357 = vadd.f32 %v7124, %v7356
      %7358 = vmatmul.f32.gmra.mxu0 %v6492
      %v7359 = vpop.f32.mrf.mxu0
      %v7360 = vadd.f32 %v7127, %v7359
      %7361 = vmatmul.f32.gmra.mxu0 %v6493
      %v7362 = vpop.f32.mrf.mxu0
      %v7363 = vadd.f32 %v7130, %v7362
      %7364 = vmatmul.f32.gmra.mxu0 %v6494
      %v7365 = vpop.f32.mrf.mxu0
      %v7366 = vadd.f32 %v7133, %v7365
      %7367 = vmatmul.f32.gmra.mxu0 %v6495
      %v7368 = vpop.f32.mrf.mxu0
      %v7369 = vadd.f32 %v7136, %v7368
      %7370 = vmatmul.f32.gmra.mxu0 %v6496
      %v7371 = vpop.f32.mrf.mxu0
      %v7372 = vadd.f32 %v7139, %v7371
      %7373 = vmatmul.f32.gmra.mxu0 %v6497
      %v7374 = vpop.f32.mrf.mxu0
      %v7375 = vadd.f32 %v7142, %v7374
      %7376 = vmatmul.f32.gmra.mxu0 %v6498
      %v7377 = vpop.f32.mrf.mxu0
      %v7378 = vadd.f32 %v7145, %v7377
      %7379 = vmatmul.f32.gmra.mxu0 %v6499
      %v7380 = vpop.f32.mrf.mxu0
      %v7381 = vadd.f32 %v7148, %v7380
      %7382 = vmatmul.f32.gmra.mxu0 %v6500
      %v7383 = vpop.f32.mrf.mxu0
      %v7384 = vadd.f32 %v7151, %v7383
      %7385 = vmatmul.f32.gmra.mxu0 %v6501
      %v7386 = vpop.f32.mrf.mxu0
      %v7387 = vadd.f32 %v7154, %v7386
      %7388 = vmatmul.f32.gmra.mxu0 %v6502
      %v7389 = vpop.f32.mrf.mxu0
      %v7390 = vadd.f32 %v7157, %v7389
      %7391 = vmatmul.f32.gmra.mxu0 %v6503
      %v7392 = vpop.f32.mrf.mxu0
      %v7393 = vadd.f32 %v7160, %v7392
      %7394 = vmatmul.f32.gmra.mxu0 %v6504
      %v7395 = vpop.f32.mrf.mxu0
      %v7396 = vadd.f32 %v7163, %v7395
      %7397 = vmatmul.f32.gmra.mxu0 %v6505
      %v7398 = vpop.f32.mrf.mxu0
      %v7399 = vadd.f32 %v7166, %v7398
      %7400 = vdwg.mxu0
      %7401 = vmatpush.msra.mxu0 0.0
      %7402 = vmatpush.msra.mxu0 0.0
      %7403 = vmatpush.msra.mxu0 0.0
      %7404 = vmatpush.msra.mxu0 0.0
      %7405 = vmatpush.msra.mxu0 0.0
      %7406 = vmatpush.msra.mxu0 0.0
      %7407 = vmatpush.msra.mxu0 0.0
      %7408 = vmatpush.msra.mxu0 0.0
      %7409 = vmatpush.msra.mxu0 %v6530
      %7410 = vmatpush.msra.mxu0 %v6529
      %7411 = vmatpush.msra.mxu0 %v6528
      %7412 = vmatpush.msra.mxu0 %v6527
      %7413 = vmatpush.msra.mxu0 %v6526
      %7414 = vmatpush.msra.mxu0 %v6525
      %7415 = vmatpush.msra.mxu0 %v6524
      %7416 = vmatpush.msra.mxu0 %v6523
      %7417 = vmatmul.f32.gmra.mxu0 %v7169
      %v7418 = vpop.f32.mrf.mxu0
      %v7419 = vadd.f32 %v7294, %v7418
      %7420 = vmatmul.f32.gmra.mxu0 %v7172
      %v7421 = vpop.f32.mrf.mxu0
      %v7422 = vadd.f32 %v7297, %v7421
      %7423 = vmatmul.f32.gmra.mxu0 %v7175
      %v7424 = vpop.f32.mrf.mxu0
      %v7425 = vadd.f32 %v7300, %v7424
      %7426 = vmatmul.f32.gmra.mxu0 %v7178
      %v7427 = vpop.f32.mrf.mxu0
      %v7428 = vadd.f32 %v7303, %v7427
      %7429 = vmatmul.f32.gmra.mxu0 %v7181
      %v7430 = vpop.f32.mrf.mxu0
      %v7431 = vadd.f32 %v7306, %v7430
      %7432 = vmatmul.f32.gmra.mxu0 %v7184
      %v7433 = vpop.f32.mrf.mxu0
      %v7434 = vadd.f32 %v7309, %v7433
      %7435 = vmatmul.f32.gmra.mxu0 %v7187
      %v7436 = vpop.f32.mrf.mxu0
      %v7437 = vadd.f32 %v7312, %v7436
      %7438 = vmatmul.f32.gmra.mxu0 %v7190
      %v7439 = vpop.f32.mrf.mxu0
      %v7440 = vadd.f32 %v7315, %v7439
      %7441 = vmatmul.f32.gmra.mxu0 %v7193
      %v7442 = vpop.f32.mrf.mxu0
      %v7443 = vadd.f32 %v7318, %v7442
      %7444 = vmatmul.f32.gmra.mxu0 %v7196
      %v7445 = vpop.f32.mrf.mxu0
      %v7446 = vadd.f32 %v7321, %v7445
      %7447 = vmatmul.f32.gmra.mxu0 %v7199
      %v7448 = vpop.f32.mrf.mxu0
      %v7449 = vadd.f32 %v7324, %v7448
      %7450 = vmatmul.f32.gmra.mxu0 %v7202
      %v7451 = vpop.f32.mrf.mxu0
      %v7452 = vadd.f32 %v7327, %v7451
      %7453 = vmatmul.f32.gmra.mxu0 %v7205
      %v7454 = vpop.f32.mrf.mxu0
      %v7455 = vadd.f32 %v7330, %v7454
      %7456 = vmatmul.f32.gmra.mxu0 %v7208
      %v7457 = vpop.f32.mrf.mxu0
      %v7458 = vadd.f32 %v7333, %v7457
      %7459 = vmatmul.f32.gmra.mxu0 %v7211
      %v7460 = vpop.f32.mrf.mxu0
      %v7461 = vadd.f32 %v7336, %v7460
      %7462 = vmatmul.f32.gmra.mxu0 %v7214
      %v7463 = vpop.f32.mrf.mxu0
      %v7464 = vadd.f32 %v7339, %v7463
      %7465 = vmatmul.f32.gmra.mxu0 %v7217
      %v7466 = vpop.f32.mrf.mxu0
      %v7467 = vadd.f32 %v7342, %v7466
      %7468 = vmatmul.f32.gmra.mxu0 %v7220
      %v7469 = vpop.f32.mrf.mxu0
      %v7470 = vadd.f32 %v7345, %v7469
      %7471 = vmatmul.f32.gmra.mxu0 %v7223
      %v7472 = vpop.f32.mrf.mxu0
      %v7473 = vadd.f32 %v7348, %v7472
      %7474 = vmatmul.f32.gmra.mxu0 %v7226
      %v7475 = vpop.f32.mrf.mxu0
      %v7476 = vadd.f32 %v7351, %v7475
      %7477 = vmatmul.f32.gmra.mxu0 %v7229
      %v7478 = vpop.f32.mrf.mxu0
      %v7479 = vadd.f32 %v7354, %v7478
      %7480 = vmatmul.f32.gmra.mxu0 %v7232
      %v7481 = vpop.f32.mrf.mxu0
      %v7482 = vadd.f32 %v7357, %v7481
      %7483 = vmatmul.f32.gmra.mxu0 %v7235
      %v7484 = vpop.f32.mrf.mxu0
      %v7485 = vadd.f32 %v7360, %v7484
      %7486 = vmatmul.f32.gmra.mxu0 %v7238
      %v7487 = vpop.f32.mrf.mxu0
      %v7488 = vadd.f32 %v7363, %v7487
      %7489 = vmatmul.f32.gmra.mxu0 %v7241
      %v7490 = vpop.f32.mrf.mxu0
      %v7491 = vadd.f32 %v7366, %v7490
      %7492 = vmatmul.f32.gmra.mxu0 %v7244
      %v7493 = vpop.f32.mrf.mxu0
      %v7494 = vadd.f32 %v7369, %v7493
      %7495 = vmatmul.f32.gmra.mxu0 %v7247
      %v7496 = vpop.f32.mrf.mxu0
      %v7497 = vadd.f32 %v7372, %v7496
      %7498 = vmatmul.f32.gmra.mxu0 %v7250
      %v7499 = vpop.f32.mrf.mxu0
      %v7500 = vadd.f32 %v7375, %v7499
      %7501 = vmatmul.f32.gmra.mxu0 %v7253
      %v7502 = vpop.f32.mrf.mxu0
      %v7503 = vadd.f32 %v7378, %v7502
      %7504 = vmatmul.f32.gmra.mxu0 %v7256
      %v7505 = vpop.f32.mrf.mxu0
      %v7506 = vadd.f32 %v7381, %v7505
      %7507 = vmatmul.f32.gmra.mxu0 %v7259
      %v7508 = vpop.f32.mrf.mxu0
      %v7509 = vadd.f32 %v7384, %v7508
      %7510 = vmatmul.f32.gmra.mxu0 %v7262
      %v7511 = vpop.f32.mrf.mxu0
      %v7512 = vadd.f32 %v7387, %v7511
      %7513 = vmatmul.f32.gmra.mxu0 %v7265
      %v7514 = vpop.f32.mrf.mxu0
      %v7515 = vadd.f32 %v7390, %v7514
      %7516 = vmatmul.f32.gmra.mxu0 %v7268
      %v7517 = vpop.f32.mrf.mxu0
      %v7518 = vadd.f32 %v7393, %v7517
      %7519 = vmatmul.f32.gmra.mxu0 %v7271
      %v7520 = vpop.f32.mrf.mxu0
      %v7521 = vadd.f32 %v7396, %v7520
      %7522 = vmatmul.f32.gmra.mxu0 %v7274
      %v7523 = vpop.f32.mrf.mxu0
      %v7524 = vadd.f32 %v7399, %v7523
      %7525 = vdwg.mxu0
      %v7526 = vld [vmem:[#allocation2 + $0x24] sm:$0xff]
      %v7527 = vld [vmem:[#allocation2 + $0x2c] sm:$0xff]
      %v7528 = vld [vmem:[#allocation2 + $0x34] sm:$0xff]
      %v7529 = vld [vmem:[#allocation2 + $0x3c] sm:$0xff]
      %v7530 = vld [vmem:[#allocation2 + $0x44] sm:$0xff]
      %v7531 = vld [vmem:[#allocation2 + $0x4c] sm:$0xff]
      %v7532 = vld [vmem:[#allocation2 + $0x54] sm:$0xff]
      %v7533 = vld [vmem:[#allocation2 + $0x5c] sm:$0xff]
      %v7534 = vld [vmem:[#allocation2 + $0x64] sm:$0xff]
      %v7535 = vld [vmem:[#allocation2 + $0x6c] sm:$0xff]
      %v7536 = vld [vmem:[#allocation2 + $0x74] sm:$0xff]
      %v7537 = vld [vmem:[#allocation2 + $0x7c] sm:$0xff]
      %v7538 = vld [vmem:[#allocation2 + $0x84] sm:$0xff]
      %v7539 = vld [vmem:[#allocation2 + $0x8c] sm:$0xff]
      %v7540 = vld [vmem:[#allocation2 + $0x94] sm:$0xff]
      %v7541 = vld [vmem:[#allocation2 + $0x9c] sm:$0xff]
      %v7542 = vld [vmem:[#allocation2 + $0xa4] sm:$0xff]
      %v7543 = vld [vmem:[#allocation2 + $0xac] sm:$0xff]
      %v7544 = vld [vmem:[#allocation2 + $0xb4] sm:$0xff]
      %v7545 = vld [vmem:[#allocation2 + $0xbc] sm:$0xff]
      %v7546 = vld [vmem:[#allocation2 + $0xc4] sm:$0xff]
      %v7547 = vld [vmem:[#allocation2 + $0xcc] sm:$0xff]
      %v7548 = vld [vmem:[#allocation2 + $0xd4] sm:$0xff]
      %v7549 = vld [vmem:[#allocation2 + $0xdc] sm:$0xff]
      %v7550 = vld [vmem:[#allocation2 + $0xe4] sm:$0xff]
      %v7551 = vld [vmem:[#allocation2 + $0xec] sm:$0xff]
      %v7552 = vld [vmem:[#allocation2 + $0xf4] sm:$0xff]
      %v7553 = vld [vmem:[#allocation2 + $0xfc] sm:$0xff]
      %v7554 = vld [vmem:[#allocation2 + $0x104] sm:$0xff]
      %v7555 = vld [vmem:[#allocation2 + $0x10c] sm:$0xff]
      %v7556 = vld [vmem:[#allocation2 + $0x114] sm:$0xff]
      %v7557 = vld [vmem:[#allocation2 + $0x11c] sm:$0xff]
      %v7558 = vld [vmem:[#allocation2 + $0x124] sm:$0xff]
      %v7559 = vld [vmem:[#allocation2 + $0x12c] sm:$0xff]
      %v7560 = vld [vmem:[#allocation2 + $0x134] sm:$0xff]
      %v7561 = vld [vmem:[#allocation2 + $0x13c] sm:$0xff]
      %v7562 = vld [vmem:[#allocation2 + $0x25] sm:$0xff]
      %v7563 = vld [vmem:[#allocation2 + $0x2d] sm:$0xff]
      %v7564 = vld [vmem:[#allocation2 + $0x35] sm:$0xff]
      %v7565 = vld [vmem:[#allocation2 + $0x3d] sm:$0xff]
      %v7566 = vld [vmem:[#allocation2 + $0x45] sm:$0xff]
      %v7567 = vld [vmem:[#allocation2 + $0x4d] sm:$0xff]
      %v7568 = vld [vmem:[#allocation2 + $0x55] sm:$0xff]
      %v7569 = vld [vmem:[#allocation2 + $0x5d] sm:$0xff]
      %v7570 = vld [vmem:[#allocation2 + $0x65] sm:$0xff]
      %v7571 = vld [vmem:[#allocation2 + $0x6d] sm:$0xff]
      %v7572 = vld [vmem:[#allocation2 + $0x75] sm:$0xff]
      %v7573 = vld [vmem:[#allocation2 + $0x7d] sm:$0xff]
      %v7574 = vld [vmem:[#allocation2 + $0x85] sm:$0xff]
      %v7575 = vld [vmem:[#allocation2 + $0x8d] sm:$0xff]
      %v7576 = vld [vmem:[#allocation2 + $0x95] sm:$0xff]
      %v7577 = vld [vmem:[#allocation2 + $0x9d] sm:$0xff]
      %v7578 = vld [vmem:[#allocation2 + $0xa5] sm:$0xff]
      %v7579 = vld [vmem:[#allocation2 + $0xad] sm:$0xff]
      %v7580 = vld [vmem:[#allocation2 + $0xb5] sm:$0xff]
      %v7581 = vld [vmem:[#allocation2 + $0xbd] sm:$0xff]
      %v7582 = vld [vmem:[#allocation2 + $0xc5] sm:$0xff]
      %v7583 = vld [vmem:[#allocation2 + $0xcd] sm:$0xff]
      %v7584 = vld [vmem:[#allocation2 + $0xd5] sm:$0xff]
      %v7585 = vld [vmem:[#allocation2 + $0xdd] sm:$0xff]
      %v7586 = vld [vmem:[#allocation2 + $0xe5] sm:$0xff]
      %v7587 = vld [vmem:[#allocation2 + $0xed] sm:$0xff]
      %v7588 = vld [vmem:[#allocation2 + $0xf5] sm:$0xff]
      %v7589 = vld [vmem:[#allocation2 + $0xfd] sm:$0xff]
      %v7590 = vld [vmem:[#allocation2 + $0x105] sm:$0xff]
      %v7591 = vld [vmem:[#allocation2 + $0x10d] sm:$0xff]
      %v7592 = vld [vmem:[#allocation2 + $0x115] sm:$0xff]
      %v7593 = vld [vmem:[#allocation2 + $0x11d] sm:$0xff]
      %v7594 = vld [vmem:[#allocation2 + $0x125] sm:$0xff]
      %v7595 = vld [vmem:[#allocation2 + $0x12d] sm:$0xff]
      %v7596 = vld [vmem:[#allocation2 + $0x135] sm:$0xff]
      %v7597 = vld [vmem:[#allocation2 + $0x13d] sm:$0xff]
      %v7598 = vld [vmem:[#allocation2 + $0x26] sm:$0xff]
      %v7599 = vld [vmem:[#allocation2 + $0x2e] sm:$0xff]
      %v7600 = vld [vmem:[#allocation2 + $0x36] sm:$0xff]
      %v7601 = vld [vmem:[#allocation2 + $0x3e] sm:$0xff]
      %v7602 = vld [vmem:[#allocation2 + $0x46] sm:$0xff]
      %v7603 = vld [vmem:[#allocation2 + $0x4e] sm:$0xff]
      %v7604 = vld [vmem:[#allocation2 + $0x56] sm:$0xff]
      %v7605 = vld [vmem:[#allocation2 + $0x5e] sm:$0xff]
      %v7606 = vld [vmem:[#allocation2 + $0x66] sm:$0xff]
      %v7607 = vld [vmem:[#allocation2 + $0x6e] sm:$0xff]
      %v7608 = vld [vmem:[#allocation2 + $0x76] sm:$0xff]
      %v7609 = vld [vmem:[#allocation2 + $0x7e] sm:$0xff]
      %v7610 = vld [vmem:[#allocation2 + $0x86] sm:$0xff]
      %v7611 = vld [vmem:[#allocation2 + $0x8e] sm:$0xff]
      %v7612 = vld [vmem:[#allocation2 + $0x96] sm:$0xff]
      %v7613 = vld [vmem:[#allocation2 + $0x9e] sm:$0xff]
      %v7614 = vld [vmem:[#allocation2 + $0xa6] sm:$0xff]
      %v7615 = vld [vmem:[#allocation2 + $0xae] sm:$0xff]
      %v7616 = vld [vmem:[#allocation2 + $0xb6] sm:$0xff]
      %v7617 = vld [vmem:[#allocation2 + $0xbe] sm:$0xff]
      %v7618 = vld [vmem:[#allocation2 + $0xc6] sm:$0xff]
      %v7619 = vld [vmem:[#allocation2 + $0xce] sm:$0xff]
      %v7620 = vld [vmem:[#allocation2 + $0xd6] sm:$0xff]
      %v7621 = vld [vmem:[#allocation2 + $0xde] sm:$0xff]
      %v7622 = vld [vmem:[#allocation2 + $0xe6] sm:$0xff]
      %v7623 = vld [vmem:[#allocation2 + $0xee] sm:$0xff]
      %v7624 = vld [vmem:[#allocation2 + $0xf6] sm:$0xff]
      %v7625 = vld [vmem:[#allocation2 + $0xfe] sm:$0xff]
      %v7626 = vld [vmem:[#allocation2 + $0x106] sm:$0xff]
      %v7627 = vld [vmem:[#allocation2 + $0x10e] sm:$0xff]
      %v7628 = vld [vmem:[#allocation2 + $0x116] sm:$0xff]
      %v7629 = vld [vmem:[#allocation2 + $0x11e] sm:$0xff]
      %v7630 = vld [vmem:[#allocation2 + $0x126] sm:$0xff]
      %v7631 = vld [vmem:[#allocation2 + $0x12e] sm:$0xff]
      %v7632 = vld [vmem:[#allocation2 + $0x136] sm:$0xff]
      %v7633 = vld [vmem:[#allocation2 + $0x13e] sm:$0xff]
      %7670 = vrot.lane.b32.xlu0 %v7562, 64
      %v7671 = vpop.permute.xlu0 %7670
      %7672 = vrot.lane.b32.xlu0 %v7563, 64
      %v7673 = vpop.permute.xlu0 %7672
      %7674 = vrot.lane.b32.xlu0 %v7564, 64
      %v7675 = vpop.permute.xlu0 %7674
      %7676 = vrot.lane.b32.xlu0 %v7565, 64
      %v7677 = vpop.permute.xlu0 %7676
      %7678 = vrot.lane.b32.xlu0 %v7566, 64
      %v7679 = vpop.permute.xlu0 %7678
      %7680 = vrot.lane.b32.xlu0 %v7567, 64
      %v7681 = vpop.permute.xlu0 %7680
      %7682 = vrot.lane.b32.xlu0 %v7568, 64
      %v7683 = vpop.permute.xlu0 %7682
      %7684 = vrot.lane.b32.xlu0 %v7569, 64
      %v7685 = vpop.permute.xlu0 %7684
      %7686 = vrot.lane.b32.xlu0 %v7570, 64
      %v7687 = vpop.permute.xlu0 %7686
      %7688 = vrot.lane.b32.xlu0 %v7571, 64
      %v7689 = vpop.permute.xlu0 %7688
      %7690 = vrot.lane.b32.xlu0 %v7572, 64
      %v7691 = vpop.permute.xlu0 %7690
      %7692 = vrot.lane.b32.xlu0 %v7573, 64
      %v7693 = vpop.permute.xlu0 %7692
      %7694 = vrot.lane.b32.xlu0 %v7574, 64
      %v7695 = vpop.permute.xlu0 %7694
      %7696 = vrot.lane.b32.xlu0 %v7575, 64
      %v7697 = vpop.permute.xlu0 %7696
      %7698 = vrot.lane.b32.xlu0 %v7576, 64
      %v7699 = vpop.permute.xlu0 %7698
      %7700 = vrot.lane.b32.xlu0 %v7577, 64
      %v7701 = vpop.permute.xlu0 %7700
      %7702 = vrot.lane.b32.xlu0 %v7578, 64
      %v7703 = vpop.permute.xlu0 %7702
      %7704 = vrot.lane.b32.xlu0 %v7579, 64
      %v7705 = vpop.permute.xlu0 %7704
      %7706 = vrot.lane.b32.xlu0 %v7580, 64
      %v7707 = vpop.permute.xlu0 %7706
      %7708 = vrot.lane.b32.xlu0 %v7581, 64
      %v7709 = vpop.permute.xlu0 %7708
      %7710 = vrot.lane.b32.xlu0 %v7582, 64
      %v7711 = vpop.permute.xlu0 %7710
      %7712 = vrot.lane.b32.xlu0 %v7583, 64
      %v7713 = vpop.permute.xlu0 %7712
      %7714 = vrot.lane.b32.xlu0 %v7584, 64
      %v7715 = vpop.permute.xlu0 %7714
      %7716 = vrot.lane.b32.xlu0 %v7585, 64
      %v7717 = vpop.permute.xlu0 %7716
      %7718 = vrot.lane.b32.xlu0 %v7586, 64
      %v7719 = vpop.permute.xlu0 %7718
      %7720 = vrot.lane.b32.xlu0 %v7587, 64
      %v7721 = vpop.permute.xlu0 %7720
      %7722 = vrot.lane.b32.xlu0 %v7588, 64
      %v7723 = vpop.permute.xlu0 %7722
      %7724 = vrot.lane.b32.xlu0 %v7589, 64
      %v7725 = vpop.permute.xlu0 %7724
      %7726 = vrot.lane.b32.xlu0 %v7590, 64
      %v7727 = vpop.permute.xlu0 %7726
      %7728 = vrot.lane.b32.xlu0 %v7591, 64
      %v7729 = vpop.permute.xlu0 %7728
      %7730 = vrot.lane.b32.xlu0 %v7592, 64
      %v7731 = vpop.permute.xlu0 %7730
      %7732 = vrot.lane.b32.xlu0 %v7593, 64
      %v7733 = vpop.permute.xlu0 %7732
      %7734 = vrot.lane.b32.xlu0 %v7594, 64
      %v7735 = vpop.permute.xlu0 %7734
      %7736 = vrot.lane.b32.xlu0 %v7595, 64
      %v7737 = vpop.permute.xlu0 %7736
      %7738 = vrot.lane.b32.xlu0 %v7596, 64
      %v7739 = vpop.permute.xlu0 %7738
      %7740 = vrot.lane.b32.xlu0 %v7597, 64
      %v7741 = vpop.permute.xlu0 %7740
      %v7778 = vsel %vm1936, %v7526, %v7671
      %v7779 = vsel %vm1936, %v7527, %v7673
      %v7780 = vsel %vm1936, %v7528, %v7675
      %v7781 = vsel %vm1936, %v7529, %v7677
      %v7782 = vsel %vm1936, %v7530, %v7679
      %v7783 = vsel %vm1936, %v7531, %v7681
      %v7784 = vsel %vm1936, %v7532, %v7683
      %v7785 = vsel %vm1936, %v7533, %v7685
      %v7786 = vsel %vm1936, %v7534, %v7687
      %v7787 = vsel %vm1936, %v7535, %v7689
      %v7788 = vsel %vm1936, %v7536, %v7691
      %v7789 = vsel %vm1936, %v7537, %v7693
      %v7790 = vsel %vm1936, %v7538, %v7695
      %v7791 = vsel %vm1936, %v7539, %v7697
      %v7792 = vsel %vm1936, %v7540, %v7699
      %v7793 = vsel %vm1936, %v7541, %v7701
      %v7794 = vsel %vm1936, %v7542, %v7703
      %v7795 = vsel %vm1936, %v7543, %v7705
      %v7796 = vsel %vm1936, %v7544, %v7707
      %v7797 = vsel %vm1936, %v7545, %v7709
      %v7798 = vsel %vm1936, %v7546, %v7711
      %v7799 = vsel %vm1936, %v7547, %v7713
      %v7800 = vsel %vm1936, %v7548, %v7715
      %v7801 = vsel %vm1936, %v7549, %v7717
      %v7802 = vsel %vm1936, %v7550, %v7719
      %v7803 = vsel %vm1936, %v7551, %v7721
      %v7804 = vsel %vm1936, %v7552, %v7723
      %v7805 = vsel %vm1936, %v7553, %v7725
      %v7806 = vsel %vm1936, %v7554, %v7727
      %v7807 = vsel %vm1936, %v7555, %v7729
      %v7808 = vsel %vm1936, %v7556, %v7731
      %v7809 = vsel %vm1936, %v7557, %v7733
      %v7810 = vsel %vm1936, %v7558, %v7735
      %v7811 = vsel %vm1936, %v7559, %v7737
      %v7812 = vsel %vm1936, %v7560, %v7739
      %v7813 = vsel %vm1936, %v7561, %v7741
      %s7814 = scalar_lea.vmem %s2, 1536
      %v7815 = vld [vmem:[%s7814] sm:$0xff]
      %v7816 = vld [vmem:[%s7814 + $0x8] sm:$0xff]
      %v7817 = vld [vmem:[%s7814 + $0x10] sm:$0xff]
      %v7818 = vld [vmem:[%s7814 + $0x18] sm:$0xff]
      %v7819 = vld [vmem:[%s7814 + $0x20] sm:$0xff]
      %v7820 = vld [vmem:[%s7814 + $0x28] sm:$0xff]
      %v7821 = vld [vmem:[%s7814 + $0x30] sm:$0xff]
      %v7822 = vld [vmem:[%s7814 + $0x38] sm:$0xff]
      %v7823 = vld [vmem:[%s7814 + $0x40] sm:$0xff]
      %v7824 = vld [vmem:[%s7814 + $0x48] sm:$0xff]
      %v7825 = vld [vmem:[%s7814 + $0x50] sm:$0xff]
      %v7826 = vld [vmem:[%s7814 + $0x58] sm:$0xff]
      %v7827 = vld [vmem:[%s7814 + $0x60] sm:$0xff]
      %v7828 = vld [vmem:[%s7814 + $0x68] sm:$0xff]
      %v7829 = vld [vmem:[%s7814 + $0x70] sm:$0xff]
      %v7830 = vld [vmem:[%s7814 + $0x78] sm:$0xff]
      %v7831 = vld [vmem:[%s7814 + $0x80] sm:$0xff]
      %v7832 = vld [vmem:[%s7814 + $0x88] sm:$0xff]
      %v7833 = vld [vmem:[%s7814 + $0x90] sm:$0xff]
      %v7834 = vld [vmem:[%s7814 + $0x98] sm:$0xff]
      %v7835 = vld [vmem:[%s7814 + $0xa0] sm:$0xff]
      %v7836 = vld [vmem:[%s7814 + $0xa8] sm:$0xff]
      %v7837 = vld [vmem:[%s7814 + $0xb0] sm:$0xff]
      %v7838 = vld [vmem:[%s7814 + $0xb8] sm:$0xff]
      %v7840 = vsel %vm1936, %v7598, 0
      %v7843 = vsel %vm1936, %v7599, 0
      %v7846 = vsel %vm1936, %v7600, 0
      %v7849 = vsel %vm1936, %v7601, 0
      %v7852 = vsel %vm1936, %v7602, 0
      %v7855 = vsel %vm1936, %v7603, 0
      %v7858 = vsel %vm1936, %v7604, 0
      %v7861 = vsel %vm1936, %v7605, 0
      %v7864 = vsel %vm1936, %v7606, 0
      %v7867 = vsel %vm1936, %v7607, 0
      %v7870 = vsel %vm1936, %v7608, 0
      %v7873 = vsel %vm1936, %v7609, 0
      %v7876 = vsel %vm1936, %v7610, 0
      %v7879 = vsel %vm1936, %v7611, 0
      %v7882 = vsel %vm1936, %v7612, 0
      %v7885 = vsel %vm1936, %v7613, 0
      %v7888 = vsel %vm1936, %v7614, 0
      %v7891 = vsel %vm1936, %v7615, 0
      %v7894 = vsel %vm1936, %v7616, 0
      %v7897 = vsel %vm1936, %v7617, 0
      %v7900 = vsel %vm1936, %v7618, 0
      %v7903 = vsel %vm1936, %v7619, 0
      %v7906 = vsel %vm1936, %v7620, 0
      %v7909 = vsel %vm1936, %v7621, 0
      %v7912 = vsel %vm1936, %v7622, 0
      %v7915 = vsel %vm1936, %v7623, 0
      %v7918 = vsel %vm1936, %v7624, 0
      %v7921 = vsel %vm1936, %v7625, 0
      %v7924 = vsel %vm1936, %v7626, 0
      %v7927 = vsel %vm1936, %v7627, 0
      %v7930 = vsel %vm1936, %v7628, 0
      %v7933 = vsel %vm1936, %v7629, 0
      %v7936 = vsel %vm1936, %v7630, 0
      %v7939 = vsel %vm1936, %v7631, 0
      %v7942 = vsel %vm1936, %v7632, 0
      %v7945 = vsel %vm1936, %v7633, 0
      %7947 = vmatpush.msra.mxu0 %v7830
      %7948 = vmatpush.msra.mxu0 %v7829
      %7949 = vmatpush.msra.mxu0 %v7828
      %7950 = vmatpush.msra.mxu0 %v7827
      %7951 = vmatpush.msra.mxu0 %v7826
      %7952 = vmatpush.msra.mxu0 %v7825
      %7953 = vmatpush.msra.mxu0 %v7824
      %7954 = vmatpush.msra.mxu0 %v7823
      %7955 = vmatpush.msra.mxu0 %v7822
      %7956 = vmatpush.msra.mxu0 %v7821
      %7957 = vmatpush.msra.mxu0 %v7820
      %7958 = vmatpush.msra.mxu0 %v7819
      %7959 = vmatpush.msra.mxu0 %v7818
      %7960 = vmatpush.msra.mxu0 %v7817
      %7961 = vmatpush.msra.mxu0 %v7816
      %7962 = vmatpush.msra.mxu0 %v7815
      %7963 = vmatmul.f32.gmra.mxu0 %v7778
      %v7964 = vpop.f32.mrf.mxu0
      %v7965 = vadd.f32 0.0, %v7964
      %7966 = vmatmul.f32.gmra.mxu0 %v7779
      %v7967 = vpop.f32.mrf.mxu0
      %v7968 = vadd.f32 0.0, %v7967
      %7969 = vmatmul.f32.gmra.mxu0 %v7780
      %v7970 = vpop.f32.mrf.mxu0
      %v7971 = vadd.f32 0.0, %v7970
      %7972 = vmatmul.f32.gmra.mxu0 %v7781
      %v7973 = vpop.f32.mrf.mxu0
      %v7974 = vadd.f32 0.0, %v7973
      %7975 = vmatmul.f32.gmra.mxu0 %v7782
      %v7976 = vpop.f32.mrf.mxu0
      %v7977 = vadd.f32 0.0, %v7976
      %7978 = vmatmul.f32.gmra.mxu0 %v7783
      %v7979 = vpop.f32.mrf.mxu0
      %v7980 = vadd.f32 0.0, %v7979
      %7981 = vmatmul.f32.gmra.mxu0 %v7784
      %v7982 = vpop.f32.mrf.mxu0
      %v7983 = vadd.f32 0.0, %v7982
      %7984 = vmatmul.f32.gmra.mxu0 %v7785
      %v7985 = vpop.f32.mrf.mxu0
      %v7986 = vadd.f32 0.0, %v7985
      %7987 = vmatmul.f32.gmra.mxu0 %v7786
      %v7988 = vpop.f32.mrf.mxu0
      %v7989 = vadd.f32 0.0, %v7988
      %7990 = vmatmul.f32.gmra.mxu0 %v7787
      %v7991 = vpop.f32.mrf.mxu0
      %v7992 = vadd.f32 0.0, %v7991
      %7993 = vmatmul.f32.gmra.mxu0 %v7788
      %v7994 = vpop.f32.mrf.mxu0
      %v7995 = vadd.f32 0.0, %v7994
      %7996 = vmatmul.f32.gmra.mxu0 %v7789
      %v7997 = vpop.f32.mrf.mxu0
      %v7998 = vadd.f32 0.0, %v7997
      %7999 = vmatmul.f32.gmra.mxu0 %v7790
      %v8000 = vpop.f32.mrf.mxu0
      %v8001 = vadd.f32 0.0, %v8000
      %8002 = vmatmul.f32.gmra.mxu0 %v7791
      %v8003 = vpop.f32.mrf.mxu0
      %v8004 = vadd.f32 0.0, %v8003
      %8005 = vmatmul.f32.gmra.mxu0 %v7792
      %v8006 = vpop.f32.mrf.mxu0
      %v8007 = vadd.f32 0.0, %v8006
      %8008 = vmatmul.f32.gmra.mxu0 %v7793
      %v8009 = vpop.f32.mrf.mxu0
      %v8010 = vadd.f32 0.0, %v8009
      %8011 = vmatmul.f32.gmra.mxu0 %v7794
      %v8012 = vpop.f32.mrf.mxu0
      %v8013 = vadd.f32 0.0, %v8012
      %8014 = vmatmul.f32.gmra.mxu0 %v7795
      %v8015 = vpop.f32.mrf.mxu0
      %v8016 = vadd.f32 0.0, %v8015
      %8017 = vmatmul.f32.gmra.mxu0 %v7796
      %v8018 = vpop.f32.mrf.mxu0
      %v8019 = vadd.f32 0.0, %v8018
      %8020 = vmatmul.f32.gmra.mxu0 %v7797
      %v8021 = vpop.f32.mrf.mxu0
      %v8022 = vadd.f32 0.0, %v8021
      %8023 = vmatmul.f32.gmra.mxu0 %v7798
      %v8024 = vpop.f32.mrf.mxu0
      %v8025 = vadd.f32 0.0, %v8024
      %8026 = vmatmul.f32.gmra.mxu0 %v7799
      %v8027 = vpop.f32.mrf.mxu0
      %v8028 = vadd.f32 0.0, %v8027
      %8029 = vmatmul.f32.gmra.mxu0 %v7800
      %v8030 = vpop.f32.mrf.mxu0
      %v8031 = vadd.f32 0.0, %v8030
      %8032 = vmatmul.f32.gmra.mxu0 %v7801
      %v8033 = vpop.f32.mrf.mxu0
      %v8034 = vadd.f32 0.0, %v8033
      %8035 = vmatmul.f32.gmra.mxu0 %v7802
      %v8036 = vpop.f32.mrf.mxu0
      %v8037 = vadd.f32 0.0, %v8036
      %8038 = vmatmul.f32.gmra.mxu0 %v7803
      %v8039 = vpop.f32.mrf.mxu0
      %v8040 = vadd.f32 0.0, %v8039
      %8041 = vmatmul.f32.gmra.mxu0 %v7804
      %v8042 = vpop.f32.mrf.mxu0
      %v8043 = vadd.f32 0.0, %v8042
      %8044 = vmatmul.f32.gmra.mxu0 %v7805
      %v8045 = vpop.f32.mrf.mxu0
      %v8046 = vadd.f32 0.0, %v8045
      %8047 = vmatmul.f32.gmra.mxu0 %v7806
      %v8048 = vpop.f32.mrf.mxu0
      %v8049 = vadd.f32 0.0, %v8048
      %8050 = vmatmul.f32.gmra.mxu0 %v7807
      %v8051 = vpop.f32.mrf.mxu0
      %v8052 = vadd.f32 0.0, %v8051
      %8053 = vmatmul.f32.gmra.mxu0 %v7808
      %v8054 = vpop.f32.mrf.mxu0
      %v8055 = vadd.f32 0.0, %v8054
      %8056 = vmatmul.f32.gmra.mxu0 %v7809
      %v8057 = vpop.f32.mrf.mxu0
      %v8058 = vadd.f32 0.0, %v8057
      %8059 = vmatmul.f32.gmra.mxu0 %v7810
      %v8060 = vpop.f32.mrf.mxu0
      %v8061 = vadd.f32 0.0, %v8060
      %8062 = vmatmul.f32.gmra.mxu0 %v7811
      %v8063 = vpop.f32.mrf.mxu0
      %v8064 = vadd.f32 0.0, %v8063
      %8065 = vmatmul.f32.gmra.mxu0 %v7812
      %v8066 = vpop.f32.mrf.mxu0
      %v8067 = vadd.f32 0.0, %v8066
      %8068 = vmatmul.f32.gmra.mxu0 %v7813
      %v8069 = vpop.f32.mrf.mxu0
      %v8070 = vadd.f32 0.0, %v8069
      %8071 = vdwg.mxu0
      %8072 = vmatpush.msra.mxu0 0.0
      %8073 = vmatpush.msra.mxu0 0.0
      %8074 = vmatpush.msra.mxu0 0.0
      %8075 = vmatpush.msra.mxu0 0.0
      %8076 = vmatpush.msra.mxu0 0.0
      %8077 = vmatpush.msra.mxu0 0.0
      %8078 = vmatpush.msra.mxu0 0.0
      %8079 = vmatpush.msra.mxu0 0.0
      %8080 = vmatpush.msra.mxu0 %v7838
      %8081 = vmatpush.msra.mxu0 %v7837
      %8082 = vmatpush.msra.mxu0 %v7836
      %8083 = vmatpush.msra.mxu0 %v7835
      %8084 = vmatpush.msra.mxu0 %v7834
      %8085 = vmatpush.msra.mxu0 %v7833
      %8086 = vmatpush.msra.mxu0 %v7832
      %8087 = vmatpush.msra.mxu0 %v7831
      %8088 = vmatmul.f32.gmra.mxu0 %v7840
      %v8089 = vpop.f32.mrf.mxu0
      %v8090 = vadd.f32 %v7965, %v8089
      %8091 = vmatmul.f32.gmra.mxu0 %v7843
      %v8092 = vpop.f32.mrf.mxu0
      %v8093 = vadd.f32 %v7968, %v8092
      %8094 = vmatmul.f32.gmra.mxu0 %v7846
      %v8095 = vpop.f32.mrf.mxu0
      %v8096 = vadd.f32 %v7971, %v8095
      %8097 = vmatmul.f32.gmra.mxu0 %v7849
      %v8098 = vpop.f32.mrf.mxu0
      %v8099 = vadd.f32 %v7974, %v8098
      %8100 = vmatmul.f32.gmra.mxu0 %v7852
      %v8101 = vpop.f32.mrf.mxu0
      %v8102 = vadd.f32 %v7977, %v8101
      %8103 = vmatmul.f32.gmra.mxu0 %v7855
      %v8104 = vpop.f32.mrf.mxu0
      %v8105 = vadd.f32 %v7980, %v8104
      %8106 = vmatmul.f32.gmra.mxu0 %v7858
      %v8107 = vpop.f32.mrf.mxu0
      %v8108 = vadd.f32 %v7983, %v8107
      %8109 = vmatmul.f32.gmra.mxu0 %v7861
      %v8110 = vpop.f32.mrf.mxu0
      %v8111 = vadd.f32 %v7986, %v8110
      %8112 = vmatmul.f32.gmra.mxu0 %v7864
      %v8113 = vpop.f32.mrf.mxu0
      %v8114 = vadd.f32 %v7989, %v8113
      %8115 = vmatmul.f32.gmra.mxu0 %v7867
      %v8116 = vpop.f32.mrf.mxu0
      %v8117 = vadd.f32 %v7992, %v8116
      %8118 = vmatmul.f32.gmra.mxu0 %v7870
      %v8119 = vpop.f32.mrf.mxu0
      %v8120 = vadd.f32 %v7995, %v8119
      %8121 = vmatmul.f32.gmra.mxu0 %v7873
      %v8122 = vpop.f32.mrf.mxu0
      %v8123 = vadd.f32 %v7998, %v8122
      %8124 = vmatmul.f32.gmra.mxu0 %v7876
      %v8125 = vpop.f32.mrf.mxu0
      %v8126 = vadd.f32 %v8001, %v8125
      %8127 = vmatmul.f32.gmra.mxu0 %v7879
      %v8128 = vpop.f32.mrf.mxu0
      %v8129 = vadd.f32 %v8004, %v8128
      %8130 = vmatmul.f32.gmra.mxu0 %v7882
      %v8131 = vpop.f32.mrf.mxu0
      %v8132 = vadd.f32 %v8007, %v8131
      %8133 = vmatmul.f32.gmra.mxu0 %v7885
      %v8134 = vpop.f32.mrf.mxu0
      %v8135 = vadd.f32 %v8010, %v8134
      %8136 = vmatmul.f32.gmra.mxu0 %v7888
      %v8137 = vpop.f32.mrf.mxu0
      %v8138 = vadd.f32 %v8013, %v8137
      %8139 = vmatmul.f32.gmra.mxu0 %v7891
      %v8140 = vpop.f32.mrf.mxu0
      %v8141 = vadd.f32 %v8016, %v8140
      %8142 = vmatmul.f32.gmra.mxu0 %v7894
      %v8143 = vpop.f32.mrf.mxu0
      %v8144 = vadd.f32 %v8019, %v8143
      %8145 = vmatmul.f32.gmra.mxu0 %v7897
      %v8146 = vpop.f32.mrf.mxu0
      %v8147 = vadd.f32 %v8022, %v8146
      %8148 = vmatmul.f32.gmra.mxu0 %v7900
      %v8149 = vpop.f32.mrf.mxu0
      %v8150 = vadd.f32 %v8025, %v8149
      %8151 = vmatmul.f32.gmra.mxu0 %v7903
      %v8152 = vpop.f32.mrf.mxu0
      %v8153 = vadd.f32 %v8028, %v8152
      %8154 = vmatmul.f32.gmra.mxu0 %v7906
      %v8155 = vpop.f32.mrf.mxu0
      %v8156 = vadd.f32 %v8031, %v8155
      %8157 = vmatmul.f32.gmra.mxu0 %v7909
      %v8158 = vpop.f32.mrf.mxu0
      %v8159 = vadd.f32 %v8034, %v8158
      %8160 = vmatmul.f32.gmra.mxu0 %v7912
      %v8161 = vpop.f32.mrf.mxu0
      %v8162 = vadd.f32 %v8037, %v8161
      %8163 = vmatmul.f32.gmra.mxu0 %v7915
      %v8164 = vpop.f32.mrf.mxu0
      %v8165 = vadd.f32 %v8040, %v8164
      %8166 = vmatmul.f32.gmra.mxu0 %v7918
      %v8167 = vpop.f32.mrf.mxu0
      %v8168 = vadd.f32 %v8043, %v8167
      %8169 = vmatmul.f32.gmra.mxu0 %v7921
      %v8170 = vpop.f32.mrf.mxu0
      %v8171 = vadd.f32 %v8046, %v8170
      %8172 = vmatmul.f32.gmra.mxu0 %v7924
      %v8173 = vpop.f32.mrf.mxu0
      %v8174 = vadd.f32 %v8049, %v8173
      %8175 = vmatmul.f32.gmra.mxu0 %v7927
      %v8176 = vpop.f32.mrf.mxu0
      %v8177 = vadd.f32 %v8052, %v8176
      %8178 = vmatmul.f32.gmra.mxu0 %v7930
      %v8179 = vpop.f32.mrf.mxu0
      %v8180 = vadd.f32 %v8055, %v8179
      %8181 = vmatmul.f32.gmra.mxu0 %v7933
      %v8182 = vpop.f32.mrf.mxu0
      %v8183 = vadd.f32 %v8058, %v8182
      %8184 = vmatmul.f32.gmra.mxu0 %v7936
      %v8185 = vpop.f32.mrf.mxu0
      %v8186 = vadd.f32 %v8061, %v8185
      %8187 = vmatmul.f32.gmra.mxu0 %v7939
      %v8188 = vpop.f32.mrf.mxu0
      %v8189 = vadd.f32 %v8064, %v8188
      %8190 = vmatmul.f32.gmra.mxu0 %v7942
      %v8191 = vpop.f32.mrf.mxu0
      %v8192 = vadd.f32 %v8067, %v8191
      %8193 = vmatmul.f32.gmra.mxu0 %v7945
      %v8194 = vpop.f32.mrf.mxu0
      %v8195 = vadd.f32 %v8070, %v8194
      %8196 = vdwg.mxu0
      %v8197 = vadd.f32 %v7419, %v8090
      %v8198 = vadd.f32 %v7422, %v8093
      %v8199 = vadd.f32 %v7425, %v8096
      %v8200 = vadd.f32 %v7428, %v8099
      %v8201 = vadd.f32 %v7431, %v8102
      %v8202 = vadd.f32 %v7434, %v8105
      %v8203 = vadd.f32 %v7437, %v8108
      %v8204 = vadd.f32 %v7440, %v8111
      %v8205 = vadd.f32 %v7443, %v8114
      %v8206 = vadd.f32 %v7446, %v8117
      %v8207 = vadd.f32 %v7449, %v8120
      %v8208 = vadd.f32 %v7452, %v8123
      %v8209 = vadd.f32 %v7455, %v8126
      %v8210 = vadd.f32 %v7458, %v8129
      %v8211 = vadd.f32 %v7461, %v8132
      %v8212 = vadd.f32 %v7464, %v8135
      %v8213 = vadd.f32 %v7467, %v8138
      %v8214 = vadd.f32 %v7470, %v8141
      %v8215 = vadd.f32 %v7473, %v8144
      %v8216 = vadd.f32 %v7476, %v8147
      %v8217 = vadd.f32 %v7479, %v8150
      %v8218 = vadd.f32 %v7482, %v8153
      %v8219 = vadd.f32 %v7485, %v8156
      %v8220 = vadd.f32 %v7488, %v8159
      %v8221 = vadd.f32 %v7491, %v8162
      %v8222 = vadd.f32 %v7494, %v8165
      %v8223 = vadd.f32 %v7497, %v8168
      %v8224 = vadd.f32 %v7500, %v8171
      %v8225 = vadd.f32 %v7503, %v8174
      %v8226 = vadd.f32 %v7506, %v8177
      %v8227 = vadd.f32 %v7509, %v8180
      %v8228 = vadd.f32 %v7512, %v8183
      %v8229 = vadd.f32 %v7515, %v8186
      %v8230 = vadd.f32 %v7518, %v8189
      %v8231 = vadd.f32 %v7521, %v8192
      %v8232 = vadd.f32 %v7524, %v8195
      %v8233 = vmax.f32 %v8197, 0.0
      %v8234 = vmax.f32 %v8198, 0.0
      %v8235 = vmax.f32 %v8199, 0.0
      %v8236 = vmax.f32 %v8200, 0.0
      %v8237 = vmax.f32 %v8201, 0.0
      %v8238 = vmax.f32 %v8202, 0.0
      %v8239 = vmax.f32 %v8203, 0.0
      %v8240 = vmax.f32 %v8204, 0.0
      %v8241 = vmax.f32 %v8205, 0.0
      %v8242 = vmax.f32 %v8206, 0.0
      %v8243 = vmax.f32 %v8207, 0.0
      %v8244 = vmax.f32 %v8208, 0.0
      %v8245 = vmax.f32 %v8209, 0.0
      %v8246 = vmax.f32 %v8210, 0.0
      %v8247 = vmax.f32 %v8211, 0.0
      %v8248 = vmax.f32 %v8212, 0.0
      %v8249 = vmax.f32 %v8213, 0.0
      %v8250 = vmax.f32 %v8214, 0.0
      %v8251 = vmax.f32 %v8215, 0.0
      %v8252 = vmax.f32 %v8216, 0.0
      %v8253 = vmax.f32 %v8217, 0.0
      %v8254 = vmax.f32 %v8218, 0.0
      %v8255 = vmax.f32 %v8219, 0.0
      %v8256 = vmax.f32 %v8220, 0.0
      %v8257 = vmax.f32 %v8221, 0.0
      %v8258 = vmax.f32 %v8222, 0.0
      %v8259 = vmax.f32 %v8223, 0.0
      %v8260 = vmax.f32 %v8224, 0.0
      %v8261 = vmax.f32 %v8225, 0.0
      %v8262 = vmax.f32 %v8226, 0.0
      %v8263 = vmax.f32 %v8227, 0.0
      %v8264 = vmax.f32 %v8228, 0.0
      %v8265 = vmax.f32 %v8229, 0.0
      %v8266 = vmax.f32 %v8230, 0.0
      %v8267 = vmax.f32 %v8231, 0.0
      %v8268 = vmax.f32 %v8232, 0.0
      %v8269 = vsel %vm1864, %v8233, 0.0
      %v8270 = vsel %vm1865, %v8234, 0.0
      %v8271 = vsel %vm1866, %v8235, 0.0
      %v8272 = vsel %vm1867, %v8236, 0.0
      %v8273 = vsel %vm1868, %v8237, 0.0
      %v8274 = vsel %vm1869, %v8238, 0.0
      %v8275 = vsel %vm1870, %v8239, 0.0
      %v8276 = vsel %vm1871, %v8240, 0.0
      %v8277 = vsel %vm1872, %v8241, 0.0
      %v8278 = vsel %vm1873, %v8242, 0.0
      %v8279 = vsel %vm1874, %v8243, 0.0
      %v8280 = vsel %vm1875, %v8244, 0.0
      %v8281 = vsel %vm1876, %v8245, 0.0
      %v8282 = vsel %vm1877, %v8246, 0.0
      %v8283 = vsel %vm1878, %v8247, 0.0
      %v8284 = vsel %vm1879, %v8248, 0.0
      %v8285 = vsel %vm1880, %v8249, 0.0
      %v8286 = vsel %vm1881, %v8250, 0.0
      %v8287 = vsel %vm1882, %v8251, 0.0
      %v8288 = vsel %vm1883, %v8252, 0.0
      %v8289 = vsel %vm1884, %v8253, 0.0
      %v8290 = vsel %vm1885, %v8254, 0.0
      %v8291 = vsel %vm1886, %v8255, 0.0
      %v8292 = vsel %vm1887, %v8256, 0.0
      %v8293 = vsel %vm1888, %v8257, 0.0
      %v8294 = vsel %vm1889, %v8258, 0.0
      %v8295 = vsel %vm1890, %v8259, 0.0
      %v8296 = vsel %vm1891, %v8260, 0.0
      %v8297 = vsel %vm1892, %v8261, 0.0
      %v8298 = vsel %vm1893, %v8262, 0.0
      %v8299 = vsel %vm1894, %v8263, 0.0
      %v8300 = vsel %vm1895, %v8264, 0.0
      %v8301 = vsel %vm1896, %v8265, 0.0
      %v8302 = vsel %vm1897, %v8266, 0.0
      %v8303 = vsel %vm1898, %v8267, 0.0
      %v8304 = vsel %vm1899, %v8268, 0.0
      %8305 = vst.msk [vmem:[#allocation3 + $0x13] sm:$0xff] %vm1936, %v8269
      %8306 = vst.msk [vmem:[#allocation3 + $0x1b] sm:$0xff] %vm1936, %v8270
      %8307 = vst.msk [vmem:[#allocation3 + $0x23] sm:$0xff] %vm1936, %v8271
      %8308 = vst.msk [vmem:[#allocation3 + $0x2b] sm:$0xff] %vm1936, %v8272
      %8309 = vst.msk [vmem:[#allocation3 + $0x33] sm:$0xff] %vm1936, %v8273
      %8310 = vst.msk [vmem:[#allocation3 + $0x3b] sm:$0xff] %vm1936, %v8274
      %8311 = vst.msk [vmem:[#allocation3 + $0x43] sm:$0xff] %vm1936, %v8275
      %8312 = vst.msk [vmem:[#allocation3 + $0x4b] sm:$0xff] %vm1936, %v8276
      %8313 = vst.msk [vmem:[#allocation3 + $0x53] sm:$0xff] %vm1936, %v8277
      %8314 = vst.msk [vmem:[#allocation3 + $0x5b] sm:$0xff] %vm1936, %v8278
      %8315 = vst.msk [vmem:[#allocation3 + $0x63] sm:$0xff] %vm1936, %v8279
      %8316 = vst.msk [vmem:[#allocation3 + $0x6b] sm:$0xff] %vm1936, %v8280
      %8317 = vst.msk [vmem:[#allocation3 + $0x73] sm:$0xff] %vm1936, %v8281
      %8318 = vst.msk [vmem:[#allocation3 + $0x7b] sm:$0xff] %vm1936, %v8282
      %8319 = vst.msk [vmem:[#allocation3 + $0x83] sm:$0xff] %vm1936, %v8283
      %8320 = vst.msk [vmem:[#allocation3 + $0x8b] sm:$0xff] %vm1936, %v8284
      %8321 = vst.msk [vmem:[#allocation3 + $0x93] sm:$0xff] %vm1936, %v8285
      %8322 = vst.msk [vmem:[#allocation3 + $0x9b] sm:$0xff] %vm1936, %v8286
      %8323 = vst.msk [vmem:[#allocation3 + $0xa3] sm:$0xff] %vm1936, %v8287
      %8324 = vst.msk [vmem:[#allocation3 + $0xab] sm:$0xff] %vm1936, %v8288
      %8325 = vst.msk [vmem:[#allocation3 + $0xb3] sm:$0xff] %vm1936, %v8289
      %8326 = vst.msk [vmem:[#allocation3 + $0xbb] sm:$0xff] %vm1936, %v8290
      %8327 = vst.msk [vmem:[#allocation3 + $0xc3] sm:$0xff] %vm1936, %v8291
      %8328 = vst.msk [vmem:[#allocation3 + $0xcb] sm:$0xff] %vm1936, %v8292
      %8329 = vst.msk [vmem:[#allocation3 + $0xd3] sm:$0xff] %vm1936, %v8293
      %8330 = vst.msk [vmem:[#allocation3 + $0xdb] sm:$0xff] %vm1936, %v8294
      %8331 = vst.msk [vmem:[#allocation3 + $0xe3] sm:$0xff] %vm1936, %v8295
      %8332 = vst.msk [vmem:[#allocation3 + $0xeb] sm:$0xff] %vm1936, %v8296
      %8333 = vst.msk [vmem:[#allocation3 + $0xf3] sm:$0xff] %vm1936, %v8297
      %8334 = vst.msk [vmem:[#allocation3 + $0xfb] sm:$0xff] %vm1936, %v8298
      %8335 = vst.msk [vmem:[#allocation3 + $0x103] sm:$0xff] %vm1936, %v8299
      %8336 = vst.msk [vmem:[#allocation3 + $0x10b] sm:$0xff] %vm1936, %v8300
      %8337 = vst.msk [vmem:[#allocation3 + $0x113] sm:$0xff] %vm1936, %v8301
      %8338 = vst.msk [vmem:[#allocation3 + $0x11b] sm:$0xff] %vm1936, %v8302
      %8339 = vst.msk [vmem:[#allocation3 + $0x123] sm:$0xff] %vm1936, %v8303
      %8340 = vst.msk [vmem:[#allocation3 + $0x12b] sm:$0xff] %vm1936, %v8304
      %v8341 = vld [vmem:[#allocation3] sm:$0xff]
      %v8342 = vld [vmem:[#allocation3 + $0x8] sm:$0xff]
      %v8343 = vld [vmem:[#allocation3 + $0x10] sm:$0xff]
      %v8344 = vld [vmem:[#allocation3 + $0x18] sm:$0xff]
      %v8345 = vld [vmem:[#allocation3 + $0x20] sm:$0xff]
      %v8346 = vld [vmem:[#allocation3 + $0x28] sm:$0xff]
      %v8347 = vld [vmem:[#allocation3 + $0x30] sm:$0xff]
      %v8348 = vld [vmem:[#allocation3 + $0x38] sm:$0xff]
      %v8349 = vld [vmem:[#allocation3 + $0x40] sm:$0xff]
      %v8350 = vld [vmem:[#allocation3 + $0x48] sm:$0xff]
      %v8351 = vld [vmem:[#allocation3 + $0x50] sm:$0xff]
      %v8352 = vld [vmem:[#allocation3 + $0x58] sm:$0xff]
      %v8353 = vld [vmem:[#allocation3 + $0x60] sm:$0xff]
      %v8354 = vld [vmem:[#allocation3 + $0x68] sm:$0xff]
      %v8355 = vld [vmem:[#allocation3 + $0x70] sm:$0xff]
      %v8356 = vld [vmem:[#allocation3 + $0x78] sm:$0xff]
      %v8357 = vld [vmem:[#allocation3 + $0x80] sm:$0xff]
      %v8358 = vld [vmem:[#allocation3 + $0x88] sm:$0xff]
      %v8359 = vld [vmem:[#allocation3 + $0x90] sm:$0xff]
      %v8360 = vld [vmem:[#allocation3 + $0x98] sm:$0xff]
      %v8361 = vld [vmem:[#allocation3 + $0xa0] sm:$0xff]
      %v8362 = vld [vmem:[#allocation3 + $0xa8] sm:$0xff]
      %v8363 = vld [vmem:[#allocation3 + $0xb0] sm:$0xff]
      %v8364 = vld [vmem:[#allocation3 + $0xb8] sm:$0xff]
      %v8365 = vld [vmem:[#allocation3 + $0xc0] sm:$0xff]
      %v8366 = vld [vmem:[#allocation3 + $0xc8] sm:$0xff]
      %v8367 = vld [vmem:[#allocation3 + $0xd0] sm:$0xff]
      %v8368 = vld [vmem:[#allocation3 + $0xd8] sm:$0xff]
      %v8369 = vld [vmem:[#allocation3 + $0xe0] sm:$0xff]
      %v8370 = vld [vmem:[#allocation3 + $0xe8] sm:$0xff]
      %v8371 = vld [vmem:[#allocation3 + $0xf0] sm:$0xff]
      %v8372 = vld [vmem:[#allocation3 + $0xf8] sm:$0xff]
      %v8373 = vld [vmem:[#allocation3 + $0x100] sm:$0xff]
      %v8374 = vld [vmem:[#allocation3 + $0x108] sm:$0xff]
      %v8375 = vld [vmem:[#allocation3 + $0x110] sm:$0xff]
      %v8376 = vld [vmem:[#allocation3 + $0x118] sm:$0xff]
      %v8377 = vld [vmem:[#allocation3 + $0x1] sm:$0xff]
      %v8378 = vld [vmem:[#allocation3 + $0x9] sm:$0xff]
      %v8379 = vld [vmem:[#allocation3 + $0x11] sm:$0xff]
      %v8380 = vld [vmem:[#allocation3 + $0x19] sm:$0xff]
      %v8381 = vld [vmem:[#allocation3 + $0x21] sm:$0xff]
      %v8382 = vld [vmem:[#allocation3 + $0x29] sm:$0xff]
      %v8383 = vld [vmem:[#allocation3 + $0x31] sm:$0xff]
      %v8384 = vld [vmem:[#allocation3 + $0x39] sm:$0xff]
      %v8385 = vld [vmem:[#allocation3 + $0x41] sm:$0xff]
      %v8386 = vld [vmem:[#allocation3 + $0x49] sm:$0xff]
      %v8387 = vld [vmem:[#allocation3 + $0x51] sm:$0xff]
      %v8388 = vld [vmem:[#allocation3 + $0x59] sm:$0xff]
      %v8389 = vld [vmem:[#allocation3 + $0x61] sm:$0xff]
      %v8390 = vld [vmem:[#allocation3 + $0x69] sm:$0xff]
      %v8391 = vld [vmem:[#allocation3 + $0x71] sm:$0xff]
      %v8392 = vld [vmem:[#allocation3 + $0x79] sm:$0xff]
      %v8393 = vld [vmem:[#allocation3 + $0x81] sm:$0xff]
      %v8394 = vld [vmem:[#allocation3 + $0x89] sm:$0xff]
      %v8395 = vld [vmem:[#allocation3 + $0x91] sm:$0xff]
      %v8396 = vld [vmem:[#allocation3 + $0x99] sm:$0xff]
      %v8397 = vld [vmem:[#allocation3 + $0xa1] sm:$0xff]
      %v8398 = vld [vmem:[#allocation3 + $0xa9] sm:$0xff]
      %v8399 = vld [vmem:[#allocation3 + $0xb1] sm:$0xff]
      %v8400 = vld [vmem:[#allocation3 + $0xb9] sm:$0xff]
      %v8401 = vld [vmem:[#allocation3 + $0xc1] sm:$0xff]
      %v8402 = vld [vmem:[#allocation3 + $0xc9] sm:$0xff]
      %v8403 = vld [vmem:[#allocation3 + $0xd1] sm:$0xff]
      %v8404 = vld [vmem:[#allocation3 + $0xd9] sm:$0xff]
      %v8405 = vld [vmem:[#allocation3 + $0xe1] sm:$0xff]
      %v8406 = vld [vmem:[#allocation3 + $0xe9] sm:$0xff]
      %v8407 = vld [vmem:[#allocation3 + $0xf1] sm:$0xff]
      %v8408 = vld [vmem:[#allocation3 + $0xf9] sm:$0xff]
      %v8409 = vld [vmem:[#allocation3 + $0x101] sm:$0xff]
      %v8410 = vld [vmem:[#allocation3 + $0x109] sm:$0xff]
      %v8411 = vld [vmem:[#allocation3 + $0x111] sm:$0xff]
      %v8412 = vld [vmem:[#allocation3 + $0x119] sm:$0xff]
      %v8413 = vld [vmem:[#allocation3 + $0x2] sm:$0xff]
      %v8414 = vld [vmem:[#allocation3 + $0xa] sm:$0xff]
      %v8415 = vld [vmem:[#allocation3 + $0x12] sm:$0xff]
      %v8416 = vld [vmem:[#allocation3 + $0x1a] sm:$0xff]
      %v8417 = vld [vmem:[#allocation3 + $0x22] sm:$0xff]
      %v8418 = vld [vmem:[#allocation3 + $0x2a] sm:$0xff]
      %v8419 = vld [vmem:[#allocation3 + $0x32] sm:$0xff]
      %v8420 = vld [vmem:[#allocation3 + $0x3a] sm:$0xff]
      %v8421 = vld [vmem:[#allocation3 + $0x42] sm:$0xff]
      %v8422 = vld [vmem:[#allocation3 + $0x4a] sm:$0xff]
      %v8423 = vld [vmem:[#allocation3 + $0x52] sm:$0xff]
      %v8424 = vld [vmem:[#allocation3 + $0x5a] sm:$0xff]
      %v8425 = vld [vmem:[#allocation3 + $0x62] sm:$0xff]
      %v8426 = vld [vmem:[#allocation3 + $0x6a] sm:$0xff]
      %v8427 = vld [vmem:[#allocation3 + $0x72] sm:$0xff]
      %v8428 = vld [vmem:[#allocation3 + $0x7a] sm:$0xff]
      %v8429 = vld [vmem:[#allocation3 + $0x82] sm:$0xff]
      %v8430 = vld [vmem:[#allocation3 + $0x8a] sm:$0xff]
      %v8431 = vld [vmem:[#allocation3 + $0x92] sm:$0xff]
      %v8432 = vld [vmem:[#allocation3 + $0x9a] sm:$0xff]
      %v8433 = vld [vmem:[#allocation3 + $0xa2] sm:$0xff]
      %v8434 = vld [vmem:[#allocation3 + $0xaa] sm:$0xff]
      %v8435 = vld [vmem:[#allocation3 + $0xb2] sm:$0xff]
      %v8436 = vld [vmem:[#allocation3 + $0xba] sm:$0xff]
      %v8437 = vld [vmem:[#allocation3 + $0xc2] sm:$0xff]
      %v8438 = vld [vmem:[#allocation3 + $0xca] sm:$0xff]
      %v8439 = vld [vmem:[#allocation3 + $0xd2] sm:$0xff]
      %v8440 = vld [vmem:[#allocation3 + $0xda] sm:$0xff]
      %v8441 = vld [vmem:[#allocation3 + $0xe2] sm:$0xff]
      %v8442 = vld [vmem:[#allocation3 + $0xea] sm:$0xff]
      %v8443 = vld [vmem:[#allocation3 + $0xf2] sm:$0xff]
      %v8444 = vld [vmem:[#allocation3 + $0xfa] sm:$0xff]
      %v8445 = vld [vmem:[#allocation3 + $0x102] sm:$0xff]
      %v8446 = vld [vmem:[#allocation3 + $0x10a] sm:$0xff]
      %v8447 = vld [vmem:[#allocation3 + $0x112] sm:$0xff]
      %v8448 = vld [vmem:[#allocation3 + $0x11a] sm:$0xff]
      %8485 = vrot.lane.b32.xlu0 %v8377, 64
      %v8486 = vpop.permute.xlu0 %8485
      %8487 = vrot.lane.b32.xlu0 %v8378, 64
      %v8488 = vpop.permute.xlu0 %8487
      %8489 = vrot.lane.b32.xlu0 %v8379, 64
      %v8490 = vpop.permute.xlu0 %8489
      %8491 = vrot.lane.b32.xlu0 %v8380, 64
      %v8492 = vpop.permute.xlu0 %8491
      %8493 = vrot.lane.b32.xlu0 %v8381, 64
      %v8494 = vpop.permute.xlu0 %8493
      %8495 = vrot.lane.b32.xlu0 %v8382, 64
      %v8496 = vpop.permute.xlu0 %8495
      %8497 = vrot.lane.b32.xlu0 %v8383, 64
      %v8498 = vpop.permute.xlu0 %8497
      %8499 = vrot.lane.b32.xlu0 %v8384, 64
      %v8500 = vpop.permute.xlu0 %8499
      %8501 = vrot.lane.b32.xlu0 %v8385, 64
      %v8502 = vpop.permute.xlu0 %8501
      %8503 = vrot.lane.b32.xlu0 %v8386, 64
      %v8504 = vpop.permute.xlu0 %8503
      %8505 = vrot.lane.b32.xlu0 %v8387, 64
      %v8506 = vpop.permute.xlu0 %8505
      %8507 = vrot.lane.b32.xlu0 %v8388, 64
      %v8508 = vpop.permute.xlu0 %8507
      %8509 = vrot.lane.b32.xlu0 %v8389, 64
      %v8510 = vpop.permute.xlu0 %8509
      %8511 = vrot.lane.b32.xlu0 %v8390, 64
      %v8512 = vpop.permute.xlu0 %8511
      %8513 = vrot.lane.b32.xlu0 %v8391, 64
      %v8514 = vpop.permute.xlu0 %8513
      %8515 = vrot.lane.b32.xlu0 %v8392, 64
      %v8516 = vpop.permute.xlu0 %8515
      %8517 = vrot.lane.b32.xlu0 %v8393, 64
      %v8518 = vpop.permute.xlu0 %8517
      %8519 = vrot.lane.b32.xlu0 %v8394, 64
      %v8520 = vpop.permute.xlu0 %8519
      %8521 = vrot.lane.b32.xlu0 %v8395, 64
      %v8522 = vpop.permute.xlu0 %8521
      %8523 = vrot.lane.b32.xlu0 %v8396, 64
      %v8524 = vpop.permute.xlu0 %8523
      %8525 = vrot.lane.b32.xlu0 %v8397, 64
      %v8526 = vpop.permute.xlu0 %8525
      %8527 = vrot.lane.b32.xlu0 %v8398, 64
      %v8528 = vpop.permute.xlu0 %8527
      %8529 = vrot.lane.b32.xlu0 %v8399, 64
      %v8530 = vpop.permute.xlu0 %8529
      %8531 = vrot.lane.b32.xlu0 %v8400, 64
      %v8532 = vpop.permute.xlu0 %8531
      %8533 = vrot.lane.b32.xlu0 %v8401, 64
      %v8534 = vpop.permute.xlu0 %8533
      %8535 = vrot.lane.b32.xlu0 %v8402, 64
      %v8536 = vpop.permute.xlu0 %8535
      %8537 = vrot.lane.b32.xlu0 %v8403, 64
      %v8538 = vpop.permute.xlu0 %8537
      %8539 = vrot.lane.b32.xlu0 %v8404, 64
      %v8540 = vpop.permute.xlu0 %8539
      %8541 = vrot.lane.b32.xlu0 %v8405, 64
      %v8542 = vpop.permute.xlu0 %8541
      %8543 = vrot.lane.b32.xlu0 %v8406, 64
      %v8544 = vpop.permute.xlu0 %8543
      %8545 = vrot.lane.b32.xlu0 %v8407, 64
      %v8546 = vpop.permute.xlu0 %8545
      %8547 = vrot.lane.b32.xlu0 %v8408, 64
      %v8548 = vpop.permute.xlu0 %8547
      %8549 = vrot.lane.b32.xlu0 %v8409, 64
      %v8550 = vpop.permute.xlu0 %8549
      %8551 = vrot.lane.b32.xlu0 %v8410, 64
      %v8552 = vpop.permute.xlu0 %8551
      %8553 = vrot.lane.b32.xlu0 %v8411, 64
      %v8554 = vpop.permute.xlu0 %8553
      %8555 = vrot.lane.b32.xlu0 %v8412, 64
      %v8556 = vpop.permute.xlu0 %8555
      %v8593 = vsel %vm1936, %v8341, %v8486
      %v8594 = vsel %vm1936, %v8342, %v8488
      %v8595 = vsel %vm1936, %v8343, %v8490
      %v8596 = vsel %vm1936, %v8344, %v8492
      %v8597 = vsel %vm1936, %v8345, %v8494
      %v8598 = vsel %vm1936, %v8346, %v8496
      %v8599 = vsel %vm1936, %v8347, %v8498
      %v8600 = vsel %vm1936, %v8348, %v8500
      %v8601 = vsel %vm1936, %v8349, %v8502
      %v8602 = vsel %vm1936, %v8350, %v8504
      %v8603 = vsel %vm1936, %v8351, %v8506
      %v8604 = vsel %vm1936, %v8352, %v8508
      %v8605 = vsel %vm1936, %v8353, %v8510
      %v8606 = vsel %vm1936, %v8354, %v8512
      %v8607 = vsel %vm1936, %v8355, %v8514
      %v8608 = vsel %vm1936, %v8356, %v8516
      %v8609 = vsel %vm1936, %v8357, %v8518
      %v8610 = vsel %vm1936, %v8358, %v8520
      %v8611 = vsel %vm1936, %v8359, %v8522
      %v8612 = vsel %vm1936, %v8360, %v8524
      %v8613 = vsel %vm1936, %v8361, %v8526
      %v8614 = vsel %vm1936, %v8362, %v8528
      %v8615 = vsel %vm1936, %v8363, %v8530
      %v8616 = vsel %vm1936, %v8364, %v8532
      %v8617 = vsel %vm1936, %v8365, %v8534
      %v8618 = vsel %vm1936, %v8366, %v8536
      %v8619 = vsel %vm1936, %v8367, %v8538
      %v8620 = vsel %vm1936, %v8368, %v8540
      %v8621 = vsel %vm1936, %v8369, %v8542
      %v8622 = vsel %vm1936, %v8370, %v8544
      %v8623 = vsel %vm1936, %v8371, %v8546
      %v8624 = vsel %vm1936, %v8372, %v8548
      %v8625 = vsel %vm1936, %v8373, %v8550
      %v8626 = vsel %vm1936, %v8374, %v8552
      %v8627 = vsel %vm1936, %v8375, %v8554
      %v8628 = vsel %vm1936, %v8376, %v8556
      %s8629 = scalar_lea.vmem %s2, 1728
      %v8630 = vld [vmem:[%s8629] sm:$0xff]
      %v8631 = vld [vmem:[%s8629 + $0x8] sm:$0xff]
      %v8632 = vld [vmem:[%s8629 + $0x10] sm:$0xff]
      %v8633 = vld [vmem:[%s8629 + $0x18] sm:$0xff]
      %v8634 = vld [vmem:[%s8629 + $0x20] sm:$0xff]
      %v8635 = vld [vmem:[%s8629 + $0x28] sm:$0xff]
      %v8636 = vld [vmem:[%s8629 + $0x30] sm:$0xff]
      %v8637 = vld [vmem:[%s8629 + $0x38] sm:$0xff]
      %v8638 = vld [vmem:[%s8629 + $0x40] sm:$0xff]
      %v8639 = vld [vmem:[%s8629 + $0x48] sm:$0xff]
      %v8640 = vld [vmem:[%s8629 + $0x50] sm:$0xff]
      %v8641 = vld [vmem:[%s8629 + $0x58] sm:$0xff]
      %v8642 = vld [vmem:[%s8629 + $0x60] sm:$0xff]
      %v8643 = vld [vmem:[%s8629 + $0x68] sm:$0xff]
      %v8644 = vld [vmem:[%s8629 + $0x70] sm:$0xff]
      %v8645 = vld [vmem:[%s8629 + $0x78] sm:$0xff]
      %v8646 = vld [vmem:[%s8629 + $0x80] sm:$0xff]
      %v8647 = vld [vmem:[%s8629 + $0x88] sm:$0xff]
      %v8648 = vld [vmem:[%s8629 + $0x90] sm:$0xff]
      %v8649 = vld [vmem:[%s8629 + $0x98] sm:$0xff]
      %v8650 = vld [vmem:[%s8629 + $0xa0] sm:$0xff]
      %v8651 = vld [vmem:[%s8629 + $0xa8] sm:$0xff]
      %v8652 = vld [vmem:[%s8629 + $0xb0] sm:$0xff]
      %v8653 = vld [vmem:[%s8629 + $0xb8] sm:$0xff]
      %v8654 = vld [vmem:[#allocation3 + $0x122] sm:$0xff]
      %v8655 = vld [vmem:[#allocation3 + $0x12a] sm:$0xff]
      %v8656 = vld [vmem:[#allocation3 + $0x13] sm:$0xff]
      %v8657 = vld [vmem:[#allocation3 + $0x1b] sm:$0xff]
      %v8658 = vld [vmem:[#allocation3 + $0x23] sm:$0xff]
      %v8659 = vld [vmem:[#allocation3 + $0x2b] sm:$0xff]
      %v8660 = vld [vmem:[#allocation3 + $0x33] sm:$0xff]
      %v8661 = vld [vmem:[#allocation3 + $0x3b] sm:$0xff]
      %v8662 = vld [vmem:[#allocation3 + $0x43] sm:$0xff]
      %v8663 = vld [vmem:[#allocation3 + $0x4b] sm:$0xff]
      %v8664 = vld [vmem:[#allocation3 + $0x53] sm:$0xff]
      %v8665 = vld [vmem:[#allocation3 + $0x5b] sm:$0xff]
      %v8666 = vld [vmem:[#allocation3 + $0x63] sm:$0xff]
      %v8667 = vld [vmem:[#allocation3 + $0x6b] sm:$0xff]
      %v8668 = vld [vmem:[#allocation3 + $0x73] sm:$0xff]
      %v8669 = vld [vmem:[#allocation3 + $0x7b] sm:$0xff]
      %v8670 = vld [vmem:[#allocation3 + $0x83] sm:$0xff]
      %v8671 = vld [vmem:[#allocation3 + $0x8b] sm:$0xff]
      %v8672 = vld [vmem:[#allocation3 + $0x93] sm:$0xff]
      %v8673 = vld [vmem:[#allocation3 + $0x9b] sm:$0xff]
      %v8674 = vld [vmem:[#allocation3 + $0xa3] sm:$0xff]
      %v8675 = vld [vmem:[#allocation3 + $0xab] sm:$0xff]
      %v8676 = vld [vmem:[#allocation3 + $0xb3] sm:$0xff]
      %v8677 = vld [vmem:[#allocation3 + $0xbb] sm:$0xff]
      %v8678 = vld [vmem:[#allocation3 + $0xc3] sm:$0xff]
      %v8679 = vld [vmem:[#allocation3 + $0xcb] sm:$0xff]
      %v8680 = vld [vmem:[#allocation3 + $0xd3] sm:$0xff]
      %v8681 = vld [vmem:[#allocation3 + $0xdb] sm:$0xff]
      %v8682 = vld [vmem:[#allocation3 + $0xe3] sm:$0xff]
      %v8683 = vld [vmem:[#allocation3 + $0xeb] sm:$0xff]
      %v8684 = vld [vmem:[#allocation3 + $0xf3] sm:$0xff]
      %v8685 = vld [vmem:[#allocation3 + $0xfb] sm:$0xff]
      %v8686 = vld [vmem:[#allocation3 + $0x103] sm:$0xff]
      %v8687 = vld [vmem:[#allocation3 + $0x10b] sm:$0xff]
      %v8688 = vld [vmem:[#allocation3 + $0x113] sm:$0xff]
      %v8689 = vld [vmem:[#allocation3 + $0x11b] sm:$0xff]
      %v8690 = vld [vmem:[#allocation3 + $0x123] sm:$0xff]
      %v8691 = vld [vmem:[#allocation3 + $0x12b] sm:$0xff]
      %v8692 = vld [vmem:[#allocation3 + $0x14] sm:$0xff]
      %v8693 = vld [vmem:[#allocation3 + $0x1c] sm:$0xff]
      %v8694 = vld [vmem:[#allocation3 + $0x24] sm:$0xff]
      %v8695 = vld [vmem:[#allocation3 + $0x2c] sm:$0xff]
      %v8696 = vld [vmem:[#allocation3 + $0x34] sm:$0xff]
      %v8697 = vld [vmem:[#allocation3 + $0x3c] sm:$0xff]
      %v8698 = vld [vmem:[#allocation3 + $0x44] sm:$0xff]
      %v8699 = vld [vmem:[#allocation3 + $0x4c] sm:$0xff]
      %v8700 = vld [vmem:[#allocation3 + $0x54] sm:$0xff]
      %v8701 = vld [vmem:[#allocation3 + $0x5c] sm:$0xff]
      %v8702 = vld [vmem:[#allocation3 + $0x64] sm:$0xff]
      %v8703 = vld [vmem:[#allocation3 + $0x6c] sm:$0xff]
      %v8704 = vld [vmem:[#allocation3 + $0x74] sm:$0xff]
      %v8705 = vld [vmem:[#allocation3 + $0x7c] sm:$0xff]
      %v8706 = vld [vmem:[#allocation3 + $0x84] sm:$0xff]
      %v8707 = vld [vmem:[#allocation3 + $0x8c] sm:$0xff]
      %v8708 = vld [vmem:[#allocation3 + $0x94] sm:$0xff]
      %v8709 = vld [vmem:[#allocation3 + $0x9c] sm:$0xff]
      %v8710 = vld [vmem:[#allocation3 + $0xa4] sm:$0xff]
      %v8711 = vld [vmem:[#allocation3 + $0xac] sm:$0xff]
      %v8712 = vld [vmem:[#allocation3 + $0xb4] sm:$0xff]
      %v8713 = vld [vmem:[#allocation3 + $0xbc] sm:$0xff]
      %v8714 = vld [vmem:[#allocation3 + $0xc4] sm:$0xff]
      %v8715 = vld [vmem:[#allocation3 + $0xcc] sm:$0xff]
      %v8716 = vld [vmem:[#allocation3 + $0xd4] sm:$0xff]
      %v8717 = vld [vmem:[#allocation3 + $0xdc] sm:$0xff]
      %v8718 = vld [vmem:[#allocation3 + $0xe4] sm:$0xff]
      %v8719 = vld [vmem:[#allocation3 + $0xec] sm:$0xff]
      %v8720 = vld [vmem:[#allocation3 + $0xf4] sm:$0xff]
      %v8721 = vld [vmem:[#allocation3 + $0xfc] sm:$0xff]
      %v8722 = vld [vmem:[#allocation3 + $0x104] sm:$0xff]
      %v8723 = vld [vmem:[#allocation3 + $0x10c] sm:$0xff]
      %v8724 = vld [vmem:[#allocation3 + $0x114] sm:$0xff]
      %v8725 = vld [vmem:[#allocation3 + $0x11c] sm:$0xff]
      %v8726 = vld [vmem:[#allocation3 + $0x124] sm:$0xff]
      %v8727 = vld [vmem:[#allocation3 + $0x12c] sm:$0xff]
      %8764 = vrot.lane.b32.xlu0 %v8656, 64
      %v8765 = vpop.permute.xlu0 %8764
      %8766 = vrot.lane.b32.xlu0 %v8657, 64
      %v8767 = vpop.permute.xlu0 %8766
      %8768 = vrot.lane.b32.xlu0 %v8658, 64
      %v8769 = vpop.permute.xlu0 %8768
      %8770 = vrot.lane.b32.xlu0 %v8659, 64
      %v8771 = vpop.permute.xlu0 %8770
      %8772 = vrot.lane.b32.xlu0 %v8660, 64
      %v8773 = vpop.permute.xlu0 %8772
      %8774 = vrot.lane.b32.xlu0 %v8661, 64
      %v8775 = vpop.permute.xlu0 %8774
      %8776 = vrot.lane.b32.xlu0 %v8662, 64
      %v8777 = vpop.permute.xlu0 %8776
      %8778 = vrot.lane.b32.xlu0 %v8663, 64
      %v8779 = vpop.permute.xlu0 %8778
      %8780 = vrot.lane.b32.xlu0 %v8664, 64
      %v8781 = vpop.permute.xlu0 %8780
      %8782 = vrot.lane.b32.xlu0 %v8665, 64
      %v8783 = vpop.permute.xlu0 %8782
      %8784 = vrot.lane.b32.xlu0 %v8666, 64
      %v8785 = vpop.permute.xlu0 %8784
      %8786 = vrot.lane.b32.xlu0 %v8667, 64
      %v8787 = vpop.permute.xlu0 %8786
      %8788 = vrot.lane.b32.xlu0 %v8668, 64
      %v8789 = vpop.permute.xlu0 %8788
      %8790 = vrot.lane.b32.xlu0 %v8669, 64
      %v8791 = vpop.permute.xlu0 %8790
      %8792 = vrot.lane.b32.xlu0 %v8670, 64
      %v8793 = vpop.permute.xlu0 %8792
      %8794 = vrot.lane.b32.xlu0 %v8671, 64
      %v8795 = vpop.permute.xlu0 %8794
      %8796 = vrot.lane.b32.xlu0 %v8672, 64
      %v8797 = vpop.permute.xlu0 %8796
      %8798 = vrot.lane.b32.xlu0 %v8673, 64
      %v8799 = vpop.permute.xlu0 %8798
      %8800 = vrot.lane.b32.xlu0 %v8674, 64
      %v8801 = vpop.permute.xlu0 %8800
      %8802 = vrot.lane.b32.xlu0 %v8675, 64
      %v8803 = vpop.permute.xlu0 %8802
      %8804 = vrot.lane.b32.xlu0 %v8676, 64
      %v8805 = vpop.permute.xlu0 %8804
      %8806 = vrot.lane.b32.xlu0 %v8677, 64
      %v8807 = vpop.permute.xlu0 %8806
      %8808 = vrot.lane.b32.xlu0 %v8678, 64
      %v8809 = vpop.permute.xlu0 %8808
      %8810 = vrot.lane.b32.xlu0 %v8679, 64
      %v8811 = vpop.permute.xlu0 %8810
      %8812 = vrot.lane.b32.xlu0 %v8680, 64
      %v8813 = vpop.permute.xlu0 %8812
      %8814 = vrot.lane.b32.xlu0 %v8681, 64
      %v8815 = vpop.permute.xlu0 %8814
      %8816 = vrot.lane.b32.xlu0 %v8682, 64
      %v8817 = vpop.permute.xlu0 %8816
      %8818 = vrot.lane.b32.xlu0 %v8683, 64
      %v8819 = vpop.permute.xlu0 %8818
      %8820 = vrot.lane.b32.xlu0 %v8684, 64
      %v8821 = vpop.permute.xlu0 %8820
      %8822 = vrot.lane.b32.xlu0 %v8685, 64
      %v8823 = vpop.permute.xlu0 %8822
      %8824 = vrot.lane.b32.xlu0 %v8686, 64
      %v8825 = vpop.permute.xlu0 %8824
      %8826 = vrot.lane.b32.xlu0 %v8687, 64
      %v8827 = vpop.permute.xlu0 %8826
      %8828 = vrot.lane.b32.xlu0 %v8688, 64
      %v8829 = vpop.permute.xlu0 %8828
      %8830 = vrot.lane.b32.xlu0 %v8689, 64
      %v8831 = vpop.permute.xlu0 %8830
      %8832 = vrot.lane.b32.xlu0 %v8690, 64
      %v8833 = vpop.permute.xlu0 %8832
      %8834 = vrot.lane.b32.xlu0 %v8691, 64
      %v8835 = vpop.permute.xlu0 %8834
      %v8872 = vsel %vm1936, %v8415, %v8765
      %v8873 = vsel %vm1936, %v8416, %v8767
      %v8874 = vsel %vm1936, %v8417, %v8769
      %v8875 = vsel %vm1936, %v8418, %v8771
      %v8876 = vsel %vm1936, %v8419, %v8773
      %v8877 = vsel %vm1936, %v8420, %v8775
      %v8878 = vsel %vm1936, %v8421, %v8777
      %v8879 = vsel %vm1936, %v8422, %v8779
      %v8880 = vsel %vm1936, %v8423, %v8781
      %v8881 = vsel %vm1936, %v8424, %v8783
      %v8882 = vsel %vm1936, %v8425, %v8785
      %v8883 = vsel %vm1936, %v8426, %v8787
      %v8884 = vsel %vm1936, %v8427, %v8789
      %v8885 = vsel %vm1936, %v8428, %v8791
      %v8886 = vsel %vm1936, %v8429, %v8793
      %v8887 = vsel %vm1936, %v8430, %v8795
      %v8888 = vsel %vm1936, %v8431, %v8797
      %v8889 = vsel %vm1936, %v8432, %v8799
      %v8890 = vsel %vm1936, %v8433, %v8801
      %v8891 = vsel %vm1936, %v8434, %v8803
      %v8892 = vsel %vm1936, %v8435, %v8805
      %v8893 = vsel %vm1936, %v8436, %v8807
      %v8894 = vsel %vm1936, %v8437, %v8809
      %v8895 = vsel %vm1936, %v8438, %v8811
      %v8896 = vsel %vm1936, %v8439, %v8813
      %v8897 = vsel %vm1936, %v8440, %v8815
      %v8898 = vsel %vm1936, %v8441, %v8817
      %v8899 = vsel %vm1936, %v8442, %v8819
      %v8900 = vsel %vm1936, %v8443, %v8821
      %v8901 = vsel %vm1936, %v8444, %v8823
      %v8902 = vsel %vm1936, %v8445, %v8825
      %v8903 = vsel %vm1936, %v8446, %v8827
      %v8904 = vsel %vm1936, %v8447, %v8829
      %v8905 = vsel %vm1936, %v8448, %v8831
      %v8906 = vsel %vm1936, %v8654, %v8833
      %v8907 = vsel %vm1936, %v8655, %v8835
      %s8908 = scalar_lea.vmem %s2, 1920
      %v8909 = vld [vmem:[%s8908] sm:$0xff]
      %v8910 = vld [vmem:[%s8908 + $0x8] sm:$0xff]
      %v8911 = vld [vmem:[%s8908 + $0x10] sm:$0xff]
      %v8912 = vld [vmem:[%s8908 + $0x18] sm:$0xff]
      %v8913 = vld [vmem:[%s8908 + $0x20] sm:$0xff]
      %v8914 = vld [vmem:[%s8908 + $0x28] sm:$0xff]
      %v8915 = vld [vmem:[%s8908 + $0x30] sm:$0xff]
      %v8916 = vld [vmem:[%s8908 + $0x38] sm:$0xff]
      %v8917 = vld [vmem:[%s8908 + $0x40] sm:$0xff]
      %v8918 = vld [vmem:[%s8908 + $0x48] sm:$0xff]
      %v8919 = vld [vmem:[%s8908 + $0x50] sm:$0xff]
      %v8920 = vld [vmem:[%s8908 + $0x58] sm:$0xff]
      %v8921 = vld [vmem:[%s8908 + $0x60] sm:$0xff]
      %v8922 = vld [vmem:[%s8908 + $0x68] sm:$0xff]
      %v8923 = vld [vmem:[%s8908 + $0x70] sm:$0xff]
      %v8924 = vld [vmem:[%s8908 + $0x78] sm:$0xff]
      %v8925 = vld [vmem:[%s8908 + $0x80] sm:$0xff]
      %v8926 = vld [vmem:[%s8908 + $0x88] sm:$0xff]
      %v8927 = vld [vmem:[%s8908 + $0x90] sm:$0xff]
      %v8928 = vld [vmem:[%s8908 + $0x98] sm:$0xff]
      %v8929 = vld [vmem:[%s8908 + $0xa0] sm:$0xff]
      %v8930 = vld [vmem:[%s8908 + $0xa8] sm:$0xff]
      %v8931 = vld [vmem:[%s8908 + $0xb0] sm:$0xff]
      %v8932 = vld [vmem:[%s8908 + $0xb8] sm:$0xff]
      %v8934 = vsel %vm1936, %v8692, 0
      %v8937 = vsel %vm1936, %v8693, 0
      %v8940 = vsel %vm1936, %v8694, 0
      %v8943 = vsel %vm1936, %v8695, 0
      %v8946 = vsel %vm1936, %v8696, 0
      %v8949 = vsel %vm1936, %v8697, 0
      %v8952 = vsel %vm1936, %v8698, 0
      %v8955 = vsel %vm1936, %v8699, 0
      %v8958 = vsel %vm1936, %v8700, 0
      %v8961 = vsel %vm1936, %v8701, 0
      %v8964 = vsel %vm1936, %v8702, 0
      %v8967 = vsel %vm1936, %v8703, 0
      %v8970 = vsel %vm1936, %v8704, 0
      %v8973 = vsel %vm1936, %v8705, 0
      %v8976 = vsel %vm1936, %v8706, 0
      %v8979 = vsel %vm1936, %v8707, 0
      %v8982 = vsel %vm1936, %v8708, 0
      %v8985 = vsel %vm1936, %v8709, 0
      %v8988 = vsel %vm1936, %v8710, 0
      %v8991 = vsel %vm1936, %v8711, 0
      %v8994 = vsel %vm1936, %v8712, 0
      %v8997 = vsel %vm1936, %v8713, 0
      %v9000 = vsel %vm1936, %v8714, 0
      %v9003 = vsel %vm1936, %v8715, 0
      %v9006 = vsel %vm1936, %v8716, 0
      %v9009 = vsel %vm1936, %v8717, 0
      %v9012 = vsel %vm1936, %v8718, 0
      %v9015 = vsel %vm1936, %v8719, 0
      %v9018 = vsel %vm1936, %v8720, 0
      %v9021 = vsel %vm1936, %v8721, 0
      %v9024 = vsel %vm1936, %v8722, 0
      %v9027 = vsel %vm1936, %v8723, 0
      %v9030 = vsel %vm1936, %v8724, 0
      %v9033 = vsel %vm1936, %v8725, 0
      %v9036 = vsel %vm1936, %v8726, 0
      %v9039 = vsel %vm1936, %v8727, 0
      %9041 = vmatpush.msra.mxu0 %v8924
      %9042 = vmatpush.msra.mxu0 %v8923
      %9043 = vmatpush.msra.mxu0 %v8922
      %9044 = vmatpush.msra.mxu0 %v8921
      %9045 = vmatpush.msra.mxu0 %v8920
      %9046 = vmatpush.msra.mxu0 %v8919
      %9047 = vmatpush.msra.mxu0 %v8918
      %9048 = vmatpush.msra.mxu0 %v8917
      %9049 = vmatpush.msra.mxu0 %v8916
      %9050 = vmatpush.msra.mxu0 %v8915
      %9051 = vmatpush.msra.mxu0 %v8914
      %9052 = vmatpush.msra.mxu0 %v8913
      %9053 = vmatpush.msra.mxu0 %v8912
      %9054 = vmatpush.msra.mxu0 %v8911
      %9055 = vmatpush.msra.mxu0 %v8910
      %9056 = vmatpush.msra.mxu0 %v8909
      %9057 = vmatmul.f32.gmra.mxu0 %v8872
      %v9058 = vpop.f32.mrf.mxu0
      %v9059 = vadd.f32 0.0, %v9058
      %9060 = vmatmul.f32.gmra.mxu0 %v8873
      %v9061 = vpop.f32.mrf.mxu0
      %v9062 = vadd.f32 0.0, %v9061
      %9063 = vmatmul.f32.gmra.mxu0 %v8874
      %v9064 = vpop.f32.mrf.mxu0
      %v9065 = vadd.f32 0.0, %v9064
      %9066 = vmatmul.f32.gmra.mxu0 %v8875
      %v9067 = vpop.f32.mrf.mxu0
      %v9068 = vadd.f32 0.0, %v9067
      %9069 = vmatmul.f32.gmra.mxu0 %v8876
      %v9070 = vpop.f32.mrf.mxu0
      %v9071 = vadd.f32 0.0, %v9070
      %9072 = vmatmul.f32.gmra.mxu0 %v8877
      %v9073 = vpop.f32.mrf.mxu0
      %v9074 = vadd.f32 0.0, %v9073
      %9075 = vmatmul.f32.gmra.mxu0 %v8878
      %v9076 = vpop.f32.mrf.mxu0
      %v9077 = vadd.f32 0.0, %v9076
      %9078 = vmatmul.f32.gmra.mxu0 %v8879
      %v9079 = vpop.f32.mrf.mxu0
      %v9080 = vadd.f32 0.0, %v9079
      %9081 = vmatmul.f32.gmra.mxu0 %v8880
      %v9082 = vpop.f32.mrf.mxu0
      %v9083 = vadd.f32 0.0, %v9082
      %9084 = vmatmul.f32.gmra.mxu0 %v8881
      %v9085 = vpop.f32.mrf.mxu0
      %v9086 = vadd.f32 0.0, %v9085
      %9087 = vmatmul.f32.gmra.mxu0 %v8882
      %v9088 = vpop.f32.mrf.mxu0
      %v9089 = vadd.f32 0.0, %v9088
      %9090 = vmatmul.f32.gmra.mxu0 %v8883
      %v9091 = vpop.f32.mrf.mxu0
      %v9092 = vadd.f32 0.0, %v9091
      %9093 = vmatmul.f32.gmra.mxu0 %v8884
      %v9094 = vpop.f32.mrf.mxu0
      %v9095 = vadd.f32 0.0, %v9094
      %9096 = vmatmul.f32.gmra.mxu0 %v8885
      %v9097 = vpop.f32.mrf.mxu0
      %v9098 = vadd.f32 0.0, %v9097
      %9099 = vmatmul.f32.gmra.mxu0 %v8886
      %v9100 = vpop.f32.mrf.mxu0
      %v9101 = vadd.f32 0.0, %v9100
      %9102 = vmatmul.f32.gmra.mxu0 %v8887
      %v9103 = vpop.f32.mrf.mxu0
      %v9104 = vadd.f32 0.0, %v9103
      %9105 = vmatmul.f32.gmra.mxu0 %v8888
      %v9106 = vpop.f32.mrf.mxu0
      %v9107 = vadd.f32 0.0, %v9106
      %9108 = vmatmul.f32.gmra.mxu0 %v8889
      %v9109 = vpop.f32.mrf.mxu0
      %v9110 = vadd.f32 0.0, %v9109
      %9111 = vmatmul.f32.gmra.mxu0 %v8890
      %v9112 = vpop.f32.mrf.mxu0
      %v9113 = vadd.f32 0.0, %v9112
      %9114 = vmatmul.f32.gmra.mxu0 %v8891
      %v9115 = vpop.f32.mrf.mxu0
      %v9116 = vadd.f32 0.0, %v9115
      %9117 = vmatmul.f32.gmra.mxu0 %v8892
      %v9118 = vpop.f32.mrf.mxu0
      %v9119 = vadd.f32 0.0, %v9118
      %9120 = vmatmul.f32.gmra.mxu0 %v8893
      %v9121 = vpop.f32.mrf.mxu0
      %v9122 = vadd.f32 0.0, %v9121
      %9123 = vmatmul.f32.gmra.mxu0 %v8894
      %v9124 = vpop.f32.mrf.mxu0
      %v9125 = vadd.f32 0.0, %v9124
      %9126 = vmatmul.f32.gmra.mxu0 %v8895
      %v9127 = vpop.f32.mrf.mxu0
      %v9128 = vadd.f32 0.0, %v9127
      %9129 = vmatmul.f32.gmra.mxu0 %v8896
      %v9130 = vpop.f32.mrf.mxu0
      %v9131 = vadd.f32 0.0, %v9130
      %9132 = vmatmul.f32.gmra.mxu0 %v8897
      %v9133 = vpop.f32.mrf.mxu0
      %v9134 = vadd.f32 0.0, %v9133
      %9135 = vmatmul.f32.gmra.mxu0 %v8898
      %v9136 = vpop.f32.mrf.mxu0
      %v9137 = vadd.f32 0.0, %v9136
      %9138 = vmatmul.f32.gmra.mxu0 %v8899
      %v9139 = vpop.f32.mrf.mxu0
      %v9140 = vadd.f32 0.0, %v9139
      %9141 = vmatmul.f32.gmra.mxu0 %v8900
      %v9142 = vpop.f32.mrf.mxu0
      %v9143 = vadd.f32 0.0, %v9142
      %9144 = vmatmul.f32.gmra.mxu0 %v8901
      %v9145 = vpop.f32.mrf.mxu0
      %v9146 = vadd.f32 0.0, %v9145
      %9147 = vmatmul.f32.gmra.mxu0 %v8902
      %v9148 = vpop.f32.mrf.mxu0
      %v9149 = vadd.f32 0.0, %v9148
      %9150 = vmatmul.f32.gmra.mxu0 %v8903
      %v9151 = vpop.f32.mrf.mxu0
      %v9152 = vadd.f32 0.0, %v9151
      %9153 = vmatmul.f32.gmra.mxu0 %v8904
      %v9154 = vpop.f32.mrf.mxu0
      %v9155 = vadd.f32 0.0, %v9154
      %9156 = vmatmul.f32.gmra.mxu0 %v8905
      %v9157 = vpop.f32.mrf.mxu0
      %v9158 = vadd.f32 0.0, %v9157
      %9159 = vmatmul.f32.gmra.mxu0 %v8906
      %v9160 = vpop.f32.mrf.mxu0
      %v9161 = vadd.f32 0.0, %v9160
      %9162 = vmatmul.f32.gmra.mxu0 %v8907
      %v9163 = vpop.f32.mrf.mxu0
      %v9164 = vadd.f32 0.0, %v9163
      %9165 = vdwg.mxu0
      %9166 = vmatpush.msra.mxu0 0.0
      %9167 = vmatpush.msra.mxu0 0.0
      %9168 = vmatpush.msra.mxu0 0.0
      %9169 = vmatpush.msra.mxu0 0.0
      %9170 = vmatpush.msra.mxu0 0.0
      %9171 = vmatpush.msra.mxu0 0.0
      %9172 = vmatpush.msra.mxu0 0.0
      %9173 = vmatpush.msra.mxu0 0.0
      %9174 = vmatpush.msra.mxu0 %v8932
      %9175 = vmatpush.msra.mxu0 %v8931
      %9176 = vmatpush.msra.mxu0 %v8930
      %9177 = vmatpush.msra.mxu0 %v8929
      %9178 = vmatpush.msra.mxu0 %v8928
      %9179 = vmatpush.msra.mxu0 %v8927
      %9180 = vmatpush.msra.mxu0 %v8926
      %9181 = vmatpush.msra.mxu0 %v8925
      %9182 = vmatmul.f32.gmra.mxu0 %v8934
      %v9183 = vpop.f32.mrf.mxu0
      %v9184 = vadd.f32 %v9059, %v9183
      %9185 = vmatmul.f32.gmra.mxu0 %v8937
      %v9186 = vpop.f32.mrf.mxu0
      %v9187 = vadd.f32 %v9062, %v9186
      %9188 = vmatmul.f32.gmra.mxu0 %v8940
      %v9189 = vpop.f32.mrf.mxu0
      %v9190 = vadd.f32 %v9065, %v9189
      %9191 = vmatmul.f32.gmra.mxu0 %v8943
      %v9192 = vpop.f32.mrf.mxu0
      %v9193 = vadd.f32 %v9068, %v9192
      %9194 = vmatmul.f32.gmra.mxu0 %v8946
      %v9195 = vpop.f32.mrf.mxu0
      %v9196 = vadd.f32 %v9071, %v9195
      %9197 = vmatmul.f32.gmra.mxu0 %v8949
      %v9198 = vpop.f32.mrf.mxu0
      %v9199 = vadd.f32 %v9074, %v9198
      %9200 = vmatmul.f32.gmra.mxu0 %v8952
      %v9201 = vpop.f32.mrf.mxu0
      %v9202 = vadd.f32 %v9077, %v9201
      %9203 = vmatmul.f32.gmra.mxu0 %v8955
      %v9204 = vpop.f32.mrf.mxu0
      %v9205 = vadd.f32 %v9080, %v9204
      %9206 = vmatmul.f32.gmra.mxu0 %v8958
      %v9207 = vpop.f32.mrf.mxu0
      %v9208 = vadd.f32 %v9083, %v9207
      %9209 = vmatmul.f32.gmra.mxu0 %v8961
      %v9210 = vpop.f32.mrf.mxu0
      %v9211 = vadd.f32 %v9086, %v9210
      %9212 = vmatmul.f32.gmra.mxu0 %v8964
      %v9213 = vpop.f32.mrf.mxu0
      %v9214 = vadd.f32 %v9089, %v9213
      %9215 = vmatmul.f32.gmra.mxu0 %v8967
      %v9216 = vpop.f32.mrf.mxu0
      %v9217 = vadd.f32 %v9092, %v9216
      %9218 = vmatmul.f32.gmra.mxu0 %v8970
      %v9219 = vpop.f32.mrf.mxu0
      %v9220 = vadd.f32 %v9095, %v9219
      %9221 = vmatmul.f32.gmra.mxu0 %v8973
      %v9222 = vpop.f32.mrf.mxu0
      %v9223 = vadd.f32 %v9098, %v9222
      %9224 = vmatmul.f32.gmra.mxu0 %v8976
      %v9225 = vpop.f32.mrf.mxu0
      %v9226 = vadd.f32 %v9101, %v9225
      %9227 = vmatmul.f32.gmra.mxu0 %v8979
      %v9228 = vpop.f32.mrf.mxu0
      %v9229 = vadd.f32 %v9104, %v9228
      %9230 = vmatmul.f32.gmra.mxu0 %v8982
      %v9231 = vpop.f32.mrf.mxu0
      %v9232 = vadd.f32 %v9107, %v9231
      %9233 = vmatmul.f32.gmra.mxu0 %v8985
      %v9234 = vpop.f32.mrf.mxu0
      %v9235 = vadd.f32 %v9110, %v9234
      %9236 = vmatmul.f32.gmra.mxu0 %v8988
      %v9237 = vpop.f32.mrf.mxu0
      %v9238 = vadd.f32 %v9113, %v9237
      %9239 = vmatmul.f32.gmra.mxu0 %v8991
      %v9240 = vpop.f32.mrf.mxu0
      %v9241 = vadd.f32 %v9116, %v9240
      %9242 = vmatmul.f32.gmra.mxu0 %v8994
      %v9243 = vpop.f32.mrf.mxu0
      %v9244 = vadd.f32 %v9119, %v9243
      %9245 = vmatmul.f32.gmra.mxu0 %v8997
      %v9246 = vpop.f32.mrf.mxu0
      %v9247 = vadd.f32 %v9122, %v9246
      %9248 = vmatmul.f32.gmra.mxu0 %v9000
      %v9249 = vpop.f32.mrf.mxu0
      %v9250 = vadd.f32 %v9125, %v9249
      %9251 = vmatmul.f32.gmra.mxu0 %v9003
      %v9252 = vpop.f32.mrf.mxu0
      %v9253 = vadd.f32 %v9128, %v9252
      %9254 = vmatmul.f32.gmra.mxu0 %v9006
      %v9255 = vpop.f32.mrf.mxu0
      %v9256 = vadd.f32 %v9131, %v9255
      %9257 = vmatmul.f32.gmra.mxu0 %v9009
      %v9258 = vpop.f32.mrf.mxu0
      %v9259 = vadd.f32 %v9134, %v9258
      %9260 = vmatmul.f32.gmra.mxu0 %v9012
      %v9261 = vpop.f32.mrf.mxu0
      %v9262 = vadd.f32 %v9137, %v9261
      %9263 = vmatmul.f32.gmra.mxu0 %v9015
      %v9264 = vpop.f32.mrf.mxu0
      %v9265 = vadd.f32 %v9140, %v9264
      %9266 = vmatmul.f32.gmra.mxu0 %v9018
      %v9267 = vpop.f32.mrf.mxu0
      %v9268 = vadd.f32 %v9143, %v9267
      %9269 = vmatmul.f32.gmra.mxu0 %v9021
      %v9270 = vpop.f32.mrf.mxu0
      %v9271 = vadd.f32 %v9146, %v9270
      %9272 = vmatmul.f32.gmra.mxu0 %v9024
      %v9273 = vpop.f32.mrf.mxu0
      %v9274 = vadd.f32 %v9149, %v9273
      %9275 = vmatmul.f32.gmra.mxu0 %v9027
      %v9276 = vpop.f32.mrf.mxu0
      %v9277 = vadd.f32 %v9152, %v9276
      %9278 = vmatmul.f32.gmra.mxu0 %v9030
      %v9279 = vpop.f32.mrf.mxu0
      %v9280 = vadd.f32 %v9155, %v9279
      %9281 = vmatmul.f32.gmra.mxu0 %v9033
      %v9282 = vpop.f32.mrf.mxu0
      %v9283 = vadd.f32 %v9158, %v9282
      %9284 = vmatmul.f32.gmra.mxu0 %v9036
      %v9285 = vpop.f32.mrf.mxu0
      %v9286 = vadd.f32 %v9161, %v9285
      %9287 = vmatmul.f32.gmra.mxu0 %v9039
      %v9288 = vpop.f32.mrf.mxu0
      %v9289 = vadd.f32 %v9164, %v9288
      %9290 = vdwg.mxu0
      %v9292 = vsel %vm1936, %v8413, 0
      %v9295 = vsel %vm1936, %v8414, 0
      %v9298 = vsel %vm1936, %v8415, 0
      %v9301 = vsel %vm1936, %v8416, 0
      %v9304 = vsel %vm1936, %v8417, 0
      %v9307 = vsel %vm1936, %v8418, 0
      %v9310 = vsel %vm1936, %v8419, 0
      %v9313 = vsel %vm1936, %v8420, 0
      %v9316 = vsel %vm1936, %v8421, 0
      %v9319 = vsel %vm1936, %v8422, 0
      %v9322 = vsel %vm1936, %v8423, 0
      %v9325 = vsel %vm1936, %v8424, 0
      %v9328 = vsel %vm1936, %v8425, 0
      %v9331 = vsel %vm1936, %v8426, 0
      %v9334 = vsel %vm1936, %v8427, 0
      %v9337 = vsel %vm1936, %v8428, 0
      %v9340 = vsel %vm1936, %v8429, 0
      %v9343 = vsel %vm1936, %v8430, 0
      %v9346 = vsel %vm1936, %v8431, 0
      %v9349 = vsel %vm1936, %v8432, 0
      %v9352 = vsel %vm1936, %v8433, 0
      %v9355 = vsel %vm1936, %v8434, 0
      %v9358 = vsel %vm1936, %v8435, 0
      %v9361 = vsel %vm1936, %v8436, 0
      %v9364 = vsel %vm1936, %v8437, 0
      %v9367 = vsel %vm1936, %v8438, 0
      %v9370 = vsel %vm1936, %v8439, 0
      %v9373 = vsel %vm1936, %v8440, 0
      %v9376 = vsel %vm1936, %v8441, 0
      %v9379 = vsel %vm1936, %v8442, 0
      %v9382 = vsel %vm1936, %v8443, 0
      %v9385 = vsel %vm1936, %v8444, 0
      %v9388 = vsel %vm1936, %v8445, 0
      %v9391 = vsel %vm1936, %v8446, 0
      %v9394 = vsel %vm1936, %v8447, 0
      %v9397 = vsel %vm1936, %v8448, 0
      %9399 = vmatpush.msra.mxu0 %v8645
      %9400 = vmatpush.msra.mxu0 %v8644
      %9401 = vmatpush.msra.mxu0 %v8643
      %9402 = vmatpush.msra.mxu0 %v8642
      %9403 = vmatpush.msra.mxu0 %v8641
      %9404 = vmatpush.msra.mxu0 %v8640
      %9405 = vmatpush.msra.mxu0 %v8639
      %9406 = vmatpush.msra.mxu0 %v8638
      %9407 = vmatpush.msra.mxu0 %v8637
      %9408 = vmatpush.msra.mxu0 %v8636
      %9409 = vmatpush.msra.mxu0 %v8635
      %9410 = vmatpush.msra.mxu0 %v8634
      %9411 = vmatpush.msra.mxu0 %v8633
      %9412 = vmatpush.msra.mxu0 %v8632
      %9413 = vmatpush.msra.mxu0 %v8631
      %9414 = vmatpush.msra.mxu0 %v8630
      %9415 = vmatmul.f32.gmra.mxu0 %v8593
      %v9416 = vpop.f32.mrf.mxu0
      %v9417 = vadd.f32 %v9184, %v9416
      %9418 = vmatmul.f32.gmra.mxu0 %v8594
      %v9419 = vpop.f32.mrf.mxu0
      %v9420 = vadd.f32 %v9187, %v9419
      %9421 = vmatmul.f32.gmra.mxu0 %v8595
      %v9422 = vpop.f32.mrf.mxu0
      %v9423 = vadd.f32 %v9190, %v9422
      %9424 = vmatmul.f32.gmra.mxu0 %v8596
      %v9425 = vpop.f32.mrf.mxu0
      %v9426 = vadd.f32 %v9193, %v9425
      %9427 = vmatmul.f32.gmra.mxu0 %v8597
      %v9428 = vpop.f32.mrf.mxu0
      %v9429 = vadd.f32 %v9196, %v9428
      %9430 = vmatmul.f32.gmra.mxu0 %v8598
      %v9431 = vpop.f32.mrf.mxu0
      %v9432 = vadd.f32 %v9199, %v9431
      %9433 = vmatmul.f32.gmra.mxu0 %v8599
      %v9434 = vpop.f32.mrf.mxu0
      %v9435 = vadd.f32 %v9202, %v9434
      %9436 = vmatmul.f32.gmra.mxu0 %v8600
      %v9437 = vpop.f32.mrf.mxu0
      %v9438 = vadd.f32 %v9205, %v9437
      %9439 = vmatmul.f32.gmra.mxu0 %v8601
      %v9440 = vpop.f32.mrf.mxu0
      %v9441 = vadd.f32 %v9208, %v9440
      %9442 = vmatmul.f32.gmra.mxu0 %v8602
      %v9443 = vpop.f32.mrf.mxu0
      %v9444 = vadd.f32 %v9211, %v9443
      %9445 = vmatmul.f32.gmra.mxu0 %v8603
      %v9446 = vpop.f32.mrf.mxu0
      %v9447 = vadd.f32 %v9214, %v9446
      %9448 = vmatmul.f32.gmra.mxu0 %v8604
      %v9449 = vpop.f32.mrf.mxu0
      %v9450 = vadd.f32 %v9217, %v9449
      %9451 = vmatmul.f32.gmra.mxu0 %v8605
      %v9452 = vpop.f32.mrf.mxu0
      %v9453 = vadd.f32 %v9220, %v9452
      %9454 = vmatmul.f32.gmra.mxu0 %v8606
      %v9455 = vpop.f32.mrf.mxu0
      %v9456 = vadd.f32 %v9223, %v9455
      %9457 = vmatmul.f32.gmra.mxu0 %v8607
      %v9458 = vpop.f32.mrf.mxu0
      %v9459 = vadd.f32 %v9226, %v9458
      %9460 = vmatmul.f32.gmra.mxu0 %v8608
      %v9461 = vpop.f32.mrf.mxu0
      %v9462 = vadd.f32 %v9229, %v9461
      %9463 = vmatmul.f32.gmra.mxu0 %v8609
      %v9464 = vpop.f32.mrf.mxu0
      %v9465 = vadd.f32 %v9232, %v9464
      %9466 = vmatmul.f32.gmra.mxu0 %v8610
      %v9467 = vpop.f32.mrf.mxu0
      %v9468 = vadd.f32 %v9235, %v9467
      %9469 = vmatmul.f32.gmra.mxu0 %v8611
      %v9470 = vpop.f32.mrf.mxu0
      %v9471 = vadd.f32 %v9238, %v9470
      %9472 = vmatmul.f32.gmra.mxu0 %v8612
      %v9473 = vpop.f32.mrf.mxu0
      %v9474 = vadd.f32 %v9241, %v9473
      %9475 = vmatmul.f32.gmra.mxu0 %v8613
      %v9476 = vpop.f32.mrf.mxu0
      %v9477 = vadd.f32 %v9244, %v9476
      %9478 = vmatmul.f32.gmra.mxu0 %v8614
      %v9479 = vpop.f32.mrf.mxu0
      %v9480 = vadd.f32 %v9247, %v9479
      %9481 = vmatmul.f32.gmra.mxu0 %v8615
      %v9482 = vpop.f32.mrf.mxu0
      %v9483 = vadd.f32 %v9250, %v9482
      %9484 = vmatmul.f32.gmra.mxu0 %v8616
      %v9485 = vpop.f32.mrf.mxu0
      %v9486 = vadd.f32 %v9253, %v9485
      %9487 = vmatmul.f32.gmra.mxu0 %v8617
      %v9488 = vpop.f32.mrf.mxu0
      %v9489 = vadd.f32 %v9256, %v9488
      %9490 = vmatmul.f32.gmra.mxu0 %v8618
      %v9491 = vpop.f32.mrf.mxu0
      %v9492 = vadd.f32 %v9259, %v9491
      %9493 = vmatmul.f32.gmra.mxu0 %v8619
      %v9494 = vpop.f32.mrf.mxu0
      %v9495 = vadd.f32 %v9262, %v9494
      %9496 = vmatmul.f32.gmra.mxu0 %v8620
      %v9497 = vpop.f32.mrf.mxu0
      %v9498 = vadd.f32 %v9265, %v9497
      %9499 = vmatmul.f32.gmra.mxu0 %v8621
      %v9500 = vpop.f32.mrf.mxu0
      %v9501 = vadd.f32 %v9268, %v9500
      %9502 = vmatmul.f32.gmra.mxu0 %v8622
      %v9503 = vpop.f32.mrf.mxu0
      %v9504 = vadd.f32 %v9271, %v9503
      %9505 = vmatmul.f32.gmra.mxu0 %v8623
      %v9506 = vpop.f32.mrf.mxu0
      %v9507 = vadd.f32 %v9274, %v9506
      %9508 = vmatmul.f32.gmra.mxu0 %v8624
      %v9509 = vpop.f32.mrf.mxu0
      %v9510 = vadd.f32 %v9277, %v9509
      %9511 = vmatmul.f32.gmra.mxu0 %v8625
      %v9512 = vpop.f32.mrf.mxu0
      %v9513 = vadd.f32 %v9280, %v9512
      %9514 = vmatmul.f32.gmra.mxu0 %v8626
      %v9515 = vpop.f32.mrf.mxu0
      %v9516 = vadd.f32 %v9283, %v9515
      %9517 = vmatmul.f32.gmra.mxu0 %v8627
      %v9518 = vpop.f32.mrf.mxu0
      %v9519 = vadd.f32 %v9286, %v9518
      %9520 = vmatmul.f32.gmra.mxu0 %v8628
      %v9521 = vpop.f32.mrf.mxu0
      %v9522 = vadd.f32 %v9289, %v9521
      %9523 = vdwg.mxu0
      %9524 = vmatpush.msra.mxu0 0.0
      %9525 = vmatpush.msra.mxu0 0.0
      %9526 = vmatpush.msra.mxu0 0.0
      %9527 = vmatpush.msra.mxu0 0.0
      %9528 = vmatpush.msra.mxu0 0.0
      %9529 = vmatpush.msra.mxu0 0.0
      %9530 = vmatpush.msra.mxu0 0.0
      %9531 = vmatpush.msra.mxu0 0.0
      %9532 = vmatpush.msra.mxu0 %v8653
      %9533 = vmatpush.msra.mxu0 %v8652
      %9534 = vmatpush.msra.mxu0 %v8651
      %9535 = vmatpush.msra.mxu0 %v8650
      %9536 = vmatpush.msra.mxu0 %v8649
      %9537 = vmatpush.msra.mxu0 %v8648
      %9538 = vmatpush.msra.mxu0 %v8647
      %9539 = vmatpush.msra.mxu0 %v8646
      %9540 = vmatmul.f32.gmra.mxu0 %v9292
      %v9541 = vpop.f32.mrf.mxu0
      %v9542 = vadd.f32 %v9417, %v9541
      %9543 = vmatmul.f32.gmra.mxu0 %v9295
      %v9544 = vpop.f32.mrf.mxu0
      %v9545 = vadd.f32 %v9420, %v9544
      %9546 = vmatmul.f32.gmra.mxu0 %v9298
      %v9547 = vpop.f32.mrf.mxu0
      %v9548 = vadd.f32 %v9423, %v9547
      %9549 = vmatmul.f32.gmra.mxu0 %v9301
      %v9550 = vpop.f32.mrf.mxu0
      %v9551 = vadd.f32 %v9426, %v9550
      %9552 = vmatmul.f32.gmra.mxu0 %v9304
      %v9553 = vpop.f32.mrf.mxu0
      %v9554 = vadd.f32 %v9429, %v9553
      %9555 = vmatmul.f32.gmra.mxu0 %v9307
      %v9556 = vpop.f32.mrf.mxu0
      %v9557 = vadd.f32 %v9432, %v9556
      %9558 = vmatmul.f32.gmra.mxu0 %v9310
      %v9559 = vpop.f32.mrf.mxu0
      %v9560 = vadd.f32 %v9435, %v9559
      %9561 = vmatmul.f32.gmra.mxu0 %v9313
      %v9562 = vpop.f32.mrf.mxu0
      %v9563 = vadd.f32 %v9438, %v9562
      %9564 = vmatmul.f32.gmra.mxu0 %v9316
      %v9565 = vpop.f32.mrf.mxu0
      %v9566 = vadd.f32 %v9441, %v9565
      %9567 = vmatmul.f32.gmra.mxu0 %v9319
      %v9568 = vpop.f32.mrf.mxu0
      %v9569 = vadd.f32 %v9444, %v9568
      %9570 = vmatmul.f32.gmra.mxu0 %v9322
      %v9571 = vpop.f32.mrf.mxu0
      %v9572 = vadd.f32 %v9447, %v9571
      %9573 = vmatmul.f32.gmra.mxu0 %v9325
      %v9574 = vpop.f32.mrf.mxu0
      %v9575 = vadd.f32 %v9450, %v9574
      %9576 = vmatmul.f32.gmra.mxu0 %v9328
      %v9577 = vpop.f32.mrf.mxu0
      %v9578 = vadd.f32 %v9453, %v9577
      %9579 = vmatmul.f32.gmra.mxu0 %v9331
      %v9580 = vpop.f32.mrf.mxu0
      %v9581 = vadd.f32 %v9456, %v9580
      %9582 = vmatmul.f32.gmra.mxu0 %v9334
      %v9583 = vpop.f32.mrf.mxu0
      %v9584 = vadd.f32 %v9459, %v9583
      %9585 = vmatmul.f32.gmra.mxu0 %v9337
      %v9586 = vpop.f32.mrf.mxu0
      %v9587 = vadd.f32 %v9462, %v9586
      %9588 = vmatmul.f32.gmra.mxu0 %v9340
      %v9589 = vpop.f32.mrf.mxu0
      %v9590 = vadd.f32 %v9465, %v9589
      %9591 = vmatmul.f32.gmra.mxu0 %v9343
      %v9592 = vpop.f32.mrf.mxu0
      %v9593 = vadd.f32 %v9468, %v9592
      %9594 = vmatmul.f32.gmra.mxu0 %v9346
      %v9595 = vpop.f32.mrf.mxu0
      %v9596 = vadd.f32 %v9471, %v9595
      %9597 = vmatmul.f32.gmra.mxu0 %v9349
      %v9598 = vpop.f32.mrf.mxu0
      %v9599 = vadd.f32 %v9474, %v9598
      %9600 = vmatmul.f32.gmra.mxu0 %v9352
      %v9601 = vpop.f32.mrf.mxu0
      %v9602 = vadd.f32 %v9477, %v9601
      %9603 = vmatmul.f32.gmra.mxu0 %v9355
      %v9604 = vpop.f32.mrf.mxu0
      %v9605 = vadd.f32 %v9480, %v9604
      %9606 = vmatmul.f32.gmra.mxu0 %v9358
      %v9607 = vpop.f32.mrf.mxu0
      %v9608 = vadd.f32 %v9483, %v9607
      %9609 = vmatmul.f32.gmra.mxu0 %v9361
      %v9610 = vpop.f32.mrf.mxu0
      %v9611 = vadd.f32 %v9486, %v9610
      %9612 = vmatmul.f32.gmra.mxu0 %v9364
      %v9613 = vpop.f32.mrf.mxu0
      %v9614 = vadd.f32 %v9489, %v9613
      %9615 = vmatmul.f32.gmra.mxu0 %v9367
      %v9616 = vpop.f32.mrf.mxu0
      %v9617 = vadd.f32 %v9492, %v9616
      %9618 = vmatmul.f32.gmra.mxu0 %v9370
      %v9619 = vpop.f32.mrf.mxu0
      %v9620 = vadd.f32 %v9495, %v9619
      %9621 = vmatmul.f32.gmra.mxu0 %v9373
      %v9622 = vpop.f32.mrf.mxu0
      %v9623 = vadd.f32 %v9498, %v9622
      %9624 = vmatmul.f32.gmra.mxu0 %v9376
      %v9625 = vpop.f32.mrf.mxu0
      %v9626 = vadd.f32 %v9501, %v9625
      %9627 = vmatmul.f32.gmra.mxu0 %v9379
      %v9628 = vpop.f32.mrf.mxu0
      %v9629 = vadd.f32 %v9504, %v9628
      %9630 = vmatmul.f32.gmra.mxu0 %v9382
      %v9631 = vpop.f32.mrf.mxu0
      %v9632 = vadd.f32 %v9507, %v9631
      %9633 = vmatmul.f32.gmra.mxu0 %v9385
      %v9634 = vpop.f32.mrf.mxu0
      %v9635 = vadd.f32 %v9510, %v9634
      %9636 = vmatmul.f32.gmra.mxu0 %v9388
      %v9637 = vpop.f32.mrf.mxu0
      %v9638 = vadd.f32 %v9513, %v9637
      %9639 = vmatmul.f32.gmra.mxu0 %v9391
      %v9640 = vpop.f32.mrf.mxu0
      %v9641 = vadd.f32 %v9516, %v9640
      %9642 = vmatmul.f32.gmra.mxu0 %v9394
      %v9643 = vpop.f32.mrf.mxu0
      %v9644 = vadd.f32 %v9519, %v9643
      %9645 = vmatmul.f32.gmra.mxu0 %v9397
      %v9646 = vpop.f32.mrf.mxu0
      %v9647 = vadd.f32 %v9522, %v9646
      %9648 = vdwg.mxu0
      %v9649 = vld [vmem:[#allocation3 + $0x24] sm:$0xff]
      %v9650 = vld [vmem:[#allocation3 + $0x2c] sm:$0xff]
      %v9651 = vld [vmem:[#allocation3 + $0x34] sm:$0xff]
      %v9652 = vld [vmem:[#allocation3 + $0x3c] sm:$0xff]
      %v9653 = vld [vmem:[#allocation3 + $0x44] sm:$0xff]
      %v9654 = vld [vmem:[#allocation3 + $0x4c] sm:$0xff]
      %v9655 = vld [vmem:[#allocation3 + $0x54] sm:$0xff]
      %v9656 = vld [vmem:[#allocation3 + $0x5c] sm:$0xff]
      %v9657 = vld [vmem:[#allocation3 + $0x64] sm:$0xff]
      %v9658 = vld [vmem:[#allocation3 + $0x6c] sm:$0xff]
      %v9659 = vld [vmem:[#allocation3 + $0x74] sm:$0xff]
      %v9660 = vld [vmem:[#allocation3 + $0x7c] sm:$0xff]
      %v9661 = vld [vmem:[#allocation3 + $0x84] sm:$0xff]
      %v9662 = vld [vmem:[#allocation3 + $0x8c] sm:$0xff]
      %v9663 = vld [vmem:[#allocation3 + $0x94] sm:$0xff]
      %v9664 = vld [vmem:[#allocation3 + $0x9c] sm:$0xff]
      %v9665 = vld [vmem:[#allocation3 + $0xa4] sm:$0xff]
      %v9666 = vld [vmem:[#allocation3 + $0xac] sm:$0xff]
      %v9667 = vld [vmem:[#allocation3 + $0xb4] sm:$0xff]
      %v9668 = vld [vmem:[#allocation3 + $0xbc] sm:$0xff]
      %v9669 = vld [vmem:[#allocation3 + $0xc4] sm:$0xff]
      %v9670 = vld [vmem:[#allocation3 + $0xcc] sm:$0xff]
      %v9671 = vld [vmem:[#allocation3 + $0xd4] sm:$0xff]
      %v9672 = vld [vmem:[#allocation3 + $0xdc] sm:$0xff]
      %v9673 = vld [vmem:[#allocation3 + $0xe4] sm:$0xff]
      %v9674 = vld [vmem:[#allocation3 + $0xec] sm:$0xff]
      %v9675 = vld [vmem:[#allocation3 + $0xf4] sm:$0xff]
      %v9676 = vld [vmem:[#allocation3 + $0xfc] sm:$0xff]
      %v9677 = vld [vmem:[#allocation3 + $0x104] sm:$0xff]
      %v9678 = vld [vmem:[#allocation3 + $0x10c] sm:$0xff]
      %v9679 = vld [vmem:[#allocation3 + $0x114] sm:$0xff]
      %v9680 = vld [vmem:[#allocation3 + $0x11c] sm:$0xff]
      %v9681 = vld [vmem:[#allocation3 + $0x124] sm:$0xff]
      %v9682 = vld [vmem:[#allocation3 + $0x12c] sm:$0xff]
      %v9683 = vld [vmem:[#allocation3 + $0x134] sm:$0xff]
      %v9684 = vld [vmem:[#allocation3 + $0x13c] sm:$0xff]
      %v9685 = vld [vmem:[#allocation3 + $0x25] sm:$0xff]
      %v9686 = vld [vmem:[#allocation3 + $0x2d] sm:$0xff]
      %v9687 = vld [vmem:[#allocation3 + $0x35] sm:$0xff]
      %v9688 = vld [vmem:[#allocation3 + $0x3d] sm:$0xff]
      %v9689 = vld [vmem:[#allocation3 + $0x45] sm:$0xff]
      %v9690 = vld [vmem:[#allocation3 + $0x4d] sm:$0xff]
      %v9691 = vld [vmem:[#allocation3 + $0x55] sm:$0xff]
      %v9692 = vld [vmem:[#allocation3 + $0x5d] sm:$0xff]
      %v9693 = vld [vmem:[#allocation3 + $0x65] sm:$0xff]
      %v9694 = vld [vmem:[#allocation3 + $0x6d] sm:$0xff]
      %v9695 = vld [vmem:[#allocation3 + $0x75] sm:$0xff]
      %v9696 = vld [vmem:[#allocation3 + $0x7d] sm:$0xff]
      %v9697 = vld [vmem:[#allocation3 + $0x85] sm:$0xff]
      %v9698 = vld [vmem:[#allocation3 + $0x8d] sm:$0xff]
      %v9699 = vld [vmem:[#allocation3 + $0x95] sm:$0xff]
      %v9700 = vld [vmem:[#allocation3 + $0x9d] sm:$0xff]
      %v9701 = vld [vmem:[#allocation3 + $0xa5] sm:$0xff]
      %v9702 = vld [vmem:[#allocation3 + $0xad] sm:$0xff]
      %v9703 = vld [vmem:[#allocation3 + $0xb5] sm:$0xff]
      %v9704 = vld [vmem:[#allocation3 + $0xbd] sm:$0xff]
      %v9705 = vld [vmem:[#allocation3 + $0xc5] sm:$0xff]
      %v9706 = vld [vmem:[#allocation3 + $0xcd] sm:$0xff]
      %v9707 = vld [vmem:[#allocation3 + $0xd5] sm:$0xff]
      %v9708 = vld [vmem:[#allocation3 + $0xdd] sm:$0xff]
      %v9709 = vld [vmem:[#allocation3 + $0xe5] sm:$0xff]
      %v9710 = vld [vmem:[#allocation3 + $0xed] sm:$0xff]
      %v9711 = vld [vmem:[#allocation3 + $0xf5] sm:$0xff]
      %v9712 = vld [vmem:[#allocation3 + $0xfd] sm:$0xff]
      %v9713 = vld [vmem:[#allocation3 + $0x105] sm:$0xff]
      %v9714 = vld [vmem:[#allocation3 + $0x10d] sm:$0xff]
      %v9715 = vld [vmem:[#allocation3 + $0x115] sm:$0xff]
      %v9716 = vld [vmem:[#allocation3 + $0x11d] sm:$0xff]
      %v9717 = vld [vmem:[#allocation3 + $0x125] sm:$0xff]
      %v9718 = vld [vmem:[#allocation3 + $0x12d] sm:$0xff]
      %v9719 = vld [vmem:[#allocation3 + $0x135] sm:$0xff]
      %v9720 = vld [vmem:[#allocation3 + $0x13d] sm:$0xff]
      %v9721 = vld [vmem:[#allocation3 + $0x26] sm:$0xff]
      %v9722 = vld [vmem:[#allocation3 + $0x2e] sm:$0xff]
      %v9723 = vld [vmem:[#allocation3 + $0x36] sm:$0xff]
      %v9724 = vld [vmem:[#allocation3 + $0x3e] sm:$0xff]
      %v9725 = vld [vmem:[#allocation3 + $0x46] sm:$0xff]
      %v9726 = vld [vmem:[#allocation3 + $0x4e] sm:$0xff]
      %v9727 = vld [vmem:[#allocation3 + $0x56] sm:$0xff]
      %v9728 = vld [vmem:[#allocation3 + $0x5e] sm:$0xff]
      %v9729 = vld [vmem:[#allocation3 + $0x66] sm:$0xff]
      %v9730 = vld [vmem:[#allocation3 + $0x6e] sm:$0xff]
      %v9731 = vld [vmem:[#allocation3 + $0x76] sm:$0xff]
      %v9732 = vld [vmem:[#allocation3 + $0x7e] sm:$0xff]
      %v9733 = vld [vmem:[#allocation3 + $0x86] sm:$0xff]
      %v9734 = vld [vmem:[#allocation3 + $0x8e] sm:$0xff]
      %v9735 = vld [vmem:[#allocation3 + $0x96] sm:$0xff]
      %v9736 = vld [vmem:[#allocation3 + $0x9e] sm:$0xff]
      %v9737 = vld [vmem:[#allocation3 + $0xa6] sm:$0xff]
      %v9738 = vld [vmem:[#allocation3 + $0xae] sm:$0xff]
      %v9739 = vld [vmem:[#allocation3 + $0xb6] sm:$0xff]
      %v9740 = vld [vmem:[#allocation3 + $0xbe] sm:$0xff]
      %v9741 = vld [vmem:[#allocation3 + $0xc6] sm:$0xff]
      %v9742 = vld [vmem:[#allocation3 + $0xce] sm:$0xff]
      %v9743 = vld [vmem:[#allocation3 + $0xd6] sm:$0xff]
      %v9744 = vld [vmem:[#allocation3 + $0xde] sm:$0xff]
      %v9745 = vld [vmem:[#allocation3 + $0xe6] sm:$0xff]
      %v9746 = vld [vmem:[#allocation3 + $0xee] sm:$0xff]
      %v9747 = vld [vmem:[#allocation3 + $0xf6] sm:$0xff]
      %v9748 = vld [vmem:[#allocation3 + $0xfe] sm:$0xff]
      %v9749 = vld [vmem:[#allocation3 + $0x106] sm:$0xff]
      %v9750 = vld [vmem:[#allocation3 + $0x10e] sm:$0xff]
      %v9751 = vld [vmem:[#allocation3 + $0x116] sm:$0xff]
      %v9752 = vld [vmem:[#allocation3 + $0x11e] sm:$0xff]
      %v9753 = vld [vmem:[#allocation3 + $0x126] sm:$0xff]
      %v9754 = vld [vmem:[#allocation3 + $0x12e] sm:$0xff]
      %v9755 = vld [vmem:[#allocation3 + $0x136] sm:$0xff]
      %v9756 = vld [vmem:[#allocation3 + $0x13e] sm:$0xff]
      %9793 = vrot.lane.b32.xlu0 %v9685, 64
      %v9794 = vpop.permute.xlu0 %9793
      %9795 = vrot.lane.b32.xlu0 %v9686, 64
      %v9796 = vpop.permute.xlu0 %9795
      %9797 = vrot.lane.b32.xlu0 %v9687, 64
      %v9798 = vpop.permute.xlu0 %9797
      %9799 = vrot.lane.b32.xlu0 %v9688, 64
      %v9800 = vpop.permute.xlu0 %9799
      %9801 = vrot.lane.b32.xlu0 %v9689, 64
      %v9802 = vpop.permute.xlu0 %9801
      %9803 = vrot.lane.b32.xlu0 %v9690, 64
      %v9804 = vpop.permute.xlu0 %9803
      %9805 = vrot.lane.b32.xlu0 %v9691, 64
      %v9806 = vpop.permute.xlu0 %9805
      %9807 = vrot.lane.b32.xlu0 %v9692, 64
      %v9808 = vpop.permute.xlu0 %9807
      %9809 = vrot.lane.b32.xlu0 %v9693, 64
      %v9810 = vpop.permute.xlu0 %9809
      %9811 = vrot.lane.b32.xlu0 %v9694, 64
      %v9812 = vpop.permute.xlu0 %9811
      %9813 = vrot.lane.b32.xlu0 %v9695, 64
      %v9814 = vpop.permute.xlu0 %9813
      %9815 = vrot.lane.b32.xlu0 %v9696, 64
      %v9816 = vpop.permute.xlu0 %9815
      %9817 = vrot.lane.b32.xlu0 %v9697, 64
      %v9818 = vpop.permute.xlu0 %9817
      %9819 = vrot.lane.b32.xlu0 %v9698, 64
      %v9820 = vpop.permute.xlu0 %9819
      %9821 = vrot.lane.b32.xlu0 %v9699, 64
      %v9822 = vpop.permute.xlu0 %9821
      %9823 = vrot.lane.b32.xlu0 %v9700, 64
      %v9824 = vpop.permute.xlu0 %9823
      %9825 = vrot.lane.b32.xlu0 %v9701, 64
      %v9826 = vpop.permute.xlu0 %9825
      %9827 = vrot.lane.b32.xlu0 %v9702, 64
      %v9828 = vpop.permute.xlu0 %9827
      %9829 = vrot.lane.b32.xlu0 %v9703, 64
      %v9830 = vpop.permute.xlu0 %9829
      %9831 = vrot.lane.b32.xlu0 %v9704, 64
      %v9832 = vpop.permute.xlu0 %9831
      %9833 = vrot.lane.b32.xlu0 %v9705, 64
      %v9834 = vpop.permute.xlu0 %9833
      %9835 = vrot.lane.b32.xlu0 %v9706, 64
      %v9836 = vpop.permute.xlu0 %9835
      %9837 = vrot.lane.b32.xlu0 %v9707, 64
      %v9838 = vpop.permute.xlu0 %9837
      %9839 = vrot.lane.b32.xlu0 %v9708, 64
      %v9840 = vpop.permute.xlu0 %9839
      %9841 = vrot.lane.b32.xlu0 %v9709, 64
      %v9842 = vpop.permute.xlu0 %9841
      %9843 = vrot.lane.b32.xlu0 %v9710, 64
      %v9844 = vpop.permute.xlu0 %9843
      %9845 = vrot.lane.b32.xlu0 %v9711, 64
      %v9846 = vpop.permute.xlu0 %9845
      %9847 = vrot.lane.b32.xlu0 %v9712, 64
      %v9848 = vpop.permute.xlu0 %9847
      %9849 = vrot.lane.b32.xlu0 %v9713, 64
      %v9850 = vpop.permute.xlu0 %9849
      %9851 = vrot.lane.b32.xlu0 %v9714, 64
      %v9852 = vpop.permute.xlu0 %9851
      %9853 = vrot.lane.b32.xlu0 %v9715, 64
      %v9854 = vpop.permute.xlu0 %9853
      %9855 = vrot.lane.b32.xlu0 %v9716, 64
      %v9856 = vpop.permute.xlu0 %9855
      %9857 = vrot.lane.b32.xlu0 %v9717, 64
      %v9858 = vpop.permute.xlu0 %9857
      %9859 = vrot.lane.b32.xlu0 %v9718, 64
      %v9860 = vpop.permute.xlu0 %9859
      %9861 = vrot.lane.b32.xlu0 %v9719, 64
      %v9862 = vpop.permute.xlu0 %9861
      %9863 = vrot.lane.b32.xlu0 %v9720, 64
      %v9864 = vpop.permute.xlu0 %9863
      %v9901 = vsel %vm1936, %v9649, %v9794
      %v9902 = vsel %vm1936, %v9650, %v9796
      %v9903 = vsel %vm1936, %v9651, %v9798
      %v9904 = vsel %vm1936, %v9652, %v9800
      %v9905 = vsel %vm1936, %v9653, %v9802
      %v9906 = vsel %vm1936, %v9654, %v9804
      %v9907 = vsel %vm1936, %v9655, %v9806
      %v9908 = vsel %vm1936, %v9656, %v9808
      %v9909 = vsel %vm1936, %v9657, %v9810
      %v9910 = vsel %vm1936, %v9658, %v9812
      %v9911 = vsel %vm1936, %v9659, %v9814
      %v9912 = vsel %vm1936, %v9660, %v9816
      %v9913 = vsel %vm1936, %v9661, %v9818
      %v9914 = vsel %vm1936, %v9662, %v9820
      %v9915 = vsel %vm1936, %v9663, %v9822
      %v9916 = vsel %vm1936, %v9664, %v9824
      %v9917 = vsel %vm1936, %v9665, %v9826
      %v9918 = vsel %vm1936, %v9666, %v9828
      %v9919 = vsel %vm1936, %v9667, %v9830
      %v9920 = vsel %vm1936, %v9668, %v9832
      %v9921 = vsel %vm1936, %v9669, %v9834
      %v9922 = vsel %vm1936, %v9670, %v9836
      %v9923 = vsel %vm1936, %v9671, %v9838
      %v9924 = vsel %vm1936, %v9672, %v9840
      %v9925 = vsel %vm1936, %v9673, %v9842
      %v9926 = vsel %vm1936, %v9674, %v9844
      %v9927 = vsel %vm1936, %v9675, %v9846
      %v9928 = vsel %vm1936, %v9676, %v9848
      %v9929 = vsel %vm1936, %v9677, %v9850
      %v9930 = vsel %vm1936, %v9678, %v9852
      %v9931 = vsel %vm1936, %v9679, %v9854
      %v9932 = vsel %vm1936, %v9680, %v9856
      %v9933 = vsel %vm1936, %v9681, %v9858
      %v9934 = vsel %vm1936, %v9682, %v9860
      %v9935 = vsel %vm1936, %v9683, %v9862
      %v9936 = vsel %vm1936, %v9684, %v9864
      %s9937 = scalar_lea.vmem %s2, 2112
      %v9938 = vld [vmem:[%s9937] sm:$0xff]
      %v9939 = vld [vmem:[%s9937 + $0x8] sm:$0xff]
      %v9940 = vld [vmem:[%s9937 + $0x10] sm:$0xff]
      %v9941 = vld [vmem:[%s9937 + $0x18] sm:$0xff]
      %v9942 = vld [vmem:[%s9937 + $0x20] sm:$0xff]
      %v9943 = vld [vmem:[%s9937 + $0x28] sm:$0xff]
      %v9944 = vld [vmem:[%s9937 + $0x30] sm:$0xff]
      %v9945 = vld [vmem:[%s9937 + $0x38] sm:$0xff]
      %v9946 = vld [vmem:[%s9937 + $0x40] sm:$0xff]
      %v9947 = vld [vmem:[%s9937 + $0x48] sm:$0xff]
      %v9948 = vld [vmem:[%s9937 + $0x50] sm:$0xff]
      %v9949 = vld [vmem:[%s9937 + $0x58] sm:$0xff]
      %v9950 = vld [vmem:[%s9937 + $0x60] sm:$0xff]
      %v9951 = vld [vmem:[%s9937 + $0x68] sm:$0xff]
      %v9952 = vld [vmem:[%s9937 + $0x70] sm:$0xff]
      %v9953 = vld [vmem:[%s9937 + $0x78] sm:$0xff]
      %v9954 = vld [vmem:[%s9937 + $0x80] sm:$0xff]
      %v9955 = vld [vmem:[%s9937 + $0x88] sm:$0xff]
      %v9956 = vld [vmem:[%s9937 + $0x90] sm:$0xff]
      %v9957 = vld [vmem:[%s9937 + $0x98] sm:$0xff]
      %v9958 = vld [vmem:[%s9937 + $0xa0] sm:$0xff]
      %v9959 = vld [vmem:[%s9937 + $0xa8] sm:$0xff]
      %v9960 = vld [vmem:[%s9937 + $0xb0] sm:$0xff]
      %v9961 = vld [vmem:[%s9937 + $0xb8] sm:$0xff]
      %v9963 = vsel %vm1936, %v9721, 0
      %v9966 = vsel %vm1936, %v9722, 0
      %v9969 = vsel %vm1936, %v9723, 0
      %v9972 = vsel %vm1936, %v9724, 0
      %v9975 = vsel %vm1936, %v9725, 0
      %v9978 = vsel %vm1936, %v9726, 0
      %v9981 = vsel %vm1936, %v9727, 0
      %v9984 = vsel %vm1936, %v9728, 0
      %v9987 = vsel %vm1936, %v9729, 0
      %v9990 = vsel %vm1936, %v9730, 0
      %v9993 = vsel %vm1936, %v9731, 0
      %v9996 = vsel %vm1936, %v9732, 0
      %v9999 = vsel %vm1936, %v9733, 0
      %v10002 = vsel %vm1936, %v9734, 0
      %v10005 = vsel %vm1936, %v9735, 0
      %v10008 = vsel %vm1936, %v9736, 0
      %v10011 = vsel %vm1936, %v9737, 0
      %v10014 = vsel %vm1936, %v9738, 0
      %v10017 = vsel %vm1936, %v9739, 0
      %v10020 = vsel %vm1936, %v9740, 0
      %v10023 = vsel %vm1936, %v9741, 0
      %v10026 = vsel %vm1936, %v9742, 0
      %v10029 = vsel %vm1936, %v9743, 0
      %v10032 = vsel %vm1936, %v9744, 0
      %v10035 = vsel %vm1936, %v9745, 0
      %v10038 = vsel %vm1936, %v9746, 0
      %v10041 = vsel %vm1936, %v9747, 0
      %v10044 = vsel %vm1936, %v9748, 0
      %v10047 = vsel %vm1936, %v9749, 0
      %v10050 = vsel %vm1936, %v9750, 0
      %v10053 = vsel %vm1936, %v9751, 0
      %v10056 = vsel %vm1936, %v9752, 0
      %v10059 = vsel %vm1936, %v9753, 0
      %v10062 = vsel %vm1936, %v9754, 0
      %v10065 = vsel %vm1936, %v9755, 0
      %v10068 = vsel %vm1936, %v9756, 0
      %10070 = vmatpush.msra.mxu0 %v9953
      %10071 = vmatpush.msra.mxu0 %v9952
      %10072 = vmatpush.msra.mxu0 %v9951
      %10073 = vmatpush.msra.mxu0 %v9950
      %10074 = vmatpush.msra.mxu0 %v9949
      %10075 = vmatpush.msra.mxu0 %v9948
      %10076 = vmatpush.msra.mxu0 %v9947
      %10077 = vmatpush.msra.mxu0 %v9946
      %10078 = vmatpush.msra.mxu0 %v9945
      %10079 = vmatpush.msra.mxu0 %v9944
      %10080 = vmatpush.msra.mxu0 %v9943
      %10081 = vmatpush.msra.mxu0 %v9942
      %10082 = vmatpush.msra.mxu0 %v9941
      %10083 = vmatpush.msra.mxu0 %v9940
      %10084 = vmatpush.msra.mxu0 %v9939
      %10085 = vmatpush.msra.mxu0 %v9938
      %10086 = vmatmul.f32.gmra.mxu0 %v9901
      %v10087 = vpop.f32.mrf.mxu0
      %v10088 = vadd.f32 0.0, %v10087
      %10089 = vmatmul.f32.gmra.mxu0 %v9902
      %v10090 = vpop.f32.mrf.mxu0
      %v10091 = vadd.f32 0.0, %v10090
      %10092 = vmatmul.f32.gmra.mxu0 %v9903
      %v10093 = vpop.f32.mrf.mxu0
      %v10094 = vadd.f32 0.0, %v10093
      %10095 = vmatmul.f32.gmra.mxu0 %v9904
      %v10096 = vpop.f32.mrf.mxu0
      %v10097 = vadd.f32 0.0, %v10096
      %10098 = vmatmul.f32.gmra.mxu0 %v9905
      %v10099 = vpop.f32.mrf.mxu0
      %v10100 = vadd.f32 0.0, %v10099
      %10101 = vmatmul.f32.gmra.mxu0 %v9906
      %v10102 = vpop.f32.mrf.mxu0
      %v10103 = vadd.f32 0.0, %v10102
      %10104 = vmatmul.f32.gmra.mxu0 %v9907
      %v10105 = vpop.f32.mrf.mxu0
      %v10106 = vadd.f32 0.0, %v10105
      %10107 = vmatmul.f32.gmra.mxu0 %v9908
      %v10108 = vpop.f32.mrf.mxu0
      %v10109 = vadd.f32 0.0, %v10108
      %10110 = vmatmul.f32.gmra.mxu0 %v9909
      %v10111 = vpop.f32.mrf.mxu0
      %v10112 = vadd.f32 0.0, %v10111
      %10113 = vmatmul.f32.gmra.mxu0 %v9910
      %v10114 = vpop.f32.mrf.mxu0
      %v10115 = vadd.f32 0.0, %v10114
      %10116 = vmatmul.f32.gmra.mxu0 %v9911
      %v10117 = vpop.f32.mrf.mxu0
      %v10118 = vadd.f32 0.0, %v10117
      %10119 = vmatmul.f32.gmra.mxu0 %v9912
      %v10120 = vpop.f32.mrf.mxu0
      %v10121 = vadd.f32 0.0, %v10120
      %10122 = vmatmul.f32.gmra.mxu0 %v9913
      %v10123 = vpop.f32.mrf.mxu0
      %v10124 = vadd.f32 0.0, %v10123
      %10125 = vmatmul.f32.gmra.mxu0 %v9914
      %v10126 = vpop.f32.mrf.mxu0
      %v10127 = vadd.f32 0.0, %v10126
      %10128 = vmatmul.f32.gmra.mxu0 %v9915
      %v10129 = vpop.f32.mrf.mxu0
      %v10130 = vadd.f32 0.0, %v10129
      %10131 = vmatmul.f32.gmra.mxu0 %v9916
      %v10132 = vpop.f32.mrf.mxu0
      %v10133 = vadd.f32 0.0, %v10132
      %10134 = vmatmul.f32.gmra.mxu0 %v9917
      %v10135 = vpop.f32.mrf.mxu0
      %v10136 = vadd.f32 0.0, %v10135
      %10137 = vmatmul.f32.gmra.mxu0 %v9918
      %v10138 = vpop.f32.mrf.mxu0
      %v10139 = vadd.f32 0.0, %v10138
      %10140 = vmatmul.f32.gmra.mxu0 %v9919
      %v10141 = vpop.f32.mrf.mxu0
      %v10142 = vadd.f32 0.0, %v10141
      %10143 = vmatmul.f32.gmra.mxu0 %v9920
      %v10144 = vpop.f32.mrf.mxu0
      %v10145 = vadd.f32 0.0, %v10144
      %10146 = vmatmul.f32.gmra.mxu0 %v9921
      %v10147 = vpop.f32.mrf.mxu0
      %v10148 = vadd.f32 0.0, %v10147
      %10149 = vmatmul.f32.gmra.mxu0 %v9922
      %v10150 = vpop.f32.mrf.mxu0
      %v10151 = vadd.f32 0.0, %v10150
      %10152 = vmatmul.f32.gmra.mxu0 %v9923
      %v10153 = vpop.f32.mrf.mxu0
      %v10154 = vadd.f32 0.0, %v10153
      %10155 = vmatmul.f32.gmra.mxu0 %v9924
      %v10156 = vpop.f32.mrf.mxu0
      %v10157 = vadd.f32 0.0, %v10156
      %10158 = vmatmul.f32.gmra.mxu0 %v9925
      %v10159 = vpop.f32.mrf.mxu0
      %v10160 = vadd.f32 0.0, %v10159
      %10161 = vmatmul.f32.gmra.mxu0 %v9926
      %v10162 = vpop.f32.mrf.mxu0
      %v10163 = vadd.f32 0.0, %v10162
      %10164 = vmatmul.f32.gmra.mxu0 %v9927
      %v10165 = vpop.f32.mrf.mxu0
      %v10166 = vadd.f32 0.0, %v10165
      %10167 = vmatmul.f32.gmra.mxu0 %v9928
      %v10168 = vpop.f32.mrf.mxu0
      %v10169 = vadd.f32 0.0, %v10168
      %10170 = vmatmul.f32.gmra.mxu0 %v9929
      %v10171 = vpop.f32.mrf.mxu0
      %v10172 = vadd.f32 0.0, %v10171
      %10173 = vmatmul.f32.gmra.mxu0 %v9930
      %v10174 = vpop.f32.mrf.mxu0
      %v10175 = vadd.f32 0.0, %v10174
      %10176 = vmatmul.f32.gmra.mxu0 %v9931
      %v10177 = vpop.f32.mrf.mxu0
      %v10178 = vadd.f32 0.0, %v10177
      %10179 = vmatmul.f32.gmra.mxu0 %v9932
      %v10180 = vpop.f32.mrf.mxu0
      %v10181 = vadd.f32 0.0, %v10180
      %10182 = vmatmul.f32.gmra.mxu0 %v9933
      %v10183 = vpop.f32.mrf.mxu0
      %v10184 = vadd.f32 0.0, %v10183
      %10185 = vmatmul.f32.gmra.mxu0 %v9934
      %v10186 = vpop.f32.mrf.mxu0
      %v10187 = vadd.f32 0.0, %v10186
      %10188 = vmatmul.f32.gmra.mxu0 %v9935
      %v10189 = vpop.f32.mrf.mxu0
      %v10190 = vadd.f32 0.0, %v10189
      %10191 = vmatmul.f32.gmra.mxu0 %v9936
      %v10192 = vpop.f32.mrf.mxu0
      %v10193 = vadd.f32 0.0, %v10192
      %10194 = vdwg.mxu0
      %10195 = vmatpush.msra.mxu0 0.0
      %10196 = vmatpush.msra.mxu0 0.0
      %10197 = vmatpush.msra.mxu0 0.0
      %10198 = vmatpush.msra.mxu0 0.0
      %10199 = vmatpush.msra.mxu0 0.0
      %10200 = vmatpush.msra.mxu0 0.0
      %10201 = vmatpush.msra.mxu0 0.0
      %10202 = vmatpush.msra.mxu0 0.0
      %10203 = vmatpush.msra.mxu0 %v9961
      %10204 = vmatpush.msra.mxu0 %v9960
      %10205 = vmatpush.msra.mxu0 %v9959
      %10206 = vmatpush.msra.mxu0 %v9958
      %10207 = vmatpush.msra.mxu0 %v9957
      %10208 = vmatpush.msra.mxu0 %v9956
      %10209 = vmatpush.msra.mxu0 %v9955
      %10210 = vmatpush.msra.mxu0 %v9954
      %10211 = vmatmul.f32.gmra.mxu0 %v9963
      %v10212 = vpop.f32.mrf.mxu0
      %v10213 = vadd.f32 %v10088, %v10212
      %10214 = vmatmul.f32.gmra.mxu0 %v9966
      %v10215 = vpop.f32.mrf.mxu0
      %v10216 = vadd.f32 %v10091, %v10215
      %10217 = vmatmul.f32.gmra.mxu0 %v9969
      %v10218 = vpop.f32.mrf.mxu0
      %v10219 = vadd.f32 %v10094, %v10218
      %10220 = vmatmul.f32.gmra.mxu0 %v9972
      %v10221 = vpop.f32.mrf.mxu0
      %v10222 = vadd.f32 %v10097, %v10221
      %10223 = vmatmul.f32.gmra.mxu0 %v9975
      %v10224 = vpop.f32.mrf.mxu0
      %v10225 = vadd.f32 %v10100, %v10224
      %10226 = vmatmul.f32.gmra.mxu0 %v9978
      %v10227 = vpop.f32.mrf.mxu0
      %v10228 = vadd.f32 %v10103, %v10227
      %10229 = vmatmul.f32.gmra.mxu0 %v9981
      %v10230 = vpop.f32.mrf.mxu0
      %v10231 = vadd.f32 %v10106, %v10230
      %10232 = vmatmul.f32.gmra.mxu0 %v9984
      %v10233 = vpop.f32.mrf.mxu0
      %v10234 = vadd.f32 %v10109, %v10233
      %10235 = vmatmul.f32.gmra.mxu0 %v9987
      %v10236 = vpop.f32.mrf.mxu0
      %v10237 = vadd.f32 %v10112, %v10236
      %10238 = vmatmul.f32.gmra.mxu0 %v9990
      %v10239 = vpop.f32.mrf.mxu0
      %v10240 = vadd.f32 %v10115, %v10239
      %10241 = vmatmul.f32.gmra.mxu0 %v9993
      %v10242 = vpop.f32.mrf.mxu0
      %v10243 = vadd.f32 %v10118, %v10242
      %10244 = vmatmul.f32.gmra.mxu0 %v9996
      %v10245 = vpop.f32.mrf.mxu0
      %v10246 = vadd.f32 %v10121, %v10245
      %10247 = vmatmul.f32.gmra.mxu0 %v9999
      %v10248 = vpop.f32.mrf.mxu0
      %v10249 = vadd.f32 %v10124, %v10248
      %10250 = vmatmul.f32.gmra.mxu0 %v10002
      %v10251 = vpop.f32.mrf.mxu0
      %v10252 = vadd.f32 %v10127, %v10251
      %10253 = vmatmul.f32.gmra.mxu0 %v10005
      %v10254 = vpop.f32.mrf.mxu0
      %v10255 = vadd.f32 %v10130, %v10254
      %10256 = vmatmul.f32.gmra.mxu0 %v10008
      %v10257 = vpop.f32.mrf.mxu0
      %v10258 = vadd.f32 %v10133, %v10257
      %10259 = vmatmul.f32.gmra.mxu0 %v10011
      %v10260 = vpop.f32.mrf.mxu0
      %v10261 = vadd.f32 %v10136, %v10260
      %10262 = vmatmul.f32.gmra.mxu0 %v10014
      %v10263 = vpop.f32.mrf.mxu0
      %v10264 = vadd.f32 %v10139, %v10263
      %10265 = vmatmul.f32.gmra.mxu0 %v10017
      %v10266 = vpop.f32.mrf.mxu0
      %v10267 = vadd.f32 %v10142, %v10266
      %10268 = vmatmul.f32.gmra.mxu0 %v10020
      %v10269 = vpop.f32.mrf.mxu0
      %v10270 = vadd.f32 %v10145, %v10269
      %10271 = vmatmul.f32.gmra.mxu0 %v10023
      %v10272 = vpop.f32.mrf.mxu0
      %v10273 = vadd.f32 %v10148, %v10272
      %10274 = vmatmul.f32.gmra.mxu0 %v10026
      %v10275 = vpop.f32.mrf.mxu0
      %v10276 = vadd.f32 %v10151, %v10275
      %10277 = vmatmul.f32.gmra.mxu0 %v10029
      %v10278 = vpop.f32.mrf.mxu0
      %v10279 = vadd.f32 %v10154, %v10278
      %10280 = vmatmul.f32.gmra.mxu0 %v10032
      %v10281 = vpop.f32.mrf.mxu0
      %v10282 = vadd.f32 %v10157, %v10281
      %10283 = vmatmul.f32.gmra.mxu0 %v10035
      %v10284 = vpop.f32.mrf.mxu0
      %v10285 = vadd.f32 %v10160, %v10284
      %10286 = vmatmul.f32.gmra.mxu0 %v10038
      %v10287 = vpop.f32.mrf.mxu0
      %v10288 = vadd.f32 %v10163, %v10287
      %10289 = vmatmul.f32.gmra.mxu0 %v10041
      %v10290 = vpop.f32.mrf.mxu0
      %v10291 = vadd.f32 %v10166, %v10290
      %10292 = vmatmul.f32.gmra.mxu0 %v10044
      %v10293 = vpop.f32.mrf.mxu0
      %v10294 = vadd.f32 %v10169, %v10293
      %10295 = vmatmul.f32.gmra.mxu0 %v10047
      %v10296 = vpop.f32.mrf.mxu0
      %v10297 = vadd.f32 %v10172, %v10296
      %10298 = vmatmul.f32.gmra.mxu0 %v10050
      %v10299 = vpop.f32.mrf.mxu0
      %v10300 = vadd.f32 %v10175, %v10299
      %10301 = vmatmul.f32.gmra.mxu0 %v10053
      %v10302 = vpop.f32.mrf.mxu0
      %v10303 = vadd.f32 %v10178, %v10302
      %10304 = vmatmul.f32.gmra.mxu0 %v10056
      %v10305 = vpop.f32.mrf.mxu0
      %v10306 = vadd.f32 %v10181, %v10305
      %10307 = vmatmul.f32.gmra.mxu0 %v10059
      %v10308 = vpop.f32.mrf.mxu0
      %v10309 = vadd.f32 %v10184, %v10308
      %10310 = vmatmul.f32.gmra.mxu0 %v10062
      %v10311 = vpop.f32.mrf.mxu0
      %v10312 = vadd.f32 %v10187, %v10311
      %10313 = vmatmul.f32.gmra.mxu0 %v10065
      %v10314 = vpop.f32.mrf.mxu0
      %v10315 = vadd.f32 %v10190, %v10314
      %10316 = vmatmul.f32.gmra.mxu0 %v10068
      %v10317 = vpop.f32.mrf.mxu0
      %v10318 = vadd.f32 %v10193, %v10317
      %10319 = vdwg.mxu0
      %v10320 = vadd.f32 %v9542, %v10213
      %v10321 = vadd.f32 %v9545, %v10216
      %v10322 = vadd.f32 %v9548, %v10219
      %v10323 = vadd.f32 %v9551, %v10222
      %v10324 = vadd.f32 %v9554, %v10225
      %v10325 = vadd.f32 %v9557, %v10228
      %v10326 = vadd.f32 %v9560, %v10231
      %v10327 = vadd.f32 %v9563, %v10234
      %v10328 = vadd.f32 %v9566, %v10237
      %v10329 = vadd.f32 %v9569, %v10240
      %v10330 = vadd.f32 %v9572, %v10243
      %v10331 = vadd.f32 %v9575, %v10246
      %v10332 = vadd.f32 %v9578, %v10249
      %v10333 = vadd.f32 %v9581, %v10252
      %v10334 = vadd.f32 %v9584, %v10255
      %v10335 = vadd.f32 %v9587, %v10258
      %v10336 = vadd.f32 %v9590, %v10261
      %v10337 = vadd.f32 %v9593, %v10264
      %v10338 = vadd.f32 %v9596, %v10267
      %v10339 = vadd.f32 %v9599, %v10270
      %v10340 = vadd.f32 %v9602, %v10273
      %v10341 = vadd.f32 %v9605, %v10276
      %v10342 = vadd.f32 %v9608, %v10279
      %v10343 = vadd.f32 %v9611, %v10282
      %v10344 = vadd.f32 %v9614, %v10285
      %v10345 = vadd.f32 %v9617, %v10288
      %v10346 = vadd.f32 %v9620, %v10291
      %v10347 = vadd.f32 %v9623, %v10294
      %v10348 = vadd.f32 %v9626, %v10297
      %v10349 = vadd.f32 %v9629, %v10300
      %v10350 = vadd.f32 %v9632, %v10303
      %v10351 = vadd.f32 %v9635, %v10306
      %v10352 = vadd.f32 %v9638, %v10309
      %v10353 = vadd.f32 %v9641, %v10312
      %v10354 = vadd.f32 %v9644, %v10315
      %v10355 = vadd.f32 %v9647, %v10318
      %v10356 = vmax.f32 %v10320, 0.0
      %v10357 = vmax.f32 %v10321, 0.0
      %v10358 = vmax.f32 %v10322, 0.0
      %v10359 = vmax.f32 %v10323, 0.0
      %v10360 = vmax.f32 %v10324, 0.0
      %v10361 = vmax.f32 %v10325, 0.0
      %v10362 = vmax.f32 %v10326, 0.0
      %v10363 = vmax.f32 %v10327, 0.0
      %v10364 = vmax.f32 %v10328, 0.0
      %v10365 = vmax.f32 %v10329, 0.0
      %v10366 = vmax.f32 %v10330, 0.0
      %v10367 = vmax.f32 %v10331, 0.0
      %v10368 = vmax.f32 %v10332, 0.0
      %v10369 = vmax.f32 %v10333, 0.0
      %v10370 = vmax.f32 %v10334, 0.0
      %v10371 = vmax.f32 %v10335, 0.0
      %v10372 = vmax.f32 %v10336, 0.0
      %v10373 = vmax.f32 %v10337, 0.0
      %v10374 = vmax.f32 %v10338, 0.0
      %v10375 = vmax.f32 %v10339, 0.0
      %v10376 = vmax.f32 %v10340, 0.0
      %v10377 = vmax.f32 %v10341, 0.0
      %v10378 = vmax.f32 %v10342, 0.0
      %v10379 = vmax.f32 %v10343, 0.0
      %v10380 = vmax.f32 %v10344, 0.0
      %v10381 = vmax.f32 %v10345, 0.0
      %v10382 = vmax.f32 %v10346, 0.0
      %v10383 = vmax.f32 %v10347, 0.0
      %v10384 = vmax.f32 %v10348, 0.0
      %v10385 = vmax.f32 %v10349, 0.0
      %v10386 = vmax.f32 %v10350, 0.0
      %v10387 = vmax.f32 %v10351, 0.0
      %v10388 = vmax.f32 %v10352, 0.0
      %v10389 = vmax.f32 %v10353, 0.0
      %v10390 = vmax.f32 %v10354, 0.0
      %v10391 = vmax.f32 %v10355, 0.0
      %v10392 = vsel %vm1864, %v10356, 0.0
      %v10393 = vsel %vm1865, %v10357, 0.0
      %v10394 = vsel %vm1866, %v10358, 0.0
      %v10395 = vsel %vm1867, %v10359, 0.0
      %v10396 = vsel %vm1868, %v10360, 0.0
      %v10397 = vsel %vm1869, %v10361, 0.0
      %v10398 = vsel %vm1870, %v10362, 0.0
      %v10399 = vsel %vm1871, %v10363, 0.0
      %v10400 = vsel %vm1872, %v10364, 0.0
      %v10401 = vsel %vm1873, %v10365, 0.0
      %v10402 = vsel %vm1874, %v10366, 0.0
      %v10403 = vsel %vm1875, %v10367, 0.0
      %v10404 = vsel %vm1876, %v10368, 0.0
      %v10405 = vsel %vm1877, %v10369, 0.0
      %v10406 = vsel %vm1878, %v10370, 0.0
      %v10407 = vsel %vm1879, %v10371, 0.0
      %v10408 = vsel %vm1880, %v10372, 0.0
      %v10409 = vsel %vm1881, %v10373, 0.0
      %v10410 = vsel %vm1882, %v10374, 0.0
      %v10411 = vsel %vm1883, %v10375, 0.0
      %v10412 = vsel %vm1884, %v10376, 0.0
      %v10413 = vsel %vm1885, %v10377, 0.0
      %v10414 = vsel %vm1886, %v10378, 0.0
      %v10415 = vsel %vm1887, %v10379, 0.0
      %v10416 = vsel %vm1888, %v10380, 0.0
      %v10417 = vsel %vm1889, %v10381, 0.0
      %v10418 = vsel %vm1890, %v10382, 0.0
      %v10419 = vsel %vm1891, %v10383, 0.0
      %v10420 = vsel %vm1892, %v10384, 0.0
      %v10421 = vsel %vm1893, %v10385, 0.0
      %v10422 = vsel %vm1894, %v10386, 0.0
      %v10423 = vsel %vm1895, %v10387, 0.0
      %v10424 = vsel %vm1896, %v10388, 0.0
      %v10425 = vsel %vm1897, %v10389, 0.0
      %v10426 = vsel %vm1898, %v10390, 0.0
      %v10427 = vsel %vm1899, %v10391, 0.0
      %10428 = vst.msk [vmem:[#allocation2 + $0x13] sm:$0xff] %vm1936, %v10392
      %10429 = vst.msk [vmem:[#allocation2 + $0x1b] sm:$0xff] %vm1936, %v10393
      %10430 = vst.msk [vmem:[#allocation2 + $0x23] sm:$0xff] %vm1936, %v10394
      %10431 = vst.msk [vmem:[#allocation2 + $0x2b] sm:$0xff] %vm1936, %v10395
      %10432 = vst.msk [vmem:[#allocation2 + $0x33] sm:$0xff] %vm1936, %v10396
      %10433 = vst.msk [vmem:[#allocation2 + $0x3b] sm:$0xff] %vm1936, %v10397
      %10434 = vst.msk [vmem:[#allocation2 + $0x43] sm:$0xff] %vm1936, %v10398
      %10435 = vst.msk [vmem:[#allocation2 + $0x4b] sm:$0xff] %vm1936, %v10399
      %10436 = vst.msk [vmem:[#allocation2 + $0x53] sm:$0xff] %vm1936, %v10400
      %10437 = vst.msk [vmem:[#allocation2 + $0x5b] sm:$0xff] %vm1936, %v10401
      %10438 = vst.msk [vmem:[#allocation2 + $0x63] sm:$0xff] %vm1936, %v10402
      %10439 = vst.msk [vmem:[#allocation2 + $0x6b] sm:$0xff] %vm1936, %v10403
      %10440 = vst.msk [vmem:[#allocation2 + $0x73] sm:$0xff] %vm1936, %v10404
      %10441 = vst.msk [vmem:[#allocation2 + $0x7b] sm:$0xff] %vm1936, %v10405
      %10442 = vst.msk [vmem:[#allocation2 + $0x83] sm:$0xff] %vm1936, %v10406
      %10443 = vst.msk [vmem:[#allocation2 + $0x8b] sm:$0xff] %vm1936, %v10407
      %10444 = vst.msk [vmem:[#allocation2 + $0x93] sm:$0xff] %vm1936, %v10408
      %10445 = vst.msk [vmem:[#allocation2 + $0x9b] sm:$0xff] %vm1936, %v10409
      %10446 = vst.msk [vmem:[#allocation2 + $0xa3] sm:$0xff] %vm1936, %v10410
      %10447 = vst.msk [vmem:[#allocation2 + $0xab] sm:$0xff] %vm1936, %v10411
      %10448 = vst.msk [vmem:[#allocation2 + $0xb3] sm:$0xff] %vm1936, %v10412
      %10449 = vst.msk [vmem:[#allocation2 + $0xbb] sm:$0xff] %vm1936, %v10413
      %10450 = vst.msk [vmem:[#allocation2 + $0xc3] sm:$0xff] %vm1936, %v10414
      %10451 = vst.msk [vmem:[#allocation2 + $0xcb] sm:$0xff] %vm1936, %v10415
      %10452 = vst.msk [vmem:[#allocation2 + $0xd3] sm:$0xff] %vm1936, %v10416
      %10453 = vst.msk [vmem:[#allocation2 + $0xdb] sm:$0xff] %vm1936, %v10417
      %10454 = vst.msk [vmem:[#allocation2 + $0xe3] sm:$0xff] %vm1936, %v10418
      %10455 = vst.msk [vmem:[#allocation2 + $0xeb] sm:$0xff] %vm1936, %v10419
      %10456 = vst.msk [vmem:[#allocation2 + $0xf3] sm:$0xff] %vm1936, %v10420
      %10457 = vst.msk [vmem:[#allocation2 + $0xfb] sm:$0xff] %vm1936, %v10421
      %10458 = vst.msk [vmem:[#allocation2 + $0x103] sm:$0xff] %vm1936, %v10422
      %10459 = vst.msk [vmem:[#allocation2 + $0x10b] sm:$0xff] %vm1936, %v10423
      %10460 = vst.msk [vmem:[#allocation2 + $0x113] sm:$0xff] %vm1936, %v10424
      %10461 = vst.msk [vmem:[#allocation2 + $0x11b] sm:$0xff] %vm1936, %v10425
      %10462 = vst.msk [vmem:[#allocation2 + $0x123] sm:$0xff] %vm1936, %v10426
      %10463 = vst.msk [vmem:[#allocation2 + $0x12b] sm:$0xff] %vm1936, %v10427
      %v10464 = vld [vmem:[#allocation2] sm:$0xff]
      %v10465 = vld [vmem:[#allocation2 + $0x8] sm:$0xff]
      %v10466 = vld [vmem:[#allocation2 + $0x10] sm:$0xff]
      %v10467 = vld [vmem:[#allocation2 + $0x18] sm:$0xff]
      %v10468 = vld [vmem:[#allocation2 + $0x20] sm:$0xff]
      %v10469 = vld [vmem:[#allocation2 + $0x28] sm:$0xff]
      %v10470 = vld [vmem:[#allocation2 + $0x30] sm:$0xff]
      %v10471 = vld [vmem:[#allocation2 + $0x38] sm:$0xff]
      %v10472 = vld [vmem:[#allocation2 + $0x40] sm:$0xff]
      %v10473 = vld [vmem:[#allocation2 + $0x48] sm:$0xff]
      %v10474 = vld [vmem:[#allocation2 + $0x50] sm:$0xff]
      %v10475 = vld [vmem:[#allocation2 + $0x58] sm:$0xff]
      %v10476 = vld [vmem:[#allocation2 + $0x60] sm:$0xff]
      %v10477 = vld [vmem:[#allocation2 + $0x68] sm:$0xff]
      %v10478 = vld [vmem:[#allocation2 + $0x70] sm:$0xff]
      %v10479 = vld [vmem:[#allocation2 + $0x78] sm:$0xff]
      %v10480 = vld [vmem:[#allocation2 + $0x80] sm:$0xff]
      %v10481 = vld [vmem:[#allocation2 + $0x88] sm:$0xff]
      %v10482 = vld [vmem:[#allocation2 + $0x90] sm:$0xff]
      %v10483 = vld [vmem:[#allocation2 + $0x98] sm:$0xff]
      %v10484 = vld [vmem:[#allocation2 + $0xa0] sm:$0xff]
      %v10485 = vld [vmem:[#allocation2 + $0xa8] sm:$0xff]
      %v10486 = vld [vmem:[#allocation2 + $0xb0] sm:$0xff]
      %v10487 = vld [vmem:[#allocation2 + $0xb8] sm:$0xff]
      %v10488 = vld [vmem:[#allocation2 + $0xc0] sm:$0xff]
      %v10489 = vld [vmem:[#allocation2 + $0xc8] sm:$0xff]
      %v10490 = vld [vmem:[#allocation2 + $0xd0] sm:$0xff]
      %v10491 = vld [vmem:[#allocation2 + $0xd8] sm:$0xff]
      %v10492 = vld [vmem:[#allocation2 + $0xe0] sm:$0xff]
      %v10493 = vld [vmem:[#allocation2 + $0xe8] sm:$0xff]
      %v10494 = vld [vmem:[#allocation2 + $0xf0] sm:$0xff]
      %v10495 = vld [vmem:[#allocation2 + $0xf8] sm:$0xff]
      %v10496 = vld [vmem:[#allocation2 + $0x100] sm:$0xff]
      %v10497 = vld [vmem:[#allocation2 + $0x108] sm:$0xff]
      %v10498 = vld [vmem:[#allocation2 + $0x110] sm:$0xff]
      %v10499 = vld [vmem:[#allocation2 + $0x118] sm:$0xff]
      %v10500 = vld [vmem:[#allocation2 + $0x1] sm:$0xff]
      %v10501 = vld [vmem:[#allocation2 + $0x9] sm:$0xff]
      %v10502 = vld [vmem:[#allocation2 + $0x11] sm:$0xff]
      %v10503 = vld [vmem:[#allocation2 + $0x19] sm:$0xff]
      %v10504 = vld [vmem:[#allocation2 + $0x21] sm:$0xff]
      %v10505 = vld [vmem:[#allocation2 + $0x29] sm:$0xff]
      %v10506 = vld [vmem:[#allocation2 + $0x31] sm:$0xff]
      %v10507 = vld [vmem:[#allocation2 + $0x39] sm:$0xff]
      %v10508 = vld [vmem:[#allocation2 + $0x41] sm:$0xff]
      %v10509 = vld [vmem:[#allocation2 + $0x49] sm:$0xff]
      %v10510 = vld [vmem:[#allocation2 + $0x51] sm:$0xff]
      %v10511 = vld [vmem:[#allocation2 + $0x59] sm:$0xff]
      %v10512 = vld [vmem:[#allocation2 + $0x61] sm:$0xff]
      %v10513 = vld [vmem:[#allocation2 + $0x69] sm:$0xff]
      %v10514 = vld [vmem:[#allocation2 + $0x71] sm:$0xff]
      %v10515 = vld [vmem:[#allocation2 + $0x79] sm:$0xff]
      %v10516 = vld [vmem:[#allocation2 + $0x81] sm:$0xff]
      %v10517 = vld [vmem:[#allocation2 + $0x89] sm:$0xff]
      %v10518 = vld [vmem:[#allocation2 + $0x91] sm:$0xff]
      %v10519 = vld [vmem:[#allocation2 + $0x99] sm:$0xff]
      %v10520 = vld [vmem:[#allocation2 + $0xa1] sm:$0xff]
      %v10521 = vld [vmem:[#allocation2 + $0xa9] sm:$0xff]
      %v10522 = vld [vmem:[#allocation2 + $0xb1] sm:$0xff]
      %v10523 = vld [vmem:[#allocation2 + $0xb9] sm:$0xff]
      %v10524 = vld [vmem:[#allocation2 + $0xc1] sm:$0xff]
      %v10525 = vld [vmem:[#allocation2 + $0xc9] sm:$0xff]
      %v10526 = vld [vmem:[#allocation2 + $0xd1] sm:$0xff]
      %v10527 = vld [vmem:[#allocation2 + $0xd9] sm:$0xff]
      %v10528 = vld [vmem:[#allocation2 + $0xe1] sm:$0xff]
      %v10529 = vld [vmem:[#allocation2 + $0xe9] sm:$0xff]
      %v10530 = vld [vmem:[#allocation2 + $0xf1] sm:$0xff]
      %v10531 = vld [vmem:[#allocation2 + $0xf9] sm:$0xff]
      %v10532 = vld [vmem:[#allocation2 + $0x101] sm:$0xff]
      %v10533 = vld [vmem:[#allocation2 + $0x109] sm:$0xff]
      %v10534 = vld [vmem:[#allocation2 + $0x111] sm:$0xff]
      %v10535 = vld [vmem:[#allocation2 + $0x119] sm:$0xff]
      %v10536 = vld [vmem:[#allocation2 + $0x2] sm:$0xff]
      %v10537 = vld [vmem:[#allocation2 + $0xa] sm:$0xff]
      %v10538 = vld [vmem:[#allocation2 + $0x12] sm:$0xff]
      %v10539 = vld [vmem:[#allocation2 + $0x1a] sm:$0xff]
      %v10540 = vld [vmem:[#allocation2 + $0x22] sm:$0xff]
      %v10541 = vld [vmem:[#allocation2 + $0x2a] sm:$0xff]
      %v10542 = vld [vmem:[#allocation2 + $0x32] sm:$0xff]
      %v10543 = vld [vmem:[#allocation2 + $0x3a] sm:$0xff]
      %v10544 = vld [vmem:[#allocation2 + $0x42] sm:$0xff]
      %v10545 = vld [vmem:[#allocation2 + $0x4a] sm:$0xff]
      %v10546 = vld [vmem:[#allocation2 + $0x52] sm:$0xff]
      %v10547 = vld [vmem:[#allocation2 + $0x5a] sm:$0xff]
      %v10548 = vld [vmem:[#allocation2 + $0x62] sm:$0xff]
      %v10549 = vld [vmem:[#allocation2 + $0x6a] sm:$0xff]
      %v10550 = vld [vmem:[#allocation2 + $0x72] sm:$0xff]
      %v10551 = vld [vmem:[#allocation2 + $0x7a] sm:$0xff]
      %v10552 = vld [vmem:[#allocation2 + $0x82] sm:$0xff]
      %v10553 = vld [vmem:[#allocation2 + $0x8a] sm:$0xff]
      %v10554 = vld [vmem:[#allocation2 + $0x92] sm:$0xff]
      %v10555 = vld [vmem:[#allocation2 + $0x9a] sm:$0xff]
      %v10556 = vld [vmem:[#allocation2 + $0xa2] sm:$0xff]
      %v10557 = vld [vmem:[#allocation2 + $0xaa] sm:$0xff]
      %v10558 = vld [vmem:[#allocation2 + $0xb2] sm:$0xff]
      %v10559 = vld [vmem:[#allocation2 + $0xba] sm:$0xff]
      %v10560 = vld [vmem:[#allocation2 + $0xc2] sm:$0xff]
      %v10561 = vld [vmem:[#allocation2 + $0xca] sm:$0xff]
      %v10562 = vld [vmem:[#allocation2 + $0xd2] sm:$0xff]
      %v10563 = vld [vmem:[#allocation2 + $0xda] sm:$0xff]
      %v10564 = vld [vmem:[#allocation2 + $0xe2] sm:$0xff]
      %v10565 = vld [vmem:[#allocation2 + $0xea] sm:$0xff]
      %v10566 = vld [vmem:[#allocation2 + $0xf2] sm:$0xff]
      %v10567 = vld [vmem:[#allocation2 + $0xfa] sm:$0xff]
      %v10568 = vld [vmem:[#allocation2 + $0x102] sm:$0xff]
      %v10569 = vld [vmem:[#allocation2 + $0x10a] sm:$0xff]
      %v10570 = vld [vmem:[#allocation2 + $0x112] sm:$0xff]
      %v10571 = vld [vmem:[#allocation2 + $0x11a] sm:$0xff]
      %10608 = vrot.lane.b32.xlu0 %v10500, 64
      %v10609 = vpop.permute.xlu0 %10608
      %10610 = vrot.lane.b32.xlu0 %v10501, 64
      %v10611 = vpop.permute.xlu0 %10610
      %10612 = vrot.lane.b32.xlu0 %v10502, 64
      %v10613 = vpop.permute.xlu0 %10612
      %10614 = vrot.lane.b32.xlu0 %v10503, 64
      %v10615 = vpop.permute.xlu0 %10614
      %10616 = vrot.lane.b32.xlu0 %v10504, 64
      %v10617 = vpop.permute.xlu0 %10616
      %10618 = vrot.lane.b32.xlu0 %v10505, 64
      %v10619 = vpop.permute.xlu0 %10618
      %10620 = vrot.lane.b32.xlu0 %v10506, 64
      %v10621 = vpop.permute.xlu0 %10620
      %10622 = vrot.lane.b32.xlu0 %v10507, 64
      %v10623 = vpop.permute.xlu0 %10622
      %10624 = vrot.lane.b32.xlu0 %v10508, 64
      %v10625 = vpop.permute.xlu0 %10624
      %10626 = vrot.lane.b32.xlu0 %v10509, 64
      %v10627 = vpop.permute.xlu0 %10626
      %10628 = vrot.lane.b32.xlu0 %v10510, 64
      %v10629 = vpop.permute.xlu0 %10628
      %10630 = vrot.lane.b32.xlu0 %v10511, 64
      %v10631 = vpop.permute.xlu0 %10630
      %10632 = vrot.lane.b32.xlu0 %v10512, 64
      %v10633 = vpop.permute.xlu0 %10632
      %10634 = vrot.lane.b32.xlu0 %v10513, 64
      %v10635 = vpop.permute.xlu0 %10634
      %10636 = vrot.lane.b32.xlu0 %v10514, 64
      %v10637 = vpop.permute.xlu0 %10636
      %10638 = vrot.lane.b32.xlu0 %v10515, 64
      %v10639 = vpop.permute.xlu0 %10638
      %10640 = vrot.lane.b32.xlu0 %v10516, 64
      %v10641 = vpop.permute.xlu0 %10640
      %10642 = vrot.lane.b32.xlu0 %v10517, 64
      %v10643 = vpop.permute.xlu0 %10642
      %10644 = vrot.lane.b32.xlu0 %v10518, 64
      %v10645 = vpop.permute.xlu0 %10644
      %10646 = vrot.lane.b32.xlu0 %v10519, 64
      %v10647 = vpop.permute.xlu0 %10646
      %10648 = vrot.lane.b32.xlu0 %v10520, 64
      %v10649 = vpop.permute.xlu0 %10648
      %10650 = vrot.lane.b32.xlu0 %v10521, 64
      %v10651 = vpop.permute.xlu0 %10650
      %10652 = vrot.lane.b32.xlu0 %v10522, 64
      %v10653 = vpop.permute.xlu0 %10652
      %10654 = vrot.lane.b32.xlu0 %v10523, 64
      %v10655 = vpop.permute.xlu0 %10654
      %10656 = vrot.lane.b32.xlu0 %v10524, 64
      %v10657 = vpop.permute.xlu0 %10656
      %10658 = vrot.lane.b32.xlu0 %v10525, 64
      %v10659 = vpop.permute.xlu0 %10658
      %10660 = vrot.lane.b32.xlu0 %v10526, 64
      %v10661 = vpop.permute.xlu0 %10660
      %10662 = vrot.lane.b32.xlu0 %v10527, 64
      %v10663 = vpop.permute.xlu0 %10662
      %10664 = vrot.lane.b32.xlu0 %v10528, 64
      %v10665 = vpop.permute.xlu0 %10664
      %10666 = vrot.lane.b32.xlu0 %v10529, 64
      %v10667 = vpop.permute.xlu0 %10666
      %10668 = vrot.lane.b32.xlu0 %v10530, 64
      %v10669 = vpop.permute.xlu0 %10668
      %10670 = vrot.lane.b32.xlu0 %v10531, 64
      %v10671 = vpop.permute.xlu0 %10670
      %10672 = vrot.lane.b32.xlu0 %v10532, 64
      %v10673 = vpop.permute.xlu0 %10672
      %10674 = vrot.lane.b32.xlu0 %v10533, 64
      %v10675 = vpop.permute.xlu0 %10674
      %10676 = vrot.lane.b32.xlu0 %v10534, 64
      %v10677 = vpop.permute.xlu0 %10676
      %10678 = vrot.lane.b32.xlu0 %v10535, 64
      %v10679 = vpop.permute.xlu0 %10678
      %v10716 = vsel %vm1936, %v10464, %v10609
      %v10717 = vsel %vm1936, %v10465, %v10611
      %v10718 = vsel %vm1936, %v10466, %v10613
      %v10719 = vsel %vm1936, %v10467, %v10615
      %v10720 = vsel %vm1936, %v10468, %v10617
      %v10721 = vsel %vm1936, %v10469, %v10619
      %v10722 = vsel %vm1936, %v10470, %v10621
      %v10723 = vsel %vm1936, %v10471, %v10623
      %v10724 = vsel %vm1936, %v10472, %v10625
      %v10725 = vsel %vm1936, %v10473, %v10627
      %v10726 = vsel %vm1936, %v10474, %v10629
      %v10727 = vsel %vm1936, %v10475, %v10631
      %v10728 = vsel %vm1936, %v10476, %v10633
      %v10729 = vsel %vm1936, %v10477, %v10635
      %v10730 = vsel %vm1936, %v10478, %v10637
      %v10731 = vsel %vm1936, %v10479, %v10639
      %v10732 = vsel %vm1936, %v10480, %v10641
      %v10733 = vsel %vm1936, %v10481, %v10643
      %v10734 = vsel %vm1936, %v10482, %v10645
      %v10735 = vsel %vm1936, %v10483, %v10647
      %v10736 = vsel %vm1936, %v10484, %v10649
      %v10737 = vsel %vm1936, %v10485, %v10651
      %v10738 = vsel %vm1936, %v10486, %v10653
      %v10739 = vsel %vm1936, %v10487, %v10655
      %v10740 = vsel %vm1936, %v10488, %v10657
      %v10741 = vsel %vm1936, %v10489, %v10659
      %v10742 = vsel %vm1936, %v10490, %v10661
      %v10743 = vsel %vm1936, %v10491, %v10663
      %v10744 = vsel %vm1936, %v10492, %v10665
      %v10745 = vsel %vm1936, %v10493, %v10667
      %v10746 = vsel %vm1936, %v10494, %v10669
      %v10747 = vsel %vm1936, %v10495, %v10671
      %v10748 = vsel %vm1936, %v10496, %v10673
      %v10749 = vsel %vm1936, %v10497, %v10675
      %v10750 = vsel %vm1936, %v10498, %v10677
      %v10751 = vsel %vm1936, %v10499, %v10679
      %v10752 = vld [vmem:[%s3] sm:$0xff]
      %v10753 = vld [vmem:[%s3 + $0x8] sm:$0xff]
      %v10754 = vld [vmem:[%s3 + $0x10] sm:$0xff]
      %v10755 = vld [vmem:[%s3 + $0x18] sm:$0xff]
      %v10756 = vld [vmem:[%s3 + $0x20] sm:$0xff]
      %v10757 = vld [vmem:[%s3 + $0x28] sm:$0xff]
      %v10758 = vld [vmem:[%s3 + $0x30] sm:$0xff]
      %v10759 = vld [vmem:[%s3 + $0x38] sm:$0xff]
      %v10760 = vld [vmem:[%s3 + $0x40] sm:$0xff]
      %v10761 = vld [vmem:[%s3 + $0x48] sm:$0xff]
      %v10762 = vld [vmem:[%s3 + $0x50] sm:$0xff]
      %v10763 = vld [vmem:[%s3 + $0x58] sm:$0xff]
      %v10764 = vld [vmem:[%s3 + $0x60] sm:$0xff]
      %v10765 = vld [vmem:[%s3 + $0x68] sm:$0xff]
      %v10766 = vld [vmem:[%s3 + $0x70] sm:$0xff]
      %v10767 = vld [vmem:[%s3 + $0x78] sm:$0xff]
      %v10768 = vld [vmem:[%s3 + $0x80] sm:$0xff]
      %v10769 = vld [vmem:[%s3 + $0x88] sm:$0xff]
      %v10770 = vld [vmem:[%s3 + $0x90] sm:$0xff]
      %v10771 = vld [vmem:[%s3 + $0x98] sm:$0xff]
      %v10772 = vld [vmem:[%s3 + $0xa0] sm:$0xff]
      %v10773 = vld [vmem:[%s3 + $0xa8] sm:$0xff]
      %v10774 = vld [vmem:[%s3 + $0xb0] sm:$0xff]
      %v10775 = vld [vmem:[%s3 + $0xb8] sm:$0xff]
      %v10776 = vld [vmem:[#allocation2 + $0x122] sm:$0xff]
      %v10777 = vld [vmem:[#allocation2 + $0x12a] sm:$0xff]
      %v10778 = vld [vmem:[#allocation2 + $0x13] sm:$0xff]
      %v10779 = vld [vmem:[#allocation2 + $0x1b] sm:$0xff]
      %v10780 = vld [vmem:[#allocation2 + $0x23] sm:$0xff]
      %v10781 = vld [vmem:[#allocation2 + $0x2b] sm:$0xff]
      %v10782 = vld [vmem:[#allocation2 + $0x33] sm:$0xff]
      %v10783 = vld [vmem:[#allocation2 + $0x3b] sm:$0xff]
      %v10784 = vld [vmem:[#allocation2 + $0x43] sm:$0xff]
      %v10785 = vld [vmem:[#allocation2 + $0x4b] sm:$0xff]
      %v10786 = vld [vmem:[#allocation2 + $0x53] sm:$0xff]
      %v10787 = vld [vmem:[#allocation2 + $0x5b] sm:$0xff]
      %v10788 = vld [vmem:[#allocation2 + $0x63] sm:$0xff]
      %v10789 = vld [vmem:[#allocation2 + $0x6b] sm:$0xff]
      %v10790 = vld [vmem:[#allocation2 + $0x73] sm:$0xff]
      %v10791 = vld [vmem:[#allocation2 + $0x7b] sm:$0xff]
      %v10792 = vld [vmem:[#allocation2 + $0x83] sm:$0xff]
      %v10793 = vld [vmem:[#allocation2 + $0x8b] sm:$0xff]
      %v10794 = vld [vmem:[#allocation2 + $0x93] sm:$0xff]
      %v10795 = vld [vmem:[#allocation2 + $0x9b] sm:$0xff]
      %v10796 = vld [vmem:[#allocation2 + $0xa3] sm:$0xff]
      %v10797 = vld [vmem:[#allocation2 + $0xab] sm:$0xff]
      %v10798 = vld [vmem:[#allocation2 + $0xb3] sm:$0xff]
      %v10799 = vld [vmem:[#allocation2 + $0xbb] sm:$0xff]
      %v10800 = vld [vmem:[#allocation2 + $0xc3] sm:$0xff]
      %v10801 = vld [vmem:[#allocation2 + $0xcb] sm:$0xff]
      %v10802 = vld [vmem:[#allocation2 + $0xd3] sm:$0xff]
      %v10803 = vld [vmem:[#allocation2 + $0xdb] sm:$0xff]
      %v10804 = vld [vmem:[#allocation2 + $0xe3] sm:$0xff]
      %v10805 = vld [vmem:[#allocation2 + $0xeb] sm:$0xff]
      %v10806 = vld [vmem:[#allocation2 + $0xf3] sm:$0xff]
      %v10807 = vld [vmem:[#allocation2 + $0xfb] sm:$0xff]
      %v10808 = vld [vmem:[#allocation2 + $0x103] sm:$0xff]
      %v10809 = vld [vmem:[#allocation2 + $0x10b] sm:$0xff]
      %v10810 = vld [vmem:[#allocation2 + $0x113] sm:$0xff]
      %v10811 = vld [vmem:[#allocation2 + $0x11b] sm:$0xff]
      %v10812 = vld [vmem:[#allocation2 + $0x123] sm:$0xff]
      %v10813 = vld [vmem:[#allocation2 + $0x12b] sm:$0xff]
      %v10814 = vld [vmem:[#allocation2 + $0x14] sm:$0xff]
      %v10815 = vld [vmem:[#allocation2 + $0x1c] sm:$0xff]
      %v10816 = vld [vmem:[#allocation2 + $0x24] sm:$0xff]
      %v10817 = vld [vmem:[#allocation2 + $0x2c] sm:$0xff]
      %v10818 = vld [vmem:[#allocation2 + $0x34] sm:$0xff]
      %v10819 = vld [vmem:[#allocation2 + $0x3c] sm:$0xff]
      %v10820 = vld [vmem:[#allocation2 + $0x44] sm:$0xff]
      %v10821 = vld [vmem:[#allocation2 + $0x4c] sm:$0xff]
      %v10822 = vld [vmem:[#allocation2 + $0x54] sm:$0xff]
      %v10823 = vld [vmem:[#allocation2 + $0x5c] sm:$0xff]
      %v10824 = vld [vmem:[#allocation2 + $0x64] sm:$0xff]
      %v10825 = vld [vmem:[#allocation2 + $0x6c] sm:$0xff]
      %v10826 = vld [vmem:[#allocation2 + $0x74] sm:$0xff]
      %v10827 = vld [vmem:[#allocation2 + $0x7c] sm:$0xff]
      %v10828 = vld [vmem:[#allocation2 + $0x84] sm:$0xff]
      %v10829 = vld [vmem:[#allocation2 + $0x8c] sm:$0xff]
      %v10830 = vld [vmem:[#allocation2 + $0x94] sm:$0xff]
      %v10831 = vld [vmem:[#allocation2 + $0x9c] sm:$0xff]
      %v10832 = vld [vmem:[#allocation2 + $0xa4] sm:$0xff]
      %v10833 = vld [vmem:[#allocation2 + $0xac] sm:$0xff]
      %v10834 = vld [vmem:[#allocation2 + $0xb4] sm:$0xff]
      %v10835 = vld [vmem:[#allocation2 + $0xbc] sm:$0xff]
      %v10836 = vld [vmem:[#allocation2 + $0xc4] sm:$0xff]
      %v10837 = vld [vmem:[#allocation2 + $0xcc] sm:$0xff]
      %v10838 = vld [vmem:[#allocation2 + $0xd4] sm:$0xff]
      %v10839 = vld [vmem:[#allocation2 + $0xdc] sm:$0xff]
      %v10840 = vld [vmem:[#allocation2 + $0xe4] sm:$0xff]
      %v10841 = vld [vmem:[#allocation2 + $0xec] sm:$0xff]
      %v10842 = vld [vmem:[#allocation2 + $0xf4] sm:$0xff]
      %v10843 = vld [vmem:[#allocation2 + $0xfc] sm:$0xff]
      %v10844 = vld [vmem:[#allocation2 + $0x104] sm:$0xff]
      %v10845 = vld [vmem:[#allocation2 + $0x10c] sm:$0xff]
      %v10846 = vld [vmem:[#allocation2 + $0x114] sm:$0xff]
      %v10847 = vld [vmem:[#allocation2 + $0x11c] sm:$0xff]
      %v10848 = vld [vmem:[#allocation2 + $0x124] sm:$0xff]
      %v10849 = vld [vmem:[#allocation2 + $0x12c] sm:$0xff]
      %10886 = vrot.lane.b32.xlu0 %v10778, 64
      %v10887 = vpop.permute.xlu0 %10886
      %10888 = vrot.lane.b32.xlu0 %v10779, 64
      %v10889 = vpop.permute.xlu0 %10888
      %10890 = vrot.lane.b32.xlu0 %v10780, 64
      %v10891 = vpop.permute.xlu0 %10890
      %10892 = vrot.lane.b32.xlu0 %v10781, 64
      %v10893 = vpop.permute.xlu0 %10892
      %10894 = vrot.lane.b32.xlu0 %v10782, 64
      %v10895 = vpop.permute.xlu0 %10894
      %10896 = vrot.lane.b32.xlu0 %v10783, 64
      %v10897 = vpop.permute.xlu0 %10896
      %10898 = vrot.lane.b32.xlu0 %v10784, 64
      %v10899 = vpop.permute.xlu0 %10898
      %10900 = vrot.lane.b32.xlu0 %v10785, 64
      %v10901 = vpop.permute.xlu0 %10900
      %10902 = vrot.lane.b32.xlu0 %v10786, 64
      %v10903 = vpop.permute.xlu0 %10902
      %10904 = vrot.lane.b32.xlu0 %v10787, 64
      %v10905 = vpop.permute.xlu0 %10904
      %10906 = vrot.lane.b32.xlu0 %v10788, 64
      %v10907 = vpop.permute.xlu0 %10906
      %10908 = vrot.lane.b32.xlu0 %v10789, 64
      %v10909 = vpop.permute.xlu0 %10908
      %10910 = vrot.lane.b32.xlu0 %v10790, 64
      %v10911 = vpop.permute.xlu0 %10910
      %10912 = vrot.lane.b32.xlu0 %v10791, 64
      %v10913 = vpop.permute.xlu0 %10912
      %10914 = vrot.lane.b32.xlu0 %v10792, 64
      %v10915 = vpop.permute.xlu0 %10914
      %10916 = vrot.lane.b32.xlu0 %v10793, 64
      %v10917 = vpop.permute.xlu0 %10916
      %10918 = vrot.lane.b32.xlu0 %v10794, 64
      %v10919 = vpop.permute.xlu0 %10918
      %10920 = vrot.lane.b32.xlu0 %v10795, 64
      %v10921 = vpop.permute.xlu0 %10920
      %10922 = vrot.lane.b32.xlu0 %v10796, 64
      %v10923 = vpop.permute.xlu0 %10922
      %10924 = vrot.lane.b32.xlu0 %v10797, 64
      %v10925 = vpop.permute.xlu0 %10924
      %10926 = vrot.lane.b32.xlu0 %v10798, 64
      %v10927 = vpop.permute.xlu0 %10926
      %10928 = vrot.lane.b32.xlu0 %v10799, 64
      %v10929 = vpop.permute.xlu0 %10928
      %10930 = vrot.lane.b32.xlu0 %v10800, 64
      %v10931 = vpop.permute.xlu0 %10930
      %10932 = vrot.lane.b32.xlu0 %v10801, 64
      %v10933 = vpop.permute.xlu0 %10932
      %10934 = vrot.lane.b32.xlu0 %v10802, 64
      %v10935 = vpop.permute.xlu0 %10934
      %10936 = vrot.lane.b32.xlu0 %v10803, 64
      %v10937 = vpop.permute.xlu0 %10936
      %10938 = vrot.lane.b32.xlu0 %v10804, 64
      %v10939 = vpop.permute.xlu0 %10938
      %10940 = vrot.lane.b32.xlu0 %v10805, 64
      %v10941 = vpop.permute.xlu0 %10940
      %10942 = vrot.lane.b32.xlu0 %v10806, 64
      %v10943 = vpop.permute.xlu0 %10942
      %10944 = vrot.lane.b32.xlu0 %v10807, 64
      %v10945 = vpop.permute.xlu0 %10944
      %10946 = vrot.lane.b32.xlu0 %v10808, 64
      %v10947 = vpop.permute.xlu0 %10946
      %10948 = vrot.lane.b32.xlu0 %v10809, 64
      %v10949 = vpop.permute.xlu0 %10948
      %10950 = vrot.lane.b32.xlu0 %v10810, 64
      %v10951 = vpop.permute.xlu0 %10950
      %10952 = vrot.lane.b32.xlu0 %v10811, 64
      %v10953 = vpop.permute.xlu0 %10952
      %10954 = vrot.lane.b32.xlu0 %v10812, 64
      %v10955 = vpop.permute.xlu0 %10954
      %10956 = vrot.lane.b32.xlu0 %v10813, 64
      %v10957 = vpop.permute.xlu0 %10956
      %v10994 = vsel %vm1936, %v10538, %v10887
      %v10995 = vsel %vm1936, %v10539, %v10889
      %v10996 = vsel %vm1936, %v10540, %v10891
      %v10997 = vsel %vm1936, %v10541, %v10893
      %v10998 = vsel %vm1936, %v10542, %v10895
      %v10999 = vsel %vm1936, %v10543, %v10897
      %v11000 = vsel %vm1936, %v10544, %v10899
      %v11001 = vsel %vm1936, %v10545, %v10901
      %v11002 = vsel %vm1936, %v10546, %v10903
      %v11003 = vsel %vm1936, %v10547, %v10905
      %v11004 = vsel %vm1936, %v10548, %v10907
      %v11005 = vsel %vm1936, %v10549, %v10909
      %v11006 = vsel %vm1936, %v10550, %v10911
      %v11007 = vsel %vm1936, %v10551, %v10913
      %v11008 = vsel %vm1936, %v10552, %v10915
      %v11009 = vsel %vm1936, %v10553, %v10917
      %v11010 = vsel %vm1936, %v10554, %v10919
      %v11011 = vsel %vm1936, %v10555, %v10921
      %v11012 = vsel %vm1936, %v10556, %v10923
      %v11013 = vsel %vm1936, %v10557, %v10925
      %v11014 = vsel %vm1936, %v10558, %v10927
      %v11015 = vsel %vm1936, %v10559, %v10929
      %v11016 = vsel %vm1936, %v10560, %v10931
      %v11017 = vsel %vm1936, %v10561, %v10933
      %v11018 = vsel %vm1936, %v10562, %v10935
      %v11019 = vsel %vm1936, %v10563, %v10937
      %v11020 = vsel %vm1936, %v10564, %v10939
      %v11021 = vsel %vm1936, %v10565, %v10941
      %v11022 = vsel %vm1936, %v10566, %v10943
      %v11023 = vsel %vm1936, %v10567, %v10945
      %v11024 = vsel %vm1936, %v10568, %v10947
      %v11025 = vsel %vm1936, %v10569, %v10949
      %v11026 = vsel %vm1936, %v10570, %v10951
      %v11027 = vsel %vm1936, %v10571, %v10953
      %v11028 = vsel %vm1936, %v10776, %v10955
      %v11029 = vsel %vm1936, %v10777, %v10957
      %s11030 = scalar_lea.vmem %s3, 192
      %v11031 = vld [vmem:[%s11030] sm:$0xff]
      %v11032 = vld [vmem:[%s11030 + $0x8] sm:$0xff]
      %v11033 = vld [vmem:[%s11030 + $0x10] sm:$0xff]
      %v11034 = vld [vmem:[%s11030 + $0x18] sm:$0xff]
      %v11035 = vld [vmem:[%s11030 + $0x20] sm:$0xff]
      %v11036 = vld [vmem:[%s11030 + $0x28] sm:$0xff]
      %v11037 = vld [vmem:[%s11030 + $0x30] sm:$0xff]
      %v11038 = vld [vmem:[%s11030 + $0x38] sm:$0xff]
      %v11039 = vld [vmem:[%s11030 + $0x40] sm:$0xff]
      %v11040 = vld [vmem:[%s11030 + $0x48] sm:$0xff]
      %v11041 = vld [vmem:[%s11030 + $0x50] sm:$0xff]
      %v11042 = vld [vmem:[%s11030 + $0x58] sm:$0xff]
      %v11043 = vld [vmem:[%s11030 + $0x60] sm:$0xff]
      %v11044 = vld [vmem:[%s11030 + $0x68] sm:$0xff]
      %v11045 = vld [vmem:[%s11030 + $0x70] sm:$0xff]
      %v11046 = vld [vmem:[%s11030 + $0x78] sm:$0xff]
      %v11047 = vld [vmem:[%s11030 + $0x80] sm:$0xff]
      %v11048 = vld [vmem:[%s11030 + $0x88] sm:$0xff]
      %v11049 = vld [vmem:[%s11030 + $0x90] sm:$0xff]
      %v11050 = vld [vmem:[%s11030 + $0x98] sm:$0xff]
      %v11051 = vld [vmem:[%s11030 + $0xa0] sm:$0xff]
      %v11052 = vld [vmem:[%s11030 + $0xa8] sm:$0xff]
      %v11053 = vld [vmem:[%s11030 + $0xb0] sm:$0xff]
      %v11054 = vld [vmem:[%s11030 + $0xb8] sm:$0xff]
      %v11056 = vsel %vm1936, %v10814, 0
      %v11059 = vsel %vm1936, %v10815, 0
      %v11062 = vsel %vm1936, %v10816, 0
      %v11065 = vsel %vm1936, %v10817, 0
      %v11068 = vsel %vm1936, %v10818, 0
      %v11071 = vsel %vm1936, %v10819, 0
      %v11074 = vsel %vm1936, %v10820, 0
      %v11077 = vsel %vm1936, %v10821, 0
      %v11080 = vsel %vm1936, %v10822, 0
      %v11083 = vsel %vm1936, %v10823, 0
      %v11086 = vsel %vm1936, %v10824, 0
      %v11089 = vsel %vm1936, %v10825, 0
      %v11092 = vsel %vm1936, %v10826, 0
      %v11095 = vsel %vm1936, %v10827, 0
      %v11098 = vsel %vm1936, %v10828, 0
      %v11101 = vsel %vm1936, %v10829, 0
      %v11104 = vsel %vm1936, %v10830, 0
      %v11107 = vsel %vm1936, %v10831, 0
      %v11110 = vsel %vm1936, %v10832, 0
      %v11113 = vsel %vm1936, %v10833, 0
      %v11116 = vsel %vm1936, %v10834, 0
      %v11119 = vsel %vm1936, %v10835, 0
      %v11122 = vsel %vm1936, %v10836, 0
      %v11125 = vsel %vm1936, %v10837, 0
      %v11128 = vsel %vm1936, %v10838, 0
      %v11131 = vsel %vm1936, %v10839, 0
      %v11134 = vsel %vm1936, %v10840, 0
      %v11137 = vsel %vm1936, %v10841, 0
      %v11140 = vsel %vm1936, %v10842, 0
      %v11143 = vsel %vm1936, %v10843, 0
      %v11146 = vsel %vm1936, %v10844, 0
      %v11149 = vsel %vm1936, %v10845, 0
      %v11152 = vsel %vm1936, %v10846, 0
      %v11155 = vsel %vm1936, %v10847, 0
      %v11158 = vsel %vm1936, %v10848, 0
      %v11161 = vsel %vm1936, %v10849, 0
      %11163 = vmatpush.msra.mxu0 %v11046
      %11164 = vmatpush.msra.mxu0 %v11045
      %11165 = vmatpush.msra.mxu0 %v11044
      %11166 = vmatpush.msra.mxu0 %v11043
      %11167 = vmatpush.msra.mxu0 %v11042
      %11168 = vmatpush.msra.mxu0 %v11041
      %11169 = vmatpush.msra.mxu0 %v11040
      %11170 = vmatpush.msra.mxu0 %v11039
      %11171 = vmatpush.msra.mxu0 %v11038
      %11172 = vmatpush.msra.mxu0 %v11037
      %11173 = vmatpush.msra.mxu0 %v11036
      %11174 = vmatpush.msra.mxu0 %v11035
      %11175 = vmatpush.msra.mxu0 %v11034
      %11176 = vmatpush.msra.mxu0 %v11033
      %11177 = vmatpush.msra.mxu0 %v11032
      %11178 = vmatpush.msra.mxu0 %v11031
      %11179 = vmatmul.f32.gmra.mxu0 %v10994
      %v11180 = vpop.f32.mrf.mxu0
      %v11181 = vadd.f32 0.0, %v11180
      %11182 = vmatmul.f32.gmra.mxu0 %v10995
      %v11183 = vpop.f32.mrf.mxu0
      %v11184 = vadd.f32 0.0, %v11183
      %11185 = vmatmul.f32.gmra.mxu0 %v10996
      %v11186 = vpop.f32.mrf.mxu0
      %v11187 = vadd.f32 0.0, %v11186
      %11188 = vmatmul.f32.gmra.mxu0 %v10997
      %v11189 = vpop.f32.mrf.mxu0
      %v11190 = vadd.f32 0.0, %v11189
      %11191 = vmatmul.f32.gmra.mxu0 %v10998
      %v11192 = vpop.f32.mrf.mxu0
      %v11193 = vadd.f32 0.0, %v11192
      %11194 = vmatmul.f32.gmra.mxu0 %v10999
      %v11195 = vpop.f32.mrf.mxu0
      %v11196 = vadd.f32 0.0, %v11195
      %11197 = vmatmul.f32.gmra.mxu0 %v11000
      %v11198 = vpop.f32.mrf.mxu0
      %v11199 = vadd.f32 0.0, %v11198
      %11200 = vmatmul.f32.gmra.mxu0 %v11001
      %v11201 = vpop.f32.mrf.mxu0
      %v11202 = vadd.f32 0.0, %v11201
      %11203 = vmatmul.f32.gmra.mxu0 %v11002
      %v11204 = vpop.f32.mrf.mxu0
      %v11205 = vadd.f32 0.0, %v11204
      %11206 = vmatmul.f32.gmra.mxu0 %v11003
      %v11207 = vpop.f32.mrf.mxu0
      %v11208 = vadd.f32 0.0, %v11207
      %11209 = vmatmul.f32.gmra.mxu0 %v11004
      %v11210 = vpop.f32.mrf.mxu0
      %v11211 = vadd.f32 0.0, %v11210
      %11212 = vmatmul.f32.gmra.mxu0 %v11005
      %v11213 = vpop.f32.mrf.mxu0
      %v11214 = vadd.f32 0.0, %v11213
      %11215 = vmatmul.f32.gmra.mxu0 %v11006
      %v11216 = vpop.f32.mrf.mxu0
      %v11217 = vadd.f32 0.0, %v11216
      %11218 = vmatmul.f32.gmra.mxu0 %v11007
      %v11219 = vpop.f32.mrf.mxu0
      %v11220 = vadd.f32 0.0, %v11219
      %11221 = vmatmul.f32.gmra.mxu0 %v11008
      %v11222 = vpop.f32.mrf.mxu0
      %v11223 = vadd.f32 0.0, %v11222
      %11224 = vmatmul.f32.gmra.mxu0 %v11009
      %v11225 = vpop.f32.mrf.mxu0
      %v11226 = vadd.f32 0.0, %v11225
      %11227 = vmatmul.f32.gmra.mxu0 %v11010
      %v11228 = vpop.f32.mrf.mxu0
      %v11229 = vadd.f32 0.0, %v11228
      %11230 = vmatmul.f32.gmra.mxu0 %v11011
      %v11231 = vpop.f32.mrf.mxu0
      %v11232 = vadd.f32 0.0, %v11231
      %11233 = vmatmul.f32.gmra.mxu0 %v11012
      %v11234 = vpop.f32.mrf.mxu0
      %v11235 = vadd.f32 0.0, %v11234
      %11236 = vmatmul.f32.gmra.mxu0 %v11013
      %v11237 = vpop.f32.mrf.mxu0
      %v11238 = vadd.f32 0.0, %v11237
      %11239 = vmatmul.f32.gmra.mxu0 %v11014
      %v11240 = vpop.f32.mrf.mxu0
      %v11241 = vadd.f32 0.0, %v11240
      %11242 = vmatmul.f32.gmra.mxu0 %v11015
      %v11243 = vpop.f32.mrf.mxu0
      %v11244 = vadd.f32 0.0, %v11243
      %11245 = vmatmul.f32.gmra.mxu0 %v11016
      %v11246 = vpop.f32.mrf.mxu0
      %v11247 = vadd.f32 0.0, %v11246
      %11248 = vmatmul.f32.gmra.mxu0 %v11017
      %v11249 = vpop.f32.mrf.mxu0
      %v11250 = vadd.f32 0.0, %v11249
      %11251 = vmatmul.f32.gmra.mxu0 %v11018
      %v11252 = vpop.f32.mrf.mxu0
      %v11253 = vadd.f32 0.0, %v11252
      %11254 = vmatmul.f32.gmra.mxu0 %v11019
      %v11255 = vpop.f32.mrf.mxu0
      %v11256 = vadd.f32 0.0, %v11255
      %11257 = vmatmul.f32.gmra.mxu0 %v11020
      %v11258 = vpop.f32.mrf.mxu0
      %v11259 = vadd.f32 0.0, %v11258
      %11260 = vmatmul.f32.gmra.mxu0 %v11021
      %v11261 = vpop.f32.mrf.mxu0
      %v11262 = vadd.f32 0.0, %v11261
      %11263 = vmatmul.f32.gmra.mxu0 %v11022
      %v11264 = vpop.f32.mrf.mxu0
      %v11265 = vadd.f32 0.0, %v11264
      %11266 = vmatmul.f32.gmra.mxu0 %v11023
      %v11267 = vpop.f32.mrf.mxu0
      %v11268 = vadd.f32 0.0, %v11267
      %11269 = vmatmul.f32.gmra.mxu0 %v11024
      %v11270 = vpop.f32.mrf.mxu0
      %v11271 = vadd.f32 0.0, %v11270
      %11272 = vmatmul.f32.gmra.mxu0 %v11025
      %v11273 = vpop.f32.mrf.mxu0
      %v11274 = vadd.f32 0.0, %v11273
      %11275 = vmatmul.f32.gmra.mxu0 %v11026
      %v11276 = vpop.f32.mrf.mxu0
      %v11277 = vadd.f32 0.0, %v11276
      %11278 = vmatmul.f32.gmra.mxu0 %v11027
      %v11279 = vpop.f32.mrf.mxu0
      %v11280 = vadd.f32 0.0, %v11279
      %11281 = vmatmul.f32.gmra.mxu0 %v11028
      %v11282 = vpop.f32.mrf.mxu0
      %v11283 = vadd.f32 0.0, %v11282
      %11284 = vmatmul.f32.gmra.mxu0 %v11029
      %v11285 = vpop.f32.mrf.mxu0
      %v11286 = vadd.f32 0.0, %v11285
      %11287 = vdwg.mxu0
      %11288 = vmatpush.msra.mxu0 0.0
      %11289 = vmatpush.msra.mxu0 0.0
      %11290 = vmatpush.msra.mxu0 0.0
      %11291 = vmatpush.msra.mxu0 0.0
      %11292 = vmatpush.msra.mxu0 0.0
      %11293 = vmatpush.msra.mxu0 0.0
      %11294 = vmatpush.msra.mxu0 0.0
      %11295 = vmatpush.msra.mxu0 0.0
      %11296 = vmatpush.msra.mxu0 %v11054
      %11297 = vmatpush.msra.mxu0 %v11053
      %11298 = vmatpush.msra.mxu0 %v11052
      %11299 = vmatpush.msra.mxu0 %v11051
      %11300 = vmatpush.msra.mxu0 %v11050
      %11301 = vmatpush.msra.mxu0 %v11049
      %11302 = vmatpush.msra.mxu0 %v11048
      %11303 = vmatpush.msra.mxu0 %v11047
      %11304 = vmatmul.f32.gmra.mxu0 %v11056
      %v11305 = vpop.f32.mrf.mxu0
      %v11306 = vadd.f32 %v11181, %v11305
      %11307 = vmatmul.f32.gmra.mxu0 %v11059
      %v11308 = vpop.f32.mrf.mxu0
      %v11309 = vadd.f32 %v11184, %v11308
      %11310 = vmatmul.f32.gmra.mxu0 %v11062
      %v11311 = vpop.f32.mrf.mxu0
      %v11312 = vadd.f32 %v11187, %v11311
      %11313 = vmatmul.f32.gmra.mxu0 %v11065
      %v11314 = vpop.f32.mrf.mxu0
      %v11315 = vadd.f32 %v11190, %v11314
      %11316 = vmatmul.f32.gmra.mxu0 %v11068
      %v11317 = vpop.f32.mrf.mxu0
      %v11318 = vadd.f32 %v11193, %v11317
      %11319 = vmatmul.f32.gmra.mxu0 %v11071
      %v11320 = vpop.f32.mrf.mxu0
      %v11321 = vadd.f32 %v11196, %v11320
      %11322 = vmatmul.f32.gmra.mxu0 %v11074
      %v11323 = vpop.f32.mrf.mxu0
      %v11324 = vadd.f32 %v11199, %v11323
      %11325 = vmatmul.f32.gmra.mxu0 %v11077
      %v11326 = vpop.f32.mrf.mxu0
      %v11327 = vadd.f32 %v11202, %v11326
      %11328 = vmatmul.f32.gmra.mxu0 %v11080
      %v11329 = vpop.f32.mrf.mxu0
      %v11330 = vadd.f32 %v11205, %v11329
      %11331 = vmatmul.f32.gmra.mxu0 %v11083
      %v11332 = vpop.f32.mrf.mxu0
      %v11333 = vadd.f32 %v11208, %v11332
      %11334 = vmatmul.f32.gmra.mxu0 %v11086
      %v11335 = vpop.f32.mrf.mxu0
      %v11336 = vadd.f32 %v11211, %v11335
      %11337 = vmatmul.f32.gmra.mxu0 %v11089
      %v11338 = vpop.f32.mrf.mxu0
      %v11339 = vadd.f32 %v11214, %v11338
      %11340 = vmatmul.f32.gmra.mxu0 %v11092
      %v11341 = vpop.f32.mrf.mxu0
      %v11342 = vadd.f32 %v11217, %v11341
      %11343 = vmatmul.f32.gmra.mxu0 %v11095
      %v11344 = vpop.f32.mrf.mxu0
      %v11345 = vadd.f32 %v11220, %v11344
      %11346 = vmatmul.f32.gmra.mxu0 %v11098
      %v11347 = vpop.f32.mrf.mxu0
      %v11348 = vadd.f32 %v11223, %v11347
      %11349 = vmatmul.f32.gmra.mxu0 %v11101
      %v11350 = vpop.f32.mrf.mxu0
      %v11351 = vadd.f32 %v11226, %v11350
      %11352 = vmatmul.f32.gmra.mxu0 %v11104
      %v11353 = vpop.f32.mrf.mxu0
      %v11354 = vadd.f32 %v11229, %v11353
      %11355 = vmatmul.f32.gmra.mxu0 %v11107
      %v11356 = vpop.f32.mrf.mxu0
      %v11357 = vadd.f32 %v11232, %v11356
      %11358 = vmatmul.f32.gmra.mxu0 %v11110
      %v11359 = vpop.f32.mrf.mxu0
      %v11360 = vadd.f32 %v11235, %v11359
      %11361 = vmatmul.f32.gmra.mxu0 %v11113
      %v11362 = vpop.f32.mrf.mxu0
      %v11363 = vadd.f32 %v11238, %v11362
      %11364 = vmatmul.f32.gmra.mxu0 %v11116
      %v11365 = vpop.f32.mrf.mxu0
      %v11366 = vadd.f32 %v11241, %v11365
      %11367 = vmatmul.f32.gmra.mxu0 %v11119
      %v11368 = vpop.f32.mrf.mxu0
      %v11369 = vadd.f32 %v11244, %v11368
      %11370 = vmatmul.f32.gmra.mxu0 %v11122
      %v11371 = vpop.f32.mrf.mxu0
      %v11372 = vadd.f32 %v11247, %v11371
      %11373 = vmatmul.f32.gmra.mxu0 %v11125
      %v11374 = vpop.f32.mrf.mxu0
      %v11375 = vadd.f32 %v11250, %v11374
      %11376 = vmatmul.f32.gmra.mxu0 %v11128
      %v11377 = vpop.f32.mrf.mxu0
      %v11378 = vadd.f32 %v11253, %v11377
      %11379 = vmatmul.f32.gmra.mxu0 %v11131
      %v11380 = vpop.f32.mrf.mxu0
      %v11381 = vadd.f32 %v11256, %v11380
      %11382 = vmatmul.f32.gmra.mxu0 %v11134
      %v11383 = vpop.f32.mrf.mxu0
      %v11384 = vadd.f32 %v11259, %v11383
      %11385 = vmatmul.f32.gmra.mxu0 %v11137
      %v11386 = vpop.f32.mrf.mxu0
      %v11387 = vadd.f32 %v11262, %v11386
      %11388 = vmatmul.f32.gmra.mxu0 %v11140
      %v11389 = vpop.f32.mrf.mxu0
      %v11390 = vadd.f32 %v11265, %v11389
      %11391 = vmatmul.f32.gmra.mxu0 %v11143
      %v11392 = vpop.f32.mrf.mxu0
      %v11393 = vadd.f32 %v11268, %v11392
      %11394 = vmatmul.f32.gmra.mxu0 %v11146
      %v11395 = vpop.f32.mrf.mxu0
      %v11396 = vadd.f32 %v11271, %v11395
      %11397 = vmatmul.f32.gmra.mxu0 %v11149
      %v11398 = vpop.f32.mrf.mxu0
      %v11399 = vadd.f32 %v11274, %v11398
      %11400 = vmatmul.f32.gmra.mxu0 %v11152
      %v11401 = vpop.f32.mrf.mxu0
      %v11402 = vadd.f32 %v11277, %v11401
      %11403 = vmatmul.f32.gmra.mxu0 %v11155
      %v11404 = vpop.f32.mrf.mxu0
      %v11405 = vadd.f32 %v11280, %v11404
      %11406 = vmatmul.f32.gmra.mxu0 %v11158
      %v11407 = vpop.f32.mrf.mxu0
      %v11408 = vadd.f32 %v11283, %v11407
      %11409 = vmatmul.f32.gmra.mxu0 %v11161
      %v11410 = vpop.f32.mrf.mxu0
      %v11411 = vadd.f32 %v11286, %v11410
      %11412 = vdwg.mxu0
      %v11414 = vsel %vm1936, %v10536, 0
      %v11417 = vsel %vm1936, %v10537, 0
      %v11420 = vsel %vm1936, %v10538, 0
      %v11423 = vsel %vm1936, %v10539, 0
      %v11426 = vsel %vm1936, %v10540, 0
      %v11429 = vsel %vm1936, %v10541, 0
      %v11432 = vsel %vm1936, %v10542, 0
      %v11435 = vsel %vm1936, %v10543, 0
      %v11438 = vsel %vm1936, %v10544, 0
      %v11441 = vsel %vm1936, %v10545, 0
      %v11444 = vsel %vm1936, %v10546, 0
      %v11447 = vsel %vm1936, %v10547, 0
      %v11450 = vsel %vm1936, %v10548, 0
      %v11453 = vsel %vm1936, %v10549, 0
      %v11456 = vsel %vm1936, %v10550, 0
      %v11459 = vsel %vm1936, %v10551, 0
      %v11462 = vsel %vm1936, %v10552, 0
      %v11465 = vsel %vm1936, %v10553, 0
      %v11468 = vsel %vm1936, %v10554, 0
      %v11471 = vsel %vm1936, %v10555, 0
      %v11474 = vsel %vm1936, %v10556, 0
      %v11477 = vsel %vm1936, %v10557, 0
      %v11480 = vsel %vm1936, %v10558, 0
      %v11483 = vsel %vm1936, %v10559, 0
      %v11486 = vsel %vm1936, %v10560, 0
      %v11489 = vsel %vm1936, %v10561, 0
      %v11492 = vsel %vm1936, %v10562, 0
      %v11495 = vsel %vm1936, %v10563, 0
      %v11498 = vsel %vm1936, %v10564, 0
      %v11501 = vsel %vm1936, %v10565, 0
      %v11504 = vsel %vm1936, %v10566, 0
      %v11507 = vsel %vm1936, %v10567, 0
      %v11510 = vsel %vm1936, %v10568, 0
      %v11513 = vsel %vm1936, %v10569, 0
      %v11516 = vsel %vm1936, %v10570, 0
      %v11519 = vsel %vm1936, %v10571, 0
      %11521 = vmatpush.msra.mxu0 %v10767
      %11522 = vmatpush.msra.mxu0 %v10766
      %11523 = vmatpush.msra.mxu0 %v10765
      %11524 = vmatpush.msra.mxu0 %v10764
      %11525 = vmatpush.msra.mxu0 %v10763
      %11526 = vmatpush.msra.mxu0 %v10762
      %11527 = vmatpush.msra.mxu0 %v10761
      %11528 = vmatpush.msra.mxu0 %v10760
      %11529 = vmatpush.msra.mxu0 %v10759
      %11530 = vmatpush.msra.mxu0 %v10758
      %11531 = vmatpush.msra.mxu0 %v10757
      %11532 = vmatpush.msra.mxu0 %v10756
      %11533 = vmatpush.msra.mxu0 %v10755
      %11534 = vmatpush.msra.mxu0 %v10754
      %11535 = vmatpush.msra.mxu0 %v10753
      %11536 = vmatpush.msra.mxu0 %v10752
      %11537 = vmatmul.f32.gmra.mxu0 %v10716
      %v11538 = vpop.f32.mrf.mxu0
      %v11539 = vadd.f32 %v11306, %v11538
      %11540 = vmatmul.f32.gmra.mxu0 %v10717
      %v11541 = vpop.f32.mrf.mxu0
      %v11542 = vadd.f32 %v11309, %v11541
      %11543 = vmatmul.f32.gmra.mxu0 %v10718
      %v11544 = vpop.f32.mrf.mxu0
      %v11545 = vadd.f32 %v11312, %v11544
      %11546 = vmatmul.f32.gmra.mxu0 %v10719
      %v11547 = vpop.f32.mrf.mxu0
      %v11548 = vadd.f32 %v11315, %v11547
      %11549 = vmatmul.f32.gmra.mxu0 %v10720
      %v11550 = vpop.f32.mrf.mxu0
      %v11551 = vadd.f32 %v11318, %v11550
      %11552 = vmatmul.f32.gmra.mxu0 %v10721
      %v11553 = vpop.f32.mrf.mxu0
      %v11554 = vadd.f32 %v11321, %v11553
      %11555 = vmatmul.f32.gmra.mxu0 %v10722
      %v11556 = vpop.f32.mrf.mxu0
      %v11557 = vadd.f32 %v11324, %v11556
      %11558 = vmatmul.f32.gmra.mxu0 %v10723
      %v11559 = vpop.f32.mrf.mxu0
      %v11560 = vadd.f32 %v11327, %v11559
      %11561 = vmatmul.f32.gmra.mxu0 %v10724
      %v11562 = vpop.f32.mrf.mxu0
      %v11563 = vadd.f32 %v11330, %v11562
      %11564 = vmatmul.f32.gmra.mxu0 %v10725
      %v11565 = vpop.f32.mrf.mxu0
      %v11566 = vadd.f32 %v11333, %v11565
      %11567 = vmatmul.f32.gmra.mxu0 %v10726
      %v11568 = vpop.f32.mrf.mxu0
      %v11569 = vadd.f32 %v11336, %v11568
      %11570 = vmatmul.f32.gmra.mxu0 %v10727
      %v11571 = vpop.f32.mrf.mxu0
      %v11572 = vadd.f32 %v11339, %v11571
      %11573 = vmatmul.f32.gmra.mxu0 %v10728
      %v11574 = vpop.f32.mrf.mxu0
      %v11575 = vadd.f32 %v11342, %v11574
      %11576 = vmatmul.f32.gmra.mxu0 %v10729
      %v11577 = vpop.f32.mrf.mxu0
      %v11578 = vadd.f32 %v11345, %v11577
      %11579 = vmatmul.f32.gmra.mxu0 %v10730
      %v11580 = vpop.f32.mrf.mxu0
      %v11581 = vadd.f32 %v11348, %v11580
      %11582 = vmatmul.f32.gmra.mxu0 %v10731
      %v11583 = vpop.f32.mrf.mxu0
      %v11584 = vadd.f32 %v11351, %v11583
      %11585 = vmatmul.f32.gmra.mxu0 %v10732
      %v11586 = vpop.f32.mrf.mxu0
      %v11587 = vadd.f32 %v11354, %v11586
      %11588 = vmatmul.f32.gmra.mxu0 %v10733
      %v11589 = vpop.f32.mrf.mxu0
      %v11590 = vadd.f32 %v11357, %v11589
      %11591 = vmatmul.f32.gmra.mxu0 %v10734
      %v11592 = vpop.f32.mrf.mxu0
      %v11593 = vadd.f32 %v11360, %v11592
      %11594 = vmatmul.f32.gmra.mxu0 %v10735
      %v11595 = vpop.f32.mrf.mxu0
      %v11596 = vadd.f32 %v11363, %v11595
      %11597 = vmatmul.f32.gmra.mxu0 %v10736
      %v11598 = vpop.f32.mrf.mxu0
      %v11599 = vadd.f32 %v11366, %v11598
      %11600 = vmatmul.f32.gmra.mxu0 %v10737
      %v11601 = vpop.f32.mrf.mxu0
      %v11602 = vadd.f32 %v11369, %v11601
      %11603 = vmatmul.f32.gmra.mxu0 %v10738
      %v11604 = vpop.f32.mrf.mxu0
      %v11605 = vadd.f32 %v11372, %v11604
      %11606 = vmatmul.f32.gmra.mxu0 %v10739
      %v11607 = vpop.f32.mrf.mxu0
      %v11608 = vadd.f32 %v11375, %v11607
      %11609 = vmatmul.f32.gmra.mxu0 %v10740
      %v11610 = vpop.f32.mrf.mxu0
      %v11611 = vadd.f32 %v11378, %v11610
      %11612 = vmatmul.f32.gmra.mxu0 %v10741
      %v11613 = vpop.f32.mrf.mxu0
      %v11614 = vadd.f32 %v11381, %v11613
      %11615 = vmatmul.f32.gmra.mxu0 %v10742
      %v11616 = vpop.f32.mrf.mxu0
      %v11617 = vadd.f32 %v11384, %v11616
      %11618 = vmatmul.f32.gmra.mxu0 %v10743
      %v11619 = vpop.f32.mrf.mxu0
      %v11620 = vadd.f32 %v11387, %v11619
      %11621 = vmatmul.f32.gmra.mxu0 %v10744
      %v11622 = vpop.f32.mrf.mxu0
      %v11623 = vadd.f32 %v11390, %v11622
      %11624 = vmatmul.f32.gmra.mxu0 %v10745
      %v11625 = vpop.f32.mrf.mxu0
      %v11626 = vadd.f32 %v11393, %v11625
      %11627 = vmatmul.f32.gmra.mxu0 %v10746
      %v11628 = vpop.f32.mrf.mxu0
      %v11629 = vadd.f32 %v11396, %v11628
      %11630 = vmatmul.f32.gmra.mxu0 %v10747
      %v11631 = vpop.f32.mrf.mxu0
      %v11632 = vadd.f32 %v11399, %v11631
      %11633 = vmatmul.f32.gmra.mxu0 %v10748
      %v11634 = vpop.f32.mrf.mxu0
      %v11635 = vadd.f32 %v11402, %v11634
      %11636 = vmatmul.f32.gmra.mxu0 %v10749
      %v11637 = vpop.f32.mrf.mxu0
      %v11638 = vadd.f32 %v11405, %v11637
      %11639 = vmatmul.f32.gmra.mxu0 %v10750
      %v11640 = vpop.f32.mrf.mxu0
      %v11641 = vadd.f32 %v11408, %v11640
      %11642 = vmatmul.f32.gmra.mxu0 %v10751
      %v11643 = vpop.f32.mrf.mxu0
      %v11644 = vadd.f32 %v11411, %v11643
      %11645 = vdwg.mxu0
      %11646 = vmatpush.msra.mxu0 0.0
      %11647 = vmatpush.msra.mxu0 0.0
      %11648 = vmatpush.msra.mxu0 0.0
      %11649 = vmatpush.msra.mxu0 0.0
      %11650 = vmatpush.msra.mxu0 0.0
      %11651 = vmatpush.msra.mxu0 0.0
      %11652 = vmatpush.msra.mxu0 0.0
      %11653 = vmatpush.msra.mxu0 0.0
      %11654 = vmatpush.msra.mxu0 %v10775
      %11655 = vmatpush.msra.mxu0 %v10774
      %11656 = vmatpush.msra.mxu0 %v10773
      %11657 = vmatpush.msra.mxu0 %v10772
      %11658 = vmatpush.msra.mxu0 %v10771
      %11659 = vmatpush.msra.mxu0 %v10770
      %11660 = vmatpush.msra.mxu0 %v10769
      %11661 = vmatpush.msra.mxu0 %v10768
      %11662 = vmatmul.f32.gmra.mxu0 %v11414
      %v11663 = vpop.f32.mrf.mxu0
      %v11664 = vadd.f32 %v11539, %v11663
      %11665 = vmatmul.f32.gmra.mxu0 %v11417
      %v11666 = vpop.f32.mrf.mxu0
      %v11667 = vadd.f32 %v11542, %v11666
      %11668 = vmatmul.f32.gmra.mxu0 %v11420
      %v11669 = vpop.f32.mrf.mxu0
      %v11670 = vadd.f32 %v11545, %v11669
      %11671 = vmatmul.f32.gmra.mxu0 %v11423
      %v11672 = vpop.f32.mrf.mxu0
      %v11673 = vadd.f32 %v11548, %v11672
      %11674 = vmatmul.f32.gmra.mxu0 %v11426
      %v11675 = vpop.f32.mrf.mxu0
      %v11676 = vadd.f32 %v11551, %v11675
      %11677 = vmatmul.f32.gmra.mxu0 %v11429
      %v11678 = vpop.f32.mrf.mxu0
      %v11679 = vadd.f32 %v11554, %v11678
      %11680 = vmatmul.f32.gmra.mxu0 %v11432
      %v11681 = vpop.f32.mrf.mxu0
      %v11682 = vadd.f32 %v11557, %v11681
      %11683 = vmatmul.f32.gmra.mxu0 %v11435
      %v11684 = vpop.f32.mrf.mxu0
      %v11685 = vadd.f32 %v11560, %v11684
      %11686 = vmatmul.f32.gmra.mxu0 %v11438
      %v11687 = vpop.f32.mrf.mxu0
      %v11688 = vadd.f32 %v11563, %v11687
      %11689 = vmatmul.f32.gmra.mxu0 %v11441
      %v11690 = vpop.f32.mrf.mxu0
      %v11691 = vadd.f32 %v11566, %v11690
      %11692 = vmatmul.f32.gmra.mxu0 %v11444
      %v11693 = vpop.f32.mrf.mxu0
      %v11694 = vadd.f32 %v11569, %v11693
      %11695 = vmatmul.f32.gmra.mxu0 %v11447
      %v11696 = vpop.f32.mrf.mxu0
      %v11697 = vadd.f32 %v11572, %v11696
      %11698 = vmatmul.f32.gmra.mxu0 %v11450
      %v11699 = vpop.f32.mrf.mxu0
      %v11700 = vadd.f32 %v11575, %v11699
      %11701 = vmatmul.f32.gmra.mxu0 %v11453
      %v11702 = vpop.f32.mrf.mxu0
      %v11703 = vadd.f32 %v11578, %v11702
      %11704 = vmatmul.f32.gmra.mxu0 %v11456
      %v11705 = vpop.f32.mrf.mxu0
      %v11706 = vadd.f32 %v11581, %v11705
      %11707 = vmatmul.f32.gmra.mxu0 %v11459
      %v11708 = vpop.f32.mrf.mxu0
      %v11709 = vadd.f32 %v11584, %v11708
      %11710 = vmatmul.f32.gmra.mxu0 %v11462
      %v11711 = vpop.f32.mrf.mxu0
      %v11712 = vadd.f32 %v11587, %v11711
      %11713 = vmatmul.f32.gmra.mxu0 %v11465
      %v11714 = vpop.f32.mrf.mxu0
      %v11715 = vadd.f32 %v11590, %v11714
      %11716 = vmatmul.f32.gmra.mxu0 %v11468
      %v11717 = vpop.f32.mrf.mxu0
      %v11718 = vadd.f32 %v11593, %v11717
      %11719 = vmatmul.f32.gmra.mxu0 %v11471
      %v11720 = vpop.f32.mrf.mxu0
      %v11721 = vadd.f32 %v11596, %v11720
      %11722 = vmatmul.f32.gmra.mxu0 %v11474
      %v11723 = vpop.f32.mrf.mxu0
      %v11724 = vadd.f32 %v11599, %v11723
      %11725 = vmatmul.f32.gmra.mxu0 %v11477
      %v11726 = vpop.f32.mrf.mxu0
      %v11727 = vadd.f32 %v11602, %v11726
      %11728 = vmatmul.f32.gmra.mxu0 %v11480
      %v11729 = vpop.f32.mrf.mxu0
      %v11730 = vadd.f32 %v11605, %v11729
      %11731 = vmatmul.f32.gmra.mxu0 %v11483
      %v11732 = vpop.f32.mrf.mxu0
      %v11733 = vadd.f32 %v11608, %v11732
      %11734 = vmatmul.f32.gmra.mxu0 %v11486
      %v11735 = vpop.f32.mrf.mxu0
      %v11736 = vadd.f32 %v11611, %v11735
      %11737 = vmatmul.f32.gmra.mxu0 %v11489
      %v11738 = vpop.f32.mrf.mxu0
      %v11739 = vadd.f32 %v11614, %v11738
      %11740 = vmatmul.f32.gmra.mxu0 %v11492
      %v11741 = vpop.f32.mrf.mxu0
      %v11742 = vadd.f32 %v11617, %v11741
      %11743 = vmatmul.f32.gmra.mxu0 %v11495
      %v11744 = vpop.f32.mrf.mxu0
      %v11745 = vadd.f32 %v11620, %v11744
      %11746 = vmatmul.f32.gmra.mxu0 %v11498
      %v11747 = vpop.f32.mrf.mxu0
      %v11748 = vadd.f32 %v11623, %v11747
      %11749 = vmatmul.f32.gmra.mxu0 %v11501
      %v11750 = vpop.f32.mrf.mxu0
      %v11751 = vadd.f32 %v11626, %v11750
      %11752 = vmatmul.f32.gmra.mxu0 %v11504
      %v11753 = vpop.f32.mrf.mxu0
      %v11754 = vadd.f32 %v11629, %v11753
      %11755 = vmatmul.f32.gmra.mxu0 %v11507
      %v11756 = vpop.f32.mrf.mxu0
      %v11757 = vadd.f32 %v11632, %v11756
      %11758 = vmatmul.f32.gmra.mxu0 %v11510
      %v11759 = vpop.f32.mrf.mxu0
      %v11760 = vadd.f32 %v11635, %v11759
      %11761 = vmatmul.f32.gmra.mxu0 %v11513
      %v11762 = vpop.f32.mrf.mxu0
      %v11763 = vadd.f32 %v11638, %v11762
      %11764 = vmatmul.f32.gmra.mxu0 %v11516
      %v11765 = vpop.f32.mrf.mxu0
      %v11766 = vadd.f32 %v11641, %v11765
      %11767 = vmatmul.f32.gmra.mxu0 %v11519
      %v11768 = vpop.f32.mrf.mxu0
      %v11769 = vadd.f32 %v11644, %v11768
      %11770 = vdwg.mxu0
      %v11771 = vld [vmem:[#allocation2 + $0x24] sm:$0xff]
      %v11772 = vld [vmem:[#allocation2 + $0x2c] sm:$0xff]
      %v11773 = vld [vmem:[#allocation2 + $0x34] sm:$0xff]
      %v11774 = vld [vmem:[#allocation2 + $0x3c] sm:$0xff]
      %v11775 = vld [vmem:[#allocation2 + $0x44] sm:$0xff]
      %v11776 = vld [vmem:[#allocation2 + $0x4c] sm:$0xff]
      %v11777 = vld [vmem:[#allocation2 + $0x54] sm:$0xff]
      %v11778 = vld [vmem:[#allocation2 + $0x5c] sm:$0xff]
      %v11779 = vld [vmem:[#allocation2 + $0x64] sm:$0xff]
      %v11780 = vld [vmem:[#allocation2 + $0x6c] sm:$0xff]
      %v11781 = vld [vmem:[#allocation2 + $0x74] sm:$0xff]
      %v11782 = vld [vmem:[#allocation2 + $0x7c] sm:$0xff]
      %v11783 = vld [vmem:[#allocation2 + $0x84] sm:$0xff]
      %v11784 = vld [vmem:[#allocation2 + $0x8c] sm:$0xff]
      %v11785 = vld [vmem:[#allocation2 + $0x94] sm:$0xff]
      %v11786 = vld [vmem:[#allocation2 + $0x9c] sm:$0xff]
      %v11787 = vld [vmem:[#allocation2 + $0xa4] sm:$0xff]
      %v11788 = vld [vmem:[#allocation2 + $0xac] sm:$0xff]
      %v11789 = vld [vmem:[#allocation2 + $0xb4] sm:$0xff]
      %v11790 = vld [vmem:[#allocation2 + $0xbc] sm:$0xff]
      %v11791 = vld [vmem:[#allocation2 + $0xc4] sm:$0xff]
      %v11792 = vld [vmem:[#allocation2 + $0xcc] sm:$0xff]
      %v11793 = vld [vmem:[#allocation2 + $0xd4] sm:$0xff]
      %v11794 = vld [vmem:[#allocation2 + $0xdc] sm:$0xff]
      %v11795 = vld [vmem:[#allocation2 + $0xe4] sm:$0xff]
      %v11796 = vld [vmem:[#allocation2 + $0xec] sm:$0xff]
      %v11797 = vld [vmem:[#allocation2 + $0xf4] sm:$0xff]
      %v11798 = vld [vmem:[#allocation2 + $0xfc] sm:$0xff]
      %v11799 = vld [vmem:[#allocation2 + $0x104] sm:$0xff]
      %v11800 = vld [vmem:[#allocation2 + $0x10c] sm:$0xff]
      %v11801 = vld [vmem:[#allocation2 + $0x114] sm:$0xff]
      %v11802 = vld [vmem:[#allocation2 + $0x11c] sm:$0xff]
      %v11803 = vld [vmem:[#allocation2 + $0x124] sm:$0xff]
      %v11804 = vld [vmem:[#allocation2 + $0x12c] sm:$0xff]
      %v11805 = vld [vmem:[#allocation2 + $0x134] sm:$0xff]
      %v11806 = vld [vmem:[#allocation2 + $0x13c] sm:$0xff]
      %v11807 = vld [vmem:[#allocation2 + $0x25] sm:$0xff]
      %v11808 = vld [vmem:[#allocation2 + $0x2d] sm:$0xff]
      %v11809 = vld [vmem:[#allocation2 + $0x35] sm:$0xff]
      %v11810 = vld [vmem:[#allocation2 + $0x3d] sm:$0xff]
      %v11811 = vld [vmem:[#allocation2 + $0x45] sm:$0xff]
      %v11812 = vld [vmem:[#allocation2 + $0x4d] sm:$0xff]
      %v11813 = vld [vmem:[#allocation2 + $0x55] sm:$0xff]
      %v11814 = vld [vmem:[#allocation2 + $0x5d] sm:$0xff]
      %v11815 = vld [vmem:[#allocation2 + $0x65] sm:$0xff]
      %v11816 = vld [vmem:[#allocation2 + $0x6d] sm:$0xff]
      %v11817 = vld [vmem:[#allocation2 + $0x75] sm:$0xff]
      %v11818 = vld [vmem:[#allocation2 + $0x7d] sm:$0xff]
      %v11819 = vld [vmem:[#allocation2 + $0x85] sm:$0xff]
      %v11820 = vld [vmem:[#allocation2 + $0x8d] sm:$0xff]
      %v11821 = vld [vmem:[#allocation2 + $0x95] sm:$0xff]
      %v11822 = vld [vmem:[#allocation2 + $0x9d] sm:$0xff]
      %v11823 = vld [vmem:[#allocation2 + $0xa5] sm:$0xff]
      %v11824 = vld [vmem:[#allocation2 + $0xad] sm:$0xff]
      %v11825 = vld [vmem:[#allocation2 + $0xb5] sm:$0xff]
      %v11826 = vld [vmem:[#allocation2 + $0xbd] sm:$0xff]
      %v11827 = vld [vmem:[#allocation2 + $0xc5] sm:$0xff]
      %v11828 = vld [vmem:[#allocation2 + $0xcd] sm:$0xff]
      %v11829 = vld [vmem:[#allocation2 + $0xd5] sm:$0xff]
      %v11830 = vld [vmem:[#allocation2 + $0xdd] sm:$0xff]
      %v11831 = vld [vmem:[#allocation2 + $0xe5] sm:$0xff]
      %v11832 = vld [vmem:[#allocation2 + $0xed] sm:$0xff]
      %v11833 = vld [vmem:[#allocation2 + $0xf5] sm:$0xff]
      %v11834 = vld [vmem:[#allocation2 + $0xfd] sm:$0xff]
      %v11835 = vld [vmem:[#allocation2 + $0x105] sm:$0xff]
      %v11836 = vld [vmem:[#allocation2 + $0x10d] sm:$0xff]
      %v11837 = vld [vmem:[#allocation2 + $0x115] sm:$0xff]
      %v11838 = vld [vmem:[#allocation2 + $0x11d] sm:$0xff]
      %v11839 = vld [vmem:[#allocation2 + $0x125] sm:$0xff]
      %v11840 = vld [vmem:[#allocation2 + $0x12d] sm:$0xff]
      %v11841 = vld [vmem:[#allocation2 + $0x135] sm:$0xff]
      %v11842 = vld [vmem:[#allocation2 + $0x13d] sm:$0xff]
      %v11843 = vld [vmem:[#allocation2 + $0x26] sm:$0xff]
      %v11844 = vld [vmem:[#allocation2 + $0x2e] sm:$0xff]
      %v11845 = vld [vmem:[#allocation2 + $0x36] sm:$0xff]
      %v11846 = vld [vmem:[#allocation2 + $0x3e] sm:$0xff]
      %v11847 = vld [vmem:[#allocation2 + $0x46] sm:$0xff]
      %v11848 = vld [vmem:[#allocation2 + $0x4e] sm:$0xff]
      %v11849 = vld [vmem:[#allocation2 + $0x56] sm:$0xff]
      %v11850 = vld [vmem:[#allocation2 + $0x5e] sm:$0xff]
      %v11851 = vld [vmem:[#allocation2 + $0x66] sm:$0xff]
      %v11852 = vld [vmem:[#allocation2 + $0x6e] sm:$0xff]
      %v11853 = vld [vmem:[#allocation2 + $0x76] sm:$0xff]
      %v11854 = vld [vmem:[#allocation2 + $0x7e] sm:$0xff]
      %v11855 = vld [vmem:[#allocation2 + $0x86] sm:$0xff]
      %v11856 = vld [vmem:[#allocation2 + $0x8e] sm:$0xff]
      %v11857 = vld [vmem:[#allocation2 + $0x96] sm:$0xff]
      %v11858 = vld [vmem:[#allocation2 + $0x9e] sm:$0xff]
      %v11859 = vld [vmem:[#allocation2 + $0xa6] sm:$0xff]
      %v11860 = vld [vmem:[#allocation2 + $0xae] sm:$0xff]
      %v11861 = vld [vmem:[#allocation2 + $0xb6] sm:$0xff]
      %v11862 = vld [vmem:[#allocation2 + $0xbe] sm:$0xff]
      %v11863 = vld [vmem:[#allocation2 + $0xc6] sm:$0xff]
      %v11864 = vld [vmem:[#allocation2 + $0xce] sm:$0xff]
      %v11865 = vld [vmem:[#allocation2 + $0xd6] sm:$0xff]
      %v11866 = vld [vmem:[#allocation2 + $0xde] sm:$0xff]
      %v11867 = vld [vmem:[#allocation2 + $0xe6] sm:$0xff]
      %v11868 = vld [vmem:[#allocation2 + $0xee] sm:$0xff]
      %v11869 = vld [vmem:[#allocation2 + $0xf6] sm:$0xff]
      %v11870 = vld [vmem:[#allocation2 + $0xfe] sm:$0xff]
      %v11871 = vld [vmem:[#allocation2 + $0x106] sm:$0xff]
      %v11872 = vld [vmem:[#allocation2 + $0x10e] sm:$0xff]
      %v11873 = vld [vmem:[#allocation2 + $0x116] sm:$0xff]
      %v11874 = vld [vmem:[#allocation2 + $0x11e] sm:$0xff]
      %v11875 = vld [vmem:[#allocation2 + $0x126] sm:$0xff]
      %v11876 = vld [vmem:[#allocation2 + $0x12e] sm:$0xff]
      %v11877 = vld [vmem:[#allocation2 + $0x136] sm:$0xff]
      %v11878 = vld [vmem:[#allocation2 + $0x13e] sm:$0xff]
      %11915 = vrot.lane.b32.xlu0 %v11807, 64
      %v11916 = vpop.permute.xlu0 %11915
      %11917 = vrot.lane.b32.xlu0 %v11808, 64
      %v11918 = vpop.permute.xlu0 %11917
      %11919 = vrot.lane.b32.xlu0 %v11809, 64
      %v11920 = vpop.permute.xlu0 %11919
      %11921 = vrot.lane.b32.xlu0 %v11810, 64
      %v11922 = vpop.permute.xlu0 %11921
      %11923 = vrot.lane.b32.xlu0 %v11811, 64
      %v11924 = vpop.permute.xlu0 %11923
      %11925 = vrot.lane.b32.xlu0 %v11812, 64
      %v11926 = vpop.permute.xlu0 %11925
      %11927 = vrot.lane.b32.xlu0 %v11813, 64
      %v11928 = vpop.permute.xlu0 %11927
      %11929 = vrot.lane.b32.xlu0 %v11814, 64
      %v11930 = vpop.permute.xlu0 %11929
      %11931 = vrot.lane.b32.xlu0 %v11815, 64
      %v11932 = vpop.permute.xlu0 %11931
      %11933 = vrot.lane.b32.xlu0 %v11816, 64
      %v11934 = vpop.permute.xlu0 %11933
      %11935 = vrot.lane.b32.xlu0 %v11817, 64
      %v11936 = vpop.permute.xlu0 %11935
      %11937 = vrot.lane.b32.xlu0 %v11818, 64
      %v11938 = vpop.permute.xlu0 %11937
      %11939 = vrot.lane.b32.xlu0 %v11819, 64
      %v11940 = vpop.permute.xlu0 %11939
      %11941 = vrot.lane.b32.xlu0 %v11820, 64
      %v11942 = vpop.permute.xlu0 %11941
      %11943 = vrot.lane.b32.xlu0 %v11821, 64
      %v11944 = vpop.permute.xlu0 %11943
      %11945 = vrot.lane.b32.xlu0 %v11822, 64
      %v11946 = vpop.permute.xlu0 %11945
      %11947 = vrot.lane.b32.xlu0 %v11823, 64
      %v11948 = vpop.permute.xlu0 %11947
      %11949 = vrot.lane.b32.xlu0 %v11824, 64
      %v11950 = vpop.permute.xlu0 %11949
      %11951 = vrot.lane.b32.xlu0 %v11825, 64
      %v11952 = vpop.permute.xlu0 %11951
      %11953 = vrot.lane.b32.xlu0 %v11826, 64
      %v11954 = vpop.permute.xlu0 %11953
      %11955 = vrot.lane.b32.xlu0 %v11827, 64
      %v11956 = vpop.permute.xlu0 %11955
      %11957 = vrot.lane.b32.xlu0 %v11828, 64
      %v11958 = vpop.permute.xlu0 %11957
      %11959 = vrot.lane.b32.xlu0 %v11829, 64
      %v11960 = vpop.permute.xlu0 %11959
      %11961 = vrot.lane.b32.xlu0 %v11830, 64
      %v11962 = vpop.permute.xlu0 %11961
      %11963 = vrot.lane.b32.xlu0 %v11831, 64
      %v11964 = vpop.permute.xlu0 %11963
      %11965 = vrot.lane.b32.xlu0 %v11832, 64
      %v11966 = vpop.permute.xlu0 %11965
      %11967 = vrot.lane.b32.xlu0 %v11833, 64
      %v11968 = vpop.permute.xlu0 %11967
      %11969 = vrot.lane.b32.xlu0 %v11834, 64
      %v11970 = vpop.permute.xlu0 %11969
      %11971 = vrot.lane.b32.xlu0 %v11835, 64
      %v11972 = vpop.permute.xlu0 %11971
      %11973 = vrot.lane.b32.xlu0 %v11836, 64
      %v11974 = vpop.permute.xlu0 %11973
      %11975 = vrot.lane.b32.xlu0 %v11837, 64
      %v11976 = vpop.permute.xlu0 %11975
      %11977 = vrot.lane.b32.xlu0 %v11838, 64
      %v11978 = vpop.permute.xlu0 %11977
      %11979 = vrot.lane.b32.xlu0 %v11839, 64
      %v11980 = vpop.permute.xlu0 %11979
      %11981 = vrot.lane.b32.xlu0 %v11840, 64
      %v11982 = vpop.permute.xlu0 %11981
      %11983 = vrot.lane.b32.xlu0 %v11841, 64
      %v11984 = vpop.permute.xlu0 %11983
      %11985 = vrot.lane.b32.xlu0 %v11842, 64
      %v11986 = vpop.permute.xlu0 %11985
      %v12023 = vsel %vm1936, %v11771, %v11916
      %v12024 = vsel %vm1936, %v11772, %v11918
      %v12025 = vsel %vm1936, %v11773, %v11920
      %v12026 = vsel %vm1936, %v11774, %v11922
      %v12027 = vsel %vm1936, %v11775, %v11924
      %v12028 = vsel %vm1936, %v11776, %v11926
      %v12029 = vsel %vm1936, %v11777, %v11928
      %v12030 = vsel %vm1936, %v11778, %v11930
      %v12031 = vsel %vm1936, %v11779, %v11932
      %v12032 = vsel %vm1936, %v11780, %v11934
      %v12033 = vsel %vm1936, %v11781, %v11936
      %v12034 = vsel %vm1936, %v11782, %v11938
      %v12035 = vsel %vm1936, %v11783, %v11940
      %v12036 = vsel %vm1936, %v11784, %v11942
      %v12037 = vsel %vm1936, %v11785, %v11944
      %v12038 = vsel %vm1936, %v11786, %v11946
      %v12039 = vsel %vm1936, %v11787, %v11948
      %v12040 = vsel %vm1936, %v11788, %v11950
      %v12041 = vsel %vm1936, %v11789, %v11952
      %v12042 = vsel %vm1936, %v11790, %v11954
      %v12043 = vsel %vm1936, %v11791, %v11956
      %v12044 = vsel %vm1936, %v11792, %v11958
      %v12045 = vsel %vm1936, %v11793, %v11960
      %v12046 = vsel %vm1936, %v11794, %v11962
      %v12047 = vsel %vm1936, %v11795, %v11964
      %v12048 = vsel %vm1936, %v11796, %v11966
      %v12049 = vsel %vm1936, %v11797, %v11968
      %v12050 = vsel %vm1936, %v11798, %v11970
      %v12051 = vsel %vm1936, %v11799, %v11972
      %v12052 = vsel %vm1936, %v11800, %v11974
      %v12053 = vsel %vm1936, %v11801, %v11976
      %v12054 = vsel %vm1936, %v11802, %v11978
      %v12055 = vsel %vm1936, %v11803, %v11980
      %v12056 = vsel %vm1936, %v11804, %v11982
      %v12057 = vsel %vm1936, %v11805, %v11984
      %v12058 = vsel %vm1936, %v11806, %v11986
      %s12059 = scalar_lea.vmem %s3, 384
      %v12060 = vld [vmem:[%s12059] sm:$0xff]
      %v12061 = vld [vmem:[%s12059 + $0x8] sm:$0xff]
      %v12062 = vld [vmem:[%s12059 + $0x10] sm:$0xff]
      %v12063 = vld [vmem:[%s12059 + $0x18] sm:$0xff]
      %v12064 = vld [vmem:[%s12059 + $0x20] sm:$0xff]
      %v12065 = vld [vmem:[%s12059 + $0x28] sm:$0xff]
      %v12066 = vld [vmem:[%s12059 + $0x30] sm:$0xff]
      %v12067 = vld [vmem:[%s12059 + $0x38] sm:$0xff]
      %v12068 = vld [vmem:[%s12059 + $0x40] sm:$0xff]
      %v12069 = vld [vmem:[%s12059 + $0x48] sm:$0xff]
      %v12070 = vld [vmem:[%s12059 + $0x50] sm:$0xff]
      %v12071 = vld [vmem:[%s12059 + $0x58] sm:$0xff]
      %v12072 = vld [vmem:[%s12059 + $0x60] sm:$0xff]
      %v12073 = vld [vmem:[%s12059 + $0x68] sm:$0xff]
      %v12074 = vld [vmem:[%s12059 + $0x70] sm:$0xff]
      %v12075 = vld [vmem:[%s12059 + $0x78] sm:$0xff]
      %v12076 = vld [vmem:[%s12059 + $0x80] sm:$0xff]
      %v12077 = vld [vmem:[%s12059 + $0x88] sm:$0xff]
      %v12078 = vld [vmem:[%s12059 + $0x90] sm:$0xff]
      %v12079 = vld [vmem:[%s12059 + $0x98] sm:$0xff]
      %v12080 = vld [vmem:[%s12059 + $0xa0] sm:$0xff]
      %v12081 = vld [vmem:[%s12059 + $0xa8] sm:$0xff]
      %v12082 = vld [vmem:[%s12059 + $0xb0] sm:$0xff]
      %v12083 = vld [vmem:[%s12059 + $0xb8] sm:$0xff]
      %v12085 = vsel %vm1936, %v11843, 0
      %v12088 = vsel %vm1936, %v11844, 0
      %v12091 = vsel %vm1936, %v11845, 0
      %v12094 = vsel %vm1936, %v11846, 0
      %v12097 = vsel %vm1936, %v11847, 0
      %v12100 = vsel %vm1936, %v11848, 0
      %v12103 = vsel %vm1936, %v11849, 0
      %v12106 = vsel %vm1936, %v11850, 0
      %v12109 = vsel %vm1936, %v11851, 0
      %v12112 = vsel %vm1936, %v11852, 0
      %v12115 = vsel %vm1936, %v11853, 0
      %v12118 = vsel %vm1936, %v11854, 0
      %v12121 = vsel %vm1936, %v11855, 0
      %v12124 = vsel %vm1936, %v11856, 0
      %v12127 = vsel %vm1936, %v11857, 0
      %v12130 = vsel %vm1936, %v11858, 0
      %v12133 = vsel %vm1936, %v11859, 0
      %v12136 = vsel %vm1936, %v11860, 0
      %v12139 = vsel %vm1936, %v11861, 0
      %v12142 = vsel %vm1936, %v11862, 0
      %v12145 = vsel %vm1936, %v11863, 0
      %v12148 = vsel %vm1936, %v11864, 0
      %v12151 = vsel %vm1936, %v11865, 0
      %v12154 = vsel %vm1936, %v11866, 0
      %v12157 = vsel %vm1936, %v11867, 0
      %v12160 = vsel %vm1936, %v11868, 0
      %v12163 = vsel %vm1936, %v11869, 0
      %v12166 = vsel %vm1936, %v11870, 0
      %v12169 = vsel %vm1936, %v11871, 0
      %v12172 = vsel %vm1936, %v11872, 0
      %v12175 = vsel %vm1936, %v11873, 0
      %v12178 = vsel %vm1936, %v11874, 0
      %v12181 = vsel %vm1936, %v11875, 0
      %v12184 = vsel %vm1936, %v11876, 0
      %v12187 = vsel %vm1936, %v11877, 0
      %v12190 = vsel %vm1936, %v11878, 0
      %12192 = vmatpush.msra.mxu0 %v12075
      %12193 = vmatpush.msra.mxu0 %v12074
      %12194 = vmatpush.msra.mxu0 %v12073
      %12195 = vmatpush.msra.mxu0 %v12072
      %12196 = vmatpush.msra.mxu0 %v12071
      %12197 = vmatpush.msra.mxu0 %v12070
      %12198 = vmatpush.msra.mxu0 %v12069
      %12199 = vmatpush.msra.mxu0 %v12068
      %12200 = vmatpush.msra.mxu0 %v12067
      %12201 = vmatpush.msra.mxu0 %v12066
      %12202 = vmatpush.msra.mxu0 %v12065
      %12203 = vmatpush.msra.mxu0 %v12064
      %12204 = vmatpush.msra.mxu0 %v12063
      %12205 = vmatpush.msra.mxu0 %v12062
      %12206 = vmatpush.msra.mxu0 %v12061
      %12207 = vmatpush.msra.mxu0 %v12060
      %12208 = vmatmul.f32.gmra.mxu0 %v12023
      %v12209 = vpop.f32.mrf.mxu0
      %v12210 = vadd.f32 0.0, %v12209
      %12211 = vmatmul.f32.gmra.mxu0 %v12024
      %v12212 = vpop.f32.mrf.mxu0
      %v12213 = vadd.f32 0.0, %v12212
      %12214 = vmatmul.f32.gmra.mxu0 %v12025
      %v12215 = vpop.f32.mrf.mxu0
      %v12216 = vadd.f32 0.0, %v12215
      %12217 = vmatmul.f32.gmra.mxu0 %v12026
      %v12218 = vpop.f32.mrf.mxu0
      %v12219 = vadd.f32 0.0, %v12218
      %12220 = vmatmul.f32.gmra.mxu0 %v12027
      %v12221 = vpop.f32.mrf.mxu0
      %v12222 = vadd.f32 0.0, %v12221
      %12223 = vmatmul.f32.gmra.mxu0 %v12028
      %v12224 = vpop.f32.mrf.mxu0
      %v12225 = vadd.f32 0.0, %v12224
      %12226 = vmatmul.f32.gmra.mxu0 %v12029
      %v12227 = vpop.f32.mrf.mxu0
      %v12228 = vadd.f32 0.0, %v12227
      %12229 = vmatmul.f32.gmra.mxu0 %v12030
      %v12230 = vpop.f32.mrf.mxu0
      %v12231 = vadd.f32 0.0, %v12230
      %12232 = vmatmul.f32.gmra.mxu0 %v12031
      %v12233 = vpop.f32.mrf.mxu0
      %v12234 = vadd.f32 0.0, %v12233
      %12235 = vmatmul.f32.gmra.mxu0 %v12032
      %v12236 = vpop.f32.mrf.mxu0
      %v12237 = vadd.f32 0.0, %v12236
      %12238 = vmatmul.f32.gmra.mxu0 %v12033
      %v12239 = vpop.f32.mrf.mxu0
      %v12240 = vadd.f32 0.0, %v12239
      %12241 = vmatmul.f32.gmra.mxu0 %v12034
      %v12242 = vpop.f32.mrf.mxu0
      %v12243 = vadd.f32 0.0, %v12242
      %12244 = vmatmul.f32.gmra.mxu0 %v12035
      %v12245 = vpop.f32.mrf.mxu0
      %v12246 = vadd.f32 0.0, %v12245
      %12247 = vmatmul.f32.gmra.mxu0 %v12036
      %v12248 = vpop.f32.mrf.mxu0
      %v12249 = vadd.f32 0.0, %v12248
      %12250 = vmatmul.f32.gmra.mxu0 %v12037
      %v12251 = vpop.f32.mrf.mxu0
      %v12252 = vadd.f32 0.0, %v12251
      %12253 = vmatmul.f32.gmra.mxu0 %v12038
      %v12254 = vpop.f32.mrf.mxu0
      %v12255 = vadd.f32 0.0, %v12254
      %12256 = vmatmul.f32.gmra.mxu0 %v12039
      %v12257 = vpop.f32.mrf.mxu0
      %v12258 = vadd.f32 0.0, %v12257
      %12259 = vmatmul.f32.gmra.mxu0 %v12040
      %v12260 = vpop.f32.mrf.mxu0
      %v12261 = vadd.f32 0.0, %v12260
      %12262 = vmatmul.f32.gmra.mxu0 %v12041
      %v12263 = vpop.f32.mrf.mxu0
      %v12264 = vadd.f32 0.0, %v12263
      %12265 = vmatmul.f32.gmra.mxu0 %v12042
      %v12266 = vpop.f32.mrf.mxu0
      %v12267 = vadd.f32 0.0, %v12266
      %12268 = vmatmul.f32.gmra.mxu0 %v12043
      %v12269 = vpop.f32.mrf.mxu0
      %v12270 = vadd.f32 0.0, %v12269
      %12271 = vmatmul.f32.gmra.mxu0 %v12044
      %v12272 = vpop.f32.mrf.mxu0
      %v12273 = vadd.f32 0.0, %v12272
      %12274 = vmatmul.f32.gmra.mxu0 %v12045
      %v12275 = vpop.f32.mrf.mxu0
      %v12276 = vadd.f32 0.0, %v12275
      %12277 = vmatmul.f32.gmra.mxu0 %v12046
      %v12278 = vpop.f32.mrf.mxu0
      %v12279 = vadd.f32 0.0, %v12278
      %12280 = vmatmul.f32.gmra.mxu0 %v12047
      %v12281 = vpop.f32.mrf.mxu0
      %v12282 = vadd.f32 0.0, %v12281
      %12283 = vmatmul.f32.gmra.mxu0 %v12048
      %v12284 = vpop.f32.mrf.mxu0
      %v12285 = vadd.f32 0.0, %v12284
      %12286 = vmatmul.f32.gmra.mxu0 %v12049
      %v12287 = vpop.f32.mrf.mxu0
      %v12288 = vadd.f32 0.0, %v12287
      %12289 = vmatmul.f32.gmra.mxu0 %v12050
      %v12290 = vpop.f32.mrf.mxu0
      %v12291 = vadd.f32 0.0, %v12290
      %12292 = vmatmul.f32.gmra.mxu0 %v12051
      %v12293 = vpop.f32.mrf.mxu0
      %v12294 = vadd.f32 0.0, %v12293
      %12295 = vmatmul.f32.gmra.mxu0 %v12052
      %v12296 = vpop.f32.mrf.mxu0
      %v12297 = vadd.f32 0.0, %v12296
      %12298 = vmatmul.f32.gmra.mxu0 %v12053
      %v12299 = vpop.f32.mrf.mxu0
      %v12300 = vadd.f32 0.0, %v12299
      %12301 = vmatmul.f32.gmra.mxu0 %v12054
      %v12302 = vpop.f32.mrf.mxu0
      %v12303 = vadd.f32 0.0, %v12302
      %12304 = vmatmul.f32.gmra.mxu0 %v12055
      %v12305 = vpop.f32.mrf.mxu0
      %v12306 = vadd.f32 0.0, %v12305
      %12307 = vmatmul.f32.gmra.mxu0 %v12056
      %v12308 = vpop.f32.mrf.mxu0
      %v12309 = vadd.f32 0.0, %v12308
      %12310 = vmatmul.f32.gmra.mxu0 %v12057
      %v12311 = vpop.f32.mrf.mxu0
      %v12312 = vadd.f32 0.0, %v12311
      %12313 = vmatmul.f32.gmra.mxu0 %v12058
      %v12314 = vpop.f32.mrf.mxu0
      %v12315 = vadd.f32 0.0, %v12314
      %12316 = vdwg.mxu0
      %12317 = vmatpush.msra.mxu0 0.0
      %12318 = vmatpush.msra.mxu0 0.0
      %12319 = vmatpush.msra.mxu0 0.0
      %12320 = vmatpush.msra.mxu0 0.0
      %12321 = vmatpush.msra.mxu0 0.0
      %12322 = vmatpush.msra.mxu0 0.0
      %12323 = vmatpush.msra.mxu0 0.0
      %12324 = vmatpush.msra.mxu0 0.0
      %12325 = vmatpush.msra.mxu0 %v12083
      %12326 = vmatpush.msra.mxu0 %v12082
      %12327 = vmatpush.msra.mxu0 %v12081
      %12328 = vmatpush.msra.mxu0 %v12080
      %12329 = vmatpush.msra.mxu0 %v12079
      %12330 = vmatpush.msra.mxu0 %v12078
      %12331 = vmatpush.msra.mxu0 %v12077
      %12332 = vmatpush.msra.mxu0 %v12076
      %12333 = vmatmul.f32.gmra.mxu0 %v12085
      %v12334 = vpop.f32.mrf.mxu0
      %v12335 = vadd.f32 %v12210, %v12334
      %12336 = vmatmul.f32.gmra.mxu0 %v12088
      %v12337 = vpop.f32.mrf.mxu0
      %v12338 = vadd.f32 %v12213, %v12337
      %12339 = vmatmul.f32.gmra.mxu0 %v12091
      %v12340 = vpop.f32.mrf.mxu0
      %v12341 = vadd.f32 %v12216, %v12340
      %12342 = vmatmul.f32.gmra.mxu0 %v12094
      %v12343 = vpop.f32.mrf.mxu0
      %v12344 = vadd.f32 %v12219, %v12343
      %12345 = vmatmul.f32.gmra.mxu0 %v12097
      %v12346 = vpop.f32.mrf.mxu0
      %v12347 = vadd.f32 %v12222, %v12346
      %12348 = vmatmul.f32.gmra.mxu0 %v12100
      %v12349 = vpop.f32.mrf.mxu0
      %v12350 = vadd.f32 %v12225, %v12349
      %12351 = vmatmul.f32.gmra.mxu0 %v12103
      %v12352 = vpop.f32.mrf.mxu0
      %v12353 = vadd.f32 %v12228, %v12352
      %12354 = vmatmul.f32.gmra.mxu0 %v12106
      %v12355 = vpop.f32.mrf.mxu0
      %v12356 = vadd.f32 %v12231, %v12355
      %12357 = vmatmul.f32.gmra.mxu0 %v12109
      %v12358 = vpop.f32.mrf.mxu0
      %v12359 = vadd.f32 %v12234, %v12358
      %12360 = vmatmul.f32.gmra.mxu0 %v12112
      %v12361 = vpop.f32.mrf.mxu0
      %v12362 = vadd.f32 %v12237, %v12361
      %12363 = vmatmul.f32.gmra.mxu0 %v12115
      %v12364 = vpop.f32.mrf.mxu0
      %v12365 = vadd.f32 %v12240, %v12364
      %12366 = vmatmul.f32.gmra.mxu0 %v12118
      %v12367 = vpop.f32.mrf.mxu0
      %v12368 = vadd.f32 %v12243, %v12367
      %12369 = vmatmul.f32.gmra.mxu0 %v12121
      %v12370 = vpop.f32.mrf.mxu0
      %v12371 = vadd.f32 %v12246, %v12370
      %12372 = vmatmul.f32.gmra.mxu0 %v12124
      %v12373 = vpop.f32.mrf.mxu0
      %v12374 = vadd.f32 %v12249, %v12373
      %12375 = vmatmul.f32.gmra.mxu0 %v12127
      %v12376 = vpop.f32.mrf.mxu0
      %v12377 = vadd.f32 %v12252, %v12376
      %12378 = vmatmul.f32.gmra.mxu0 %v12130
      %v12379 = vpop.f32.mrf.mxu0
      %v12380 = vadd.f32 %v12255, %v12379
      %12381 = vmatmul.f32.gmra.mxu0 %v12133
      %v12382 = vpop.f32.mrf.mxu0
      %v12383 = vadd.f32 %v12258, %v12382
      %12384 = vmatmul.f32.gmra.mxu0 %v12136
      %v12385 = vpop.f32.mrf.mxu0
      %v12386 = vadd.f32 %v12261, %v12385
      %12387 = vmatmul.f32.gmra.mxu0 %v12139
      %v12388 = vpop.f32.mrf.mxu0
      %v12389 = vadd.f32 %v12264, %v12388
      %12390 = vmatmul.f32.gmra.mxu0 %v12142
      %v12391 = vpop.f32.mrf.mxu0
      %v12392 = vadd.f32 %v12267, %v12391
      %12393 = vmatmul.f32.gmra.mxu0 %v12145
      %v12394 = vpop.f32.mrf.mxu0
      %v12395 = vadd.f32 %v12270, %v12394
      %12396 = vmatmul.f32.gmra.mxu0 %v12148
      %v12397 = vpop.f32.mrf.mxu0
      %v12398 = vadd.f32 %v12273, %v12397
      %12399 = vmatmul.f32.gmra.mxu0 %v12151
      %v12400 = vpop.f32.mrf.mxu0
      %v12401 = vadd.f32 %v12276, %v12400
      %12402 = vmatmul.f32.gmra.mxu0 %v12154
      %v12403 = vpop.f32.mrf.mxu0
      %v12404 = vadd.f32 %v12279, %v12403
      %12405 = vmatmul.f32.gmra.mxu0 %v12157
      %v12406 = vpop.f32.mrf.mxu0
      %v12407 = vadd.f32 %v12282, %v12406
      %12408 = vmatmul.f32.gmra.mxu0 %v12160
      %v12409 = vpop.f32.mrf.mxu0
      %v12410 = vadd.f32 %v12285, %v12409
      %12411 = vmatmul.f32.gmra.mxu0 %v12163
      %v12412 = vpop.f32.mrf.mxu0
      %v12413 = vadd.f32 %v12288, %v12412
      %12414 = vmatmul.f32.gmra.mxu0 %v12166
      %v12415 = vpop.f32.mrf.mxu0
      %v12416 = vadd.f32 %v12291, %v12415
      %12417 = vmatmul.f32.gmra.mxu0 %v12169
      %v12418 = vpop.f32.mrf.mxu0
      %v12419 = vadd.f32 %v12294, %v12418
      %12420 = vmatmul.f32.gmra.mxu0 %v12172
      %v12421 = vpop.f32.mrf.mxu0
      %v12422 = vadd.f32 %v12297, %v12421
      %12423 = vmatmul.f32.gmra.mxu0 %v12175
      %v12424 = vpop.f32.mrf.mxu0
      %v12425 = vadd.f32 %v12300, %v12424
      %12426 = vmatmul.f32.gmra.mxu0 %v12178
      %v12427 = vpop.f32.mrf.mxu0
      %v12428 = vadd.f32 %v12303, %v12427
      %12429 = vmatmul.f32.gmra.mxu0 %v12181
      %v12430 = vpop.f32.mrf.mxu0
      %v12431 = vadd.f32 %v12306, %v12430
      %12432 = vmatmul.f32.gmra.mxu0 %v12184
      %v12433 = vpop.f32.mrf.mxu0
      %v12434 = vadd.f32 %v12309, %v12433
      %12435 = vmatmul.f32.gmra.mxu0 %v12187
      %v12436 = vpop.f32.mrf.mxu0
      %v12437 = vadd.f32 %v12312, %v12436
      %12438 = vmatmul.f32.gmra.mxu0 %v12190
      %v12439 = vpop.f32.mrf.mxu0
      %v12440 = vadd.f32 %v12315, %v12439
      %12441 = vdwg.mxu0
      %v12442 = vadd.f32 %v11664, %v12335
      %v12443 = vadd.f32 %v11667, %v12338
      %v12444 = vadd.f32 %v11670, %v12341
      %v12445 = vadd.f32 %v11673, %v12344
      %v12446 = vadd.f32 %v11676, %v12347
      %v12447 = vadd.f32 %v11679, %v12350
      %v12448 = vadd.f32 %v11682, %v12353
      %v12449 = vadd.f32 %v11685, %v12356
      %v12450 = vadd.f32 %v11688, %v12359
      %v12451 = vadd.f32 %v11691, %v12362
      %v12452 = vadd.f32 %v11694, %v12365
      %v12453 = vadd.f32 %v11697, %v12368
      %v12454 = vadd.f32 %v11700, %v12371
      %v12455 = vadd.f32 %v11703, %v12374
      %v12456 = vadd.f32 %v11706, %v12377
      %v12457 = vadd.f32 %v11709, %v12380
      %v12458 = vadd.f32 %v11712, %v12383
      %v12459 = vadd.f32 %v11715, %v12386
      %v12460 = vadd.f32 %v11718, %v12389
      %v12461 = vadd.f32 %v11721, %v12392
      %v12462 = vadd.f32 %v11724, %v12395
      %v12463 = vadd.f32 %v11727, %v12398
      %v12464 = vadd.f32 %v11730, %v12401
      %v12465 = vadd.f32 %v11733, %v12404
      %v12466 = vadd.f32 %v11736, %v12407
      %v12467 = vadd.f32 %v11739, %v12410
      %v12468 = vadd.f32 %v11742, %v12413
      %v12469 = vadd.f32 %v11745, %v12416
      %v12470 = vadd.f32 %v11748, %v12419
      %v12471 = vadd.f32 %v11751, %v12422
      %v12472 = vadd.f32 %v11754, %v12425
      %v12473 = vadd.f32 %v11757, %v12428
      %v12474 = vadd.f32 %v11760, %v12431
      %v12475 = vadd.f32 %v11763, %v12434
      %v12476 = vadd.f32 %v11766, %v12437
      %v12477 = vadd.f32 %v11769, %v12440
      %v12478 = vld [vmem:[%s192] sm:$0xff]
      %v12479 = vld [vmem:[%s192 + $0x8] sm:$0xff]
      %v12480 = vld [vmem:[%s192 + $0x10] sm:$0xff]
      %v12481 = vld [vmem:[%s192 + $0x18] sm:$0xff]
      %v12482 = vld [vmem:[%s192 + $0x20] sm:$0xff]
      %v12483 = vld [vmem:[%s192 + $0x28] sm:$0xff]
      %v12484 = vld [vmem:[%s192 + $0x30] sm:$0xff]
      %v12485 = vld [vmem:[%s192 + $0x38] sm:$0xff]
      %v12486 = vld [vmem:[%s192 + $0x40] sm:$0xff]
      %v12487 = vld [vmem:[%s192 + $0x48] sm:$0xff]
      %v12488 = vld [vmem:[%s192 + $0x50] sm:$0xff]
      %v12489 = vld [vmem:[%s192 + $0x58] sm:$0xff]
      %v12490 = vld [vmem:[%s192 + $0x60] sm:$0xff]
      %v12491 = vld [vmem:[%s192 + $0x68] sm:$0xff]
      %v12492 = vld [vmem:[%s192 + $0x70] sm:$0xff]
      %v12493 = vld [vmem:[%s192 + $0x78] sm:$0xff]
      %v12494 = vld [vmem:[%s192 + $0x80] sm:$0xff]
      %v12495 = vld [vmem:[%s192 + $0x88] sm:$0xff]
      %v12496 = vld [vmem:[%s192 + $0x90] sm:$0xff]
      %v12497 = vld [vmem:[%s192 + $0x98] sm:$0xff]
      %v12498 = vld [vmem:[%s192 + $0xa0] sm:$0xff]
      %v12499 = vld [vmem:[%s192 + $0xa8] sm:$0xff]
      %v12500 = vld [vmem:[%s192 + $0xb0] sm:$0xff]
      %v12501 = vld [vmem:[%s192 + $0xb8] sm:$0xff]
      %v12502 = vld [vmem:[%s192 + $0xc0] sm:$0xff]
      %v12503 = vld [vmem:[%s192 + $0xc8] sm:$0xff]
      %v12504 = vld [vmem:[%s192 + $0xd0] sm:$0xff]
      %v12505 = vld [vmem:[%s192 + $0xd8] sm:$0xff]
      %v12506 = vld [vmem:[%s192 + $0xe0] sm:$0xff]
      %v12507 = vld [vmem:[%s192 + $0xe8] sm:$0xff]
      %v12508 = vld [vmem:[%s192 + $0xf0] sm:$0xff]
      %v12509 = vld [vmem:[%s192 + $0xf8] sm:$0xff]
      %v12510 = vld [vmem:[%s192 + $0x100] sm:$0xff]
      %v12511 = vld [vmem:[%s192 + $0x108] sm:$0xff]
      %v12512 = vld [vmem:[%s192 + $0x110] sm:$0xff]
      %v12513 = vld [vmem:[%s192 + $0x118] sm:$0xff]
      %v12514 = vadd.f32 %v12442, %v12478
      %v12515 = vadd.f32 %v12443, %v12479
      %v12516 = vadd.f32 %v12444, %v12480
      %v12517 = vadd.f32 %v12445, %v12481
      %v12518 = vadd.f32 %v12446, %v12482
      %v12519 = vadd.f32 %v12447, %v12483
      %v12520 = vadd.f32 %v12448, %v12484
      %v12521 = vadd.f32 %v12449, %v12485
      %v12522 = vadd.f32 %v12450, %v12486
      %v12523 = vadd.f32 %v12451, %v12487
      %v12524 = vadd.f32 %v12452, %v12488
      %v12525 = vadd.f32 %v12453, %v12489
      %v12526 = vadd.f32 %v12454, %v12490
      %v12527 = vadd.f32 %v12455, %v12491
      %v12528 = vadd.f32 %v12456, %v12492
      %v12529 = vadd.f32 %v12457, %v12493
      %v12530 = vadd.f32 %v12458, %v12494
      %v12531 = vadd.f32 %v12459, %v12495
      %v12532 = vadd.f32 %v12460, %v12496
      %v12533 = vadd.f32 %v12461, %v12497
      %v12534 = vadd.f32 %v12462, %v12498
      %v12535 = vadd.f32 %v12463, %v12499
      %v12536 = vadd.f32 %v12464, %v12500
      %v12537 = vadd.f32 %v12465, %v12501
      %v12538 = vadd.f32 %v12466, %v12502
      %v12539 = vadd.f32 %v12467, %v12503
      %v12540 = vadd.f32 %v12468, %v12504
      %v12541 = vadd.f32 %v12469, %v12505
      %v12542 = vadd.f32 %v12470, %v12506
      %v12543 = vadd.f32 %v12471, %v12507
      %v12544 = vadd.f32 %v12472, %v12508
      %v12545 = vadd.f32 %v12473, %v12509
      %v12546 = vadd.f32 %v12474, %v12510
      %v12547 = vadd.f32 %v12475, %v12511
      %v12548 = vadd.f32 %v12476, %v12512
      %v12549 = vadd.f32 %v12477, %v12513
      %vm12550 = vcmask 23552
      %12551 = vst.msk [vmem:[%s197] sm:$0xff] %vm12550, %v12514
      %12552 = vst.msk [vmem:[%s197 + $0x8] sm:$0xff] %vm12550, %v12515
      %12553 = vst.msk [vmem:[%s197 + $0x10] sm:$0xff] %vm12550, %v12516
      %12554 = vst.msk [vmem:[%s197 + $0x18] sm:$0xff] %vm12550, %v12517
      %12555 = vst.msk [vmem:[%s197 + $0x20] sm:$0xff] %vm12550, %v12518
      %12556 = vst.msk [vmem:[%s197 + $0x28] sm:$0xff] %vm12550, %v12519
      %12557 = vst.msk [vmem:[%s197 + $0x30] sm:$0xff] %vm12550, %v12520
      %12558 = vst.msk [vmem:[%s197 + $0x38] sm:$0xff] %vm12550, %v12521
      %12559 = vst.msk [vmem:[%s197 + $0x40] sm:$0xff] %vm12550, %v12522
      %12560 = vst.msk [vmem:[%s197 + $0x48] sm:$0xff] %vm12550, %v12523
      %12561 = vst.msk [vmem:[%s197 + $0x50] sm:$0xff] %vm12550, %v12524
      %12562 = vst.msk [vmem:[%s197 + $0x58] sm:$0xff] %vm12550, %v12525
      %12563 = vst.msk [vmem:[%s197 + $0x60] sm:$0xff] %vm12550, %v12526
      %12564 = vst.msk [vmem:[%s197 + $0x68] sm:$0xff] %vm12550, %v12527
      %12565 = vst.msk [vmem:[%s197 + $0x70] sm:$0xff] %vm12550, %v12528
      %12566 = vst.msk [vmem:[%s197 + $0x78] sm:$0xff] %vm12550, %v12529
      %12567 = vst.msk [vmem:[%s197 + $0x80] sm:$0xff] %vm12550, %v12530
      %12568 = vst.msk [vmem:[%s197 + $0x88] sm:$0xff] %vm12550, %v12531
      %12569 = vst.msk [vmem:[%s197 + $0x90] sm:$0xff] %vm12550, %v12532
      %12570 = vst.msk [vmem:[%s197 + $0x98] sm:$0xff] %vm12550, %v12533
      %12571 = vst.msk [vmem:[%s197 + $0xa0] sm:$0xff] %vm12550, %v12534
      %12572 = vst.msk [vmem:[%s197 + $0xa8] sm:$0xff] %vm12550, %v12535
      %12573 = vst.msk [vmem:[%s197 + $0xb0] sm:$0xff] %vm12550, %v12536
      %12574 = vst.msk [vmem:[%s197 + $0xb8] sm:$0xff] %vm12550, %v12537
      %12575 = vst.msk [vmem:[%s197 + $0xc0] sm:$0xff] %vm12550, %v12538
      %12576 = vst.msk [vmem:[%s197 + $0xc8] sm:$0xff] %vm12550, %v12539
      %12577 = vst.msk [vmem:[%s197 + $0xd0] sm:$0xff] %vm12550, %v12540
      %12578 = vst.msk [vmem:[%s197 + $0xd8] sm:$0xff] %vm12550, %v12541
      %12579 = vst.msk [vmem:[%s197 + $0xe0] sm:$0xff] %vm12550, %v12542
      %12580 = vst.msk [vmem:[%s197 + $0xe8] sm:$0xff] %vm12550, %v12543
      %12581 = vst.msk [vmem:[%s197 + $0xf0] sm:$0xff] %vm12550, %v12544
      %12582 = vst.msk [vmem:[%s197 + $0xf8] sm:$0xff] %vm12550, %v12545
      %12583 = vst.msk [vmem:[%s197 + $0x100] sm:$0xff] %vm12550, %v12546
      %12584 = vst.msk [vmem:[%s197 + $0x108] sm:$0xff] %vm12550, %v12547
      %12585 = vst.msk [vmem:[%s197 + $0x110] sm:$0xff] %vm12550, %v12548
      %12586 = vst.msk [vmem:[%s197 + $0x118] sm:$0xff] %vm12550, %v12549
      %p12587 = scmp.lt.s32.totalorder %s15, 1
      %s12588 = scalar_select %p12587, %s15, 1
      %s12589 = smul.addr %s12588, 36
      %s12590 = smul.addr %s12589, 8
      %s12591 = scalar_lea.vmem %s4, %s12590
      // Predicated region
      $region41: #{vdsr_forward.1} parent=35 // pred_check
        %p12592 = pneg %p122
      $region42: #{vdsr_forward.1} parent=35 // pred_check_branch
        %12594 = sbr.rel (%p12592) target = $region44
      $region43: #{vdsr_forward.1} parent=35 // pred_region
        _
      $region44: #{vdsr_forward.1} parent=35 // pred_fallthru
        _
    $region36: #{vdsr_forward.1} parent=5 // pred_fallthru
      _
    %p12595 = scmp.le.s32.totalorder 2, %s10
    // Predicated region
    $region45: #{vdsr_forward.1} parent=5 // pred_check
      %p12596 = pneg %p12595
    $region46: #{vdsr_forward.1} parent=5 // pred_check_branch
      %12598 = sbr.rel (%p12596) target = $region48
    $region47: #{vdsr_forward.1} parent=5 // pred_region
      %s12599 = ssub.s32 %s10, 2
      // Predicated region
      $region49: #{vdsr_forward.1} parent=47 // pred_check
        %p12600 = pneg %p128
      $region50: #{vdsr_forward.1} parent=47 // pred_check_branch
        %12602 = sbr.rel (%p12600) target = $region52
      $region51: #{vdsr_forward.1} parent=47 // pred_region
        %p12603 = scmp.lt.s32.totalorder %s16, 1
        %s12604 = scalar_select %p12603, %s16, 1
        %s12605 = smul.addr %s12604, 36
        %s12606 = smul.addr %s12605, 8
        %s12607 = scalar_lea.vmem %s4, %s12606
      $region52: #{vdsr_forward.1} parent=47 // pred_fallthru
        _
    $region48: #{vdsr_forward.1} parent=5 // pred_fallthru
      _
  $region6: #{vdsr_forward.1} parent=0 // loop_footer
    %s14 = sadd.s32 1, %s10
  $region7: #{vdsr_forward.1} parent=0 // loop_footer_branch
    %9 = sbr.rel target = $region3
  $region8: #{vdsr_forward.1} parent=0 // loop_exit
    _

</llo_original>
